<compile_context>
chip_gen: v6e
topology: v6e:2x2x1
jax: 0.10.0
libtpu: 0.0.40
codegen_flags: <defaults>
</compile_context>

<pallas_src>
import functools
import math

import jax
import jax.numpy as jnp
import numpy as np
from jax.experimental import pallas as pl
from jax.experimental.pallas import tpu as pltpu

_PLANE_AXES = ((0, 1), (0, 2), (1, 2))  # (x, y) point coords per plane, as in the torch module


def _triplane_kernel(points_ref, coords_ref, planes_ref, out_ref, *,
                     resolution, tn, reduce, c_pad):
    R = resolution
    RR = R * R

    # Fused affine: ix = ((p / 1.2) + 1) * 0.5 * (R - 1) = p * scale + offset, on the whole
    # (TN, 3) tile at once.
    scale = 0.5 * (R - 1) / 1.2
    offset = 0.5 * (R - 1)
    idx = points_ref[...].astype(jnp.float32) * scale + offset  # (TN, 3)

    # Hoisted lane-coordinate tables (x-of-lane, y-of-lane): broadcast once per grid step,
    # shared by all three planes.
    lx = jnp.broadcast_to(coords_ref[0:1, :], (tn, RR))  # (TN, RR) f32
    ly = jnp.broadcast_to(coords_ref[1:2, :], (tn, RR))  # (TN, RR) f32

    def plane_weights(pi):
        """Separable bilinear 'hat' weight mask, (TN, R*R), bf16 at the MXU boundary."""
        ax, ay = _PLANE_AXES[pi]
        ix = idx[:, ax:ax + 1]  # (TN, 1)
        iy = idx[:, ay:ay + 1]  # (TN, 1)
        # weight of grid point k for sample s is max(0, 1 - |k - s|); out-of-range corners
        # (k outside [0, R-1]) simply never appear on a lane -> zeros padding for free.
        wx = jnp.maximum(1.0 - jnp.abs(lx - ix), 0.0)
        wy = jnp.maximum(1.0 - jnp.abs(ly - iy), 0.0)
        return (wx * wy).astype(jnp.bfloat16)

    def plane_dot(pi):
        w = plane_weights(pi)
        tbl = planes_ref[pi * RR:(pi + 1) * RR, :]  # static ref slice -> zero-cost view
        return jnp.dot(w, tbl, preferred_element_type=jnp.float32)  # (TN, Cpad) f32

    if reduce == "sum":
        out_ref[...] = plane_dot(0) + plane_dot(1) + plane_dot(2)
    elif reduce == "product":
        out_ref[...] = plane_dot(0) * plane_dot(1) * plane_dot(2)
    elif reduce == "concat":
        # Write each plane's slab directly at a 128-lane-aligned column offset.
        for pi in range(3):
            out_ref[:, pi * c_pad:(pi + 1) * c_pad] = plane_dot(pi)
    else:
        raise ValueError(f"Unknown reduce method {reduce}")


def triplane_encoding_forward(points, planes, *, reduce="sum", mask_k_levels=0, tn=None):
    """Pallas TriplaneEncoding forward.

    points: (..., 3) float32
    planes: (3, C, R, R) float32 (same layout as the torch nn.Parameter)
    """
    assert points.shape[-1] == 3
    if reduce not in ("sum", "product", "concat"):
        raise ValueError(f"Unknown reduce method {reduce}")
    orig_shape = points.shape
    pts = points.reshape(-1, 3).astype(jnp.float32)
    n = pts.shape[0]

    C = planes.shape[1]
    R = planes.shape[-1]
    # mask_k_levels preprocessing (parameter glue, plain JAX — mirrors the torch view+mean).
    if mask_k_levels > 0:
        factor = 2 ** mask_k_levels
        planes = planes.reshape(3, C, factor, R // factor, factor, R // factor)
        planes = planes.mean(axis=(2, 4))
        R = R // factor
    RR = R * R

    # Lane-dense channel padding: round C up to a multiple of 128 (unmasked stores).
    c_pad = ((C + 127) // 128) * 128
    # Repack planes to (3*R*R, Cpad) bf16: channels on lanes, row index plane*RR + y*R + x.
    planes_flat = jnp.transpose(planes, (0, 2, 3, 1)).reshape(3 * RR, C)
    if c_pad != C:
        planes_flat = jnp.pad(planes_flat, ((0, 0), (0, c_pad - C)))
    planes_flat = planes_flat.astype(jnp.bfloat16)

    # Precomputed lane coordinates (x-of-lane, y-of-lane) as f32; (2, R*R), 8 KiB at R=32.
    ar = jnp.arange(RR, dtype=jnp.int32)
    coords = jnp.stack([(ar % R).astype(jnp.float32),
                        (ar // R).astype(jnp.float32)], axis=0)  # (2, RR)

    out_width = 3 * c_pad if reduce == "concat" else c_pad

    # Tile size: bigger tiles amortize per-step overhead; keep small for tiny calls.
    if tn is None:
        tn = 512 if n > 256 else 256
    n_pad = ((n + tn - 1) // tn) * tn
    if n_pad != n:
        pts = jnp.pad(pts, ((0, n_pad - n), (0, 0)))

    kernel = functools.partial(_triplane_kernel, resolution=R, tn=tn,
                               reduce=reduce, c_pad=c_pad)

    # NOTE: the coordinate table and plane table have constant block indices, so they are
    # DMA'd once and stay resident across grid steps.
    out = pl.pallas_call(
        kernel,
        out_shape=jax.ShapeDtypeStruct((n_pad, out_width), jnp.float32),
        grid_spec=pltpu.PrefetchScalarGridSpec(
            num_scalar_prefetch=0,
            grid=(n_pad // tn,),
            in_specs=[
                pl.BlockSpec((tn, 3), lambda i: (i, 0)),
                pl.BlockSpec((2, RR), lambda i: (0, 0)),
                pl.BlockSpec((3 * RR, c_pad), lambda i: (0, 0)),
            ],
            out_specs=pl.BlockSpec((tn, out_width), lambda i: (i, 0)),
        ),
        compiler_params=pltpu.CompilerParams(
            dimension_semantics=("parallel",),
            vmem_limit_bytes=32 * 1024 * 1024,
        ),
    )(pts, coords, planes_flat)

    out = out[:n]
    if reduce == "concat":
        out = out.reshape(n, 3, c_pad)[:, :, :C].reshape(n, 3 * C)
        out_features = 3 * C
    else:
        out = out[:, :C]
        out_features = C
    return out.reshape(*orig_shape[:-1], out_features)


def _ref_triplane(points, planes, reduce="sum", mask_k_levels=0):
    """Pure-JAX reference (gather-based bilinear grid_sample, zeros padding, align_corners)."""
    orig_shape = points.shape
    pts = points.reshape(-1, 3).astype(jnp.float32) / 1.2
    C = planes.shape[1]
    R = planes.shape[-1]
    if mask_k_levels > 0:
        factor = 2 ** mask_k_levels
        planes = planes.reshape(3, C, factor, R // factor, factor, R // factor)
        planes = planes.mean(axis=(2, 4))
        R = R // factor

    feats = []
    for pi, (ax, ay) in enumerate(_PLANE_AXES):
        x = pts[:, ax]
        y = pts[:, ay]
        ix = (x + 1.0) * 0.5 * (R - 1)
        iy = (y + 1.0) * 0.5 * (R - 1)
        x0f = jnp.floor(ix)
        y0f = jnp.floor(iy)
        x0 = x0f.astype(jnp.int32)
        y0 = y0f.astype(jnp.int32)
        x1 = x0 + 1
        y1 = y0 + 1
        wx1 = ix - x0f
        wx0 = 1.0 - wx1
        wy1 = iy - y0f
        wy0 = 1.0 - wy1
        plane = planes[pi]  # (C, R, R)

        def gather(yy, xx):
            valid = (yy >= 0) & (yy <= R - 1) & (xx >= 0) & (xx <= R - 1)
            v = plane[:, jnp.clip(yy, 0, R - 1), jnp.clip(xx, 0, R - 1)]  # (C, N)
            return jnp.where(valid[None, :], v, 0.0)

        f = (
            gather(y0, x0) * (wy0 * wx0)[None]
            + gather(y0, x1) * (wy0 * wx1)[None]
            + gather(y1, x0) * (wy1 * wx0)[None]
            + gather(y1, x1) * (wy1 * wx1)[None]
        )
        feats.append(f)

    if reduce == "sum":
        out = feats[0] + feats[1] + feats[2]
    elif reduce == "product":
        out = feats[0] * feats[1] * feats[2]
    else:  # concat
        out = jnp.concatenate(feats, axis=0)
    out = out.T
    return out.reshape(*orig_shape[:-1], out.shape[-1])


def _init_planes(key, resolution, out_features):
    """Deterministic xavier_uniform_ (gain=1.0) as in the torch module."""
    fan_in = out_features * resolution * resolution
    fan_out = 3 * resolution * resolution
    a = math.sqrt(3.0) * math.sqrt(2.0 / (fan_in + fan_out))
    return jax.random.uniform(
        key, (3, out_features, resolution, resolution),
        minval=-a, maxval=a, dtype=jnp.float32,
    )


if __name__ == "__main__":
    key = jax.random.PRNGKey(0)
    k_planes, k_pts = jax.random.split(key)

    resolution = 32
    out_features = 64

    planes = _init_planes(k_planes, resolution, out_features)
    # points in [-1, 1], shape (2, 64, 3)  -> 128 flattened points
    points = jax.random.uniform(k_pts, (2, 64, 3), minval=-1.0, maxval=1.0,
                                dtype=jnp.float32)

    for reduce, mask_k in (("sum", 0), ("product", 0), ("concat", 0), ("sum", 1)):
        out = triplane_encoding_forward(points, planes, reduce=reduce,
                                        mask_k_levels=mask_k)
        out = jax.block_until_ready(out)
        ref = _ref_triplane(points, planes, reduce=reduce, mask_k_levels=mask_k)
        # bf16 MXU inputs with f32 accumulation -> slightly looser tolerance than pure f32.
        np.testing.assert_allclose(np.asarray(out), np.asarray(ref),
                                   atol=5e-4, rtol=5e-3)
        exp_f = 3 * out_features if reduce == "concat" else out_features
        assert out.shape == (2, 64, exp_f)

    print("KERNEL_OK")
</pallas_src>

<mosaic_0001>
module attributes {stable_mosaic.version = 11 : i64} {
  func.func @_triplane_kernel(%arg0: i32, %arg1: memref<256x3xf32, #tpu.memory_space<vmem>>, %arg2: memref<2x1024xf32, #tpu.memory_space<vmem>>, %arg3: memref<3072x128xbf16, #tpu.memory_space<vmem>>, %arg4: memref<256x128xf32, #tpu.memory_space<vmem>>) attributes {dimension_semantics = [#tpu.dimension_semantics<parallel>], iteration_bounds = array<i64: 1>, scalar_prefetch = 0 : i64, scratch_operands = 0 : i64, tpu.core_type = #tpu.core_type<tc>, window_params = [{transform_indices = @transform_0, window_bounds = array<i64: 256, 3>}, {pipeline_mode = #tpu.pipeline_mode<synchronous>, transform_indices = @transform_1, window_bounds = array<i64: 2, 1024>}, {pipeline_mode = #tpu.pipeline_mode<synchronous>, transform_indices = @transform_2, window_bounds = array<i64: 3072, 128>}, {transform_indices = @transform_3, window_bounds = array<i64: 256, 128>}]} {
    %c0 = arith.constant 0 : index
    %c0_0 = arith.constant 0 : index
    %0 = vector.load %arg1[%c0, %c0_0] : memref<256x3xf32, #tpu.memory_space<vmem>>, vector<256x3xf32>
    %cst = arith.constant 12.916667 : f32
    %1 = vector.broadcast %cst : f32 to vector<256x3xf32>
    %2 = arith.mulf %0, %1 : vector<256x3xf32>
    %cst_1 = arith.constant 1.550000e+01 : f32
    %3 = vector.broadcast %cst_1 : f32 to vector<256x3xf32>
    %4 = arith.addf %2, %3 : vector<256x3xf32>
    %c0_2 = arith.constant 0 : index
    %c0_3 = arith.constant 0 : index
    %5 = vector.load %arg2[%c0_2, %c0_3] : memref<2x1024xf32, #tpu.memory_space<vmem>>, vector<1x1024xf32>
    %6 = vector.shape_cast %5 : vector<1x1024xf32> to vector<1x1024xf32>
    %7 = vector.broadcast %6 : vector<1x1024xf32> to vector<256x1024xf32>
    %c1 = arith.constant 1 : index
    %c0_4 = arith.constant 0 : index
    %8 = vector.load %arg2[%c1, %c0_4] : memref<2x1024xf32, #tpu.memory_space<vmem>>, vector<1x1024xf32>
    %9 = vector.shape_cast %8 : vector<1x1024xf32> to vector<1x1024xf32>
    %10 = vector.broadcast %9 : vector<1x1024xf32> to vector<256x1024xf32>
    %11 = vector.extract_strided_slice %4 {offsets = [0, 0], sizes = [256, 1], strides = [1, 1]} : vector<256x3xf32> to vector<256x1xf32>
    %12 = vector.extract_strided_slice %4 {offsets = [0, 1], sizes = [256, 1], strides = [1, 1]} : vector<256x3xf32> to vector<256x1xf32>
    %13 = vector.broadcast %11 : vector<256x1xf32> to vector<256x1024xf32>
    %14 = arith.subf %7, %13 : vector<256x1024xf32>
    %15 = math.absf %14 : vector<256x1024xf32>
    %cst_5 = arith.constant 1.000000e+00 : f32
    %16 = vector.broadcast %cst_5 : f32 to vector<256x1024xf32>
    %17 = arith.subf %16, %15 : vector<256x1024xf32>
    %cst_6 = arith.constant 0.000000e+00 : f32
    %18 = vector.broadcast %cst_6 : f32 to vector<256x1024xf32>
    %19 = arith.maximumf %17, %18 : vector<256x1024xf32>
    %20 = vector.broadcast %12 : vector<256x1xf32> to vector<256x1024xf32>
    %21 = arith.subf %10, %20 : vector<256x1024xf32>
    %22 = math.absf %21 : vector<256x1024xf32>
    %cst_7 = arith.constant 1.000000e+00 : f32
    %23 = vector.broadcast %cst_7 : f32 to vector<256x1024xf32>
    %24 = arith.subf %23, %22 : vector<256x1024xf32>
    %cst_8 = arith.constant 0.000000e+00 : f32
    %25 = vector.broadcast %cst_8 : f32 to vector<256x1024xf32>
    %26 = arith.maximumf %24, %25 : vector<256x1024xf32>
    %27 = arith.mulf %19, %26 : vector<256x1024xf32>
    %28 = arith.truncf %27 : vector<256x1024xf32> to vector<256x1024xbf16>
    %c0_9 = arith.constant 0 : index
    %c0_10 = arith.constant 0 : index
    %29 = vector.load %arg3[%c0_9, %c0_10] : memref<3072x128xbf16, #tpu.memory_space<vmem>>, vector<1024x128xbf16>
    %cst_11 = arith.constant dense<0.000000e+00> : vector<256x128xf32>
    %30 = tpu.matmul %28, %29, %cst_11 {dimension_numbers = #tpu.dot_dimension_numbers<[1], [0], [0], [1], [0, 0, 1, 1], [], []>} : vector<256x1024xbf16>, vector<1024x128xbf16>, vector<256x128xf32> -> vector<256x128xf32>
    %31 = vector.extract_strided_slice %4 {offsets = [0, 0], sizes = [256, 1], strides = [1, 1]} : vector<256x3xf32> to vector<256x1xf32>
    %32 = vector.extract_strided_slice %4 {offsets = [0, 2], sizes = [256, 1], strides = [1, 1]} : vector<256x3xf32> to vector<256x1xf32>
    %33 = vector.broadcast %31 : vector<256x1xf32> to vector<256x1024xf32>
    %34 = arith.subf %7, %33 : vector<256x1024xf32>
    %35 = math.absf %34 : vector<256x1024xf32>
    %cst_12 = arith.constant 1.000000e+00 : f32
    %36 = vector.broadcast %cst_12 : f32 to vector<256x1024xf32>
    %37 = arith.subf %36, %35 : vector<256x1024xf32>
    %cst_13 = arith.constant 0.000000e+00 : f32
    %38 = vector.broadcast %cst_13 : f32 to vector<256x1024xf32>
    %39 = arith.maximumf %37, %38 : vector<256x1024xf32>
    %40 = vector.broadcast %32 : vector<256x1xf32> to vector<256x1024xf32>
    %41 = arith.subf %10, %40 : vector<256x1024xf32>
    %42 = math.absf %41 : vector<256x1024xf32>
    %cst_14 = arith.constant 1.000000e+00 : f32
    %43 = vector.broadcast %cst_14 : f32 to vector<256x1024xf32>
    %44 = arith.subf %43, %42 : vector<256x1024xf32>
    %cst_15 = arith.constant 0.000000e+00 : f32
    %45 = vector.broadcast %cst_15 : f32 to vector<256x1024xf32>
    %46 = arith.maximumf %44, %45 : vector<256x1024xf32>
    %47 = arith.mulf %39, %46 : vector<256x1024xf32>
    %48 = arith.truncf %47 : vector<256x1024xf32> to vector<256x1024xbf16>
    %c1024 = arith.constant 1024 : index
    %c0_16 = arith.constant 0 : index
    %49 = vector.load %arg3[%c1024, %c0_16] : memref<3072x128xbf16, #tpu.memory_space<vmem>>, vector<1024x128xbf16>
    %cst_17 = arith.constant dense<0.000000e+00> : vector<256x128xf32>
    %50 = tpu.matmul %48, %49, %cst_17 {dimension_numbers = #tpu.dot_dimension_numbers<[1], [0], [0], [1], [0, 0, 1, 1], [], []>} : vector<256x1024xbf16>, vector<1024x128xbf16>, vector<256x128xf32> -> vector<256x128xf32>
    %51 = arith.addf %30, %50 : vector<256x128xf32>
    %52 = vector.extract_strided_slice %4 {offsets = [0, 1], sizes = [256, 1], strides = [1, 1]} : vector<256x3xf32> to vector<256x1xf32>
    %53 = vector.extract_strided_slice %4 {offsets = [0, 2], sizes = [256, 1], strides = [1, 1]} : vector<256x3xf32> to vector<256x1xf32>
    %54 = vector.broadcast %52 : vector<256x1xf32> to vector<256x1024xf32>
    %55 = arith.subf %7, %54 : vector<256x1024xf32>
    %56 = math.absf %55 : vector<256x1024xf32>
    %cst_18 = arith.constant 1.000000e+00 : f32
    %57 = vector.broadcast %cst_18 : f32 to vector<256x1024xf32>
    %58 = arith.subf %57, %56 : vector<256x1024xf32>
    %cst_19 = arith.constant 0.000000e+00 : f32
    %59 = vector.broadcast %cst_19 : f32 to vector<256x1024xf32>
    %60 = arith.maximumf %58, %59 : vector<256x1024xf32>
    %61 = vector.broadcast %53 : vector<256x1xf32> to vector<256x1024xf32>
    %62 = arith.subf %10, %61 : vector<256x1024xf32>
    %63 = math.absf %62 : vector<256x1024xf32>
    %cst_20 = arith.constant 1.000000e+00 : f32
    %64 = vector.broadcast %cst_20 : f32 to vector<256x1024xf32>
    %65 = arith.subf %64, %63 : vector<256x1024xf32>
    %cst_21 = arith.constant 0.000000e+00 : f32
    %66 = vector.broadcast %cst_21 : f32 to vector<256x1024xf32>
    %67 = arith.maximumf %65, %66 : vector<256x1024xf32>
    %68 = arith.mulf %60, %67 : vector<256x1024xf32>
    %69 = arith.truncf %68 : vector<256x1024xf32> to vector<256x1024xbf16>
    %c2048 = arith.constant 2048 : index
    %c0_22 = arith.constant 0 : index
    %70 = vector.load %arg3[%c2048, %c0_22] : memref<3072x128xbf16, #tpu.memory_space<vmem>>, vector<1024x128xbf16>
    %cst_23 = arith.constant dense<0.000000e+00> : vector<256x128xf32>
    %71 = tpu.matmul %69, %70, %cst_23 {dimension_numbers = #tpu.dot_dimension_numbers<[1], [0], [0], [1], [0, 0, 1, 1], [], []>} : vector<256x1024xbf16>, vector<1024x128xbf16>, vector<256x128xf32> -> vector<256x128xf32>
    %72 = arith.addf %51, %71 : vector<256x128xf32>
    %c0_24 = arith.constant 0 : index
    %c0_25 = arith.constant 0 : index
    %73 = vector.load %arg4[%c0_24, %c0_25] : memref<256x128xf32, #tpu.memory_space<vmem>>, vector<256x128xf32>
    tpu.vector_store %arg4[%c0_24, %c0_25], %72 {strides = array<i32>} : memref<256x128xf32, #tpu.memory_space<vmem>>, vector<256x128xf32>,
    return
  }
  func.func @transform_0(%arg0: i32) -> (i32, i32) {
    %c0_i32 = arith.constant 0 : i32
    %c0_i32_0 = arith.constant 0 : i32
    return %arg0, %c0_i32 : i32, i32
  }
  func.func @transform_1(%arg0: i32) -> (i32, i32) {
    %c0_i32 = arith.constant 0 : i32
    %c0_i32_0 = arith.constant 0 : i32
    %c0_i32_1 = arith.constant 0 : i32
    return %c0_i32, %c0_i32_0 : i32, i32
  }
  func.func @transform_2(%arg0: i32) -> (i32, i32) {
    %c0_i32 = arith.constant 0 : i32
    %c0_i32_0 = arith.constant 0 : i32
    %c0_i32_1 = arith.constant 0 : i32
    return %c0_i32, %c0_i32_0 : i32, i32
  }
  func.func @transform_3(%arg0: i32) -> (i32, i32) {
    %c0_i32 = arith.constant 0 : i32
    %c0_i32_0 = arith.constant 0 : i32
    return %arg0, %c0_i32 : i32, i32
  }
}

</mosaic_0001>

<llo_original>
// kernel: tpu_custom_call.1
$region0: #{tpu_custom_call.1}
  #allocation0 [shape = 'u32[]', space=smem, size = 0x4, offset = 0x4, fixed_abs, tag = 'smem constant byte address 0x4 - core index']
  #allocation1 [shape = 'u32[144,128]{1,0:T(1,128)}', space=vmem, size = 0x12000, scoped, tag = 'internal scratch']
  %s0 = inlined_call_operand.vmem [shape: f32[256,3], index: 0, kind: input, shape index: {}]
  %s1 = inlined_call_operand.vmem [shape: f32[2,1024], index: 1, kind: input, shape index: {}]
  %s2 = inlined_call_operand.hbm [shape: bf16[3072,128], index: 2, kind: input, shape index: {}]
  %s3 = inlined_call_operand.hbm [shape: f32[256,128], index: 3, kind: output, shape index: {}]
  %s4 = sld [smem:[#allocation0]]
  $region26: #{tpu_custom_call.1} parent=0
    _
  %s6 = ssub.s32 1, %s4
  %s7 = scalar_select 0, %s6, %s4
  $region1: #{tpu_custom_call.1} parent=0
    #allocation2 [shape = 'u8[786432]{0}', space=vmem, size = 0xc0000, scoped, tag = 'input window, operand 2, single buffered']
    #allocation3 [shape = 's32[1]{0}', space=sflag, size = 0x4, scoped, tag = 'scoped memory for tpu_custom_call.1']
    #allocation4 [shape = 's32[1]{0}', space=sflag, size = 0x4, scoped, tag = 'scoped memory for tpu_custom_call.1']
    #allocation5 [shape = 'u8[131072]{0}', space=vmem, size = 0x20000, scoped, tag = 'output window, operand 0, single buffered']
    %8 = vsyncpa [#allocation3], 0
    %9 = vsyncpa [#allocation4], 0
    // Predicated region
    $region2: #{tpu_custom_call.1} parent=1 // pred_check
      _
    $region3: #{tpu_custom_call.1} parent=1 // pred_check_branch
      %11 = sbr.rel (0) target = $region5
    $region4: #{tpu_custom_call.1} parent=1 // pred_region
      _
    $region5: #{tpu_custom_call.1} parent=1 // pred_fallthru
      _
    // Predicated region
    $region6: #{tpu_custom_call.1} parent=1 // pred_check
      _
    $region7: #{tpu_custom_call.1} parent=1 // pred_check_branch
      %13 = sbr.rel (0) target = $region9
    $region8: #{tpu_custom_call.1} parent=1 // pred_region
      _
    $region9: #{tpu_custom_call.1} parent=1 // pred_fallthru
      _
    // Predicated region
    $region10: #{tpu_custom_call.1} parent=1 // pred_check
      _
    $region11: #{tpu_custom_call.1} parent=1 // pred_check_branch
      %15 = sbr.rel (0) target = $region13
    $region12: #{tpu_custom_call.1} parent=1 // pred_region
      %s17 = ssub.s32 24576, 24576
      %18 = vsyncadd [#allocation3], %s17
      %s19 = sshll.u32 [#allocation2], 4
      %s20 = int_to_ptr.vmem [resolvable:$true] %s19
      %25 = dma.hbm_to_vmem [thread:$0]  %s2, 24576, %s20, [#allocation3], 64, 64, 4
    $region13: #{tpu_custom_call.1} parent=1 // pred_fallthru
      _
    // Predicated region
    $region14: #{tpu_custom_call.1} parent=1 // pred_check
      _
    $region15: #{tpu_custom_call.1} parent=1 // pred_check_branch
      %27 = sbr.rel (0) target = $region17
    $region16: #{tpu_custom_call.1} parent=1 // pred_region
      %28 = dma.done [#allocation3], 24576
    $region17: #{tpu_custom_call.1} parent=1 // pred_fallthru
      _
    %v30 = vld [vmem:[%s0] sm:$0xff]
    %v31 = vld [vmem:[%s0 + $0x8] sm:$0xff]
    %v32 = vld [vmem:[%s0 + $0x10] sm:$0xff]
    %v33 = vld [vmem:[%s0 + $0x18] sm:$0xff]
    %v34 = vld [vmem:[%s0 + $0x20] sm:$0xff]
    %v35 = vld [vmem:[%s0 + $0x28] sm:$0xff]
    %v36 = vld [vmem:[%s0 + $0x30] sm:$0xff]
    %v37 = vld [vmem:[%s0 + $0x38] sm:$0xff]
    %v38 = vld [vmem:[%s0 + $0x40] sm:$0xff]
    %v39 = vld [vmem:[%s0 + $0x48] sm:$0xff]
    %v40 = vld [vmem:[%s0 + $0x50] sm:$0xff]
    %v41 = vld [vmem:[%s0 + $0x58] sm:$0xff]
    %v42 = vld [vmem:[%s0 + $0x60] sm:$0xff]
    %v43 = vld [vmem:[%s0 + $0x68] sm:$0xff]
    %v44 = vld [vmem:[%s0 + $0x70] sm:$0xff]
    %v45 = vld [vmem:[%s0 + $0x78] sm:$0xff]
    %v46 = vld [vmem:[%s0 + $0x80] sm:$0xff]
    %v47 = vld [vmem:[%s0 + $0x88] sm:$0xff]
    %v48 = vld [vmem:[%s0 + $0x90] sm:$0xff]
    %v49 = vld [vmem:[%s0 + $0x98] sm:$0xff]
    %v50 = vld [vmem:[%s0 + $0xa0] sm:$0xff]
    %v51 = vld [vmem:[%s0 + $0xa8] sm:$0xff]
    %v52 = vld [vmem:[%s0 + $0xb0] sm:$0xff]
    %v53 = vld [vmem:[%s0 + $0xb8] sm:$0xff]
    %v54 = vld [vmem:[%s0 + $0xc0] sm:$0xff]
    %v55 = vld [vmem:[%s0 + $0xc8] sm:$0xff]
    %v56 = vld [vmem:[%s0 + $0xd0] sm:$0xff]
    %v57 = vld [vmem:[%s0 + $0xd8] sm:$0xff]
    %v58 = vld [vmem:[%s0 + $0xe0] sm:$0xff]
    %v59 = vld [vmem:[%s0 + $0xe8] sm:$0xff]
    %v60 = vld [vmem:[%s0 + $0xf0] sm:$0xff]
    %v61 = vld [vmem:[%s0 + $0xf8] sm:$0xff]
    %v62 = vmul.f32 %v30, 12.916667
    %v63 = vmul.f32 %v31, 12.916667
    %v64 = vmul.f32 %v32, 12.916667
    %v65 = vmul.f32 %v33, 12.916667
    %v66 = vmul.f32 %v34, 12.916667
    %v67 = vmul.f32 %v35, 12.916667
    %v68 = vmul.f32 %v36, 12.916667
    %v69 = vmul.f32 %v37, 12.916667
    %v70 = vmul.f32 %v38, 12.916667
    %v71 = vmul.f32 %v39, 12.916667
    %v72 = vmul.f32 %v40, 12.916667
    %v73 = vmul.f32 %v41, 12.916667
    %v74 = vmul.f32 %v42, 12.916667
    %v75 = vmul.f32 %v43, 12.916667
    %v76 = vmul.f32 %v44, 12.916667
    %v77 = vmul.f32 %v45, 12.916667
    %v78 = vmul.f32 %v46, 12.916667
    %v79 = vmul.f32 %v47, 12.916667
    %v80 = vmul.f32 %v48, 12.916667
    %v81 = vmul.f32 %v49, 12.916667
    %v82 = vmul.f32 %v50, 12.916667
    %v83 = vmul.f32 %v51, 12.916667
    %v84 = vmul.f32 %v52, 12.916667
    %v85 = vmul.f32 %v53, 12.916667
    %v86 = vmul.f32 %v54, 12.916667
    %v87 = vmul.f32 %v55, 12.916667
    %v88 = vmul.f32 %v56, 12.916667
    %v89 = vmul.f32 %v57, 12.916667
    %v90 = vmul.f32 %v58, 12.916667
    %v91 = vmul.f32 %v59, 12.916667
    %v92 = vmul.f32 %v60, 12.916667
    %v93 = vmul.f32 %v61, 12.916667
    %v94 = vadd.f32 %v62, 15.5
    %v95 = vadd.f32 %v63, 15.5
    %v96 = vadd.f32 %v64, 15.5
    %v97 = vadd.f32 %v65, 15.5
    %v98 = vadd.f32 %v66, 15.5
    %v99 = vadd.f32 %v67, 15.5
    %v100 = vadd.f32 %v68, 15.5
    %v101 = vadd.f32 %v69, 15.5
    %v102 = vadd.f32 %v70, 15.5
    %v103 = vadd.f32 %v71, 15.5
    %v104 = vadd.f32 %v72, 15.5
    %v105 = vadd.f32 %v73, 15.5
    %v106 = vadd.f32 %v74, 15.5
    %v107 = vadd.f32 %v75, 15.5
    %v108 = vadd.f32 %v76, 15.5
    %v109 = vadd.f32 %v77, 15.5
    %v110 = vadd.f32 %v78, 15.5
    %v111 = vadd.f32 %v79, 15.5
    %v112 = vadd.f32 %v80, 15.5
    %v113 = vadd.f32 %v81, 15.5
    %v114 = vadd.f32 %v82, 15.5
    %v115 = vadd.f32 %v83, 15.5
    %v116 = vadd.f32 %v84, 15.5
    %v117 = vadd.f32 %v85, 15.5
    %v118 = vadd.f32 %v86, 15.5
    %v119 = vadd.f32 %v87, 15.5
    %v120 = vadd.f32 %v88, 15.5
    %v121 = vadd.f32 %v89, 15.5
    %v122 = vadd.f32 %v90, 15.5
    %v123 = vadd.f32 %v91, 15.5
    %v124 = vadd.f32 %v92, 15.5
    %v125 = vadd.f32 %v93, 15.5
    %v126 = vld [vmem:[%s1] ss:$2 sm:$0xff]
    %v128 = vlaneseq
    %v129 = vshrl.u32 %v128, 7
    %v130 = vsub.s32 0, %v129
    %v131 = vrot.slane %v126, %v130
    %v132 = vlaneseq
    %v133 = vshrl.u32 %v132, 7
    %v134 = vsub.s32 1, %v133
    %v135 = vrot.slane %v126, %v134
    %v136 = vlaneseq
    %v137 = vshrl.u32 %v136, 7
    %v138 = vsub.s32 2, %v137
    %v139 = vrot.slane %v126, %v138
    %v140 = vlaneseq
    %v141 = vshrl.u32 %v140, 7
    %v142 = vsub.s32 3, %v141
    %v143 = vrot.slane %v126, %v142
    %v144 = vlaneseq
    %v145 = vshrl.u32 %v144, 7
    %v146 = vsub.s32 4, %v145
    %v147 = vrot.slane %v126, %v146
    %v148 = vlaneseq
    %v149 = vshrl.u32 %v148, 7
    %v150 = vsub.s32 5, %v149
    %v151 = vrot.slane %v126, %v150
    %v152 = vlaneseq
    %v153 = vshrl.u32 %v152, 7
    %v154 = vsub.s32 6, %v153
    %v155 = vrot.slane %v126, %v154
    %v156 = vlaneseq
    %v157 = vshrl.u32 %v156, 7
    %v158 = vsub.s32 7, %v157
    %v159 = vrot.slane %v126, %v158
    %s168 = scalar_lea.vmem %s1, 1
    %v169 = vld [vmem:[%s168] ss:$2 sm:$0xff]
    %v171 = vlaneseq
    %v172 = vshrl.u32 %v171, 7
    %v173 = vsub.s32 0, %v172
    %v174 = vrot.slane %v169, %v173
    %v175 = vlaneseq
    %v176 = vshrl.u32 %v175, 7
    %v177 = vsub.s32 1, %v176
    %v178 = vrot.slane %v169, %v177
    %v179 = vlaneseq
    %v180 = vshrl.u32 %v179, 7
    %v181 = vsub.s32 2, %v180
    %v182 = vrot.slane %v169, %v181
    %v183 = vlaneseq
    %v184 = vshrl.u32 %v183, 7
    %v185 = vsub.s32 3, %v184
    %v186 = vrot.slane %v169, %v185
    %v187 = vlaneseq
    %v188 = vshrl.u32 %v187, 7
    %v189 = vsub.s32 4, %v188
    %v190 = vrot.slane %v169, %v189
    %v191 = vlaneseq
    %v192 = vshrl.u32 %v191, 7
    %v193 = vsub.s32 5, %v192
    %v194 = vrot.slane %v169, %v193
    %v195 = vlaneseq
    %v196 = vshrl.u32 %v195, 7
    %v197 = vsub.s32 6, %v196
    %v198 = vrot.slane %v169, %v197
    %v199 = vlaneseq
    %v200 = vshrl.u32 %v199, 7
    %v201 = vsub.s32 7, %v200
    %v202 = vrot.slane %v169, %v201
    %212 = vset.pattern.permute.xlu0 0
    %213 = vperm.xlu0 %212, %v94
    %v214 = vpop.permute.xlu0 %213
    %217 = vset.pattern.permute.xlu0 0
    %218 = vperm.xlu0 %217, %v95
    %v219 = vpop.permute.xlu0 %218
    %222 = vset.pattern.permute.xlu0 0
    %223 = vperm.xlu0 %222, %v96
    %v224 = vpop.permute.xlu0 %223
    %227 = vset.pattern.permute.xlu0 0
    %228 = vperm.xlu0 %227, %v97
    %v229 = vpop.permute.xlu0 %228
    %232 = vset.pattern.permute.xlu0 0
    %233 = vperm.xlu0 %232, %v98
    %v234 = vpop.permute.xlu0 %233
    %237 = vset.pattern.permute.xlu0 0
    %238 = vperm.xlu0 %237, %v99
    %v239 = vpop.permute.xlu0 %238
    %242 = vset.pattern.permute.xlu0 0
    %243 = vperm.xlu0 %242, %v100
    %v244 = vpop.permute.xlu0 %243
    %247 = vset.pattern.permute.xlu0 0
    %248 = vperm.xlu0 %247, %v101
    %v249 = vpop.permute.xlu0 %248
    %252 = vset.pattern.permute.xlu0 0
    %253 = vperm.xlu0 %252, %v102
    %v254 = vpop.permute.xlu0 %253
    %257 = vset.pattern.permute.xlu0 0
    %258 = vperm.xlu0 %257, %v103
    %v259 = vpop.permute.xlu0 %258
    %262 = vset.pattern.permute.xlu0 0
    %263 = vperm.xlu0 %262, %v104
    %v264 = vpop.permute.xlu0 %263
    %267 = vset.pattern.permute.xlu0 0
    %268 = vperm.xlu0 %267, %v105
    %v269 = vpop.permute.xlu0 %268
    %272 = vset.pattern.permute.xlu0 0
    %273 = vperm.xlu0 %272, %v106
    %v274 = vpop.permute.xlu0 %273
    %277 = vset.pattern.permute.xlu0 0
    %278 = vperm.xlu0 %277, %v107
    %v279 = vpop.permute.xlu0 %278
    %282 = vset.pattern.permute.xlu0 0
    %283 = vperm.xlu0 %282, %v108
    %v284 = vpop.permute.xlu0 %283
    %287 = vset.pattern.permute.xlu0 0
    %288 = vperm.xlu0 %287, %v109
    %v289 = vpop.permute.xlu0 %288
    %292 = vset.pattern.permute.xlu0 0
    %293 = vperm.xlu0 %292, %v110
    %v294 = vpop.permute.xlu0 %293
    %297 = vset.pattern.permute.xlu0 0
    %298 = vperm.xlu0 %297, %v111
    %v299 = vpop.permute.xlu0 %298
    %302 = vset.pattern.permute.xlu0 0
    %303 = vperm.xlu0 %302, %v112
    %v304 = vpop.permute.xlu0 %303
    %307 = vset.pattern.permute.xlu0 0
    %308 = vperm.xlu0 %307, %v113
    %v309 = vpop.permute.xlu0 %308
    %312 = vset.pattern.permute.xlu0 0
    %313 = vperm.xlu0 %312, %v114
    %v314 = vpop.permute.xlu0 %313
    %317 = vset.pattern.permute.xlu0 0
    %318 = vperm.xlu0 %317, %v115
    %v319 = vpop.permute.xlu0 %318
    %322 = vset.pattern.permute.xlu0 0
    %323 = vperm.xlu0 %322, %v116
    %v324 = vpop.permute.xlu0 %323
    %327 = vset.pattern.permute.xlu0 0
    %328 = vperm.xlu0 %327, %v117
    %v329 = vpop.permute.xlu0 %328
    %332 = vset.pattern.permute.xlu0 0
    %333 = vperm.xlu0 %332, %v118
    %v334 = vpop.permute.xlu0 %333
    %337 = vset.pattern.permute.xlu0 0
    %338 = vperm.xlu0 %337, %v119
    %v339 = vpop.permute.xlu0 %338
    %342 = vset.pattern.permute.xlu0 0
    %343 = vperm.xlu0 %342, %v120
    %v344 = vpop.permute.xlu0 %343
    %347 = vset.pattern.permute.xlu0 0
    %348 = vperm.xlu0 %347, %v121
    %v349 = vpop.permute.xlu0 %348
    %352 = vset.pattern.permute.xlu0 0
    %353 = vperm.xlu0 %352, %v122
    %v354 = vpop.permute.xlu0 %353
    %357 = vset.pattern.permute.xlu0 0
    %358 = vperm.xlu0 %357, %v123
    %v359 = vpop.permute.xlu0 %358
    %362 = vset.pattern.permute.xlu0 0
    %363 = vperm.xlu0 %362, %v124
    %v364 = vpop.permute.xlu0 %363
    %367 = vset.pattern.permute.xlu0 0
    %368 = vperm.xlu0 %367, %v125
    %v369 = vpop.permute.xlu0 %368
    %v371 = vsub.f32 %v131, %v214
    %v372 = vsub.f32 %v135, %v214
    %v373 = vsub.f32 %v139, %v214
    %v374 = vsub.f32 %v143, %v214
    %v375 = vsub.f32 %v147, %v214
    %v376 = vsub.f32 %v151, %v214
    %v377 = vsub.f32 %v155, %v214
    %v378 = vsub.f32 %v159, %v214
    %v379 = vsub.f32 %v131, %v219
    %v380 = vsub.f32 %v135, %v219
    %v381 = vsub.f32 %v139, %v219
    %v382 = vsub.f32 %v143, %v219
    %v383 = vsub.f32 %v147, %v219
    %v384 = vsub.f32 %v151, %v219
    %v385 = vsub.f32 %v155, %v219
    %v386 = vsub.f32 %v159, %v219
    %v387 = vsub.f32 %v131, %v224
    %v388 = vsub.f32 %v135, %v224
    %v389 = vsub.f32 %v139, %v224
    %v390 = vsub.f32 %v143, %v224
    %v391 = vsub.f32 %v147, %v224
    %v392 = vsub.f32 %v151, %v224
    %v393 = vsub.f32 %v155, %v224
    %v394 = vsub.f32 %v159, %v224
    %v395 = vsub.f32 %v131, %v229
    %v396 = vsub.f32 %v135, %v229
    %v397 = vsub.f32 %v139, %v229
    %v398 = vsub.f32 %v143, %v229
    %v399 = vsub.f32 %v147, %v229
    %v400 = vsub.f32 %v151, %v229
    %v401 = vsub.f32 %v155, %v229
    %v402 = vsub.f32 %v159, %v229
    %v403 = vsub.f32 %v131, %v234
    %v404 = vsub.f32 %v135, %v234
    %v405 = vsub.f32 %v139, %v234
    %v406 = vsub.f32 %v143, %v234
    %v407 = vsub.f32 %v147, %v234
    %v408 = vsub.f32 %v151, %v234
    %v409 = vsub.f32 %v155, %v234
    %v410 = vsub.f32 %v159, %v234
    %v411 = vsub.f32 %v131, %v239
    %v412 = vsub.f32 %v135, %v239
    %v413 = vsub.f32 %v139, %v239
    %v414 = vsub.f32 %v143, %v239
    %v415 = vsub.f32 %v147, %v239
    %v416 = vsub.f32 %v151, %v239
    %v417 = vsub.f32 %v155, %v239
    %v418 = vsub.f32 %v159, %v239
    %v419 = vsub.f32 %v131, %v244
    %v420 = vsub.f32 %v135, %v244
    %v421 = vsub.f32 %v139, %v244
    %v422 = vsub.f32 %v143, %v244
    %v423 = vsub.f32 %v147, %v244
    %v424 = vsub.f32 %v151, %v244
    %v425 = vsub.f32 %v155, %v244
    %v426 = vsub.f32 %v159, %v244
    %v427 = vsub.f32 %v131, %v249
    %v428 = vsub.f32 %v135, %v249
    %v429 = vsub.f32 %v139, %v249
    %v430 = vsub.f32 %v143, %v249
    %v431 = vsub.f32 %v147, %v249
    %v432 = vsub.f32 %v151, %v249
    %v433 = vsub.f32 %v155, %v249
    %v434 = vsub.f32 %v159, %v249
    %v435 = vsub.f32 %v131, %v254
    %v436 = vsub.f32 %v135, %v254
    %v437 = vsub.f32 %v139, %v254
    %v438 = vsub.f32 %v143, %v254
    %v439 = vsub.f32 %v147, %v254
    %v440 = vsub.f32 %v151, %v254
    %v441 = vsub.f32 %v155, %v254
    %v442 = vsub.f32 %v159, %v254
    %v443 = vsub.f32 %v131, %v259
    %v444 = vsub.f32 %v135, %v259
    %v445 = vsub.f32 %v139, %v259
    %v446 = vsub.f32 %v143, %v259
    %v447 = vsub.f32 %v147, %v259
    %v448 = vsub.f32 %v151, %v259
    %v449 = vsub.f32 %v155, %v259
    %v450 = vsub.f32 %v159, %v259
    %v451 = vsub.f32 %v131, %v264
    %v452 = vsub.f32 %v135, %v264
    %v453 = vsub.f32 %v139, %v264
    %v454 = vsub.f32 %v143, %v264
    %v455 = vsub.f32 %v147, %v264
    %v456 = vsub.f32 %v151, %v264
    %v457 = vsub.f32 %v155, %v264
    %v458 = vsub.f32 %v159, %v264
    %v459 = vsub.f32 %v131, %v269
    %v460 = vsub.f32 %v135, %v269
    %v461 = vsub.f32 %v139, %v269
    %v462 = vsub.f32 %v143, %v269
    %v463 = vsub.f32 %v147, %v269
    %v464 = vsub.f32 %v151, %v269
    %v465 = vsub.f32 %v155, %v269
    %v466 = vsub.f32 %v159, %v269
    %v467 = vsub.f32 %v131, %v274
    %v468 = vsub.f32 %v135, %v274
    %v469 = vsub.f32 %v139, %v274
    %v470 = vsub.f32 %v143, %v274
    %v471 = vsub.f32 %v147, %v274
    %v472 = vsub.f32 %v151, %v274
    %v473 = vsub.f32 %v155, %v274
    %v474 = vsub.f32 %v159, %v274
    %v475 = vsub.f32 %v131, %v279
    %v476 = vsub.f32 %v135, %v279
    %v477 = vsub.f32 %v139, %v279
    %v478 = vsub.f32 %v143, %v279
    %v479 = vsub.f32 %v147, %v279
    %v480 = vsub.f32 %v151, %v279
    %v481 = vsub.f32 %v155, %v279
    %v482 = vsub.f32 %v159, %v279
    %v483 = vsub.f32 %v131, %v284
    %v484 = vsub.f32 %v135, %v284
    %v485 = vsub.f32 %v139, %v284
    %v486 = vsub.f32 %v143, %v284
    %v487 = vsub.f32 %v147, %v284
    %v488 = vsub.f32 %v151, %v284
    %v489 = vsub.f32 %v155, %v284
    %v490 = vsub.f32 %v159, %v284
    %v491 = vsub.f32 %v131, %v289
    %v492 = vsub.f32 %v135, %v289
    %v493 = vsub.f32 %v139, %v289
    %v494 = vsub.f32 %v143, %v289
    %v495 = vsub.f32 %v147, %v289
    %v496 = vsub.f32 %v151, %v289
    %v497 = vsub.f32 %v155, %v289
    %v498 = vsub.f32 %v159, %v289
    %v499 = vsub.f32 %v131, %v294
    %v500 = vsub.f32 %v135, %v294
    %v501 = vsub.f32 %v139, %v294
    %v502 = vsub.f32 %v143, %v294
    %v503 = vsub.f32 %v147, %v294
    %v504 = vsub.f32 %v151, %v294
    %v505 = vsub.f32 %v155, %v294
    %v506 = vsub.f32 %v159, %v294
    %v507 = vsub.f32 %v131, %v299
    %v508 = vsub.f32 %v135, %v299
    %v509 = vsub.f32 %v139, %v299
    %v510 = vsub.f32 %v143, %v299
    %v511 = vsub.f32 %v147, %v299
    %v512 = vsub.f32 %v151, %v299
    %v513 = vsub.f32 %v155, %v299
    %v514 = vsub.f32 %v159, %v299
    %v515 = vsub.f32 %v131, %v304
    %v516 = vsub.f32 %v135, %v304
    %v517 = vsub.f32 %v139, %v304
    %v518 = vsub.f32 %v143, %v304
    %v519 = vsub.f32 %v147, %v304
    %v520 = vsub.f32 %v151, %v304
    %v521 = vsub.f32 %v155, %v304
    %v522 = vsub.f32 %v159, %v304
    %v523 = vsub.f32 %v131, %v309
    %v524 = vsub.f32 %v135, %v309
    %v525 = vsub.f32 %v139, %v309
    %v526 = vsub.f32 %v143, %v309
    %v527 = vsub.f32 %v147, %v309
    %v528 = vsub.f32 %v151, %v309
    %v529 = vsub.f32 %v155, %v309
    %v530 = vsub.f32 %v159, %v309
    %v531 = vsub.f32 %v131, %v314
    %v532 = vsub.f32 %v135, %v314
    %v533 = vsub.f32 %v139, %v314
    %v534 = vsub.f32 %v143, %v314
    %v535 = vsub.f32 %v147, %v314
    %v536 = vsub.f32 %v151, %v314
    %v537 = vsub.f32 %v155, %v314
    %v538 = vsub.f32 %v159, %v314
    %v539 = vsub.f32 %v131, %v319
    %v540 = vsub.f32 %v135, %v319
    %v541 = vsub.f32 %v139, %v319
    %v542 = vsub.f32 %v143, %v319
    %v543 = vsub.f32 %v147, %v319
    %v544 = vsub.f32 %v151, %v319
    %v545 = vsub.f32 %v155, %v319
    %v546 = vsub.f32 %v159, %v319
    %v547 = vsub.f32 %v131, %v324
    %v548 = vsub.f32 %v135, %v324
    %v549 = vsub.f32 %v139, %v324
    %v550 = vsub.f32 %v143, %v324
    %v551 = vsub.f32 %v147, %v324
    %v552 = vsub.f32 %v151, %v324
    %v553 = vsub.f32 %v155, %v324
    %v554 = vsub.f32 %v159, %v324
    %v555 = vsub.f32 %v131, %v329
    %v556 = vsub.f32 %v135, %v329
    %v557 = vsub.f32 %v139, %v329
    %v558 = vsub.f32 %v143, %v329
    %v559 = vsub.f32 %v147, %v329
    %v560 = vsub.f32 %v151, %v329
    %v561 = vsub.f32 %v155, %v329
    %v562 = vsub.f32 %v159, %v329
    %v563 = vsub.f32 %v131, %v334
    %v564 = vsub.f32 %v135, %v334
    %v565 = vsub.f32 %v139, %v334
    %v566 = vsub.f32 %v143, %v334
    %v567 = vsub.f32 %v147, %v334
    %v568 = vsub.f32 %v151, %v334
    %v569 = vsub.f32 %v155, %v334
    %v570 = vsub.f32 %v159, %v334
    %v571 = vsub.f32 %v131, %v339
    %v572 = vsub.f32 %v135, %v339
    %v573 = vsub.f32 %v139, %v339
    %v574 = vsub.f32 %v143, %v339
    %v575 = vsub.f32 %v147, %v339
    %v576 = vsub.f32 %v151, %v339
    %v577 = vsub.f32 %v155, %v339
    %v578 = vsub.f32 %v159, %v339
    %v579 = vsub.f32 %v131, %v344
    %v580 = vsub.f32 %v135, %v344
    %v581 = vsub.f32 %v139, %v344
    %v582 = vsub.f32 %v143, %v344
    %v583 = vsub.f32 %v147, %v344
    %v584 = vsub.f32 %v151, %v344
    %v585 = vsub.f32 %v155, %v344
    %v586 = vsub.f32 %v159, %v344
    %v587 = vsub.f32 %v131, %v349
    %v588 = vsub.f32 %v135, %v349
    %v589 = vsub.f32 %v139, %v349
    %v590 = vsub.f32 %v143, %v349
    %v591 = vsub.f32 %v147, %v349
    %v592 = vsub.f32 %v151, %v349
    %v593 = vsub.f32 %v155, %v349
    %v594 = vsub.f32 %v159, %v349
    %v595 = vsub.f32 %v131, %v354
    %v596 = vsub.f32 %v135, %v354
    %v597 = vsub.f32 %v139, %v354
    %v598 = vsub.f32 %v143, %v354
    %v599 = vsub.f32 %v147, %v354
    %v600 = vsub.f32 %v151, %v354
    %v601 = vsub.f32 %v155, %v354
    %v602 = vsub.f32 %v159, %v354
    %v603 = vsub.f32 %v131, %v359
    %v604 = vsub.f32 %v135, %v359
    %v605 = vsub.f32 %v139, %v359
    %v606 = vsub.f32 %v143, %v359
    %v607 = vsub.f32 %v147, %v359
    %v608 = vsub.f32 %v151, %v359
    %v609 = vsub.f32 %v155, %v359
    %v610 = vsub.f32 %v159, %v359
    %v611 = vsub.f32 %v131, %v364
    %v612 = vsub.f32 %v135, %v364
    %v613 = vsub.f32 %v139, %v364
    %v614 = vsub.f32 %v143, %v364
    %v615 = vsub.f32 %v147, %v364
    %v616 = vsub.f32 %v151, %v364
    %v617 = vsub.f32 %v155, %v364
    %v618 = vsub.f32 %v159, %v364
    %v619 = vsub.f32 %v131, %v369
    %v620 = vsub.f32 %v135, %v369
    %v621 = vsub.f32 %v139, %v369
    %v622 = vsub.f32 %v143, %v369
    %v623 = vsub.f32 %v147, %v369
    %v624 = vsub.f32 %v151, %v369
    %v625 = vsub.f32 %v155, %v369
    %v626 = vsub.f32 %v159, %v369
    %v627 = vand.u32 2147483647, %v371
    %v628 = vand.u32 2147483647, %v372
    %v629 = vand.u32 2147483647, %v373
    %v630 = vand.u32 2147483647, %v374
    %v631 = vand.u32 2147483647, %v375
    %v632 = vand.u32 2147483647, %v376
    %v633 = vand.u32 2147483647, %v377
    %v634 = vand.u32 2147483647, %v378
    %v635 = vand.u32 2147483647, %v379
    %v636 = vand.u32 2147483647, %v380
    %v637 = vand.u32 2147483647, %v381
    %v638 = vand.u32 2147483647, %v382
    %v639 = vand.u32 2147483647, %v383
    %v640 = vand.u32 2147483647, %v384
    %v641 = vand.u32 2147483647, %v385
    %v642 = vand.u32 2147483647, %v386
    %v643 = vand.u32 2147483647, %v387
    %v644 = vand.u32 2147483647, %v388
    %v645 = vand.u32 2147483647, %v389
    %v646 = vand.u32 2147483647, %v390
    %v647 = vand.u32 2147483647, %v391
    %v648 = vand.u32 2147483647, %v392
    %v649 = vand.u32 2147483647, %v393
    %v650 = vand.u32 2147483647, %v394
    %v651 = vand.u32 2147483647, %v395
    %v652 = vand.u32 2147483647, %v396
    %v653 = vand.u32 2147483647, %v397
    %v654 = vand.u32 2147483647, %v398
    %v655 = vand.u32 2147483647, %v399
    %v656 = vand.u32 2147483647, %v400
    %v657 = vand.u32 2147483647, %v401
    %v658 = vand.u32 2147483647, %v402
    %v659 = vand.u32 2147483647, %v403
    %v660 = vand.u32 2147483647, %v404
    %v661 = vand.u32 2147483647, %v405
    %v662 = vand.u32 2147483647, %v406
    %v663 = vand.u32 2147483647, %v407
    %v664 = vand.u32 2147483647, %v408
    %v665 = vand.u32 2147483647, %v409
    %v666 = vand.u32 2147483647, %v410
    %v667 = vand.u32 2147483647, %v411
    %v668 = vand.u32 2147483647, %v412
    %v669 = vand.u32 2147483647, %v413
    %v670 = vand.u32 2147483647, %v414
    %v671 = vand.u32 2147483647, %v415
    %v672 = vand.u32 2147483647, %v416
    %v673 = vand.u32 2147483647, %v417
    %v674 = vand.u32 2147483647, %v418
    %v675 = vand.u32 2147483647, %v419
    %v676 = vand.u32 2147483647, %v420
    %v677 = vand.u32 2147483647, %v421
    %v678 = vand.u32 2147483647, %v422
    %v679 = vand.u32 2147483647, %v423
    %v680 = vand.u32 2147483647, %v424
    %v681 = vand.u32 2147483647, %v425
    %v682 = vand.u32 2147483647, %v426
    %v683 = vand.u32 2147483647, %v427
    %v684 = vand.u32 2147483647, %v428
    %v685 = vand.u32 2147483647, %v429
    %v686 = vand.u32 2147483647, %v430
    %v687 = vand.u32 2147483647, %v431
    %v688 = vand.u32 2147483647, %v432
    %v689 = vand.u32 2147483647, %v433
    %v690 = vand.u32 2147483647, %v434
    %v691 = vand.u32 2147483647, %v435
    %v692 = vand.u32 2147483647, %v436
    %v693 = vand.u32 2147483647, %v437
    %v694 = vand.u32 2147483647, %v438
    %v695 = vand.u32 2147483647, %v439
    %v696 = vand.u32 2147483647, %v440
    %v697 = vand.u32 2147483647, %v441
    %v698 = vand.u32 2147483647, %v442
    %v699 = vand.u32 2147483647, %v443
    %v700 = vand.u32 2147483647, %v444
    %v701 = vand.u32 2147483647, %v445
    %v702 = vand.u32 2147483647, %v446
    %v703 = vand.u32 2147483647, %v447
    %v704 = vand.u32 2147483647, %v448
    %v705 = vand.u32 2147483647, %v449
    %v706 = vand.u32 2147483647, %v450
    %v707 = vand.u32 2147483647, %v451
    %v708 = vand.u32 2147483647, %v452
    %v709 = vand.u32 2147483647, %v453
    %v710 = vand.u32 2147483647, %v454
    %v711 = vand.u32 2147483647, %v455
    %v712 = vand.u32 2147483647, %v456
    %v713 = vand.u32 2147483647, %v457
    %v714 = vand.u32 2147483647, %v458
    %v715 = vand.u32 2147483647, %v459
    %v716 = vand.u32 2147483647, %v460
    %v717 = vand.u32 2147483647, %v461
    %v718 = vand.u32 2147483647, %v462
    %v719 = vand.u32 2147483647, %v463
    %v720 = vand.u32 2147483647, %v464
    %v721 = vand.u32 2147483647, %v465
    %v722 = vand.u32 2147483647, %v466
    %v723 = vand.u32 2147483647, %v467
    %v724 = vand.u32 2147483647, %v468
    %v725 = vand.u32 2147483647, %v469
    %v726 = vand.u32 2147483647, %v470
    %v727 = vand.u32 2147483647, %v471
    %v728 = vand.u32 2147483647, %v472
    %v729 = vand.u32 2147483647, %v473
    %v730 = vand.u32 2147483647, %v474
    %v731 = vand.u32 2147483647, %v475
    %v732 = vand.u32 2147483647, %v476
    %v733 = vand.u32 2147483647, %v477
    %v734 = vand.u32 2147483647, %v478
    %v735 = vand.u32 2147483647, %v479
    %v736 = vand.u32 2147483647, %v480
    %v737 = vand.u32 2147483647, %v481
    %v738 = vand.u32 2147483647, %v482
    %v739 = vand.u32 2147483647, %v483
    %v740 = vand.u32 2147483647, %v484
    %v741 = vand.u32 2147483647, %v485
    %v742 = vand.u32 2147483647, %v486
    %v743 = vand.u32 2147483647, %v487
    %v744 = vand.u32 2147483647, %v488
    %v745 = vand.u32 2147483647, %v489
    %v746 = vand.u32 2147483647, %v490
    %v747 = vand.u32 2147483647, %v491
    %v748 = vand.u32 2147483647, %v492
    %v749 = vand.u32 2147483647, %v493
    %v750 = vand.u32 2147483647, %v494
    %v751 = vand.u32 2147483647, %v495
    %v752 = vand.u32 2147483647, %v496
    %v753 = vand.u32 2147483647, %v497
    %v754 = vand.u32 2147483647, %v498
    %v755 = vand.u32 2147483647, %v499
    %v756 = vand.u32 2147483647, %v500
    %v757 = vand.u32 2147483647, %v501
    %v758 = vand.u32 2147483647, %v502
    %v759 = vand.u32 2147483647, %v503
    %v760 = vand.u32 2147483647, %v504
    %v761 = vand.u32 2147483647, %v505
    %v762 = vand.u32 2147483647, %v506
    %v763 = vand.u32 2147483647, %v507
    %v764 = vand.u32 2147483647, %v508
    %v765 = vand.u32 2147483647, %v509
    %v766 = vand.u32 2147483647, %v510
    %v767 = vand.u32 2147483647, %v511
    %v768 = vand.u32 2147483647, %v512
    %v769 = vand.u32 2147483647, %v513
    %v770 = vand.u32 2147483647, %v514
    %v771 = vand.u32 2147483647, %v515
    %v772 = vand.u32 2147483647, %v516
    %v773 = vand.u32 2147483647, %v517
    %v774 = vand.u32 2147483647, %v518
    %v775 = vand.u32 2147483647, %v519
    %v776 = vand.u32 2147483647, %v520
    %v777 = vand.u32 2147483647, %v521
    %v778 = vand.u32 2147483647, %v522
    %v779 = vand.u32 2147483647, %v523
    %v780 = vand.u32 2147483647, %v524
    %v781 = vand.u32 2147483647, %v525
    %v782 = vand.u32 2147483647, %v526
    %v783 = vand.u32 2147483647, %v527
    %v784 = vand.u32 2147483647, %v528
    %v785 = vand.u32 2147483647, %v529
    %v786 = vand.u32 2147483647, %v530
    %v787 = vand.u32 2147483647, %v531
    %v788 = vand.u32 2147483647, %v532
    %v789 = vand.u32 2147483647, %v533
    %v790 = vand.u32 2147483647, %v534
    %v791 = vand.u32 2147483647, %v535
    %v792 = vand.u32 2147483647, %v536
    %v793 = vand.u32 2147483647, %v537
    %v794 = vand.u32 2147483647, %v538
    %v795 = vand.u32 2147483647, %v539
    %v796 = vand.u32 2147483647, %v540
    %v797 = vand.u32 2147483647, %v541
    %v798 = vand.u32 2147483647, %v542
    %v799 = vand.u32 2147483647, %v543
    %v800 = vand.u32 2147483647, %v544
    %v801 = vand.u32 2147483647, %v545
    %v802 = vand.u32 2147483647, %v546
    %v803 = vand.u32 2147483647, %v547
    %v804 = vand.u32 2147483647, %v548
    %v805 = vand.u32 2147483647, %v549
    %v806 = vand.u32 2147483647, %v550
    %v807 = vand.u32 2147483647, %v551
    %v808 = vand.u32 2147483647, %v552
    %v809 = vand.u32 2147483647, %v553
    %v810 = vand.u32 2147483647, %v554
    %v811 = vand.u32 2147483647, %v555
    %v812 = vand.u32 2147483647, %v556
    %v813 = vand.u32 2147483647, %v557
    %v814 = vand.u32 2147483647, %v558
    %v815 = vand.u32 2147483647, %v559
    %v816 = vand.u32 2147483647, %v560
    %v817 = vand.u32 2147483647, %v561
    %v818 = vand.u32 2147483647, %v562
    %v819 = vand.u32 2147483647, %v563
    %v820 = vand.u32 2147483647, %v564
    %v821 = vand.u32 2147483647, %v565
    %v822 = vand.u32 2147483647, %v566
    %v823 = vand.u32 2147483647, %v567
    %v824 = vand.u32 2147483647, %v568
    %v825 = vand.u32 2147483647, %v569
    %v826 = vand.u32 2147483647, %v570
    %v827 = vand.u32 2147483647, %v571
    %v828 = vand.u32 2147483647, %v572
    %v829 = vand.u32 2147483647, %v573
    %v830 = vand.u32 2147483647, %v574
    %v831 = vand.u32 2147483647, %v575
    %v832 = vand.u32 2147483647, %v576
    %v833 = vand.u32 2147483647, %v577
    %v834 = vand.u32 2147483647, %v578
    %v835 = vand.u32 2147483647, %v579
    %v836 = vand.u32 2147483647, %v580
    %v837 = vand.u32 2147483647, %v581
    %v838 = vand.u32 2147483647, %v582
    %v839 = vand.u32 2147483647, %v583
    %v840 = vand.u32 2147483647, %v584
    %v841 = vand.u32 2147483647, %v585
    %v842 = vand.u32 2147483647, %v586
    %v843 = vand.u32 2147483647, %v587
    %v844 = vand.u32 2147483647, %v588
    %v845 = vand.u32 2147483647, %v589
    %v846 = vand.u32 2147483647, %v590
    %v847 = vand.u32 2147483647, %v591
    %v848 = vand.u32 2147483647, %v592
    %v849 = vand.u32 2147483647, %v593
    %v850 = vand.u32 2147483647, %v594
    %v851 = vand.u32 2147483647, %v595
    %v852 = vand.u32 2147483647, %v596
    %v853 = vand.u32 2147483647, %v597
    %v854 = vand.u32 2147483647, %v598
    %v855 = vand.u32 2147483647, %v599
    %v856 = vand.u32 2147483647, %v600
    %v857 = vand.u32 2147483647, %v601
    %v858 = vand.u32 2147483647, %v602
    %v859 = vand.u32 2147483647, %v603
    %v860 = vand.u32 2147483647, %v604
    %v861 = vand.u32 2147483647, %v605
    %v862 = vand.u32 2147483647, %v606
    %v863 = vand.u32 2147483647, %v607
    %v864 = vand.u32 2147483647, %v608
    %v865 = vand.u32 2147483647, %v609
    %v866 = vand.u32 2147483647, %v610
    %v867 = vand.u32 2147483647, %v611
    %v868 = vand.u32 2147483647, %v612
    %v869 = vand.u32 2147483647, %v613
    %v870 = vand.u32 2147483647, %v614
    %v871 = vand.u32 2147483647, %v615
    %v872 = vand.u32 2147483647, %v616
    %v873 = vand.u32 2147483647, %v617
    %v874 = vand.u32 2147483647, %v618
    %v875 = vand.u32 2147483647, %v619
    %v876 = vand.u32 2147483647, %v620
    %v877 = vand.u32 2147483647, %v621
    %v878 = vand.u32 2147483647, %v622
    %v879 = vand.u32 2147483647, %v623
    %v880 = vand.u32 2147483647, %v624
    %v881 = vand.u32 2147483647, %v625
    %v882 = vand.u32 2147483647, %v626
    %v883 = vsub.f32 1.0, %v627
    %v884 = vsub.f32 1.0, %v628
    %v885 = vsub.f32 1.0, %v629
    %v886 = vsub.f32 1.0, %v630
    %v887 = vsub.f32 1.0, %v631
    %v888 = vsub.f32 1.0, %v632
    %v889 = vsub.f32 1.0, %v633
    %v890 = vsub.f32 1.0, %v634
    %v891 = vsub.f32 1.0, %v635
    %v892 = vsub.f32 1.0, %v636
    %v893 = vsub.f32 1.0, %v637
    %v894 = vsub.f32 1.0, %v638
    %v895 = vsub.f32 1.0, %v639
    %v896 = vsub.f32 1.0, %v640
    %v897 = vsub.f32 1.0, %v641
    %v898 = vsub.f32 1.0, %v642
    %v899 = vsub.f32 1.0, %v643
    %v900 = vsub.f32 1.0, %v644
    %v901 = vsub.f32 1.0, %v645
    %v902 = vsub.f32 1.0, %v646
    %v903 = vsub.f32 1.0, %v647
    %v904 = vsub.f32 1.0, %v648
    %v905 = vsub.f32 1.0, %v649
    %v906 = vsub.f32 1.0, %v650
    %v907 = vsub.f32 1.0, %v651
    %v908 = vsub.f32 1.0, %v652
    %v909 = vsub.f32 1.0, %v653
    %v910 = vsub.f32 1.0, %v654
    %v911 = vsub.f32 1.0, %v655
    %v912 = vsub.f32 1.0, %v656
    %v913 = vsub.f32 1.0, %v657
    %v914 = vsub.f32 1.0, %v658
    %v915 = vsub.f32 1.0, %v659
    %v916 = vsub.f32 1.0, %v660
    %v917 = vsub.f32 1.0, %v661
    %v918 = vsub.f32 1.0, %v662
    %v919 = vsub.f32 1.0, %v663
    %v920 = vsub.f32 1.0, %v664
    %v921 = vsub.f32 1.0, %v665
    %v922 = vsub.f32 1.0, %v666
    %v923 = vsub.f32 1.0, %v667
    %v924 = vsub.f32 1.0, %v668
    %v925 = vsub.f32 1.0, %v669
    %v926 = vsub.f32 1.0, %v670
    %v927 = vsub.f32 1.0, %v671
    %v928 = vsub.f32 1.0, %v672
    %v929 = vsub.f32 1.0, %v673
    %v930 = vsub.f32 1.0, %v674
    %v931 = vsub.f32 1.0, %v675
    %v932 = vsub.f32 1.0, %v676
    %v933 = vsub.f32 1.0, %v677
    %v934 = vsub.f32 1.0, %v678
    %v935 = vsub.f32 1.0, %v679
    %v936 = vsub.f32 1.0, %v680
    %v937 = vsub.f32 1.0, %v681
    %v938 = vsub.f32 1.0, %v682
    %v939 = vsub.f32 1.0, %v683
    %v940 = vsub.f32 1.0, %v684
    %v941 = vsub.f32 1.0, %v685
    %v942 = vsub.f32 1.0, %v686
    %v943 = vsub.f32 1.0, %v687
    %v944 = vsub.f32 1.0, %v688
    %v945 = vsub.f32 1.0, %v689
    %v946 = vsub.f32 1.0, %v690
    %v947 = vsub.f32 1.0, %v691
    %v948 = vsub.f32 1.0, %v692
    %v949 = vsub.f32 1.0, %v693
    %v950 = vsub.f32 1.0, %v694
    %v951 = vsub.f32 1.0, %v695
    %v952 = vsub.f32 1.0, %v696
    %v953 = vsub.f32 1.0, %v697
    %v954 = vsub.f32 1.0, %v698
    %v955 = vsub.f32 1.0, %v699
    %v956 = vsub.f32 1.0, %v700
    %v957 = vsub.f32 1.0, %v701
    %v958 = vsub.f32 1.0, %v702
    %v959 = vsub.f32 1.0, %v703
    %v960 = vsub.f32 1.0, %v704
    %v961 = vsub.f32 1.0, %v705
    %v962 = vsub.f32 1.0, %v706
    %v963 = vsub.f32 1.0, %v707
    %v964 = vsub.f32 1.0, %v708
    %v965 = vsub.f32 1.0, %v709
    %v966 = vsub.f32 1.0, %v710
    %v967 = vsub.f32 1.0, %v711
    %v968 = vsub.f32 1.0, %v712
    %v969 = vsub.f32 1.0, %v713
    %v970 = vsub.f32 1.0, %v714
    %v971 = vsub.f32 1.0, %v715
    %v972 = vsub.f32 1.0, %v716
    %v973 = vsub.f32 1.0, %v717
    %v974 = vsub.f32 1.0, %v718
    %v975 = vsub.f32 1.0, %v719
    %v976 = vsub.f32 1.0, %v720
    %v977 = vsub.f32 1.0, %v721
    %v978 = vsub.f32 1.0, %v722
    %v979 = vsub.f32 1.0, %v723
    %v980 = vsub.f32 1.0, %v724
    %v981 = vsub.f32 1.0, %v725
    %v982 = vsub.f32 1.0, %v726
    %v983 = vsub.f32 1.0, %v727
    %v984 = vsub.f32 1.0, %v728
    %v985 = vsub.f32 1.0, %v729
    %v986 = vsub.f32 1.0, %v730
    %v987 = vsub.f32 1.0, %v731
    %v988 = vsub.f32 1.0, %v732
    %v989 = vsub.f32 1.0, %v733
    %v990 = vsub.f32 1.0, %v734
    %v991 = vsub.f32 1.0, %v735
    %v992 = vsub.f32 1.0, %v736
    %v993 = vsub.f32 1.0, %v737
    %v994 = vsub.f32 1.0, %v738
    %v995 = vsub.f32 1.0, %v739
    %v996 = vsub.f32 1.0, %v740
    %v997 = vsub.f32 1.0, %v741
    %v998 = vsub.f32 1.0, %v742
    %v999 = vsub.f32 1.0, %v743
    %v1000 = vsub.f32 1.0, %v744
    %v1001 = vsub.f32 1.0, %v745
    %v1002 = vsub.f32 1.0, %v746
    %v1003 = vsub.f32 1.0, %v747
    %v1004 = vsub.f32 1.0, %v748
    %v1005 = vsub.f32 1.0, %v749
    %v1006 = vsub.f32 1.0, %v750
    %v1007 = vsub.f32 1.0, %v751
    %v1008 = vsub.f32 1.0, %v752
    %v1009 = vsub.f32 1.0, %v753
    %v1010 = vsub.f32 1.0, %v754
    %v1011 = vsub.f32 1.0, %v755
    %v1012 = vsub.f32 1.0, %v756
    %v1013 = vsub.f32 1.0, %v757
    %v1014 = vsub.f32 1.0, %v758
    %v1015 = vsub.f32 1.0, %v759
    %v1016 = vsub.f32 1.0, %v760
    %v1017 = vsub.f32 1.0, %v761
    %v1018 = vsub.f32 1.0, %v762
    %v1019 = vsub.f32 1.0, %v763
    %v1020 = vsub.f32 1.0, %v764
    %v1021 = vsub.f32 1.0, %v765
    %v1022 = vsub.f32 1.0, %v766
    %v1023 = vsub.f32 1.0, %v767
    %v1024 = vsub.f32 1.0, %v768
    %v1025 = vsub.f32 1.0, %v769
    %v1026 = vsub.f32 1.0, %v770
    %v1027 = vsub.f32 1.0, %v771
    %v1028 = vsub.f32 1.0, %v772
    %v1029 = vsub.f32 1.0, %v773
    %v1030 = vsub.f32 1.0, %v774
    %v1031 = vsub.f32 1.0, %v775
    %v1032 = vsub.f32 1.0, %v776
    %v1033 = vsub.f32 1.0, %v777
    %v1034 = vsub.f32 1.0, %v778
    %v1035 = vsub.f32 1.0, %v779
    %v1036 = vsub.f32 1.0, %v780
    %v1037 = vsub.f32 1.0, %v781
    %v1038 = vsub.f32 1.0, %v782
    %v1039 = vsub.f32 1.0, %v783
    %v1040 = vsub.f32 1.0, %v784
    %v1041 = vsub.f32 1.0, %v785
    %v1042 = vsub.f32 1.0, %v786
    %v1043 = vsub.f32 1.0, %v787
    %v1044 = vsub.f32 1.0, %v788
    %v1045 = vsub.f32 1.0, %v789
    %v1046 = vsub.f32 1.0, %v790
    %v1047 = vsub.f32 1.0, %v791
    %v1048 = vsub.f32 1.0, %v792
    %v1049 = vsub.f32 1.0, %v793
    %v1050 = vsub.f32 1.0, %v794
    %v1051 = vsub.f32 1.0, %v795
    %v1052 = vsub.f32 1.0, %v796
    %v1053 = vsub.f32 1.0, %v797
    %v1054 = vsub.f32 1.0, %v798
    %v1055 = vsub.f32 1.0, %v799
    %v1056 = vsub.f32 1.0, %v800
    %v1057 = vsub.f32 1.0, %v801
    %v1058 = vsub.f32 1.0, %v802
    %v1059 = vsub.f32 1.0, %v803
    %v1060 = vsub.f32 1.0, %v804
    %v1061 = vsub.f32 1.0, %v805
    %v1062 = vsub.f32 1.0, %v806
    %v1063 = vsub.f32 1.0, %v807
    %v1064 = vsub.f32 1.0, %v808
    %v1065 = vsub.f32 1.0, %v809
    %v1066 = vsub.f32 1.0, %v810
    %v1067 = vsub.f32 1.0, %v811
    %v1068 = vsub.f32 1.0, %v812
    %v1069 = vsub.f32 1.0, %v813
    %v1070 = vsub.f32 1.0, %v814
    %v1071 = vsub.f32 1.0, %v815
    %v1072 = vsub.f32 1.0, %v816
    %v1073 = vsub.f32 1.0, %v817
    %v1074 = vsub.f32 1.0, %v818
    %v1075 = vsub.f32 1.0, %v819
    %v1076 = vsub.f32 1.0, %v820
    %v1077 = vsub.f32 1.0, %v821
    %v1078 = vsub.f32 1.0, %v822
    %v1079 = vsub.f32 1.0, %v823
    %v1080 = vsub.f32 1.0, %v824
    %v1081 = vsub.f32 1.0, %v825
    %v1082 = vsub.f32 1.0, %v826
    %v1083 = vsub.f32 1.0, %v827
    %v1084 = vsub.f32 1.0, %v828
    %v1085 = vsub.f32 1.0, %v829
    %v1086 = vsub.f32 1.0, %v830
    %v1087 = vsub.f32 1.0, %v831
    %v1088 = vsub.f32 1.0, %v832
    %v1089 = vsub.f32 1.0, %v833
    %v1090 = vsub.f32 1.0, %v834
    %v1091 = vsub.f32 1.0, %v835
    %v1092 = vsub.f32 1.0, %v836
    %v1093 = vsub.f32 1.0, %v837
    %v1094 = vsub.f32 1.0, %v838
    %v1095 = vsub.f32 1.0, %v839
    %v1096 = vsub.f32 1.0, %v840
    %v1097 = vsub.f32 1.0, %v841
    %v1098 = vsub.f32 1.0, %v842
    %v1099 = vsub.f32 1.0, %v843
    %v1100 = vsub.f32 1.0, %v844
    %v1101 = vsub.f32 1.0, %v845
    %v1102 = vsub.f32 1.0, %v846
    %v1103 = vsub.f32 1.0, %v847
    %v1104 = vsub.f32 1.0, %v848
    %v1105 = vsub.f32 1.0, %v849
    %v1106 = vsub.f32 1.0, %v850
    %v1107 = vsub.f32 1.0, %v851
    %v1108 = vsub.f32 1.0, %v852
    %v1109 = vsub.f32 1.0, %v853
    %v1110 = vsub.f32 1.0, %v854
    %v1111 = vsub.f32 1.0, %v855
    %v1112 = vsub.f32 1.0, %v856
    %v1113 = vsub.f32 1.0, %v857
    %v1114 = vsub.f32 1.0, %v858
    %v1115 = vsub.f32 1.0, %v859
    %v1116 = vsub.f32 1.0, %v860
    %v1117 = vsub.f32 1.0, %v861
    %v1118 = vsub.f32 1.0, %v862
    %v1119 = vsub.f32 1.0, %v863
    %v1120 = vsub.f32 1.0, %v864
    %v1121 = vsub.f32 1.0, %v865
    %v1122 = vsub.f32 1.0, %v866
    %v1123 = vsub.f32 1.0, %v867
    %v1124 = vsub.f32 1.0, %v868
    %v1125 = vsub.f32 1.0, %v869
    %v1126 = vsub.f32 1.0, %v870
    %v1127 = vsub.f32 1.0, %v871
    %v1128 = vsub.f32 1.0, %v872
    %v1129 = vsub.f32 1.0, %v873
    %v1130 = vsub.f32 1.0, %v874
    %v1131 = vsub.f32 1.0, %v875
    %v1132 = vsub.f32 1.0, %v876
    %v1133 = vsub.f32 1.0, %v877
    %v1134 = vsub.f32 1.0, %v878
    %v1135 = vsub.f32 1.0, %v879
    %v1136 = vsub.f32 1.0, %v880
    %v1137 = vsub.f32 1.0, %v881
    %v1138 = vsub.f32 1.0, %v882
    %v1139 = vmax.f32 %v883, 0.0
    %v1140 = vmax.f32 %v884, 0.0
    %v1141 = vmax.f32 %v885, 0.0
    %v1142 = vmax.f32 %v886, 0.0
    %v1143 = vmax.f32 %v887, 0.0
    %v1144 = vmax.f32 %v888, 0.0
    %v1145 = vmax.f32 %v889, 0.0
    %v1146 = vmax.f32 %v890, 0.0
    %v1147 = vmax.f32 %v891, 0.0
    %v1148 = vmax.f32 %v892, 0.0
    %v1149 = vmax.f32 %v893, 0.0
    %v1150 = vmax.f32 %v894, 0.0
    %v1151 = vmax.f32 %v895, 0.0
    %v1152 = vmax.f32 %v896, 0.0
    %v1153 = vmax.f32 %v897, 0.0
    %v1154 = vmax.f32 %v898, 0.0
    %v1155 = vmax.f32 %v899, 0.0
    %v1156 = vmax.f32 %v900, 0.0
    %v1157 = vmax.f32 %v901, 0.0
    %v1158 = vmax.f32 %v902, 0.0
    %v1159 = vmax.f32 %v903, 0.0
    %v1160 = vmax.f32 %v904, 0.0
    %v1161 = vmax.f32 %v905, 0.0
    %v1162 = vmax.f32 %v906, 0.0
    %v1163 = vmax.f32 %v907, 0.0
    %v1164 = vmax.f32 %v908, 0.0
    %v1165 = vmax.f32 %v909, 0.0
    %v1166 = vmax.f32 %v910, 0.0
    %v1167 = vmax.f32 %v911, 0.0
    %v1168 = vmax.f32 %v912, 0.0
    %v1169 = vmax.f32 %v913, 0.0
    %v1170 = vmax.f32 %v914, 0.0
    %v1171 = vmax.f32 %v915, 0.0
    %v1172 = vmax.f32 %v916, 0.0
    %v1173 = vmax.f32 %v917, 0.0
    %v1174 = vmax.f32 %v918, 0.0
    %v1175 = vmax.f32 %v919, 0.0
    %v1176 = vmax.f32 %v920, 0.0
    %v1177 = vmax.f32 %v921, 0.0
    %v1178 = vmax.f32 %v922, 0.0
    %v1179 = vmax.f32 %v923, 0.0
    %v1180 = vmax.f32 %v924, 0.0
    %v1181 = vmax.f32 %v925, 0.0
    %v1182 = vmax.f32 %v926, 0.0
    %v1183 = vmax.f32 %v927, 0.0
    %v1184 = vmax.f32 %v928, 0.0
    %v1185 = vmax.f32 %v929, 0.0
    %v1186 = vmax.f32 %v930, 0.0
    %v1187 = vmax.f32 %v931, 0.0
    %v1188 = vmax.f32 %v932, 0.0
    %v1189 = vmax.f32 %v933, 0.0
    %v1190 = vmax.f32 %v934, 0.0
    %v1191 = vmax.f32 %v935, 0.0
    %v1192 = vmax.f32 %v936, 0.0
    %v1193 = vmax.f32 %v937, 0.0
    %v1194 = vmax.f32 %v938, 0.0
    %v1195 = vmax.f32 %v939, 0.0
    %v1196 = vmax.f32 %v940, 0.0
    %v1197 = vmax.f32 %v941, 0.0
    %v1198 = vmax.f32 %v942, 0.0
    %v1199 = vmax.f32 %v943, 0.0
    %v1200 = vmax.f32 %v944, 0.0
    %v1201 = vmax.f32 %v945, 0.0
    %v1202 = vmax.f32 %v946, 0.0
    %v1203 = vmax.f32 %v947, 0.0
    %v1204 = vmax.f32 %v948, 0.0
    %v1205 = vmax.f32 %v949, 0.0
    %v1206 = vmax.f32 %v950, 0.0
    %v1207 = vmax.f32 %v951, 0.0
    %v1208 = vmax.f32 %v952, 0.0
    %v1209 = vmax.f32 %v953, 0.0
    %v1210 = vmax.f32 %v954, 0.0
    %v1211 = vmax.f32 %v955, 0.0
    %v1212 = vmax.f32 %v956, 0.0
    %v1213 = vmax.f32 %v957, 0.0
    %v1214 = vmax.f32 %v958, 0.0
    %v1215 = vmax.f32 %v959, 0.0
    %v1216 = vmax.f32 %v960, 0.0
    %v1217 = vmax.f32 %v961, 0.0
    %v1218 = vmax.f32 %v962, 0.0
    %v1219 = vmax.f32 %v963, 0.0
    %v1220 = vmax.f32 %v964, 0.0
    %v1221 = vmax.f32 %v965, 0.0
    %v1222 = vmax.f32 %v966, 0.0
    %v1223 = vmax.f32 %v967, 0.0
    %v1224 = vmax.f32 %v968, 0.0
    %v1225 = vmax.f32 %v969, 0.0
    %v1226 = vmax.f32 %v970, 0.0
    %v1227 = vmax.f32 %v971, 0.0
    %v1228 = vmax.f32 %v972, 0.0
    %v1229 = vmax.f32 %v973, 0.0
    %v1230 = vmax.f32 %v974, 0.0
    %v1231 = vmax.f32 %v975, 0.0
    %v1232 = vmax.f32 %v976, 0.0
    %v1233 = vmax.f32 %v977, 0.0
    %v1234 = vmax.f32 %v978, 0.0
    %v1235 = vmax.f32 %v979, 0.0
    %v1236 = vmax.f32 %v980, 0.0
    %v1237 = vmax.f32 %v981, 0.0
    %v1238 = vmax.f32 %v982, 0.0
    %v1239 = vmax.f32 %v983, 0.0
    %v1240 = vmax.f32 %v984, 0.0
    %v1241 = vmax.f32 %v985, 0.0
    %v1242 = vmax.f32 %v986, 0.0
    %v1243 = vmax.f32 %v987, 0.0
    %v1244 = vmax.f32 %v988, 0.0
    %v1245 = vmax.f32 %v989, 0.0
    %v1246 = vmax.f32 %v990, 0.0
    %v1247 = vmax.f32 %v991, 0.0
    %v1248 = vmax.f32 %v992, 0.0
    %v1249 = vmax.f32 %v993, 0.0
    %v1250 = vmax.f32 %v994, 0.0
    %v1251 = vmax.f32 %v995, 0.0
    %v1252 = vmax.f32 %v996, 0.0
    %v1253 = vmax.f32 %v997, 0.0
    %v1254 = vmax.f32 %v998, 0.0
    %v1255 = vmax.f32 %v999, 0.0
    %v1256 = vmax.f32 %v1000, 0.0
    %v1257 = vmax.f32 %v1001, 0.0
    %v1258 = vmax.f32 %v1002, 0.0
    %v1259 = vmax.f32 %v1003, 0.0
    %v1260 = vmax.f32 %v1004, 0.0
    %v1261 = vmax.f32 %v1005, 0.0
    %v1262 = vmax.f32 %v1006, 0.0
    %v1263 = vmax.f32 %v1007, 0.0
    %v1264 = vmax.f32 %v1008, 0.0
    %v1265 = vmax.f32 %v1009, 0.0
    %v1266 = vmax.f32 %v1010, 0.0
    %v1267 = vmax.f32 %v1011, 0.0
    %v1268 = vmax.f32 %v1012, 0.0
    %v1269 = vmax.f32 %v1013, 0.0
    %v1270 = vmax.f32 %v1014, 0.0
    %v1271 = vmax.f32 %v1015, 0.0
    %v1272 = vmax.f32 %v1016, 0.0
    %v1273 = vmax.f32 %v1017, 0.0
    %v1274 = vmax.f32 %v1018, 0.0
    %v1275 = vmax.f32 %v1019, 0.0
    %v1276 = vmax.f32 %v1020, 0.0
    %v1277 = vmax.f32 %v1021, 0.0
    %v1278 = vmax.f32 %v1022, 0.0
    %v1279 = vmax.f32 %v1023, 0.0
    %v1280 = vmax.f32 %v1024, 0.0
    %v1281 = vmax.f32 %v1025, 0.0
    %v1282 = vmax.f32 %v1026, 0.0
    %v1283 = vmax.f32 %v1027, 0.0
    %v1284 = vmax.f32 %v1028, 0.0
    %v1285 = vmax.f32 %v1029, 0.0
    %v1286 = vmax.f32 %v1030, 0.0
    %v1287 = vmax.f32 %v1031, 0.0
    %v1288 = vmax.f32 %v1032, 0.0
    %v1289 = vmax.f32 %v1033, 0.0
    %v1290 = vmax.f32 %v1034, 0.0
    %v1291 = vmax.f32 %v1035, 0.0
    %v1292 = vmax.f32 %v1036, 0.0
    %v1293 = vmax.f32 %v1037, 0.0
    %v1294 = vmax.f32 %v1038, 0.0
    %v1295 = vmax.f32 %v1039, 0.0
    %v1296 = vmax.f32 %v1040, 0.0
    %v1297 = vmax.f32 %v1041, 0.0
    %v1298 = vmax.f32 %v1042, 0.0
    %v1299 = vmax.f32 %v1043, 0.0
    %v1300 = vmax.f32 %v1044, 0.0
    %v1301 = vmax.f32 %v1045, 0.0
    %v1302 = vmax.f32 %v1046, 0.0
    %v1303 = vmax.f32 %v1047, 0.0
    %v1304 = vmax.f32 %v1048, 0.0
    %v1305 = vmax.f32 %v1049, 0.0
    %v1306 = vmax.f32 %v1050, 0.0
    %v1307 = vmax.f32 %v1051, 0.0
    %v1308 = vmax.f32 %v1052, 0.0
    %v1309 = vmax.f32 %v1053, 0.0
    %v1310 = vmax.f32 %v1054, 0.0
    %v1311 = vmax.f32 %v1055, 0.0
    %v1312 = vmax.f32 %v1056, 0.0
    %v1313 = vmax.f32 %v1057, 0.0
    %v1314 = vmax.f32 %v1058, 0.0
    %v1315 = vmax.f32 %v1059, 0.0
    %v1316 = vmax.f32 %v1060, 0.0
    %v1317 = vmax.f32 %v1061, 0.0
    %v1318 = vmax.f32 %v1062, 0.0
    %v1319 = vmax.f32 %v1063, 0.0
    %v1320 = vmax.f32 %v1064, 0.0
    %v1321 = vmax.f32 %v1065, 0.0
    %v1322 = vmax.f32 %v1066, 0.0
    %v1323 = vmax.f32 %v1067, 0.0
    %v1324 = vmax.f32 %v1068, 0.0
    %v1325 = vmax.f32 %v1069, 0.0
    %v1326 = vmax.f32 %v1070, 0.0
    %v1327 = vmax.f32 %v1071, 0.0
    %v1328 = vmax.f32 %v1072, 0.0
    %v1329 = vmax.f32 %v1073, 0.0
    %v1330 = vmax.f32 %v1074, 0.0
    %v1331 = vmax.f32 %v1075, 0.0
    %v1332 = vmax.f32 %v1076, 0.0
    %v1333 = vmax.f32 %v1077, 0.0
    %v1334 = vmax.f32 %v1078, 0.0
    %v1335 = vmax.f32 %v1079, 0.0
    %v1336 = vmax.f32 %v1080, 0.0
    %v1337 = vmax.f32 %v1081, 0.0
    %v1338 = vmax.f32 %v1082, 0.0
    %v1339 = vmax.f32 %v1083, 0.0
    %v1340 = vmax.f32 %v1084, 0.0
    %v1341 = vmax.f32 %v1085, 0.0
    %v1342 = vmax.f32 %v1086, 0.0
    %v1343 = vmax.f32 %v1087, 0.0
    %v1344 = vmax.f32 %v1088, 0.0
    %v1345 = vmax.f32 %v1089, 0.0
    %v1346 = vmax.f32 %v1090, 0.0
    %v1347 = vmax.f32 %v1091, 0.0
    %v1348 = vmax.f32 %v1092, 0.0
    %v1349 = vmax.f32 %v1093, 0.0
    %v1350 = vmax.f32 %v1094, 0.0
    %v1351 = vmax.f32 %v1095, 0.0
    %v1352 = vmax.f32 %v1096, 0.0
    %v1353 = vmax.f32 %v1097, 0.0
    %v1354 = vmax.f32 %v1098, 0.0
    %v1355 = vmax.f32 %v1099, 0.0
    %v1356 = vmax.f32 %v1100, 0.0
    %v1357 = vmax.f32 %v1101, 0.0
    %v1358 = vmax.f32 %v1102, 0.0
    %v1359 = vmax.f32 %v1103, 0.0
    %v1360 = vmax.f32 %v1104, 0.0
    %v1361 = vmax.f32 %v1105, 0.0
    %v1362 = vmax.f32 %v1106, 0.0
    %v1363 = vmax.f32 %v1107, 0.0
    %v1364 = vmax.f32 %v1108, 0.0
    %v1365 = vmax.f32 %v1109, 0.0
    %v1366 = vmax.f32 %v1110, 0.0
    %v1367 = vmax.f32 %v1111, 0.0
    %v1368 = vmax.f32 %v1112, 0.0
    %v1369 = vmax.f32 %v1113, 0.0
    %v1370 = vmax.f32 %v1114, 0.0
    %v1371 = vmax.f32 %v1115, 0.0
    %v1372 = vmax.f32 %v1116, 0.0
    %v1373 = vmax.f32 %v1117, 0.0
    %v1374 = vmax.f32 %v1118, 0.0
    %v1375 = vmax.f32 %v1119, 0.0
    %v1376 = vmax.f32 %v1120, 0.0
    %v1377 = vmax.f32 %v1121, 0.0
    %v1378 = vmax.f32 %v1122, 0.0
    %v1379 = vmax.f32 %v1123, 0.0
    %v1380 = vmax.f32 %v1124, 0.0
    %v1381 = vmax.f32 %v1125, 0.0
    %v1382 = vmax.f32 %v1126, 0.0
    %v1383 = vmax.f32 %v1127, 0.0
    %v1384 = vmax.f32 %v1128, 0.0
    %v1385 = vmax.f32 %v1129, 0.0
    %v1386 = vmax.f32 %v1130, 0.0
    %v1387 = vmax.f32 %v1131, 0.0
    %v1388 = vmax.f32 %v1132, 0.0
    %v1389 = vmax.f32 %v1133, 0.0
    %v1390 = vmax.f32 %v1134, 0.0
    %v1391 = vmax.f32 %v1135, 0.0
    %v1392 = vmax.f32 %v1136, 0.0
    %v1393 = vmax.f32 %v1137, 0.0
    %v1394 = vmax.f32 %v1138, 0.0
    %1395 = vset.pattern.permute.xlu0 1
    %1396 = vperm.xlu0 %1395, %v94
    %v1397 = vpop.permute.xlu0 %1396
    %1399 = vset.pattern.permute.xlu0 1
    %1400 = vperm.xlu0 %1399, %v95
    %v1401 = vpop.permute.xlu0 %1400
    %1403 = vset.pattern.permute.xlu0 1
    %1404 = vperm.xlu0 %1403, %v96
    %v1405 = vpop.permute.xlu0 %1404
    %1407 = vset.pattern.permute.xlu0 1
    %1408 = vperm.xlu0 %1407, %v97
    %v1409 = vpop.permute.xlu0 %1408
    %1411 = vset.pattern.permute.xlu0 1
    %1412 = vperm.xlu0 %1411, %v98
    %v1413 = vpop.permute.xlu0 %1412
    %1415 = vset.pattern.permute.xlu0 1
    %1416 = vperm.xlu0 %1415, %v99
    %v1417 = vpop.permute.xlu0 %1416
    %1419 = vset.pattern.permute.xlu0 1
    %1420 = vperm.xlu0 %1419, %v100
    %v1421 = vpop.permute.xlu0 %1420
    %1423 = vset.pattern.permute.xlu0 1
    %1424 = vperm.xlu0 %1423, %v101
    %v1425 = vpop.permute.xlu0 %1424
    %1427 = vset.pattern.permute.xlu0 1
    %1428 = vperm.xlu0 %1427, %v102
    %v1429 = vpop.permute.xlu0 %1428
    %1431 = vset.pattern.permute.xlu0 1
    %1432 = vperm.xlu0 %1431, %v103
    %v1433 = vpop.permute.xlu0 %1432
    %1435 = vset.pattern.permute.xlu0 1
    %1436 = vperm.xlu0 %1435, %v104
    %v1437 = vpop.permute.xlu0 %1436
    %1439 = vset.pattern.permute.xlu0 1
    %1440 = vperm.xlu0 %1439, %v105
    %v1441 = vpop.permute.xlu0 %1440
    %1443 = vset.pattern.permute.xlu0 1
    %1444 = vperm.xlu0 %1443, %v106
    %v1445 = vpop.permute.xlu0 %1444
    %1447 = vset.pattern.permute.xlu0 1
    %1448 = vperm.xlu0 %1447, %v107
    %v1449 = vpop.permute.xlu0 %1448
    %1451 = vset.pattern.permute.xlu0 1
    %1452 = vperm.xlu0 %1451, %v108
    %v1453 = vpop.permute.xlu0 %1452
    %1455 = vset.pattern.permute.xlu0 1
    %1456 = vperm.xlu0 %1455, %v109
    %v1457 = vpop.permute.xlu0 %1456
    %1459 = vset.pattern.permute.xlu0 1
    %1460 = vperm.xlu0 %1459, %v110
    %v1461 = vpop.permute.xlu0 %1460
    %1463 = vset.pattern.permute.xlu0 1
    %1464 = vperm.xlu0 %1463, %v111
    %v1465 = vpop.permute.xlu0 %1464
    %1467 = vset.pattern.permute.xlu0 1
    %1468 = vperm.xlu0 %1467, %v112
    %v1469 = vpop.permute.xlu0 %1468
    %1471 = vset.pattern.permute.xlu0 1
    %1472 = vperm.xlu0 %1471, %v113
    %v1473 = vpop.permute.xlu0 %1472
    %1475 = vset.pattern.permute.xlu0 1
    %1476 = vperm.xlu0 %1475, %v114
    %v1477 = vpop.permute.xlu0 %1476
    %1479 = vset.pattern.permute.xlu0 1
    %1480 = vperm.xlu0 %1479, %v115
    %v1481 = vpop.permute.xlu0 %1480
    %1483 = vset.pattern.permute.xlu0 1
    %1484 = vperm.xlu0 %1483, %v116
    %v1485 = vpop.permute.xlu0 %1484
    %1487 = vset.pattern.permute.xlu0 1
    %1488 = vperm.xlu0 %1487, %v117
    %v1489 = vpop.permute.xlu0 %1488
    %1491 = vset.pattern.permute.xlu0 1
    %1492 = vperm.xlu0 %1491, %v118
    %v1493 = vpop.permute.xlu0 %1492
    %1495 = vset.pattern.permute.xlu0 1
    %1496 = vperm.xlu0 %1495, %v119
    %v1497 = vpop.permute.xlu0 %1496
    %1499 = vset.pattern.permute.xlu0 1
    %1500 = vperm.xlu0 %1499, %v120
    %v1501 = vpop.permute.xlu0 %1500
    %1503 = vset.pattern.permute.xlu0 1
    %1504 = vperm.xlu0 %1503, %v121
    %v1505 = vpop.permute.xlu0 %1504
    %1507 = vset.pattern.permute.xlu0 1
    %1508 = vperm.xlu0 %1507, %v122
    %v1509 = vpop.permute.xlu0 %1508
    %1511 = vset.pattern.permute.xlu0 1
    %1512 = vperm.xlu0 %1511, %v123
    %v1513 = vpop.permute.xlu0 %1512
    %1515 = vset.pattern.permute.xlu0 1
    %1516 = vperm.xlu0 %1515, %v124
    %v1517 = vpop.permute.xlu0 %1516
    %1519 = vset.pattern.permute.xlu0 1
    %1520 = vperm.xlu0 %1519, %v125
    %v1521 = vpop.permute.xlu0 %1520
    %v1523 = vsub.f32 %v174, %v1397
    %v1524 = vsub.f32 %v178, %v1397
    %v1525 = vsub.f32 %v182, %v1397
    %v1526 = vsub.f32 %v186, %v1397
    %v1527 = vsub.f32 %v190, %v1397
    %v1528 = vsub.f32 %v194, %v1397
    %v1529 = vsub.f32 %v198, %v1397
    %v1530 = vsub.f32 %v202, %v1397
    %v1531 = vsub.f32 %v174, %v1401
    %v1532 = vsub.f32 %v178, %v1401
    %v1533 = vsub.f32 %v182, %v1401
    %v1534 = vsub.f32 %v186, %v1401
    %v1535 = vsub.f32 %v190, %v1401
    %v1536 = vsub.f32 %v194, %v1401
    %v1537 = vsub.f32 %v198, %v1401
    %v1538 = vsub.f32 %v202, %v1401
    %v1539 = vsub.f32 %v174, %v1405
    %v1540 = vsub.f32 %v178, %v1405
    %v1541 = vsub.f32 %v182, %v1405
    %v1542 = vsub.f32 %v186, %v1405
    %v1543 = vsub.f32 %v190, %v1405
    %v1544 = vsub.f32 %v194, %v1405
    %v1545 = vsub.f32 %v198, %v1405
    %v1546 = vsub.f32 %v202, %v1405
    %v1547 = vsub.f32 %v174, %v1409
    %v1548 = vsub.f32 %v178, %v1409
    %v1549 = vsub.f32 %v182, %v1409
    %v1550 = vsub.f32 %v186, %v1409
    %v1551 = vsub.f32 %v190, %v1409
    %v1552 = vsub.f32 %v194, %v1409
    %v1553 = vsub.f32 %v198, %v1409
    %v1554 = vsub.f32 %v202, %v1409
    %v1555 = vsub.f32 %v174, %v1413
    %v1556 = vsub.f32 %v178, %v1413
    %v1557 = vsub.f32 %v182, %v1413
    %v1558 = vsub.f32 %v186, %v1413
    %v1559 = vsub.f32 %v190, %v1413
    %v1560 = vsub.f32 %v194, %v1413
    %v1561 = vsub.f32 %v198, %v1413
    %v1562 = vsub.f32 %v202, %v1413
    %v1563 = vsub.f32 %v174, %v1417
    %v1564 = vsub.f32 %v178, %v1417
    %v1565 = vsub.f32 %v182, %v1417
    %v1566 = vsub.f32 %v186, %v1417
    %v1567 = vsub.f32 %v190, %v1417
    %v1568 = vsub.f32 %v194, %v1417
    %v1569 = vsub.f32 %v198, %v1417
    %v1570 = vsub.f32 %v202, %v1417
    %v1571 = vsub.f32 %v174, %v1421
    %v1572 = vsub.f32 %v178, %v1421
    %v1573 = vsub.f32 %v182, %v1421
    %v1574 = vsub.f32 %v186, %v1421
    %v1575 = vsub.f32 %v190, %v1421
    %v1576 = vsub.f32 %v194, %v1421
    %v1577 = vsub.f32 %v198, %v1421
    %v1578 = vsub.f32 %v202, %v1421
    %v1579 = vsub.f32 %v174, %v1425
    %v1580 = vsub.f32 %v178, %v1425
    %v1581 = vsub.f32 %v182, %v1425
    %v1582 = vsub.f32 %v186, %v1425
    %v1583 = vsub.f32 %v190, %v1425
    %v1584 = vsub.f32 %v194, %v1425
    %v1585 = vsub.f32 %v198, %v1425
    %v1586 = vsub.f32 %v202, %v1425
    %v1587 = vsub.f32 %v174, %v1429
    %v1588 = vsub.f32 %v178, %v1429
    %v1589 = vsub.f32 %v182, %v1429
    %v1590 = vsub.f32 %v186, %v1429
    %v1591 = vsub.f32 %v190, %v1429
    %v1592 = vsub.f32 %v194, %v1429
    %v1593 = vsub.f32 %v198, %v1429
    %v1594 = vsub.f32 %v202, %v1429
    %v1595 = vsub.f32 %v174, %v1433
    %v1596 = vsub.f32 %v178, %v1433
    %v1597 = vsub.f32 %v182, %v1433
    %v1598 = vsub.f32 %v186, %v1433
    %v1599 = vsub.f32 %v190, %v1433
    %v1600 = vsub.f32 %v194, %v1433
    %v1601 = vsub.f32 %v198, %v1433
    %v1602 = vsub.f32 %v202, %v1433
    %v1603 = vsub.f32 %v174, %v1437
    %v1604 = vsub.f32 %v178, %v1437
    %v1605 = vsub.f32 %v182, %v1437
    %v1606 = vsub.f32 %v186, %v1437
    %v1607 = vsub.f32 %v190, %v1437
    %v1608 = vsub.f32 %v194, %v1437
    %v1609 = vsub.f32 %v198, %v1437
    %v1610 = vsub.f32 %v202, %v1437
    %v1611 = vsub.f32 %v174, %v1441
    %v1612 = vsub.f32 %v178, %v1441
    %v1613 = vsub.f32 %v182, %v1441
    %v1614 = vsub.f32 %v186, %v1441
    %v1615 = vsub.f32 %v190, %v1441
    %v1616 = vsub.f32 %v194, %v1441
    %v1617 = vsub.f32 %v198, %v1441
    %v1618 = vsub.f32 %v202, %v1441
    %v1619 = vsub.f32 %v174, %v1445
    %v1620 = vsub.f32 %v178, %v1445
    %v1621 = vsub.f32 %v182, %v1445
    %v1622 = vsub.f32 %v186, %v1445
    %v1623 = vsub.f32 %v190, %v1445
    %v1624 = vsub.f32 %v194, %v1445
    %v1625 = vsub.f32 %v198, %v1445
    %v1626 = vsub.f32 %v202, %v1445
    %v1627 = vsub.f32 %v174, %v1449
    %v1628 = vsub.f32 %v178, %v1449
    %v1629 = vsub.f32 %v182, %v1449
    %v1630 = vsub.f32 %v186, %v1449
    %v1631 = vsub.f32 %v190, %v1449
    %v1632 = vsub.f32 %v194, %v1449
    %v1633 = vsub.f32 %v198, %v1449
    %v1634 = vsub.f32 %v202, %v1449
    %v1635 = vsub.f32 %v174, %v1453
    %v1636 = vsub.f32 %v178, %v1453
    %v1637 = vsub.f32 %v182, %v1453
    %v1638 = vsub.f32 %v186, %v1453
    %v1639 = vsub.f32 %v190, %v1453
    %v1640 = vsub.f32 %v194, %v1453
    %v1641 = vsub.f32 %v198, %v1453
    %v1642 = vsub.f32 %v202, %v1453
    %v1643 = vsub.f32 %v174, %v1457
    %v1644 = vsub.f32 %v178, %v1457
    %v1645 = vsub.f32 %v182, %v1457
    %v1646 = vsub.f32 %v186, %v1457
    %v1647 = vsub.f32 %v190, %v1457
    %v1648 = vsub.f32 %v194, %v1457
    %v1649 = vsub.f32 %v198, %v1457
    %v1650 = vsub.f32 %v202, %v1457
    %v1651 = vsub.f32 %v174, %v1461
    %v1652 = vsub.f32 %v178, %v1461
    %v1653 = vsub.f32 %v182, %v1461
    %v1654 = vsub.f32 %v186, %v1461
    %v1655 = vsub.f32 %v190, %v1461
    %v1656 = vsub.f32 %v194, %v1461
    %v1657 = vsub.f32 %v198, %v1461
    %v1658 = vsub.f32 %v202, %v1461
    %v1659 = vsub.f32 %v174, %v1465
    %v1660 = vsub.f32 %v178, %v1465
    %v1661 = vsub.f32 %v182, %v1465
    %v1662 = vsub.f32 %v186, %v1465
    %v1663 = vsub.f32 %v190, %v1465
    %v1664 = vsub.f32 %v194, %v1465
    %v1665 = vsub.f32 %v198, %v1465
    %v1666 = vsub.f32 %v202, %v1465
    %v1667 = vsub.f32 %v174, %v1469
    %v1668 = vsub.f32 %v178, %v1469
    %v1669 = vsub.f32 %v182, %v1469
    %v1670 = vsub.f32 %v186, %v1469
    %v1671 = vsub.f32 %v190, %v1469
    %v1672 = vsub.f32 %v194, %v1469
    %v1673 = vsub.f32 %v198, %v1469
    %v1674 = vsub.f32 %v202, %v1469
    %v1675 = vsub.f32 %v174, %v1473
    %v1676 = vsub.f32 %v178, %v1473
    %v1677 = vsub.f32 %v182, %v1473
    %v1678 = vsub.f32 %v186, %v1473
    %v1679 = vsub.f32 %v190, %v1473
    %v1680 = vsub.f32 %v194, %v1473
    %v1681 = vsub.f32 %v198, %v1473
    %v1682 = vsub.f32 %v202, %v1473
    %v1683 = vsub.f32 %v174, %v1477
    %v1684 = vsub.f32 %v178, %v1477
    %v1685 = vsub.f32 %v182, %v1477
    %v1686 = vsub.f32 %v186, %v1477
    %v1687 = vsub.f32 %v190, %v1477
    %v1688 = vsub.f32 %v194, %v1477
    %v1689 = vsub.f32 %v198, %v1477
    %v1690 = vsub.f32 %v202, %v1477
    %v1691 = vsub.f32 %v174, %v1481
    %v1692 = vsub.f32 %v178, %v1481
    %v1693 = vsub.f32 %v182, %v1481
    %v1694 = vsub.f32 %v186, %v1481
    %v1695 = vsub.f32 %v190, %v1481
    %v1696 = vsub.f32 %v194, %v1481
    %v1697 = vsub.f32 %v198, %v1481
    %v1698 = vsub.f32 %v202, %v1481
    %v1699 = vsub.f32 %v174, %v1485
    %v1700 = vsub.f32 %v178, %v1485
    %v1701 = vsub.f32 %v182, %v1485
    %v1702 = vsub.f32 %v186, %v1485
    %v1703 = vsub.f32 %v190, %v1485
    %v1704 = vsub.f32 %v194, %v1485
    %v1705 = vsub.f32 %v198, %v1485
    %v1706 = vsub.f32 %v202, %v1485
    %v1707 = vsub.f32 %v174, %v1489
    %v1708 = vsub.f32 %v178, %v1489
    %v1709 = vsub.f32 %v182, %v1489
    %v1710 = vsub.f32 %v186, %v1489
    %v1711 = vsub.f32 %v190, %v1489
    %v1712 = vsub.f32 %v194, %v1489
    %v1713 = vsub.f32 %v198, %v1489
    %v1714 = vsub.f32 %v202, %v1489
    %v1715 = vsub.f32 %v174, %v1493
    %v1716 = vsub.f32 %v178, %v1493
    %v1717 = vsub.f32 %v182, %v1493
    %v1718 = vsub.f32 %v186, %v1493
    %v1719 = vsub.f32 %v190, %v1493
    %v1720 = vsub.f32 %v194, %v1493
    %v1721 = vsub.f32 %v198, %v1493
    %v1722 = vsub.f32 %v202, %v1493
    %v1723 = vsub.f32 %v174, %v1497
    %v1724 = vsub.f32 %v178, %v1497
    %v1725 = vsub.f32 %v182, %v1497
    %v1726 = vsub.f32 %v186, %v1497
    %v1727 = vsub.f32 %v190, %v1497
    %v1728 = vsub.f32 %v194, %v1497
    %v1729 = vsub.f32 %v198, %v1497
    %v1730 = vsub.f32 %v202, %v1497
    %v1731 = vsub.f32 %v174, %v1501
    %v1732 = vsub.f32 %v178, %v1501
    %v1733 = vsub.f32 %v182, %v1501
    %v1734 = vsub.f32 %v186, %v1501
    %v1735 = vsub.f32 %v190, %v1501
    %v1736 = vsub.f32 %v194, %v1501
    %v1737 = vsub.f32 %v198, %v1501
    %v1738 = vsub.f32 %v202, %v1501
    %v1739 = vsub.f32 %v174, %v1505
    %v1740 = vsub.f32 %v178, %v1505
    %v1741 = vsub.f32 %v182, %v1505
    %v1742 = vsub.f32 %v186, %v1505
    %v1743 = vsub.f32 %v190, %v1505
    %v1744 = vsub.f32 %v194, %v1505
    %v1745 = vsub.f32 %v198, %v1505
    %v1746 = vsub.f32 %v202, %v1505
    %v1747 = vsub.f32 %v174, %v1509
    %v1748 = vsub.f32 %v178, %v1509
    %v1749 = vsub.f32 %v182, %v1509
    %v1750 = vsub.f32 %v186, %v1509
    %v1751 = vsub.f32 %v190, %v1509
    %v1752 = vsub.f32 %v194, %v1509
    %v1753 = vsub.f32 %v198, %v1509
    %v1754 = vsub.f32 %v202, %v1509
    %v1755 = vsub.f32 %v174, %v1513
    %v1756 = vsub.f32 %v178, %v1513
    %v1757 = vsub.f32 %v182, %v1513
    %v1758 = vsub.f32 %v186, %v1513
    %v1759 = vsub.f32 %v190, %v1513
    %v1760 = vsub.f32 %v194, %v1513
    %v1761 = vsub.f32 %v198, %v1513
    %v1762 = vsub.f32 %v202, %v1513
    %v1763 = vsub.f32 %v174, %v1517
    %v1764 = vsub.f32 %v178, %v1517
    %v1765 = vsub.f32 %v182, %v1517
    %v1766 = vsub.f32 %v186, %v1517
    %v1767 = vsub.f32 %v190, %v1517
    %v1768 = vsub.f32 %v194, %v1517
    %v1769 = vsub.f32 %v198, %v1517
    %v1770 = vsub.f32 %v202, %v1517
    %v1771 = vsub.f32 %v174, %v1521
    %v1772 = vsub.f32 %v178, %v1521
    %v1773 = vsub.f32 %v182, %v1521
    %v1774 = vsub.f32 %v186, %v1521
    %v1775 = vsub.f32 %v190, %v1521
    %v1776 = vsub.f32 %v194, %v1521
    %v1777 = vsub.f32 %v198, %v1521
    %v1778 = vsub.f32 %v202, %v1521
    %v1779 = vand.u32 2147483647, %v1523
    %v1780 = vand.u32 2147483647, %v1524
    %v1781 = vand.u32 2147483647, %v1525
    %v1782 = vand.u32 2147483647, %v1526
    %v1783 = vand.u32 2147483647, %v1527
    %v1784 = vand.u32 2147483647, %v1528
    %v1785 = vand.u32 2147483647, %v1529
    %v1786 = vand.u32 2147483647, %v1530
    %v1787 = vand.u32 2147483647, %v1531
    %v1788 = vand.u32 2147483647, %v1532
    %v1789 = vand.u32 2147483647, %v1533
    %v1790 = vand.u32 2147483647, %v1534
    %v1791 = vand.u32 2147483647, %v1535
    %v1792 = vand.u32 2147483647, %v1536
    %v1793 = vand.u32 2147483647, %v1537
    %v1794 = vand.u32 2147483647, %v1538
    %v1795 = vand.u32 2147483647, %v1539
    %v1796 = vand.u32 2147483647, %v1540
    %v1797 = vand.u32 2147483647, %v1541
    %v1798 = vand.u32 2147483647, %v1542
    %v1799 = vand.u32 2147483647, %v1543
    %v1800 = vand.u32 2147483647, %v1544
    %v1801 = vand.u32 2147483647, %v1545
    %v1802 = vand.u32 2147483647, %v1546
    %v1803 = vand.u32 2147483647, %v1547
    %v1804 = vand.u32 2147483647, %v1548
    %v1805 = vand.u32 2147483647, %v1549
    %v1806 = vand.u32 2147483647, %v1550
    %v1807 = vand.u32 2147483647, %v1551
    %v1808 = vand.u32 2147483647, %v1552
    %v1809 = vand.u32 2147483647, %v1553
    %v1810 = vand.u32 2147483647, %v1554
    %v1811 = vand.u32 2147483647, %v1555
    %v1812 = vand.u32 2147483647, %v1556
    %v1813 = vand.u32 2147483647, %v1557
    %v1814 = vand.u32 2147483647, %v1558
    %v1815 = vand.u32 2147483647, %v1559
    %v1816 = vand.u32 2147483647, %v1560
    %v1817 = vand.u32 2147483647, %v1561
    %v1818 = vand.u32 2147483647, %v1562
    %v1819 = vand.u32 2147483647, %v1563
    %v1820 = vand.u32 2147483647, %v1564
    %v1821 = vand.u32 2147483647, %v1565
    %v1822 = vand.u32 2147483647, %v1566
    %v1823 = vand.u32 2147483647, %v1567
    %v1824 = vand.u32 2147483647, %v1568
    %v1825 = vand.u32 2147483647, %v1569
    %v1826 = vand.u32 2147483647, %v1570
    %v1827 = vand.u32 2147483647, %v1571
    %v1828 = vand.u32 2147483647, %v1572
    %v1829 = vand.u32 2147483647, %v1573
    %v1830 = vand.u32 2147483647, %v1574
    %v1831 = vand.u32 2147483647, %v1575
    %v1832 = vand.u32 2147483647, %v1576
    %v1833 = vand.u32 2147483647, %v1577
    %v1834 = vand.u32 2147483647, %v1578
    %v1835 = vand.u32 2147483647, %v1579
    %v1836 = vand.u32 2147483647, %v1580
    %v1837 = vand.u32 2147483647, %v1581
    %v1838 = vand.u32 2147483647, %v1582
    %v1839 = vand.u32 2147483647, %v1583
    %v1840 = vand.u32 2147483647, %v1584
    %v1841 = vand.u32 2147483647, %v1585
    %v1842 = vand.u32 2147483647, %v1586
    %v1843 = vand.u32 2147483647, %v1587
    %v1844 = vand.u32 2147483647, %v1588
    %v1845 = vand.u32 2147483647, %v1589
    %v1846 = vand.u32 2147483647, %v1590
    %v1847 = vand.u32 2147483647, %v1591
    %v1848 = vand.u32 2147483647, %v1592
    %v1849 = vand.u32 2147483647, %v1593
    %v1850 = vand.u32 2147483647, %v1594
    %v1851 = vand.u32 2147483647, %v1595
    %v1852 = vand.u32 2147483647, %v1596
    %v1853 = vand.u32 2147483647, %v1597
    %v1854 = vand.u32 2147483647, %v1598
    %v1855 = vand.u32 2147483647, %v1599
    %v1856 = vand.u32 2147483647, %v1600
    %v1857 = vand.u32 2147483647, %v1601
    %v1858 = vand.u32 2147483647, %v1602
    %v1859 = vand.u32 2147483647, %v1603
    %v1860 = vand.u32 2147483647, %v1604
    %v1861 = vand.u32 2147483647, %v1605
    %v1862 = vand.u32 2147483647, %v1606
    %v1863 = vand.u32 2147483647, %v1607
    %v1864 = vand.u32 2147483647, %v1608
    %v1865 = vand.u32 2147483647, %v1609
    %v1866 = vand.u32 2147483647, %v1610
    %v1867 = vand.u32 2147483647, %v1611
    %v1868 = vand.u32 2147483647, %v1612
    %v1869 = vand.u32 2147483647, %v1613
    %v1870 = vand.u32 2147483647, %v1614
    %v1871 = vand.u32 2147483647, %v1615
    %v1872 = vand.u32 2147483647, %v1616
    %v1873 = vand.u32 2147483647, %v1617
    %v1874 = vand.u32 2147483647, %v1618
    %v1875 = vand.u32 2147483647, %v1619
    %v1876 = vand.u32 2147483647, %v1620
    %v1877 = vand.u32 2147483647, %v1621
    %v1878 = vand.u32 2147483647, %v1622
    %v1879 = vand.u32 2147483647, %v1623
    %v1880 = vand.u32 2147483647, %v1624
    %v1881 = vand.u32 2147483647, %v1625
    %v1882 = vand.u32 2147483647, %v1626
    %v1883 = vand.u32 2147483647, %v1627
    %v1884 = vand.u32 2147483647, %v1628
    %v1885 = vand.u32 2147483647, %v1629
    %v1886 = vand.u32 2147483647, %v1630
    %v1887 = vand.u32 2147483647, %v1631
    %v1888 = vand.u32 2147483647, %v1632
    %v1889 = vand.u32 2147483647, %v1633
    %v1890 = vand.u32 2147483647, %v1634
    %v1891 = vand.u32 2147483647, %v1635
    %v1892 = vand.u32 2147483647, %v1636
    %v1893 = vand.u32 2147483647, %v1637
    %v1894 = vand.u32 2147483647, %v1638
    %v1895 = vand.u32 2147483647, %v1639
    %v1896 = vand.u32 2147483647, %v1640
    %v1897 = vand.u32 2147483647, %v1641
    %v1898 = vand.u32 2147483647, %v1642
    %v1899 = vand.u32 2147483647, %v1643
    %v1900 = vand.u32 2147483647, %v1644
    %v1901 = vand.u32 2147483647, %v1645
    %v1902 = vand.u32 2147483647, %v1646
    %v1903 = vand.u32 2147483647, %v1647
    %v1904 = vand.u32 2147483647, %v1648
    %v1905 = vand.u32 2147483647, %v1649
    %v1906 = vand.u32 2147483647, %v1650
    %v1907 = vand.u32 2147483647, %v1651
    %v1908 = vand.u32 2147483647, %v1652
    %v1909 = vand.u32 2147483647, %v1653
    %v1910 = vand.u32 2147483647, %v1654
    %v1911 = vand.u32 2147483647, %v1655
    %v1912 = vand.u32 2147483647, %v1656
    %v1913 = vand.u32 2147483647, %v1657
    %v1914 = vand.u32 2147483647, %v1658
    %v1915 = vand.u32 2147483647, %v1659
    %v1916 = vand.u32 2147483647, %v1660
    %v1917 = vand.u32 2147483647, %v1661
    %v1918 = vand.u32 2147483647, %v1662
    %v1919 = vand.u32 2147483647, %v1663
    %v1920 = vand.u32 2147483647, %v1664
    %v1921 = vand.u32 2147483647, %v1665
    %v1922 = vand.u32 2147483647, %v1666
    %v1923 = vand.u32 2147483647, %v1667
    %v1924 = vand.u32 2147483647, %v1668
    %v1925 = vand.u32 2147483647, %v1669
    %v1926 = vand.u32 2147483647, %v1670
    %v1927 = vand.u32 2147483647, %v1671
    %v1928 = vand.u32 2147483647, %v1672
    %v1929 = vand.u32 2147483647, %v1673
    %v1930 = vand.u32 2147483647, %v1674
    %v1931 = vand.u32 2147483647, %v1675
    %v1932 = vand.u32 2147483647, %v1676
    %v1933 = vand.u32 2147483647, %v1677
    %v1934 = vand.u32 2147483647, %v1678
    %v1935 = vand.u32 2147483647, %v1679
    %v1936 = vand.u32 2147483647, %v1680
    %v1937 = vand.u32 2147483647, %v1681
    %v1938 = vand.u32 2147483647, %v1682
    %v1939 = vand.u32 2147483647, %v1683
    %v1940 = vand.u32 2147483647, %v1684
    %v1941 = vand.u32 2147483647, %v1685
    %v1942 = vand.u32 2147483647, %v1686
    %v1943 = vand.u32 2147483647, %v1687
    %v1944 = vand.u32 2147483647, %v1688
    %v1945 = vand.u32 2147483647, %v1689
    %v1946 = vand.u32 2147483647, %v1690
    %v1947 = vand.u32 2147483647, %v1691
    %v1948 = vand.u32 2147483647, %v1692
    %v1949 = vand.u32 2147483647, %v1693
    %v1950 = vand.u32 2147483647, %v1694
    %v1951 = vand.u32 2147483647, %v1695
    %v1952 = vand.u32 2147483647, %v1696
    %v1953 = vand.u32 2147483647, %v1697
    %v1954 = vand.u32 2147483647, %v1698
    %v1955 = vand.u32 2147483647, %v1699
    %v1956 = vand.u32 2147483647, %v1700
    %v1957 = vand.u32 2147483647, %v1701
    %v1958 = vand.u32 2147483647, %v1702
    %v1959 = vand.u32 2147483647, %v1703
    %v1960 = vand.u32 2147483647, %v1704
    %v1961 = vand.u32 2147483647, %v1705
    %v1962 = vand.u32 2147483647, %v1706
    %v1963 = vand.u32 2147483647, %v1707
    %v1964 = vand.u32 2147483647, %v1708
    %v1965 = vand.u32 2147483647, %v1709
    %v1966 = vand.u32 2147483647, %v1710
    %v1967 = vand.u32 2147483647, %v1711
    %v1968 = vand.u32 2147483647, %v1712
    %v1969 = vand.u32 2147483647, %v1713
    %v1970 = vand.u32 2147483647, %v1714
    %v1971 = vand.u32 2147483647, %v1715
    %v1972 = vand.u32 2147483647, %v1716
    %v1973 = vand.u32 2147483647, %v1717
    %v1974 = vand.u32 2147483647, %v1718
    %v1975 = vand.u32 2147483647, %v1719
    %v1976 = vand.u32 2147483647, %v1720
    %v1977 = vand.u32 2147483647, %v1721
    %v1978 = vand.u32 2147483647, %v1722
    %v1979 = vand.u32 2147483647, %v1723
    %v1980 = vand.u32 2147483647, %v1724
    %v1981 = vand.u32 2147483647, %v1725
    %v1982 = vand.u32 2147483647, %v1726
    %v1983 = vand.u32 2147483647, %v1727
    %v1984 = vand.u32 2147483647, %v1728
    %v1985 = vand.u32 2147483647, %v1729
    %v1986 = vand.u32 2147483647, %v1730
    %v1987 = vand.u32 2147483647, %v1731
    %v1988 = vand.u32 2147483647, %v1732
    %v1989 = vand.u32 2147483647, %v1733
    %v1990 = vand.u32 2147483647, %v1734
    %v1991 = vand.u32 2147483647, %v1735
    %v1992 = vand.u32 2147483647, %v1736
    %v1993 = vand.u32 2147483647, %v1737
    %v1994 = vand.u32 2147483647, %v1738
    %v1995 = vand.u32 2147483647, %v1739
    %v1996 = vand.u32 2147483647, %v1740
    %v1997 = vand.u32 2147483647, %v1741
    %v1998 = vand.u32 2147483647, %v1742
    %v1999 = vand.u32 2147483647, %v1743
    %v2000 = vand.u32 2147483647, %v1744
    %v2001 = vand.u32 2147483647, %v1745
    %v2002 = vand.u32 2147483647, %v1746
    %v2003 = vand.u32 2147483647, %v1747
    %v2004 = vand.u32 2147483647, %v1748
    %v2005 = vand.u32 2147483647, %v1749
    %v2006 = vand.u32 2147483647, %v1750
    %v2007 = vand.u32 2147483647, %v1751
    %v2008 = vand.u32 2147483647, %v1752
    %v2009 = vand.u32 2147483647, %v1753
    %v2010 = vand.u32 2147483647, %v1754
    %v2011 = vand.u32 2147483647, %v1755
    %v2012 = vand.u32 2147483647, %v1756
    %v2013 = vand.u32 2147483647, %v1757
    %v2014 = vand.u32 2147483647, %v1758
    %v2015 = vand.u32 2147483647, %v1759
    %v2016 = vand.u32 2147483647, %v1760
    %v2017 = vand.u32 2147483647, %v1761
    %v2018 = vand.u32 2147483647, %v1762
    %v2019 = vand.u32 2147483647, %v1763
    %v2020 = vand.u32 2147483647, %v1764
    %v2021 = vand.u32 2147483647, %v1765
    %v2022 = vand.u32 2147483647, %v1766
    %v2023 = vand.u32 2147483647, %v1767
    %v2024 = vand.u32 2147483647, %v1768
    %v2025 = vand.u32 2147483647, %v1769
    %v2026 = vand.u32 2147483647, %v1770
    %v2027 = vand.u32 2147483647, %v1771
    %v2028 = vand.u32 2147483647, %v1772
    %v2029 = vand.u32 2147483647, %v1773
    %v2030 = vand.u32 2147483647, %v1774
    %v2031 = vand.u32 2147483647, %v1775
    %v2032 = vand.u32 2147483647, %v1776
    %v2033 = vand.u32 2147483647, %v1777
    %v2034 = vand.u32 2147483647, %v1778
    %v2035 = vsub.f32 1.0, %v1779
    %v2036 = vsub.f32 1.0, %v1780
    %v2037 = vsub.f32 1.0, %v1781
    %v2038 = vsub.f32 1.0, %v1782
    %v2039 = vsub.f32 1.0, %v1783
    %v2040 = vsub.f32 1.0, %v1784
    %v2041 = vsub.f32 1.0, %v1785
    %v2042 = vsub.f32 1.0, %v1786
    %v2043 = vsub.f32 1.0, %v1787
    %v2044 = vsub.f32 1.0, %v1788
    %v2045 = vsub.f32 1.0, %v1789
    %v2046 = vsub.f32 1.0, %v1790
    %v2047 = vsub.f32 1.0, %v1791
    %v2048 = vsub.f32 1.0, %v1792
    %v2049 = vsub.f32 1.0, %v1793
    %v2050 = vsub.f32 1.0, %v1794
    %v2051 = vsub.f32 1.0, %v1795
    %v2052 = vsub.f32 1.0, %v1796
    %v2053 = vsub.f32 1.0, %v1797
    %v2054 = vsub.f32 1.0, %v1798
    %v2055 = vsub.f32 1.0, %v1799
    %v2056 = vsub.f32 1.0, %v1800
    %v2057 = vsub.f32 1.0, %v1801
    %v2058 = vsub.f32 1.0, %v1802
    %v2059 = vsub.f32 1.0, %v1803
    %v2060 = vsub.f32 1.0, %v1804
    %v2061 = vsub.f32 1.0, %v1805
    %v2062 = vsub.f32 1.0, %v1806
    %v2063 = vsub.f32 1.0, %v1807
    %v2064 = vsub.f32 1.0, %v1808
    %v2065 = vsub.f32 1.0, %v1809
    %v2066 = vsub.f32 1.0, %v1810
    %v2067 = vsub.f32 1.0, %v1811
    %v2068 = vsub.f32 1.0, %v1812
    %v2069 = vsub.f32 1.0, %v1813
    %v2070 = vsub.f32 1.0, %v1814
    %v2071 = vsub.f32 1.0, %v1815
    %v2072 = vsub.f32 1.0, %v1816
    %v2073 = vsub.f32 1.0, %v1817
    %v2074 = vsub.f32 1.0, %v1818
    %v2075 = vsub.f32 1.0, %v1819
    %v2076 = vsub.f32 1.0, %v1820
    %v2077 = vsub.f32 1.0, %v1821
    %v2078 = vsub.f32 1.0, %v1822
    %v2079 = vsub.f32 1.0, %v1823
    %v2080 = vsub.f32 1.0, %v1824
    %v2081 = vsub.f32 1.0, %v1825
    %v2082 = vsub.f32 1.0, %v1826
    %v2083 = vsub.f32 1.0, %v1827
    %v2084 = vsub.f32 1.0, %v1828
    %v2085 = vsub.f32 1.0, %v1829
    %v2086 = vsub.f32 1.0, %v1830
    %v2087 = vsub.f32 1.0, %v1831
    %v2088 = vsub.f32 1.0, %v1832
    %v2089 = vsub.f32 1.0, %v1833
    %v2090 = vsub.f32 1.0, %v1834
    %v2091 = vsub.f32 1.0, %v1835
    %v2092 = vsub.f32 1.0, %v1836
    %v2093 = vsub.f32 1.0, %v1837
    %v2094 = vsub.f32 1.0, %v1838
    %v2095 = vsub.f32 1.0, %v1839
    %v2096 = vsub.f32 1.0, %v1840
    %v2097 = vsub.f32 1.0, %v1841
    %v2098 = vsub.f32 1.0, %v1842
    %v2099 = vsub.f32 1.0, %v1843
    %v2100 = vsub.f32 1.0, %v1844
    %v2101 = vsub.f32 1.0, %v1845
    %v2102 = vsub.f32 1.0, %v1846
    %v2103 = vsub.f32 1.0, %v1847
    %v2104 = vsub.f32 1.0, %v1848
    %v2105 = vsub.f32 1.0, %v1849
    %v2106 = vsub.f32 1.0, %v1850
    %v2107 = vsub.f32 1.0, %v1851
    %v2108 = vsub.f32 1.0, %v1852
    %v2109 = vsub.f32 1.0, %v1853
    %v2110 = vsub.f32 1.0, %v1854
    %v2111 = vsub.f32 1.0, %v1855
    %v2112 = vsub.f32 1.0, %v1856
    %v2113 = vsub.f32 1.0, %v1857
    %v2114 = vsub.f32 1.0, %v1858
    %v2115 = vsub.f32 1.0, %v1859
    %v2116 = vsub.f32 1.0, %v1860
    %v2117 = vsub.f32 1.0, %v1861
    %v2118 = vsub.f32 1.0, %v1862
    %v2119 = vsub.f32 1.0, %v1863
    %v2120 = vsub.f32 1.0, %v1864
    %v2121 = vsub.f32 1.0, %v1865
    %v2122 = vsub.f32 1.0, %v1866
    %v2123 = vsub.f32 1.0, %v1867
    %v2124 = vsub.f32 1.0, %v1868
    %v2125 = vsub.f32 1.0, %v1869
    %v2126 = vsub.f32 1.0, %v1870
    %v2127 = vsub.f32 1.0, %v1871
    %v2128 = vsub.f32 1.0, %v1872
    %v2129 = vsub.f32 1.0, %v1873
    %v2130 = vsub.f32 1.0, %v1874
    %v2131 = vsub.f32 1.0, %v1875
    %v2132 = vsub.f32 1.0, %v1876
    %v2133 = vsub.f32 1.0, %v1877
    %v2134 = vsub.f32 1.0, %v1878
    %v2135 = vsub.f32 1.0, %v1879
    %v2136 = vsub.f32 1.0, %v1880
    %v2137 = vsub.f32 1.0, %v1881
    %v2138 = vsub.f32 1.0, %v1882
    %v2139 = vsub.f32 1.0, %v1883
    %v2140 = vsub.f32 1.0, %v1884
    %v2141 = vsub.f32 1.0, %v1885
    %v2142 = vsub.f32 1.0, %v1886
    %v2143 = vsub.f32 1.0, %v1887
    %v2144 = vsub.f32 1.0, %v1888
    %v2145 = vsub.f32 1.0, %v1889
    %v2146 = vsub.f32 1.0, %v1890
    %v2147 = vsub.f32 1.0, %v1891
    %v2148 = vsub.f32 1.0, %v1892
    %v2149 = vsub.f32 1.0, %v1893
    %v2150 = vsub.f32 1.0, %v1894
    %v2151 = vsub.f32 1.0, %v1895
    %v2152 = vsub.f32 1.0, %v1896
    %v2153 = vsub.f32 1.0, %v1897
    %v2154 = vsub.f32 1.0, %v1898
    %v2155 = vsub.f32 1.0, %v1899
    %v2156 = vsub.f32 1.0, %v1900
    %v2157 = vsub.f32 1.0, %v1901
    %v2158 = vsub.f32 1.0, %v1902
    %v2159 = vsub.f32 1.0, %v1903
    %v2160 = vsub.f32 1.0, %v1904
    %v2161 = vsub.f32 1.0, %v1905
    %v2162 = vsub.f32 1.0, %v1906
    %v2163 = vsub.f32 1.0, %v1907
    %v2164 = vsub.f32 1.0, %v1908
    %v2165 = vsub.f32 1.0, %v1909
    %v2166 = vsub.f32 1.0, %v1910
    %v2167 = vsub.f32 1.0, %v1911
    %v2168 = vsub.f32 1.0, %v1912
    %v2169 = vsub.f32 1.0, %v1913
    %v2170 = vsub.f32 1.0, %v1914
    %v2171 = vsub.f32 1.0, %v1915
    %v2172 = vsub.f32 1.0, %v1916
    %v2173 = vsub.f32 1.0, %v1917
    %v2174 = vsub.f32 1.0, %v1918
    %v2175 = vsub.f32 1.0, %v1919
    %v2176 = vsub.f32 1.0, %v1920
    %v2177 = vsub.f32 1.0, %v1921
    %v2178 = vsub.f32 1.0, %v1922
    %v2179 = vsub.f32 1.0, %v1923
    %v2180 = vsub.f32 1.0, %v1924
    %v2181 = vsub.f32 1.0, %v1925
    %v2182 = vsub.f32 1.0, %v1926
    %v2183 = vsub.f32 1.0, %v1927
    %v2184 = vsub.f32 1.0, %v1928
    %v2185 = vsub.f32 1.0, %v1929
    %v2186 = vsub.f32 1.0, %v1930
    %v2187 = vsub.f32 1.0, %v1931
    %v2188 = vsub.f32 1.0, %v1932
    %v2189 = vsub.f32 1.0, %v1933
    %v2190 = vsub.f32 1.0, %v1934
    %v2191 = vsub.f32 1.0, %v1935
    %v2192 = vsub.f32 1.0, %v1936
    %v2193 = vsub.f32 1.0, %v1937
    %v2194 = vsub.f32 1.0, %v1938
    %v2195 = vsub.f32 1.0, %v1939
    %v2196 = vsub.f32 1.0, %v1940
    %v2197 = vsub.f32 1.0, %v1941
    %v2198 = vsub.f32 1.0, %v1942
    %v2199 = vsub.f32 1.0, %v1943
    %v2200 = vsub.f32 1.0, %v1944
    %v2201 = vsub.f32 1.0, %v1945
    %v2202 = vsub.f32 1.0, %v1946
    %v2203 = vsub.f32 1.0, %v1947
    %v2204 = vsub.f32 1.0, %v1948
    %v2205 = vsub.f32 1.0, %v1949
    %v2206 = vsub.f32 1.0, %v1950
    %v2207 = vsub.f32 1.0, %v1951
    %v2208 = vsub.f32 1.0, %v1952
    %v2209 = vsub.f32 1.0, %v1953
    %v2210 = vsub.f32 1.0, %v1954
    %v2211 = vsub.f32 1.0, %v1955
    %v2212 = vsub.f32 1.0, %v1956
    %v2213 = vsub.f32 1.0, %v1957
    %v2214 = vsub.f32 1.0, %v1958
    %v2215 = vsub.f32 1.0, %v1959
    %v2216 = vsub.f32 1.0, %v1960
    %v2217 = vsub.f32 1.0, %v1961
    %v2218 = vsub.f32 1.0, %v1962
    %v2219 = vsub.f32 1.0, %v1963
    %v2220 = vsub.f32 1.0, %v1964
    %v2221 = vsub.f32 1.0, %v1965
    %v2222 = vsub.f32 1.0, %v1966
    %v2223 = vsub.f32 1.0, %v1967
    %v2224 = vsub.f32 1.0, %v1968
    %v2225 = vsub.f32 1.0, %v1969
    %v2226 = vsub.f32 1.0, %v1970
    %v2227 = vsub.f32 1.0, %v1971
    %v2228 = vsub.f32 1.0, %v1972
    %v2229 = vsub.f32 1.0, %v1973
    %v2230 = vsub.f32 1.0, %v1974
    %v2231 = vsub.f32 1.0, %v1975
    %v2232 = vsub.f32 1.0, %v1976
    %v2233 = vsub.f32 1.0, %v1977
    %v2234 = vsub.f32 1.0, %v1978
    %v2235 = vsub.f32 1.0, %v1979
    %v2236 = vsub.f32 1.0, %v1980
    %v2237 = vsub.f32 1.0, %v1981
    %v2238 = vsub.f32 1.0, %v1982
    %v2239 = vsub.f32 1.0, %v1983
    %v2240 = vsub.f32 1.0, %v1984
    %v2241 = vsub.f32 1.0, %v1985
    %v2242 = vsub.f32 1.0, %v1986
    %v2243 = vsub.f32 1.0, %v1987
    %v2244 = vsub.f32 1.0, %v1988
    %v2245 = vsub.f32 1.0, %v1989
    %v2246 = vsub.f32 1.0, %v1990
    %v2247 = vsub.f32 1.0, %v1991
    %v2248 = vsub.f32 1.0, %v1992
    %v2249 = vsub.f32 1.0, %v1993
    %v2250 = vsub.f32 1.0, %v1994
    %v2251 = vsub.f32 1.0, %v1995
    %v2252 = vsub.f32 1.0, %v1996
    %v2253 = vsub.f32 1.0, %v1997
    %v2254 = vsub.f32 1.0, %v1998
    %v2255 = vsub.f32 1.0, %v1999
    %v2256 = vsub.f32 1.0, %v2000
    %v2257 = vsub.f32 1.0, %v2001
    %v2258 = vsub.f32 1.0, %v2002
    %v2259 = vsub.f32 1.0, %v2003
    %v2260 = vsub.f32 1.0, %v2004
    %v2261 = vsub.f32 1.0, %v2005
    %v2262 = vsub.f32 1.0, %v2006
    %v2263 = vsub.f32 1.0, %v2007
    %v2264 = vsub.f32 1.0, %v2008
    %v2265 = vsub.f32 1.0, %v2009
    %v2266 = vsub.f32 1.0, %v2010
    %v2267 = vsub.f32 1.0, %v2011
    %v2268 = vsub.f32 1.0, %v2012
    %v2269 = vsub.f32 1.0, %v2013
    %v2270 = vsub.f32 1.0, %v2014
    %v2271 = vsub.f32 1.0, %v2015
    %v2272 = vsub.f32 1.0, %v2016
    %v2273 = vsub.f32 1.0, %v2017
    %v2274 = vsub.f32 1.0, %v2018
    %v2275 = vsub.f32 1.0, %v2019
    %v2276 = vsub.f32 1.0, %v2020
    %v2277 = vsub.f32 1.0, %v2021
    %v2278 = vsub.f32 1.0, %v2022
    %v2279 = vsub.f32 1.0, %v2023
    %v2280 = vsub.f32 1.0, %v2024
    %v2281 = vsub.f32 1.0, %v2025
    %v2282 = vsub.f32 1.0, %v2026
    %v2283 = vsub.f32 1.0, %v2027
    %v2284 = vsub.f32 1.0, %v2028
    %v2285 = vsub.f32 1.0, %v2029
    %v2286 = vsub.f32 1.0, %v2030
    %v2287 = vsub.f32 1.0, %v2031
    %v2288 = vsub.f32 1.0, %v2032
    %v2289 = vsub.f32 1.0, %v2033
    %v2290 = vsub.f32 1.0, %v2034
    %v2291 = vmax.f32 %v2035, 0.0
    %v2292 = vmax.f32 %v2036, 0.0
    %v2293 = vmax.f32 %v2037, 0.0
    %v2294 = vmax.f32 %v2038, 0.0
    %v2295 = vmax.f32 %v2039, 0.0
    %v2296 = vmax.f32 %v2040, 0.0
    %v2297 = vmax.f32 %v2041, 0.0
    %v2298 = vmax.f32 %v2042, 0.0
    %v2299 = vmax.f32 %v2043, 0.0
    %v2300 = vmax.f32 %v2044, 0.0
    %v2301 = vmax.f32 %v2045, 0.0
    %v2302 = vmax.f32 %v2046, 0.0
    %v2303 = vmax.f32 %v2047, 0.0
    %v2304 = vmax.f32 %v2048, 0.0
    %v2305 = vmax.f32 %v2049, 0.0
    %v2306 = vmax.f32 %v2050, 0.0
    %v2307 = vmax.f32 %v2051, 0.0
    %v2308 = vmax.f32 %v2052, 0.0
    %v2309 = vmax.f32 %v2053, 0.0
    %v2310 = vmax.f32 %v2054, 0.0
    %v2311 = vmax.f32 %v2055, 0.0
    %v2312 = vmax.f32 %v2056, 0.0
    %v2313 = vmax.f32 %v2057, 0.0
    %v2314 = vmax.f32 %v2058, 0.0
    %v2315 = vmax.f32 %v2059, 0.0
    %v2316 = vmax.f32 %v2060, 0.0
    %v2317 = vmax.f32 %v2061, 0.0
    %v2318 = vmax.f32 %v2062, 0.0
    %v2319 = vmax.f32 %v2063, 0.0
    %v2320 = vmax.f32 %v2064, 0.0
    %v2321 = vmax.f32 %v2065, 0.0
    %v2322 = vmax.f32 %v2066, 0.0
    %v2323 = vmax.f32 %v2067, 0.0
    %v2324 = vmax.f32 %v2068, 0.0
    %v2325 = vmax.f32 %v2069, 0.0
    %v2326 = vmax.f32 %v2070, 0.0
    %v2327 = vmax.f32 %v2071, 0.0
    %v2328 = vmax.f32 %v2072, 0.0
    %v2329 = vmax.f32 %v2073, 0.0
    %v2330 = vmax.f32 %v2074, 0.0
    %v2331 = vmax.f32 %v2075, 0.0
    %v2332 = vmax.f32 %v2076, 0.0
    %v2333 = vmax.f32 %v2077, 0.0
    %v2334 = vmax.f32 %v2078, 0.0
    %v2335 = vmax.f32 %v2079, 0.0
    %v2336 = vmax.f32 %v2080, 0.0
    %v2337 = vmax.f32 %v2081, 0.0
    %v2338 = vmax.f32 %v2082, 0.0
    %v2339 = vmax.f32 %v2083, 0.0
    %v2340 = vmax.f32 %v2084, 0.0
    %v2341 = vmax.f32 %v2085, 0.0
    %v2342 = vmax.f32 %v2086, 0.0
    %v2343 = vmax.f32 %v2087, 0.0
    %v2344 = vmax.f32 %v2088, 0.0
    %v2345 = vmax.f32 %v2089, 0.0
    %v2346 = vmax.f32 %v2090, 0.0
    %v2347 = vmax.f32 %v2091, 0.0
    %v2348 = vmax.f32 %v2092, 0.0
    %v2349 = vmax.f32 %v2093, 0.0
    %v2350 = vmax.f32 %v2094, 0.0
    %v2351 = vmax.f32 %v2095, 0.0
    %v2352 = vmax.f32 %v2096, 0.0
    %v2353 = vmax.f32 %v2097, 0.0
    %v2354 = vmax.f32 %v2098, 0.0
    %v2355 = vmax.f32 %v2099, 0.0
    %v2356 = vmax.f32 %v2100, 0.0
    %v2357 = vmax.f32 %v2101, 0.0
    %v2358 = vmax.f32 %v2102, 0.0
    %v2359 = vmax.f32 %v2103, 0.0
    %v2360 = vmax.f32 %v2104, 0.0
    %v2361 = vmax.f32 %v2105, 0.0
    %v2362 = vmax.f32 %v2106, 0.0
    %v2363 = vmax.f32 %v2107, 0.0
    %v2364 = vmax.f32 %v2108, 0.0
    %v2365 = vmax.f32 %v2109, 0.0
    %v2366 = vmax.f32 %v2110, 0.0
    %v2367 = vmax.f32 %v2111, 0.0
    %v2368 = vmax.f32 %v2112, 0.0
    %v2369 = vmax.f32 %v2113, 0.0
    %v2370 = vmax.f32 %v2114, 0.0
    %v2371 = vmax.f32 %v2115, 0.0
    %v2372 = vmax.f32 %v2116, 0.0
    %v2373 = vmax.f32 %v2117, 0.0
    %v2374 = vmax.f32 %v2118, 0.0
    %v2375 = vmax.f32 %v2119, 0.0
    %v2376 = vmax.f32 %v2120, 0.0
    %v2377 = vmax.f32 %v2121, 0.0
    %v2378 = vmax.f32 %v2122, 0.0
    %v2379 = vmax.f32 %v2123, 0.0
    %v2380 = vmax.f32 %v2124, 0.0
    %v2381 = vmax.f32 %v2125, 0.0
    %v2382 = vmax.f32 %v2126, 0.0
    %v2383 = vmax.f32 %v2127, 0.0
    %v2384 = vmax.f32 %v2128, 0.0
    %v2385 = vmax.f32 %v2129, 0.0
    %v2386 = vmax.f32 %v2130, 0.0
    %v2387 = vmax.f32 %v2131, 0.0
    %v2388 = vmax.f32 %v2132, 0.0
    %v2389 = vmax.f32 %v2133, 0.0
    %v2390 = vmax.f32 %v2134, 0.0
    %v2391 = vmax.f32 %v2135, 0.0
    %v2392 = vmax.f32 %v2136, 0.0
    %v2393 = vmax.f32 %v2137, 0.0
    %v2394 = vmax.f32 %v2138, 0.0
    %v2395 = vmax.f32 %v2139, 0.0
    %v2396 = vmax.f32 %v2140, 0.0
    %v2397 = vmax.f32 %v2141, 0.0
    %v2398 = vmax.f32 %v2142, 0.0
    %v2399 = vmax.f32 %v2143, 0.0
    %v2400 = vmax.f32 %v2144, 0.0
    %v2401 = vmax.f32 %v2145, 0.0
    %v2402 = vmax.f32 %v2146, 0.0
    %v2403 = vmax.f32 %v2147, 0.0
    %v2404 = vmax.f32 %v2148, 0.0
    %v2405 = vmax.f32 %v2149, 0.0
    %v2406 = vmax.f32 %v2150, 0.0
    %v2407 = vmax.f32 %v2151, 0.0
    %v2408 = vmax.f32 %v2152, 0.0
    %v2409 = vmax.f32 %v2153, 0.0
    %v2410 = vmax.f32 %v2154, 0.0
    %v2411 = vmax.f32 %v2155, 0.0
    %v2412 = vmax.f32 %v2156, 0.0
    %v2413 = vmax.f32 %v2157, 0.0
    %v2414 = vmax.f32 %v2158, 0.0
    %v2415 = vmax.f32 %v2159, 0.0
    %v2416 = vmax.f32 %v2160, 0.0
    %v2417 = vmax.f32 %v2161, 0.0
    %v2418 = vmax.f32 %v2162, 0.0
    %v2419 = vmax.f32 %v2163, 0.0
    %v2420 = vmax.f32 %v2164, 0.0
    %v2421 = vmax.f32 %v2165, 0.0
    %v2422 = vmax.f32 %v2166, 0.0
    %v2423 = vmax.f32 %v2167, 0.0
    %v2424 = vmax.f32 %v2168, 0.0
    %v2425 = vmax.f32 %v2169, 0.0
    %v2426 = vmax.f32 %v2170, 0.0
    %v2427 = vmax.f32 %v2171, 0.0
    %v2428 = vmax.f32 %v2172, 0.0
    %v2429 = vmax.f32 %v2173, 0.0
    %v2430 = vmax.f32 %v2174, 0.0
    %v2431 = vmax.f32 %v2175, 0.0
    %v2432 = vmax.f32 %v2176, 0.0
    %v2433 = vmax.f32 %v2177, 0.0
    %v2434 = vmax.f32 %v2178, 0.0
    %v2435 = vmax.f32 %v2179, 0.0
    %v2436 = vmax.f32 %v2180, 0.0
    %v2437 = vmax.f32 %v2181, 0.0
    %v2438 = vmax.f32 %v2182, 0.0
    %v2439 = vmax.f32 %v2183, 0.0
    %v2440 = vmax.f32 %v2184, 0.0
    %v2441 = vmax.f32 %v2185, 0.0
    %v2442 = vmax.f32 %v2186, 0.0
    %v2443 = vmax.f32 %v2187, 0.0
    %v2444 = vmax.f32 %v2188, 0.0
    %v2445 = vmax.f32 %v2189, 0.0
    %v2446 = vmax.f32 %v2190, 0.0
    %v2447 = vmax.f32 %v2191, 0.0
    %v2448 = vmax.f32 %v2192, 0.0
    %v2449 = vmax.f32 %v2193, 0.0
    %v2450 = vmax.f32 %v2194, 0.0
    %v2451 = vmax.f32 %v2195, 0.0
    %v2452 = vmax.f32 %v2196, 0.0
    %v2453 = vmax.f32 %v2197, 0.0
    %v2454 = vmax.f32 %v2198, 0.0
    %v2455 = vmax.f32 %v2199, 0.0
    %v2456 = vmax.f32 %v2200, 0.0
    %v2457 = vmax.f32 %v2201, 0.0
    %v2458 = vmax.f32 %v2202, 0.0
    %v2459 = vmax.f32 %v2203, 0.0
    %v2460 = vmax.f32 %v2204, 0.0
    %v2461 = vmax.f32 %v2205, 0.0
    %v2462 = vmax.f32 %v2206, 0.0
    %v2463 = vmax.f32 %v2207, 0.0
    %v2464 = vmax.f32 %v2208, 0.0
    %v2465 = vmax.f32 %v2209, 0.0
    %v2466 = vmax.f32 %v2210, 0.0
    %v2467 = vmax.f32 %v2211, 0.0
    %v2468 = vmax.f32 %v2212, 0.0
    %v2469 = vmax.f32 %v2213, 0.0
    %v2470 = vmax.f32 %v2214, 0.0
    %v2471 = vmax.f32 %v2215, 0.0
    %v2472 = vmax.f32 %v2216, 0.0
    %v2473 = vmax.f32 %v2217, 0.0
    %v2474 = vmax.f32 %v2218, 0.0
    %v2475 = vmax.f32 %v2219, 0.0
    %v2476 = vmax.f32 %v2220, 0.0
    %v2477 = vmax.f32 %v2221, 0.0
    %v2478 = vmax.f32 %v2222, 0.0
    %v2479 = vmax.f32 %v2223, 0.0
    %v2480 = vmax.f32 %v2224, 0.0
    %v2481 = vmax.f32 %v2225, 0.0
    %v2482 = vmax.f32 %v2226, 0.0
    %v2483 = vmax.f32 %v2227, 0.0
    %v2484 = vmax.f32 %v2228, 0.0
    %v2485 = vmax.f32 %v2229, 0.0
    %v2486 = vmax.f32 %v2230, 0.0
    %v2487 = vmax.f32 %v2231, 0.0
    %v2488 = vmax.f32 %v2232, 0.0
    %v2489 = vmax.f32 %v2233, 0.0
    %v2490 = vmax.f32 %v2234, 0.0
    %v2491 = vmax.f32 %v2235, 0.0
    %v2492 = vmax.f32 %v2236, 0.0
    %v2493 = vmax.f32 %v2237, 0.0
    %v2494 = vmax.f32 %v2238, 0.0
    %v2495 = vmax.f32 %v2239, 0.0
    %v2496 = vmax.f32 %v2240, 0.0
    %v2497 = vmax.f32 %v2241, 0.0
    %v2498 = vmax.f32 %v2242, 0.0
    %v2499 = vmax.f32 %v2243, 0.0
    %v2500 = vmax.f32 %v2244, 0.0
    %v2501 = vmax.f32 %v2245, 0.0
    %v2502 = vmax.f32 %v2246, 0.0
    %v2503 = vmax.f32 %v2247, 0.0
    %v2504 = vmax.f32 %v2248, 0.0
    %v2505 = vmax.f32 %v2249, 0.0
    %v2506 = vmax.f32 %v2250, 0.0
    %v2507 = vmax.f32 %v2251, 0.0
    %v2508 = vmax.f32 %v2252, 0.0
    %v2509 = vmax.f32 %v2253, 0.0
    %v2510 = vmax.f32 %v2254, 0.0
    %v2511 = vmax.f32 %v2255, 0.0
    %v2512 = vmax.f32 %v2256, 0.0
    %v2513 = vmax.f32 %v2257, 0.0
    %v2514 = vmax.f32 %v2258, 0.0
    %v2515 = vmax.f32 %v2259, 0.0
    %v2516 = vmax.f32 %v2260, 0.0
    %v2517 = vmax.f32 %v2261, 0.0
    %v2518 = vmax.f32 %v2262, 0.0
    %v2519 = vmax.f32 %v2263, 0.0
    %v2520 = vmax.f32 %v2264, 0.0
    %v2521 = vmax.f32 %v2265, 0.0
    %v2522 = vmax.f32 %v2266, 0.0
    %v2523 = vmax.f32 %v2267, 0.0
    %v2524 = vmax.f32 %v2268, 0.0
    %v2525 = vmax.f32 %v2269, 0.0
    %v2526 = vmax.f32 %v2270, 0.0
    %v2527 = vmax.f32 %v2271, 0.0
    %v2528 = vmax.f32 %v2272, 0.0
    %v2529 = vmax.f32 %v2273, 0.0
    %v2530 = vmax.f32 %v2274, 0.0
    %v2531 = vmax.f32 %v2275, 0.0
    %v2532 = vmax.f32 %v2276, 0.0
    %v2533 = vmax.f32 %v2277, 0.0
    %v2534 = vmax.f32 %v2278, 0.0
    %v2535 = vmax.f32 %v2279, 0.0
    %v2536 = vmax.f32 %v2280, 0.0
    %v2537 = vmax.f32 %v2281, 0.0
    %v2538 = vmax.f32 %v2282, 0.0
    %v2539 = vmax.f32 %v2283, 0.0
    %v2540 = vmax.f32 %v2284, 0.0
    %v2541 = vmax.f32 %v2285, 0.0
    %v2542 = vmax.f32 %v2286, 0.0
    %v2543 = vmax.f32 %v2287, 0.0
    %v2544 = vmax.f32 %v2288, 0.0
    %v2545 = vmax.f32 %v2289, 0.0
    %v2546 = vmax.f32 %v2290, 0.0
    %v2547 = vmul.f32 %v1139, %v2291
    %v2548 = vmul.f32 %v1140, %v2292
    %v2549 = vmul.f32 %v1141, %v2293
    %v2550 = vmul.f32 %v1142, %v2294
    %v2551 = vmul.f32 %v1143, %v2295
    %v2552 = vmul.f32 %v1144, %v2296
    %v2553 = vmul.f32 %v1145, %v2297
    %v2554 = vmul.f32 %v1146, %v2298
    %v2555 = vmul.f32 %v1147, %v2299
    %v2556 = vmul.f32 %v1148, %v2300
    %v2557 = vmul.f32 %v1149, %v2301
    %v2558 = vmul.f32 %v1150, %v2302
    %v2559 = vmul.f32 %v1151, %v2303
    %v2560 = vmul.f32 %v1152, %v2304
    %v2561 = vmul.f32 %v1153, %v2305
    %v2562 = vmul.f32 %v1154, %v2306
    %v2563 = vmul.f32 %v1155, %v2307
    %v2564 = vmul.f32 %v1156, %v2308
    %v2565 = vmul.f32 %v1157, %v2309
    %v2566 = vmul.f32 %v1158, %v2310
    %v2567 = vmul.f32 %v1159, %v2311
    %v2568 = vmul.f32 %v1160, %v2312
    %v2569 = vmul.f32 %v1161, %v2313
    %v2570 = vmul.f32 %v1162, %v2314
    %v2571 = vmul.f32 %v1163, %v2315
    %v2572 = vmul.f32 %v1164, %v2316
    %v2573 = vmul.f32 %v1165, %v2317
    %v2574 = vmul.f32 %v1166, %v2318
    %v2575 = vmul.f32 %v1167, %v2319
    %v2576 = vmul.f32 %v1168, %v2320
    %v2577 = vmul.f32 %v1169, %v2321
    %v2578 = vmul.f32 %v1170, %v2322
    %v2579 = vmul.f32 %v1171, %v2323
    %v2580 = vmul.f32 %v1172, %v2324
    %v2581 = vmul.f32 %v1173, %v2325
    %v2582 = vmul.f32 %v1174, %v2326
    %v2583 = vmul.f32 %v1175, %v2327
    %v2584 = vmul.f32 %v1176, %v2328
    %v2585 = vmul.f32 %v1177, %v2329
    %v2586 = vmul.f32 %v1178, %v2330
    %v2587 = vmul.f32 %v1179, %v2331
    %v2588 = vmul.f32 %v1180, %v2332
    %v2589 = vmul.f32 %v1181, %v2333
    %v2590 = vmul.f32 %v1182, %v2334
    %v2591 = vmul.f32 %v1183, %v2335
    %v2592 = vmul.f32 %v1184, %v2336
    %v2593 = vmul.f32 %v1185, %v2337
    %v2594 = vmul.f32 %v1186, %v2338
    %v2595 = vmul.f32 %v1187, %v2339
    %v2596 = vmul.f32 %v1188, %v2340
    %v2597 = vmul.f32 %v1189, %v2341
    %v2598 = vmul.f32 %v1190, %v2342
    %v2599 = vmul.f32 %v1191, %v2343
    %v2600 = vmul.f32 %v1192, %v2344
    %v2601 = vmul.f32 %v1193, %v2345
    %v2602 = vmul.f32 %v1194, %v2346
    %v2603 = vmul.f32 %v1195, %v2347
    %v2604 = vmul.f32 %v1196, %v2348
    %v2605 = vmul.f32 %v1197, %v2349
    %v2606 = vmul.f32 %v1198, %v2350
    %v2607 = vmul.f32 %v1199, %v2351
    %v2608 = vmul.f32 %v1200, %v2352
    %v2609 = vmul.f32 %v1201, %v2353
    %v2610 = vmul.f32 %v1202, %v2354
    %v2611 = vmul.f32 %v1203, %v2355
    %v2612 = vmul.f32 %v1204, %v2356
    %v2613 = vmul.f32 %v1205, %v2357
    %v2614 = vmul.f32 %v1206, %v2358
    %v2615 = vmul.f32 %v1207, %v2359
    %v2616 = vmul.f32 %v1208, %v2360
    %v2617 = vmul.f32 %v1209, %v2361
    %v2618 = vmul.f32 %v1210, %v2362
    %v2619 = vmul.f32 %v1211, %v2363
    %v2620 = vmul.f32 %v1212, %v2364
    %v2621 = vmul.f32 %v1213, %v2365
    %v2622 = vmul.f32 %v1214, %v2366
    %v2623 = vmul.f32 %v1215, %v2367
    %v2624 = vmul.f32 %v1216, %v2368
    %v2625 = vmul.f32 %v1217, %v2369
    %v2626 = vmul.f32 %v1218, %v2370
    %v2627 = vmul.f32 %v1219, %v2371
    %v2628 = vmul.f32 %v1220, %v2372
    %v2629 = vmul.f32 %v1221, %v2373
    %v2630 = vmul.f32 %v1222, %v2374
    %v2631 = vmul.f32 %v1223, %v2375
    %v2632 = vmul.f32 %v1224, %v2376
    %v2633 = vmul.f32 %v1225, %v2377
    %v2634 = vmul.f32 %v1226, %v2378
    %v2635 = vmul.f32 %v1227, %v2379
    %v2636 = vmul.f32 %v1228, %v2380
    %v2637 = vmul.f32 %v1229, %v2381
    %v2638 = vmul.f32 %v1230, %v2382
    %v2639 = vmul.f32 %v1231, %v2383
    %v2640 = vmul.f32 %v1232, %v2384
    %v2641 = vmul.f32 %v1233, %v2385
    %v2642 = vmul.f32 %v1234, %v2386
    %v2643 = vmul.f32 %v1235, %v2387
    %v2644 = vmul.f32 %v1236, %v2388
    %v2645 = vmul.f32 %v1237, %v2389
    %v2646 = vmul.f32 %v1238, %v2390
    %v2647 = vmul.f32 %v1239, %v2391
    %v2648 = vmul.f32 %v1240, %v2392
    %v2649 = vmul.f32 %v1241, %v2393
    %v2650 = vmul.f32 %v1242, %v2394
    %v2651 = vmul.f32 %v1243, %v2395
    %v2652 = vmul.f32 %v1244, %v2396
    %v2653 = vmul.f32 %v1245, %v2397
    %v2654 = vmul.f32 %v1246, %v2398
    %v2655 = vmul.f32 %v1247, %v2399
    %v2656 = vmul.f32 %v1248, %v2400
    %v2657 = vmul.f32 %v1249, %v2401
    %v2658 = vmul.f32 %v1250, %v2402
    %v2659 = vmul.f32 %v1251, %v2403
    %v2660 = vmul.f32 %v1252, %v2404
    %v2661 = vmul.f32 %v1253, %v2405
    %v2662 = vmul.f32 %v1254, %v2406
    %v2663 = vmul.f32 %v1255, %v2407
    %v2664 = vmul.f32 %v1256, %v2408
    %v2665 = vmul.f32 %v1257, %v2409
    %v2666 = vmul.f32 %v1258, %v2410
    %v2667 = vmul.f32 %v1259, %v2411
    %v2668 = vmul.f32 %v1260, %v2412
    %v2669 = vmul.f32 %v1261, %v2413
    %v2670 = vmul.f32 %v1262, %v2414
    %v2671 = vmul.f32 %v1263, %v2415
    %v2672 = vmul.f32 %v1264, %v2416
    %v2673 = vmul.f32 %v1265, %v2417
    %v2674 = vmul.f32 %v1266, %v2418
    %v2675 = vmul.f32 %v1267, %v2419
    %v2676 = vmul.f32 %v1268, %v2420
    %v2677 = vmul.f32 %v1269, %v2421
    %v2678 = vmul.f32 %v1270, %v2422
    %v2679 = vmul.f32 %v1271, %v2423
    %v2680 = vmul.f32 %v1272, %v2424
    %v2681 = vmul.f32 %v1273, %v2425
    %v2682 = vmul.f32 %v1274, %v2426
    %v2683 = vmul.f32 %v1275, %v2427
    %v2684 = vmul.f32 %v1276, %v2428
    %v2685 = vmul.f32 %v1277, %v2429
    %v2686 = vmul.f32 %v1278, %v2430
    %v2687 = vmul.f32 %v1279, %v2431
    %v2688 = vmul.f32 %v1280, %v2432
    %v2689 = vmul.f32 %v1281, %v2433
    %v2690 = vmul.f32 %v1282, %v2434
    %v2691 = vmul.f32 %v1283, %v2435
    %v2692 = vmul.f32 %v1284, %v2436
    %v2693 = vmul.f32 %v1285, %v2437
    %v2694 = vmul.f32 %v1286, %v2438
    %v2695 = vmul.f32 %v1287, %v2439
    %v2696 = vmul.f32 %v1288, %v2440
    %v2697 = vmul.f32 %v1289, %v2441
    %v2698 = vmul.f32 %v1290, %v2442
    %v2699 = vmul.f32 %v1291, %v2443
    %v2700 = vmul.f32 %v1292, %v2444
    %v2701 = vmul.f32 %v1293, %v2445
    %v2702 = vmul.f32 %v1294, %v2446
    %v2703 = vmul.f32 %v1295, %v2447
    %v2704 = vmul.f32 %v1296, %v2448
    %v2705 = vmul.f32 %v1297, %v2449
    %v2706 = vmul.f32 %v1298, %v2450
    %v2707 = vmul.f32 %v1299, %v2451
    %v2708 = vmul.f32 %v1300, %v2452
    %v2709 = vmul.f32 %v1301, %v2453
    %v2710 = vmul.f32 %v1302, %v2454
    %v2711 = vmul.f32 %v1303, %v2455
    %v2712 = vmul.f32 %v1304, %v2456
    %v2713 = vmul.f32 %v1305, %v2457
    %v2714 = vmul.f32 %v1306, %v2458
    %v2715 = vmul.f32 %v1307, %v2459
    %v2716 = vmul.f32 %v1308, %v2460
    %v2717 = vmul.f32 %v1309, %v2461
    %v2718 = vmul.f32 %v1310, %v2462
    %v2719 = vmul.f32 %v1311, %v2463
    %v2720 = vmul.f32 %v1312, %v2464
    %v2721 = vmul.f32 %v1313, %v2465
    %v2722 = vmul.f32 %v1314, %v2466
    %v2723 = vmul.f32 %v1315, %v2467
    %v2724 = vmul.f32 %v1316, %v2468
    %v2725 = vmul.f32 %v1317, %v2469
    %v2726 = vmul.f32 %v1318, %v2470
    %v2727 = vmul.f32 %v1319, %v2471
    %v2728 = vmul.f32 %v1320, %v2472
    %v2729 = vmul.f32 %v1321, %v2473
    %v2730 = vmul.f32 %v1322, %v2474
    %v2731 = vmul.f32 %v1323, %v2475
    %v2732 = vmul.f32 %v1324, %v2476
    %v2733 = vmul.f32 %v1325, %v2477
    %v2734 = vmul.f32 %v1326, %v2478
    %v2735 = vmul.f32 %v1327, %v2479
    %v2736 = vmul.f32 %v1328, %v2480
    %v2737 = vmul.f32 %v1329, %v2481
    %v2738 = vmul.f32 %v1330, %v2482
    %v2739 = vmul.f32 %v1331, %v2483
    %v2740 = vmul.f32 %v1332, %v2484
    %v2741 = vmul.f32 %v1333, %v2485
    %v2742 = vmul.f32 %v1334, %v2486
    %v2743 = vmul.f32 %v1335, %v2487
    %v2744 = vmul.f32 %v1336, %v2488
    %v2745 = vmul.f32 %v1337, %v2489
    %v2746 = vmul.f32 %v1338, %v2490
    %v2747 = vmul.f32 %v1339, %v2491
    %v2748 = vmul.f32 %v1340, %v2492
    %v2749 = vmul.f32 %v1341, %v2493
    %v2750 = vmul.f32 %v1342, %v2494
    %v2751 = vmul.f32 %v1343, %v2495
    %v2752 = vmul.f32 %v1344, %v2496
    %v2753 = vmul.f32 %v1345, %v2497
    %v2754 = vmul.f32 %v1346, %v2498
    %v2755 = vmul.f32 %v1347, %v2499
    %v2756 = vmul.f32 %v1348, %v2500
    %v2757 = vmul.f32 %v1349, %v2501
    %v2758 = vmul.f32 %v1350, %v2502
    %v2759 = vmul.f32 %v1351, %v2503
    %v2760 = vmul.f32 %v1352, %v2504
    %v2761 = vmul.f32 %v1353, %v2505
    %v2762 = vmul.f32 %v1354, %v2506
    %v2763 = vmul.f32 %v1355, %v2507
    %v2764 = vmul.f32 %v1356, %v2508
    %v2765 = vmul.f32 %v1357, %v2509
    %v2766 = vmul.f32 %v1358, %v2510
    %v2767 = vmul.f32 %v1359, %v2511
    %v2768 = vmul.f32 %v1360, %v2512
    %v2769 = vmul.f32 %v1361, %v2513
    %v2770 = vmul.f32 %v1362, %v2514
    %v2771 = vmul.f32 %v1363, %v2515
    %v2772 = vmul.f32 %v1364, %v2516
    %v2773 = vmul.f32 %v1365, %v2517
    %v2774 = vmul.f32 %v1366, %v2518
    %v2775 = vmul.f32 %v1367, %v2519
    %v2776 = vmul.f32 %v1368, %v2520
    %v2777 = vmul.f32 %v1369, %v2521
    %v2778 = vmul.f32 %v1370, %v2522
    %v2779 = vmul.f32 %v1371, %v2523
    %v2780 = vmul.f32 %v1372, %v2524
    %v2781 = vmul.f32 %v1373, %v2525
    %v2782 = vmul.f32 %v1374, %v2526
    %v2783 = vmul.f32 %v1375, %v2527
    %v2784 = vmul.f32 %v1376, %v2528
    %v2785 = vmul.f32 %v1377, %v2529
    %v2786 = vmul.f32 %v1378, %v2530
    %v2787 = vmul.f32 %v1379, %v2531
    %v2788 = vmul.f32 %v1380, %v2532
    %v2789 = vmul.f32 %v1381, %v2533
    %v2790 = vmul.f32 %v1382, %v2534
    %v2791 = vmul.f32 %v1383, %v2535
    %v2792 = vmul.f32 %v1384, %v2536
    %v2793 = vmul.f32 %v1385, %v2537
    %v2794 = vmul.f32 %v1386, %v2538
    %v2795 = vmul.f32 %v1387, %v2539
    %v2796 = vmul.f32 %v1388, %v2540
    %v2797 = vmul.f32 %v1389, %v2541
    %v2798 = vmul.f32 %v1390, %v2542
    %v2799 = vmul.f32 %v1391, %v2543
    %v2800 = vmul.f32 %v1392, %v2544
    %v2801 = vmul.f32 %v1393, %v2545
    %v2802 = vmul.f32 %v1394, %v2546
    %v2803 = vpack.c.bf16 %v2555, %v2547
    %v2804 = vpack.c.bf16 %v2556, %v2548
    %v2805 = vpack.c.bf16 %v2557, %v2549
    %v2806 = vpack.c.bf16 %v2558, %v2550
    %v2807 = vpack.c.bf16 %v2559, %v2551
    %v2808 = vpack.c.bf16 %v2560, %v2552
    %v2809 = vpack.c.bf16 %v2561, %v2553
    %v2810 = vpack.c.bf16 %v2562, %v2554
    %v2811 = vpack.c.bf16 %v2571, %v2563
    %v2812 = vpack.c.bf16 %v2572, %v2564
    %v2813 = vpack.c.bf16 %v2573, %v2565
    %v2814 = vpack.c.bf16 %v2574, %v2566
    %v2815 = vpack.c.bf16 %v2575, %v2567
    %v2816 = vpack.c.bf16 %v2576, %v2568
    %v2817 = vpack.c.bf16 %v2577, %v2569
    %v2818 = vpack.c.bf16 %v2578, %v2570
    %v2819 = vpack.c.bf16 %v2587, %v2579
    %v2820 = vpack.c.bf16 %v2588, %v2580
    %v2821 = vpack.c.bf16 %v2589, %v2581
    %v2822 = vpack.c.bf16 %v2590, %v2582
    %v2823 = vpack.c.bf16 %v2591, %v2583
    %v2824 = vpack.c.bf16 %v2592, %v2584
    %v2825 = vpack.c.bf16 %v2593, %v2585
    %v2826 = vpack.c.bf16 %v2594, %v2586
    %v2827 = vpack.c.bf16 %v2603, %v2595
    %v2828 = vpack.c.bf16 %v2604, %v2596
    %v2829 = vpack.c.bf16 %v2605, %v2597
    %v2830 = vpack.c.bf16 %v2606, %v2598
    %v2831 = vpack.c.bf16 %v2607, %v2599
    %v2832 = vpack.c.bf16 %v2608, %v2600
    %v2833 = vpack.c.bf16 %v2609, %v2601
    %v2834 = vpack.c.bf16 %v2610, %v2602
    %v2835 = vpack.c.bf16 %v2619, %v2611
    %v2836 = vpack.c.bf16 %v2620, %v2612
    %v2837 = vpack.c.bf16 %v2621, %v2613
    %v2838 = vpack.c.bf16 %v2622, %v2614
    %v2839 = vpack.c.bf16 %v2623, %v2615
    %v2840 = vpack.c.bf16 %v2624, %v2616
    %v2841 = vpack.c.bf16 %v2625, %v2617
    %v2842 = vpack.c.bf16 %v2626, %v2618
    %v2843 = vpack.c.bf16 %v2635, %v2627
    %v2844 = vpack.c.bf16 %v2636, %v2628
    %v2845 = vpack.c.bf16 %v2637, %v2629
    %v2846 = vpack.c.bf16 %v2638, %v2630
    %v2847 = vpack.c.bf16 %v2639, %v2631
    %v2848 = vpack.c.bf16 %v2640, %v2632
    %v2849 = vpack.c.bf16 %v2641, %v2633
    %v2850 = vpack.c.bf16 %v2642, %v2634
    %v2851 = vpack.c.bf16 %v2651, %v2643
    %v2852 = vpack.c.bf16 %v2652, %v2644
    %v2853 = vpack.c.bf16 %v2653, %v2645
    %v2854 = vpack.c.bf16 %v2654, %v2646
    %v2855 = vpack.c.bf16 %v2655, %v2647
    %v2856 = vpack.c.bf16 %v2656, %v2648
    %v2857 = vpack.c.bf16 %v2657, %v2649
    %v2858 = vpack.c.bf16 %v2658, %v2650
    %v2859 = vpack.c.bf16 %v2667, %v2659
    %v2860 = vpack.c.bf16 %v2668, %v2660
    %v2861 = vpack.c.bf16 %v2669, %v2661
    %v2862 = vpack.c.bf16 %v2670, %v2662
    %v2863 = vpack.c.bf16 %v2671, %v2663
    %v2864 = vpack.c.bf16 %v2672, %v2664
    %v2865 = vpack.c.bf16 %v2673, %v2665
    %v2866 = vpack.c.bf16 %v2674, %v2666
    %v2867 = vpack.c.bf16 %v2683, %v2675
    %v2868 = vpack.c.bf16 %v2684, %v2676
    %v2869 = vpack.c.bf16 %v2685, %v2677
    %v2870 = vpack.c.bf16 %v2686, %v2678
    %v2871 = vpack.c.bf16 %v2687, %v2679
    %v2872 = vpack.c.bf16 %v2688, %v2680
    %v2873 = vpack.c.bf16 %v2689, %v2681
    %v2874 = vpack.c.bf16 %v2690, %v2682
    %v2875 = vpack.c.bf16 %v2699, %v2691
    %v2876 = vpack.c.bf16 %v2700, %v2692
    %v2877 = vpack.c.bf16 %v2701, %v2693
    %v2878 = vpack.c.bf16 %v2702, %v2694
    %v2879 = vpack.c.bf16 %v2703, %v2695
    %v2880 = vpack.c.bf16 %v2704, %v2696
    %v2881 = vpack.c.bf16 %v2705, %v2697
    %v2882 = vpack.c.bf16 %v2706, %v2698
    %v2883 = vpack.c.bf16 %v2715, %v2707
    %v2884 = vpack.c.bf16 %v2716, %v2708
    %v2885 = vpack.c.bf16 %v2717, %v2709
    %v2886 = vpack.c.bf16 %v2718, %v2710
    %v2887 = vpack.c.bf16 %v2719, %v2711
    %v2888 = vpack.c.bf16 %v2720, %v2712
    %v2889 = vpack.c.bf16 %v2721, %v2713
    %v2890 = vpack.c.bf16 %v2722, %v2714
    %v2891 = vpack.c.bf16 %v2731, %v2723
    %v2892 = vpack.c.bf16 %v2732, %v2724
    %v2893 = vpack.c.bf16 %v2733, %v2725
    %v2894 = vpack.c.bf16 %v2734, %v2726
    %v2895 = vpack.c.bf16 %v2735, %v2727
    %v2896 = vpack.c.bf16 %v2736, %v2728
    %v2897 = vpack.c.bf16 %v2737, %v2729
    %v2898 = vpack.c.bf16 %v2738, %v2730
    %v2899 = vpack.c.bf16 %v2747, %v2739
    %v2900 = vpack.c.bf16 %v2748, %v2740
    %v2901 = vpack.c.bf16 %v2749, %v2741
    %v2902 = vpack.c.bf16 %v2750, %v2742
    %v2903 = vpack.c.bf16 %v2751, %v2743
    %v2904 = vpack.c.bf16 %v2752, %v2744
    %v2905 = vpack.c.bf16 %v2753, %v2745
    %v2906 = vpack.c.bf16 %v2754, %v2746
    %v2907 = vpack.c.bf16 %v2763, %v2755
    %v2908 = vpack.c.bf16 %v2764, %v2756
    %v2909 = vpack.c.bf16 %v2765, %v2757
    %v2910 = vpack.c.bf16 %v2766, %v2758
    %v2911 = vpack.c.bf16 %v2767, %v2759
    %v2912 = vpack.c.bf16 %v2768, %v2760
    %v2913 = vpack.c.bf16 %v2769, %v2761
    %v2914 = vpack.c.bf16 %v2770, %v2762
    %v2915 = vpack.c.bf16 %v2779, %v2771
    %v2916 = vpack.c.bf16 %v2780, %v2772
    %v2917 = vpack.c.bf16 %v2781, %v2773
    %v2918 = vpack.c.bf16 %v2782, %v2774
    %v2919 = vpack.c.bf16 %v2783, %v2775
    %v2920 = vpack.c.bf16 %v2784, %v2776
    %v2921 = vpack.c.bf16 %v2785, %v2777
    %v2922 = vpack.c.bf16 %v2786, %v2778
    %v2923 = vpack.c.bf16 %v2795, %v2787
    %v2924 = vpack.c.bf16 %v2796, %v2788
    %v2925 = vpack.c.bf16 %v2797, %v2789
    %v2926 = vpack.c.bf16 %v2798, %v2790
    %v2927 = vpack.c.bf16 %v2799, %v2791
    %v2928 = vpack.c.bf16 %v2800, %v2792
    %v2929 = vpack.c.bf16 %v2801, %v2793
    %v2930 = vpack.c.bf16 %v2802, %v2794
    %v2931 = vld [vmem:[#allocation2] sm:$0xf]
    %v2932 = vld [vmem:[#allocation2 + $0x4] sm:$0xf]
    %v2933 = vld [vmem:[#allocation2 + $0x8] sm:$0xf]
    %v2934 = vld [vmem:[#allocation2 + $0xc] sm:$0xf]
    %v2935 = vld [vmem:[#allocation2 + $0x10] sm:$0xf]
    %v2936 = vld [vmem:[#allocation2 + $0x14] sm:$0xf]
    %v2937 = vld [vmem:[#allocation2 + $0x18] sm:$0xf]
    %v2938 = vld [vmem:[#allocation2 + $0x1c] sm:$0xf]
    %v2939 = vld [vmem:[#allocation2 + $0x20] sm:$0xf]
    %v2940 = vld [vmem:[#allocation2 + $0x24] sm:$0xf]
    %v2941 = vld [vmem:[#allocation2 + $0x28] sm:$0xf]
    %v2942 = vld [vmem:[#allocation2 + $0x2c] sm:$0xf]
    %v2943 = vld [vmem:[#allocation2 + $0x30] sm:$0xf]
    %v2944 = vld [vmem:[#allocation2 + $0x34] sm:$0xf]
    %v2945 = vld [vmem:[#allocation2 + $0x38] sm:$0xf]
    %v2946 = vld [vmem:[#allocation2 + $0x3c] sm:$0xf]
    %v2947 = vld [vmem:[#allocation2 + $0x40] sm:$0xf]
    %v2948 = vld [vmem:[#allocation2 + $0x44] sm:$0xf]
    %v2949 = vld [vmem:[#allocation2 + $0x48] sm:$0xf]
    %v2950 = vld [vmem:[#allocation2 + $0x4c] sm:$0xf]
    %v2951 = vld [vmem:[#allocation2 + $0x50] sm:$0xf]
    %v2952 = vld [vmem:[#allocation2 + $0x54] sm:$0xf]
    %v2953 = vld [vmem:[#allocation2 + $0x58] sm:$0xf]
    %v2954 = vld [vmem:[#allocation2 + $0x5c] sm:$0xf]
    %v2955 = vld [vmem:[#allocation2 + $0x60] sm:$0xf]
    %v2956 = vld [vmem:[#allocation2 + $0x64] sm:$0xf]
    %v2957 = vld [vmem:[#allocation2 + $0x68] sm:$0xf]
    %v2958 = vld [vmem:[#allocation2 + $0x6c] sm:$0xf]
    %v2959 = vld [vmem:[#allocation2 + $0x70] sm:$0xf]
    %v2960 = vld [vmem:[#allocation2 + $0x74] sm:$0xf]
    %v2961 = vld [vmem:[#allocation2 + $0x78] sm:$0xf]
    %v2962 = vld [vmem:[#allocation2 + $0x7c] sm:$0xf]
    %v2963 = vld [vmem:[#allocation2 + $0x80] sm:$0xf]
    %v2964 = vld [vmem:[#allocation2 + $0x84] sm:$0xf]
    %v2965 = vld [vmem:[#allocation2 + $0x88] sm:$0xf]
    %v2966 = vld [vmem:[#allocation2 + $0x8c] sm:$0xf]
    %v2967 = vld [vmem:[#allocation2 + $0x90] sm:$0xf]
    %v2968 = vld [vmem:[#allocation2 + $0x94] sm:$0xf]
    %v2969 = vld [vmem:[#allocation2 + $0x98] sm:$0xf]
    %v2970 = vld [vmem:[#allocation2 + $0x9c] sm:$0xf]
    %v2971 = vld [vmem:[#allocation2 + $0xa0] sm:$0xf]
    %v2972 = vld [vmem:[#allocation2 + $0xa4] sm:$0xf]
    %v2973 = vld [vmem:[#allocation2 + $0xa8] sm:$0xf]
    %v2974 = vld [vmem:[#allocation2 + $0xac] sm:$0xf]
    %v2975 = vld [vmem:[#allocation2 + $0xb0] sm:$0xf]
    %v2976 = vld [vmem:[#allocation2 + $0xb4] sm:$0xf]
    %v2977 = vld [vmem:[#allocation2 + $0xb8] sm:$0xf]
    %v2978 = vld [vmem:[#allocation2 + $0xbc] sm:$0xf]
    %v2979 = vld [vmem:[#allocation2 + $0xc0] sm:$0xf]
    %v2980 = vld [vmem:[#allocation2 + $0xc4] sm:$0xf]
    %v2981 = vld [vmem:[#allocation2 + $0xc8] sm:$0xf]
    %v2982 = vld [vmem:[#allocation2 + $0xcc] sm:$0xf]
    %v2983 = vld [vmem:[#allocation2 + $0xd0] sm:$0xf]
    %v2984 = vld [vmem:[#allocation2 + $0xd4] sm:$0xf]
    %v2985 = vld [vmem:[#allocation2 + $0xd8] sm:$0xf]
    %v2986 = vld [vmem:[#allocation2 + $0xdc] sm:$0xf]
    %v2987 = vld [vmem:[#allocation2 + $0xe0] sm:$0xf]
    %v2988 = vld [vmem:[#allocation2 + $0xe4] sm:$0xf]
    %v2989 = vld [vmem:[#allocation2 + $0xe8] sm:$0xf]
    %v2990 = vld [vmem:[#allocation2 + $0xec] sm:$0xf]
    %v2991 = vld [vmem:[#allocation2 + $0xf0] sm:$0xf]
    %v2992 = vld [vmem:[#allocation2 + $0xf4] sm:$0xf]
    %v2993 = vld [vmem:[#allocation2 + $0xf8] sm:$0xf]
    %v2994 = vld [vmem:[#allocation2 + $0xfc] sm:$0xf]
    %v2995 = vld [vmem:[#allocation2 + $0x100] sm:$0xf]
    %v2996 = vld [vmem:[#allocation2 + $0x104] sm:$0xf]
    %v2997 = vld [vmem:[#allocation2 + $0x108] sm:$0xf]
    %v2998 = vld [vmem:[#allocation2 + $0x10c] sm:$0xf]
    %v2999 = vld [vmem:[#allocation2 + $0x110] sm:$0xf]
    %v3000 = vld [vmem:[#allocation2 + $0x114] sm:$0xf]
    %v3001 = vld [vmem:[#allocation2 + $0x118] sm:$0xf]
    %v3002 = vld [vmem:[#allocation2 + $0x11c] sm:$0xf]
    %v3003 = vld [vmem:[#allocation2 + $0x120] sm:$0xf]
    %v3004 = vld [vmem:[#allocation2 + $0x124] sm:$0xf]
    %v3005 = vld [vmem:[#allocation2 + $0x128] sm:$0xf]
    %v3006 = vld [vmem:[#allocation2 + $0x12c] sm:$0xf]
    %v3007 = vld [vmem:[#allocation2 + $0x130] sm:$0xf]
    %v3008 = vld [vmem:[#allocation2 + $0x134] sm:$0xf]
    %v3009 = vld [vmem:[#allocation2 + $0x138] sm:$0xf]
    %v3010 = vld [vmem:[#allocation2 + $0x13c] sm:$0xf]
    %v3011 = vld [vmem:[#allocation2 + $0x140] sm:$0xf]
    %v3012 = vld [vmem:[#allocation2 + $0x144] sm:$0xf]
    %v3013 = vld [vmem:[#allocation2 + $0x148] sm:$0xf]
    %v3014 = vld [vmem:[#allocation2 + $0x14c] sm:$0xf]
    %v3015 = vld [vmem:[#allocation2 + $0x150] sm:$0xf]
    %v3016 = vld [vmem:[#allocation2 + $0x154] sm:$0xf]
    %v3017 = vld [vmem:[#allocation2 + $0x158] sm:$0xf]
    %v3018 = vld [vmem:[#allocation2 + $0x15c] sm:$0xf]
    %v3019 = vld [vmem:[#allocation2 + $0x160] sm:$0xf]
    %v3020 = vld [vmem:[#allocation2 + $0x164] sm:$0xf]
    %v3021 = vld [vmem:[#allocation2 + $0x168] sm:$0xf]
    %v3022 = vld [vmem:[#allocation2 + $0x16c] sm:$0xf]
    %v3023 = vld [vmem:[#allocation2 + $0x170] sm:$0xf]
    %v3024 = vld [vmem:[#allocation2 + $0x174] sm:$0xf]
    %v3025 = vld [vmem:[#allocation2 + $0x178] sm:$0xf]
    %v3026 = vld [vmem:[#allocation2 + $0x17c] sm:$0xf]
    %v3027 = vld [vmem:[#allocation2 + $0x180] sm:$0xf]
    %v3028 = vld [vmem:[#allocation2 + $0x184] sm:$0xf]
    %v3029 = vld [vmem:[#allocation2 + $0x188] sm:$0xf]
    %v3030 = vld [vmem:[#allocation2 + $0x18c] sm:$0xf]
    %v3031 = vld [vmem:[#allocation2 + $0x190] sm:$0xf]
    %v3032 = vld [vmem:[#allocation2 + $0x194] sm:$0xf]
    %v3033 = vld [vmem:[#allocation2 + $0x198] sm:$0xf]
    %v3034 = vld [vmem:[#allocation2 + $0x19c] sm:$0xf]
    %v3035 = vld [vmem:[#allocation2 + $0x1a0] sm:$0xf]
    %v3036 = vld [vmem:[#allocation2 + $0x1a4] sm:$0xf]
    %v3037 = vld [vmem:[#allocation2 + $0x1a8] sm:$0xf]
    %v3038 = vld [vmem:[#allocation2 + $0x1ac] sm:$0xf]
    %v3039 = vld [vmem:[#allocation2 + $0x1b0] sm:$0xf]
    %v3040 = vld [vmem:[#allocation2 + $0x1b4] sm:$0xf]
    %v3041 = vld [vmem:[#allocation2 + $0x1b8] sm:$0xf]
    %v3042 = vld [vmem:[#allocation2 + $0x1bc] sm:$0xf]
    %v3043 = vld [vmem:[#allocation2 + $0x1c0] sm:$0xf]
    %v3044 = vld [vmem:[#allocation2 + $0x1c4] sm:$0xf]
    %v3045 = vld [vmem:[#allocation2 + $0x1c8] sm:$0xf]
    %v3046 = vld [vmem:[#allocation2 + $0x1cc] sm:$0xf]
    %v3047 = vld [vmem:[#allocation2 + $0x1d0] sm:$0xf]
    %v3048 = vld [vmem:[#allocation2 + $0x1d4] sm:$0xf]
    %v3049 = vld [vmem:[#allocation2 + $0x1d8] sm:$0xf]
    %v3050 = vld [vmem:[#allocation2 + $0x1dc] sm:$0xf]
    %v3051 = vld [vmem:[#allocation2 + $0x1e0] sm:$0xf]
    %v3052 = vld [vmem:[#allocation2 + $0x1e4] sm:$0xf]
    %v3053 = vld [vmem:[#allocation2 + $0x1e8] sm:$0xf]
    %v3054 = vld [vmem:[#allocation2 + $0x1ec] sm:$0xf]
    %v3055 = vld [vmem:[#allocation2 + $0x1f0] sm:$0xf]
    %v3056 = vld [vmem:[#allocation2 + $0x1f4] sm:$0xf]
    %v3057 = vld [vmem:[#allocation2 + $0x1f8] sm:$0xf]
    %v3058 = vld [vmem:[#allocation2 + $0x1fc] sm:$0xf]
    %3059 = vset.pattern.permute.xlu0 2
    %3060 = vperm.xlu0 %3059, %v94
    %v3061 = vpop.permute.xlu0 %3060
    %3063 = vset.pattern.permute.xlu0 2
    %3064 = vperm.xlu0 %3063, %v95
    %v3065 = vpop.permute.xlu0 %3064
    %3067 = vset.pattern.permute.xlu0 2
    %3068 = vperm.xlu0 %3067, %v96
    %v3069 = vpop.permute.xlu0 %3068
    %3071 = vset.pattern.permute.xlu0 2
    %3072 = vperm.xlu0 %3071, %v97
    %v3073 = vpop.permute.xlu0 %3072
    %3075 = vset.pattern.permute.xlu0 2
    %3076 = vperm.xlu0 %3075, %v98
    %v3077 = vpop.permute.xlu0 %3076
    %3079 = vset.pattern.permute.xlu0 2
    %3080 = vperm.xlu0 %3079, %v99
    %v3081 = vpop.permute.xlu0 %3080
    %3083 = vset.pattern.permute.xlu0 2
    %3084 = vperm.xlu0 %3083, %v100
    %v3085 = vpop.permute.xlu0 %3084
    %3087 = vset.pattern.permute.xlu0 2
    %3088 = vperm.xlu0 %3087, %v101
    %v3089 = vpop.permute.xlu0 %3088
    %3091 = vset.pattern.permute.xlu0 2
    %3092 = vperm.xlu0 %3091, %v102
    %v3093 = vpop.permute.xlu0 %3092
    %3095 = vset.pattern.permute.xlu0 2
    %3096 = vperm.xlu0 %3095, %v103
    %v3097 = vpop.permute.xlu0 %3096
    %3099 = vset.pattern.permute.xlu0 2
    %3100 = vperm.xlu0 %3099, %v104
    %v3101 = vpop.permute.xlu0 %3100
    %3103 = vset.pattern.permute.xlu0 2
    %3104 = vperm.xlu0 %3103, %v105
    %v3105 = vpop.permute.xlu0 %3104
    %3107 = vset.pattern.permute.xlu0 2
    %3108 = vperm.xlu0 %3107, %v106
    %v3109 = vpop.permute.xlu0 %3108
    %3111 = vset.pattern.permute.xlu0 2
    %3112 = vperm.xlu0 %3111, %v107
    %v3113 = vpop.permute.xlu0 %3112
    %3115 = vset.pattern.permute.xlu0 2
    %3116 = vperm.xlu0 %3115, %v108
    %v3117 = vpop.permute.xlu0 %3116
    %3119 = vset.pattern.permute.xlu0 2
    %3120 = vperm.xlu0 %3119, %v109
    %v3121 = vpop.permute.xlu0 %3120
    %3123 = vset.pattern.permute.xlu0 2
    %3124 = vperm.xlu0 %3123, %v110
    %v3125 = vpop.permute.xlu0 %3124
    %3127 = vset.pattern.permute.xlu0 2
    %3128 = vperm.xlu0 %3127, %v111
    %v3129 = vpop.permute.xlu0 %3128
    %3131 = vset.pattern.permute.xlu0 2
    %3132 = vperm.xlu0 %3131, %v112
    %v3133 = vpop.permute.xlu0 %3132
    %3135 = vset.pattern.permute.xlu0 2
    %3136 = vperm.xlu0 %3135, %v113
    %v3137 = vpop.permute.xlu0 %3136
    %3139 = vset.pattern.permute.xlu0 2
    %3140 = vperm.xlu0 %3139, %v114
    %v3141 = vpop.permute.xlu0 %3140
    %3143 = vset.pattern.permute.xlu0 2
    %3144 = vperm.xlu0 %3143, %v115
    %v3145 = vpop.permute.xlu0 %3144
    %3147 = vset.pattern.permute.xlu0 2
    %3148 = vperm.xlu0 %3147, %v116
    %v3149 = vpop.permute.xlu0 %3148
    %3151 = vset.pattern.permute.xlu0 2
    %3152 = vperm.xlu0 %3151, %v117
    %v3153 = vpop.permute.xlu0 %3152
    %3155 = vset.pattern.permute.xlu0 2
    %3156 = vperm.xlu0 %3155, %v118
    %v3157 = vpop.permute.xlu0 %3156
    %3159 = vset.pattern.permute.xlu0 2
    %3160 = vperm.xlu0 %3159, %v119
    %v3161 = vpop.permute.xlu0 %3160
    %3163 = vset.pattern.permute.xlu0 2
    %3164 = vperm.xlu0 %3163, %v120
    %v3165 = vpop.permute.xlu0 %3164
    %3167 = vset.pattern.permute.xlu0 2
    %3168 = vperm.xlu0 %3167, %v121
    %v3169 = vpop.permute.xlu0 %3168
    %3171 = vset.pattern.permute.xlu0 2
    %3172 = vperm.xlu0 %3171, %v122
    %v3173 = vpop.permute.xlu0 %3172
    %3175 = vset.pattern.permute.xlu0 2
    %3176 = vperm.xlu0 %3175, %v123
    %v3177 = vpop.permute.xlu0 %3176
    %3179 = vset.pattern.permute.xlu0 2
    %3180 = vperm.xlu0 %3179, %v124
    %v3181 = vpop.permute.xlu0 %3180
    %3183 = vset.pattern.permute.xlu0 2
    %3184 = vperm.xlu0 %3183, %v125
    %v3185 = vpop.permute.xlu0 %3184
    %v3187 = vsub.f32 %v174, %v3061
    %v3188 = vsub.f32 %v178, %v3061
    %v3189 = vsub.f32 %v182, %v3061
    %v3190 = vsub.f32 %v186, %v3061
    %v3191 = vsub.f32 %v190, %v3061
    %v3192 = vsub.f32 %v194, %v3061
    %v3193 = vsub.f32 %v198, %v3061
    %v3194 = vsub.f32 %v202, %v3061
    %v3195 = vsub.f32 %v174, %v3065
    %v3196 = vsub.f32 %v178, %v3065
    %v3197 = vsub.f32 %v182, %v3065
    %v3198 = vsub.f32 %v186, %v3065
    %v3199 = vsub.f32 %v190, %v3065
    %v3200 = vsub.f32 %v194, %v3065
    %v3201 = vsub.f32 %v198, %v3065
    %v3202 = vsub.f32 %v202, %v3065
    %v3203 = vsub.f32 %v174, %v3069
    %v3204 = vsub.f32 %v178, %v3069
    %v3205 = vsub.f32 %v182, %v3069
    %v3206 = vsub.f32 %v186, %v3069
    %v3207 = vsub.f32 %v190, %v3069
    %v3208 = vsub.f32 %v194, %v3069
    %v3209 = vsub.f32 %v198, %v3069
    %v3210 = vsub.f32 %v202, %v3069
    %v3211 = vsub.f32 %v174, %v3073
    %v3212 = vsub.f32 %v178, %v3073
    %v3213 = vsub.f32 %v182, %v3073
    %v3214 = vsub.f32 %v186, %v3073
    %v3215 = vsub.f32 %v190, %v3073
    %v3216 = vsub.f32 %v194, %v3073
    %v3217 = vsub.f32 %v198, %v3073
    %v3218 = vsub.f32 %v202, %v3073
    %v3219 = vsub.f32 %v174, %v3077
    %v3220 = vsub.f32 %v178, %v3077
    %v3221 = vsub.f32 %v182, %v3077
    %v3222 = vsub.f32 %v186, %v3077
    %v3223 = vsub.f32 %v190, %v3077
    %v3224 = vsub.f32 %v194, %v3077
    %v3225 = vsub.f32 %v198, %v3077
    %v3226 = vsub.f32 %v202, %v3077
    %v3227 = vsub.f32 %v174, %v3081
    %v3228 = vsub.f32 %v178, %v3081
    %v3229 = vsub.f32 %v182, %v3081
    %v3230 = vsub.f32 %v186, %v3081
    %v3231 = vsub.f32 %v190, %v3081
    %v3232 = vsub.f32 %v194, %v3081
    %v3233 = vsub.f32 %v198, %v3081
    %v3234 = vsub.f32 %v202, %v3081
    %v3235 = vsub.f32 %v174, %v3085
    %v3236 = vsub.f32 %v178, %v3085
    %v3237 = vsub.f32 %v182, %v3085
    %v3238 = vsub.f32 %v186, %v3085
    %v3239 = vsub.f32 %v190, %v3085
    %v3240 = vsub.f32 %v194, %v3085
    %v3241 = vsub.f32 %v198, %v3085
    %v3242 = vsub.f32 %v202, %v3085
    %v3243 = vsub.f32 %v174, %v3089
    %v3244 = vsub.f32 %v178, %v3089
    %v3245 = vsub.f32 %v182, %v3089
    %v3246 = vsub.f32 %v186, %v3089
    %v3247 = vsub.f32 %v190, %v3089
    %v3248 = vsub.f32 %v194, %v3089
    %v3249 = vsub.f32 %v198, %v3089
    %v3250 = vsub.f32 %v202, %v3089
    %v3251 = vsub.f32 %v174, %v3093
    %v3252 = vsub.f32 %v178, %v3093
    %v3253 = vsub.f32 %v182, %v3093
    %v3254 = vsub.f32 %v186, %v3093
    %v3255 = vsub.f32 %v190, %v3093
    %v3256 = vsub.f32 %v194, %v3093
    %v3257 = vsub.f32 %v198, %v3093
    %v3258 = vsub.f32 %v202, %v3093
    %v3259 = vsub.f32 %v174, %v3097
    %v3260 = vsub.f32 %v178, %v3097
    %v3261 = vsub.f32 %v182, %v3097
    %v3262 = vsub.f32 %v186, %v3097
    %v3263 = vsub.f32 %v190, %v3097
    %v3264 = vsub.f32 %v194, %v3097
    %v3265 = vsub.f32 %v198, %v3097
    %v3266 = vsub.f32 %v202, %v3097
    %v3267 = vsub.f32 %v174, %v3101
    %v3268 = vsub.f32 %v178, %v3101
    %v3269 = vsub.f32 %v182, %v3101
    %v3270 = vsub.f32 %v186, %v3101
    %v3271 = vsub.f32 %v190, %v3101
    %v3272 = vsub.f32 %v194, %v3101
    %v3273 = vsub.f32 %v198, %v3101
    %v3274 = vsub.f32 %v202, %v3101
    %v3275 = vsub.f32 %v174, %v3105
    %v3276 = vsub.f32 %v178, %v3105
    %v3277 = vsub.f32 %v182, %v3105
    %v3278 = vsub.f32 %v186, %v3105
    %v3279 = vsub.f32 %v190, %v3105
    %v3280 = vsub.f32 %v194, %v3105
    %v3281 = vsub.f32 %v198, %v3105
    %v3282 = vsub.f32 %v202, %v3105
    %v3283 = vsub.f32 %v174, %v3109
    %v3284 = vsub.f32 %v178, %v3109
    %v3285 = vsub.f32 %v182, %v3109
    %v3286 = vsub.f32 %v186, %v3109
    %v3287 = vsub.f32 %v190, %v3109
    %v3288 = vsub.f32 %v194, %v3109
    %v3289 = vsub.f32 %v198, %v3109
    %v3290 = vsub.f32 %v202, %v3109
    %v3291 = vsub.f32 %v174, %v3113
    %v3292 = vsub.f32 %v178, %v3113
    %v3293 = vsub.f32 %v182, %v3113
    %v3294 = vsub.f32 %v186, %v3113
    %v3295 = vsub.f32 %v190, %v3113
    %v3296 = vsub.f32 %v194, %v3113
    %v3297 = vsub.f32 %v198, %v3113
    %v3298 = vsub.f32 %v202, %v3113
    %v3299 = vsub.f32 %v174, %v3117
    %v3300 = vsub.f32 %v178, %v3117
    %v3301 = vsub.f32 %v182, %v3117
    %v3302 = vsub.f32 %v186, %v3117
    %v3303 = vsub.f32 %v190, %v3117
    %v3304 = vsub.f32 %v194, %v3117
    %v3305 = vsub.f32 %v198, %v3117
    %v3306 = vsub.f32 %v202, %v3117
    %v3307 = vsub.f32 %v174, %v3121
    %v3308 = vsub.f32 %v178, %v3121
    %v3309 = vsub.f32 %v182, %v3121
    %v3310 = vsub.f32 %v186, %v3121
    %v3311 = vsub.f32 %v190, %v3121
    %v3312 = vsub.f32 %v194, %v3121
    %v3313 = vsub.f32 %v198, %v3121
    %v3314 = vsub.f32 %v202, %v3121
    %v3315 = vsub.f32 %v174, %v3125
    %v3316 = vsub.f32 %v178, %v3125
    %v3317 = vsub.f32 %v182, %v3125
    %v3318 = vsub.f32 %v186, %v3125
    %v3319 = vsub.f32 %v190, %v3125
    %v3320 = vsub.f32 %v194, %v3125
    %v3321 = vsub.f32 %v198, %v3125
    %v3322 = vsub.f32 %v202, %v3125
    %v3323 = vsub.f32 %v174, %v3129
    %v3324 = vsub.f32 %v178, %v3129
    %v3325 = vsub.f32 %v182, %v3129
    %v3326 = vsub.f32 %v186, %v3129
    %v3327 = vsub.f32 %v190, %v3129
    %v3328 = vsub.f32 %v194, %v3129
    %v3329 = vsub.f32 %v198, %v3129
    %v3330 = vsub.f32 %v202, %v3129
    %v3331 = vsub.f32 %v174, %v3133
    %v3332 = vsub.f32 %v178, %v3133
    %v3333 = vsub.f32 %v182, %v3133
    %v3334 = vsub.f32 %v186, %v3133
    %v3335 = vsub.f32 %v190, %v3133
    %v3336 = vsub.f32 %v194, %v3133
    %v3337 = vsub.f32 %v198, %v3133
    %v3338 = vsub.f32 %v202, %v3133
    %v3339 = vsub.f32 %v174, %v3137
    %v3340 = vsub.f32 %v178, %v3137
    %v3341 = vsub.f32 %v182, %v3137
    %v3342 = vsub.f32 %v186, %v3137
    %v3343 = vsub.f32 %v190, %v3137
    %v3344 = vsub.f32 %v194, %v3137
    %v3345 = vsub.f32 %v198, %v3137
    %v3346 = vsub.f32 %v202, %v3137
    %v3347 = vsub.f32 %v174, %v3141
    %v3348 = vsub.f32 %v178, %v3141
    %v3349 = vsub.f32 %v182, %v3141
    %v3350 = vsub.f32 %v186, %v3141
    %v3351 = vsub.f32 %v190, %v3141
    %v3352 = vsub.f32 %v194, %v3141
    %v3353 = vsub.f32 %v198, %v3141
    %v3354 = vsub.f32 %v202, %v3141
    %v3355 = vsub.f32 %v174, %v3145
    %v3356 = vsub.f32 %v178, %v3145
    %v3357 = vsub.f32 %v182, %v3145
    %v3358 = vsub.f32 %v186, %v3145
    %v3359 = vsub.f32 %v190, %v3145
    %v3360 = vsub.f32 %v194, %v3145
    %v3361 = vsub.f32 %v198, %v3145
    %v3362 = vsub.f32 %v202, %v3145
    %v3363 = vsub.f32 %v174, %v3149
    %v3364 = vsub.f32 %v178, %v3149
    %v3365 = vsub.f32 %v182, %v3149
    %v3366 = vsub.f32 %v186, %v3149
    %v3367 = vsub.f32 %v190, %v3149
    %v3368 = vsub.f32 %v194, %v3149
    %v3369 = vsub.f32 %v198, %v3149
    %v3370 = vsub.f32 %v202, %v3149
    %v3371 = vsub.f32 %v174, %v3153
    %v3372 = vsub.f32 %v178, %v3153
    %v3373 = vsub.f32 %v182, %v3153
    %v3374 = vsub.f32 %v186, %v3153
    %v3375 = vsub.f32 %v190, %v3153
    %v3376 = vsub.f32 %v194, %v3153
    %v3377 = vsub.f32 %v198, %v3153
    %v3378 = vsub.f32 %v202, %v3153
    %v3379 = vsub.f32 %v174, %v3157
    %v3380 = vsub.f32 %v178, %v3157
    %v3381 = vsub.f32 %v182, %v3157
    %v3382 = vsub.f32 %v186, %v3157
    %v3383 = vsub.f32 %v190, %v3157
    %v3384 = vsub.f32 %v194, %v3157
    %v3385 = vsub.f32 %v198, %v3157
    %v3386 = vsub.f32 %v202, %v3157
    %v3387 = vsub.f32 %v174, %v3161
    %v3388 = vsub.f32 %v178, %v3161
    %v3389 = vsub.f32 %v182, %v3161
    %v3390 = vsub.f32 %v186, %v3161
    %v3391 = vsub.f32 %v190, %v3161
    %v3392 = vsub.f32 %v194, %v3161
    %v3393 = vsub.f32 %v198, %v3161
    %v3394 = vsub.f32 %v202, %v3161
    %v3395 = vsub.f32 %v174, %v3165
    %v3396 = vsub.f32 %v178, %v3165
    %v3397 = vsub.f32 %v182, %v3165
    %v3398 = vsub.f32 %v186, %v3165
    %v3399 = vsub.f32 %v190, %v3165
    %v3400 = vsub.f32 %v194, %v3165
    %v3401 = vsub.f32 %v198, %v3165
    %v3402 = vsub.f32 %v202, %v3165
    %v3403 = vsub.f32 %v174, %v3169
    %v3404 = vsub.f32 %v178, %v3169
    %v3405 = vsub.f32 %v182, %v3169
    %v3406 = vsub.f32 %v186, %v3169
    %v3407 = vsub.f32 %v190, %v3169
    %v3408 = vsub.f32 %v194, %v3169
    %v3409 = vsub.f32 %v198, %v3169
    %v3410 = vsub.f32 %v202, %v3169
    %v3411 = vsub.f32 %v174, %v3173
    %v3412 = vsub.f32 %v178, %v3173
    %v3413 = vsub.f32 %v182, %v3173
    %v3414 = vsub.f32 %v186, %v3173
    %v3415 = vsub.f32 %v190, %v3173
    %v3416 = vsub.f32 %v194, %v3173
    %v3417 = vsub.f32 %v198, %v3173
    %v3418 = vsub.f32 %v202, %v3173
    %v3419 = vsub.f32 %v174, %v3177
    %v3420 = vsub.f32 %v178, %v3177
    %v3421 = vsub.f32 %v182, %v3177
    %v3422 = vsub.f32 %v186, %v3177
    %v3423 = vsub.f32 %v190, %v3177
    %v3424 = vsub.f32 %v194, %v3177
    %v3425 = vsub.f32 %v198, %v3177
    %v3426 = vsub.f32 %v202, %v3177
    %v3427 = vsub.f32 %v174, %v3181
    %v3428 = vsub.f32 %v178, %v3181
    %v3429 = vsub.f32 %v182, %v3181
    %v3430 = vsub.f32 %v186, %v3181
    %v3431 = vsub.f32 %v190, %v3181
    %v3432 = vsub.f32 %v194, %v3181
    %v3433 = vsub.f32 %v198, %v3181
    %v3434 = vsub.f32 %v202, %v3181
    %v3435 = vsub.f32 %v174, %v3185
    %v3436 = vsub.f32 %v178, %v3185
    %v3437 = vsub.f32 %v182, %v3185
    %v3438 = vsub.f32 %v186, %v3185
    %v3439 = vsub.f32 %v190, %v3185
    %v3440 = vsub.f32 %v194, %v3185
    %v3441 = vsub.f32 %v198, %v3185
    %v3442 = vsub.f32 %v202, %v3185
    %v3443 = vand.u32 2147483647, %v3187
    %v3444 = vand.u32 2147483647, %v3188
    %v3445 = vand.u32 2147483647, %v3189
    %v3446 = vand.u32 2147483647, %v3190
    %v3447 = vand.u32 2147483647, %v3191
    %v3448 = vand.u32 2147483647, %v3192
    %v3449 = vand.u32 2147483647, %v3193
    %v3450 = vand.u32 2147483647, %v3194
    %v3451 = vand.u32 2147483647, %v3195
    %v3452 = vand.u32 2147483647, %v3196
    %v3453 = vand.u32 2147483647, %v3197
    %v3454 = vand.u32 2147483647, %v3198
    %v3455 = vand.u32 2147483647, %v3199
    %v3456 = vand.u32 2147483647, %v3200
    %v3457 = vand.u32 2147483647, %v3201
    %v3458 = vand.u32 2147483647, %v3202
    %v3459 = vand.u32 2147483647, %v3203
    %v3460 = vand.u32 2147483647, %v3204
    %v3461 = vand.u32 2147483647, %v3205
    %v3462 = vand.u32 2147483647, %v3206
    %v3463 = vand.u32 2147483647, %v3207
    %v3464 = vand.u32 2147483647, %v3208
    %v3465 = vand.u32 2147483647, %v3209
    %v3466 = vand.u32 2147483647, %v3210
    %v3467 = vand.u32 2147483647, %v3211
    %v3468 = vand.u32 2147483647, %v3212
    %v3469 = vand.u32 2147483647, %v3213
    %v3470 = vand.u32 2147483647, %v3214
    %v3471 = vand.u32 2147483647, %v3215
    %v3472 = vand.u32 2147483647, %v3216
    %v3473 = vand.u32 2147483647, %v3217
    %v3474 = vand.u32 2147483647, %v3218
    %v3475 = vand.u32 2147483647, %v3219
    %v3476 = vand.u32 2147483647, %v3220
    %v3477 = vand.u32 2147483647, %v3221
    %v3478 = vand.u32 2147483647, %v3222
    %v3479 = vand.u32 2147483647, %v3223
    %v3480 = vand.u32 2147483647, %v3224
    %v3481 = vand.u32 2147483647, %v3225
    %v3482 = vand.u32 2147483647, %v3226
    %v3483 = vand.u32 2147483647, %v3227
    %v3484 = vand.u32 2147483647, %v3228
    %v3485 = vand.u32 2147483647, %v3229
    %v3486 = vand.u32 2147483647, %v3230
    %v3487 = vand.u32 2147483647, %v3231
    %v3488 = vand.u32 2147483647, %v3232
    %v3489 = vand.u32 2147483647, %v3233
    %v3490 = vand.u32 2147483647, %v3234
    %v3491 = vand.u32 2147483647, %v3235
    %v3492 = vand.u32 2147483647, %v3236
    %v3493 = vand.u32 2147483647, %v3237
    %v3494 = vand.u32 2147483647, %v3238
    %v3495 = vand.u32 2147483647, %v3239
    %v3496 = vand.u32 2147483647, %v3240
    %v3497 = vand.u32 2147483647, %v3241
    %v3498 = vand.u32 2147483647, %v3242
    %v3499 = vand.u32 2147483647, %v3243
    %v3500 = vand.u32 2147483647, %v3244
    %v3501 = vand.u32 2147483647, %v3245
    %v3502 = vand.u32 2147483647, %v3246
    %v3503 = vand.u32 2147483647, %v3247
    %v3504 = vand.u32 2147483647, %v3248
    %v3505 = vand.u32 2147483647, %v3249
    %v3506 = vand.u32 2147483647, %v3250
    %v3507 = vand.u32 2147483647, %v3251
    %v3508 = vand.u32 2147483647, %v3252
    %v3509 = vand.u32 2147483647, %v3253
    %v3510 = vand.u32 2147483647, %v3254
    %v3511 = vand.u32 2147483647, %v3255
    %v3512 = vand.u32 2147483647, %v3256
    %v3513 = vand.u32 2147483647, %v3257
    %v3514 = vand.u32 2147483647, %v3258
    %v3515 = vand.u32 2147483647, %v3259
    %v3516 = vand.u32 2147483647, %v3260
    %v3517 = vand.u32 2147483647, %v3261
    %v3518 = vand.u32 2147483647, %v3262
    %v3519 = vand.u32 2147483647, %v3263
    %v3520 = vand.u32 2147483647, %v3264
    %v3521 = vand.u32 2147483647, %v3265
    %v3522 = vand.u32 2147483647, %v3266
    %v3523 = vand.u32 2147483647, %v3267
    %v3524 = vand.u32 2147483647, %v3268
    %v3525 = vand.u32 2147483647, %v3269
    %v3526 = vand.u32 2147483647, %v3270
    %v3527 = vand.u32 2147483647, %v3271
    %v3528 = vand.u32 2147483647, %v3272
    %v3529 = vand.u32 2147483647, %v3273
    %v3530 = vand.u32 2147483647, %v3274
    %v3531 = vand.u32 2147483647, %v3275
    %v3532 = vand.u32 2147483647, %v3276
    %v3533 = vand.u32 2147483647, %v3277
    %v3534 = vand.u32 2147483647, %v3278
    %v3535 = vand.u32 2147483647, %v3279
    %v3536 = vand.u32 2147483647, %v3280
    %v3537 = vand.u32 2147483647, %v3281
    %v3538 = vand.u32 2147483647, %v3282
    %v3539 = vand.u32 2147483647, %v3283
    %v3540 = vand.u32 2147483647, %v3284
    %v3541 = vand.u32 2147483647, %v3285
    %v3542 = vand.u32 2147483647, %v3286
    %v3543 = vand.u32 2147483647, %v3287
    %v3544 = vand.u32 2147483647, %v3288
    %v3545 = vand.u32 2147483647, %v3289
    %v3546 = vand.u32 2147483647, %v3290
    %v3547 = vand.u32 2147483647, %v3291
    %v3548 = vand.u32 2147483647, %v3292
    %v3549 = vand.u32 2147483647, %v3293
    %v3550 = vand.u32 2147483647, %v3294
    %v3551 = vand.u32 2147483647, %v3295
    %v3552 = vand.u32 2147483647, %v3296
    %v3553 = vand.u32 2147483647, %v3297
    %v3554 = vand.u32 2147483647, %v3298
    %v3555 = vand.u32 2147483647, %v3299
    %v3556 = vand.u32 2147483647, %v3300
    %v3557 = vand.u32 2147483647, %v3301
    %v3558 = vand.u32 2147483647, %v3302
    %v3559 = vand.u32 2147483647, %v3303
    %v3560 = vand.u32 2147483647, %v3304
    %v3561 = vand.u32 2147483647, %v3305
    %v3562 = vand.u32 2147483647, %v3306
    %v3563 = vand.u32 2147483647, %v3307
    %v3564 = vand.u32 2147483647, %v3308
    %v3565 = vand.u32 2147483647, %v3309
    %v3566 = vand.u32 2147483647, %v3310
    %v3567 = vand.u32 2147483647, %v3311
    %v3568 = vand.u32 2147483647, %v3312
    %v3569 = vand.u32 2147483647, %v3313
    %v3570 = vand.u32 2147483647, %v3314
    %v3571 = vand.u32 2147483647, %v3315
    %v3572 = vand.u32 2147483647, %v3316
    %v3573 = vand.u32 2147483647, %v3317
    %v3574 = vand.u32 2147483647, %v3318
    %v3575 = vand.u32 2147483647, %v3319
    %v3576 = vand.u32 2147483647, %v3320
    %v3577 = vand.u32 2147483647, %v3321
    %v3578 = vand.u32 2147483647, %v3322
    %v3579 = vand.u32 2147483647, %v3323
    %v3580 = vand.u32 2147483647, %v3324
    %v3581 = vand.u32 2147483647, %v3325
    %v3582 = vand.u32 2147483647, %v3326
    %v3583 = vand.u32 2147483647, %v3327
    %v3584 = vand.u32 2147483647, %v3328
    %v3585 = vand.u32 2147483647, %v3329
    %v3586 = vand.u32 2147483647, %v3330
    %v3587 = vand.u32 2147483647, %v3331
    %v3588 = vand.u32 2147483647, %v3332
    %v3589 = vand.u32 2147483647, %v3333
    %v3590 = vand.u32 2147483647, %v3334
    %v3591 = vand.u32 2147483647, %v3335
    %v3592 = vand.u32 2147483647, %v3336
    %v3593 = vand.u32 2147483647, %v3337
    %v3594 = vand.u32 2147483647, %v3338
    %v3595 = vand.u32 2147483647, %v3339
    %v3596 = vand.u32 2147483647, %v3340
    %v3597 = vand.u32 2147483647, %v3341
    %v3598 = vand.u32 2147483647, %v3342
    %v3599 = vand.u32 2147483647, %v3343
    %v3600 = vand.u32 2147483647, %v3344
    %v3601 = vand.u32 2147483647, %v3345
    %v3602 = vand.u32 2147483647, %v3346
    %v3603 = vand.u32 2147483647, %v3347
    %v3604 = vand.u32 2147483647, %v3348
    %v3605 = vand.u32 2147483647, %v3349
    %v3606 = vand.u32 2147483647, %v3350
    %v3607 = vand.u32 2147483647, %v3351
    %v3608 = vand.u32 2147483647, %v3352
    %v3609 = vand.u32 2147483647, %v3353
    %v3610 = vand.u32 2147483647, %v3354
    %v3611 = vand.u32 2147483647, %v3355
    %v3612 = vand.u32 2147483647, %v3356
    %v3613 = vand.u32 2147483647, %v3357
    %v3614 = vand.u32 2147483647, %v3358
    %v3615 = vand.u32 2147483647, %v3359
    %v3616 = vand.u32 2147483647, %v3360
    %v3617 = vand.u32 2147483647, %v3361
    %v3618 = vand.u32 2147483647, %v3362
    %v3619 = vand.u32 2147483647, %v3363
    %v3620 = vand.u32 2147483647, %v3364
    %v3621 = vand.u32 2147483647, %v3365
    %v3622 = vand.u32 2147483647, %v3366
    %v3623 = vand.u32 2147483647, %v3367
    %v3624 = vand.u32 2147483647, %v3368
    %v3625 = vand.u32 2147483647, %v3369
    %v3626 = vand.u32 2147483647, %v3370
    %v3627 = vand.u32 2147483647, %v3371
    %v3628 = vand.u32 2147483647, %v3372
    %v3629 = vand.u32 2147483647, %v3373
    %v3630 = vand.u32 2147483647, %v3374
    %v3631 = vand.u32 2147483647, %v3375
    %v3632 = vand.u32 2147483647, %v3376
    %v3633 = vand.u32 2147483647, %v3377
    %v3634 = vand.u32 2147483647, %v3378
    %v3635 = vand.u32 2147483647, %v3379
    %v3636 = vand.u32 2147483647, %v3380
    %v3637 = vand.u32 2147483647, %v3381
    %v3638 = vand.u32 2147483647, %v3382
    %v3639 = vand.u32 2147483647, %v3383
    %v3640 = vand.u32 2147483647, %v3384
    %v3641 = vand.u32 2147483647, %v3385
    %v3642 = vand.u32 2147483647, %v3386
    %v3643 = vand.u32 2147483647, %v3387
    %v3644 = vand.u32 2147483647, %v3388
    %v3645 = vand.u32 2147483647, %v3389
    %v3646 = vand.u32 2147483647, %v3390
    %v3647 = vand.u32 2147483647, %v3391
    %v3648 = vand.u32 2147483647, %v3392
    %v3649 = vand.u32 2147483647, %v3393
    %v3650 = vand.u32 2147483647, %v3394
    %v3651 = vand.u32 2147483647, %v3395
    %v3652 = vand.u32 2147483647, %v3396
    %v3653 = vand.u32 2147483647, %v3397
    %v3654 = vand.u32 2147483647, %v3398
    %v3655 = vand.u32 2147483647, %v3399
    %v3656 = vand.u32 2147483647, %v3400
    %v3657 = vand.u32 2147483647, %v3401
    %v3658 = vand.u32 2147483647, %v3402
    %v3659 = vand.u32 2147483647, %v3403
    %v3660 = vand.u32 2147483647, %v3404
    %v3661 = vand.u32 2147483647, %v3405
    %v3662 = vand.u32 2147483647, %v3406
    %v3663 = vand.u32 2147483647, %v3407
    %v3664 = vand.u32 2147483647, %v3408
    %v3665 = vand.u32 2147483647, %v3409
    %v3666 = vand.u32 2147483647, %v3410
    %v3667 = vand.u32 2147483647, %v3411
    %v3668 = vand.u32 2147483647, %v3412
    %v3669 = vand.u32 2147483647, %v3413
    %v3670 = vand.u32 2147483647, %v3414
    %v3671 = vand.u32 2147483647, %v3415
    %v3672 = vand.u32 2147483647, %v3416
    %v3673 = vand.u32 2147483647, %v3417
    %v3674 = vand.u32 2147483647, %v3418
    %v3675 = vand.u32 2147483647, %v3419
    %v3676 = vand.u32 2147483647, %v3420
    %v3677 = vand.u32 2147483647, %v3421
    %v3678 = vand.u32 2147483647, %v3422
    %v3679 = vand.u32 2147483647, %v3423
    %v3680 = vand.u32 2147483647, %v3424
    %v3681 = vand.u32 2147483647, %v3425
    %v3682 = vand.u32 2147483647, %v3426
    %v3683 = vand.u32 2147483647, %v3427
    %v3684 = vand.u32 2147483647, %v3428
    %v3685 = vand.u32 2147483647, %v3429
    %v3686 = vand.u32 2147483647, %v3430
    %v3687 = vand.u32 2147483647, %v3431
    %v3688 = vand.u32 2147483647, %v3432
    %v3689 = vand.u32 2147483647, %v3433
    %v3690 = vand.u32 2147483647, %v3434
    %v3691 = vand.u32 2147483647, %v3435
    %v3692 = vand.u32 2147483647, %v3436
    %v3693 = vand.u32 2147483647, %v3437
    %v3694 = vand.u32 2147483647, %v3438
    %v3695 = vand.u32 2147483647, %v3439
    %v3696 = vand.u32 2147483647, %v3440
    %v3697 = vand.u32 2147483647, %v3441
    %v3698 = vand.u32 2147483647, %v3442
    %v3699 = vsub.f32 1.0, %v3443
    %v3700 = vsub.f32 1.0, %v3444
    %v3701 = vsub.f32 1.0, %v3445
    %v3702 = vsub.f32 1.0, %v3446
    %v3703 = vsub.f32 1.0, %v3447
    %v3704 = vsub.f32 1.0, %v3448
    %v3705 = vsub.f32 1.0, %v3449
    %v3706 = vsub.f32 1.0, %v3450
    %v3707 = vsub.f32 1.0, %v3451
    %v3708 = vsub.f32 1.0, %v3452
    %v3709 = vsub.f32 1.0, %v3453
    %v3710 = vsub.f32 1.0, %v3454
    %v3711 = vsub.f32 1.0, %v3455
    %v3712 = vsub.f32 1.0, %v3456
    %v3713 = vsub.f32 1.0, %v3457
    %v3714 = vsub.f32 1.0, %v3458
    %v3715 = vsub.f32 1.0, %v3459
    %v3716 = vsub.f32 1.0, %v3460
    %v3717 = vsub.f32 1.0, %v3461
    %v3718 = vsub.f32 1.0, %v3462
    %v3719 = vsub.f32 1.0, %v3463
    %v3720 = vsub.f32 1.0, %v3464
    %v3721 = vsub.f32 1.0, %v3465
    %v3722 = vsub.f32 1.0, %v3466
    %v3723 = vsub.f32 1.0, %v3467
    %v3724 = vsub.f32 1.0, %v3468
    %v3725 = vsub.f32 1.0, %v3469
    %v3726 = vsub.f32 1.0, %v3470
    %v3727 = vsub.f32 1.0, %v3471
    %v3728 = vsub.f32 1.0, %v3472
    %v3729 = vsub.f32 1.0, %v3473
    %v3730 = vsub.f32 1.0, %v3474
    %v3731 = vsub.f32 1.0, %v3475
    %v3732 = vsub.f32 1.0, %v3476
    %v3733 = vsub.f32 1.0, %v3477
    %v3734 = vsub.f32 1.0, %v3478
    %v3735 = vsub.f32 1.0, %v3479
    %v3736 = vsub.f32 1.0, %v3480
    %v3737 = vsub.f32 1.0, %v3481
    %v3738 = vsub.f32 1.0, %v3482
    %v3739 = vsub.f32 1.0, %v3483
    %v3740 = vsub.f32 1.0, %v3484
    %v3741 = vsub.f32 1.0, %v3485
    %v3742 = vsub.f32 1.0, %v3486
    %v3743 = vsub.f32 1.0, %v3487
    %v3744 = vsub.f32 1.0, %v3488
    %v3745 = vsub.f32 1.0, %v3489
    %v3746 = vsub.f32 1.0, %v3490
    %v3747 = vsub.f32 1.0, %v3491
    %v3748 = vsub.f32 1.0, %v3492
    %v3749 = vsub.f32 1.0, %v3493
    %v3750 = vsub.f32 1.0, %v3494
    %v3751 = vsub.f32 1.0, %v3495
    %v3752 = vsub.f32 1.0, %v3496
    %v3753 = vsub.f32 1.0, %v3497
    %v3754 = vsub.f32 1.0, %v3498
    %v3755 = vsub.f32 1.0, %v3499
    %v3756 = vsub.f32 1.0, %v3500
    %v3757 = vsub.f32 1.0, %v3501
    %v3758 = vsub.f32 1.0, %v3502
    %v3759 = vsub.f32 1.0, %v3503
    %v3760 = vsub.f32 1.0, %v3504
    %v3761 = vsub.f32 1.0, %v3505
    %v3762 = vsub.f32 1.0, %v3506
    %v3763 = vsub.f32 1.0, %v3507
    %v3764 = vsub.f32 1.0, %v3508
    %v3765 = vsub.f32 1.0, %v3509
    %v3766 = vsub.f32 1.0, %v3510
    %v3767 = vsub.f32 1.0, %v3511
    %v3768 = vsub.f32 1.0, %v3512
    %v3769 = vsub.f32 1.0, %v3513
    %v3770 = vsub.f32 1.0, %v3514
    %v3771 = vsub.f32 1.0, %v3515
    %v3772 = vsub.f32 1.0, %v3516
    %v3773 = vsub.f32 1.0, %v3517
    %v3774 = vsub.f32 1.0, %v3518
    %v3775 = vsub.f32 1.0, %v3519
    %v3776 = vsub.f32 1.0, %v3520
    %v3777 = vsub.f32 1.0, %v3521
    %v3778 = vsub.f32 1.0, %v3522
    %v3779 = vsub.f32 1.0, %v3523
    %v3780 = vsub.f32 1.0, %v3524
    %v3781 = vsub.f32 1.0, %v3525
    %v3782 = vsub.f32 1.0, %v3526
    %v3783 = vsub.f32 1.0, %v3527
    %v3784 = vsub.f32 1.0, %v3528
    %v3785 = vsub.f32 1.0, %v3529
    %v3786 = vsub.f32 1.0, %v3530
    %v3787 = vsub.f32 1.0, %v3531
    %v3788 = vsub.f32 1.0, %v3532
    %v3789 = vsub.f32 1.0, %v3533
    %v3790 = vsub.f32 1.0, %v3534
    %v3791 = vsub.f32 1.0, %v3535
    %v3792 = vsub.f32 1.0, %v3536
    %v3793 = vsub.f32 1.0, %v3537
    %v3794 = vsub.f32 1.0, %v3538
    %v3795 = vsub.f32 1.0, %v3539
    %v3796 = vsub.f32 1.0, %v3540
    %v3797 = vsub.f32 1.0, %v3541
    %v3798 = vsub.f32 1.0, %v3542
    %v3799 = vsub.f32 1.0, %v3543
    %v3800 = vsub.f32 1.0, %v3544
    %v3801 = vsub.f32 1.0, %v3545
    %v3802 = vsub.f32 1.0, %v3546
    %v3803 = vsub.f32 1.0, %v3547
    %v3804 = vsub.f32 1.0, %v3548
    %v3805 = vsub.f32 1.0, %v3549
    %v3806 = vsub.f32 1.0, %v3550
    %v3807 = vsub.f32 1.0, %v3551
    %v3808 = vsub.f32 1.0, %v3552
    %v3809 = vsub.f32 1.0, %v3553
    %v3810 = vsub.f32 1.0, %v3554
    %v3811 = vsub.f32 1.0, %v3555
    %v3812 = vsub.f32 1.0, %v3556
    %v3813 = vsub.f32 1.0, %v3557
    %v3814 = vsub.f32 1.0, %v3558
    %v3815 = vsub.f32 1.0, %v3559
    %v3816 = vsub.f32 1.0, %v3560
    %v3817 = vsub.f32 1.0, %v3561
    %v3818 = vsub.f32 1.0, %v3562
    %v3819 = vsub.f32 1.0, %v3563
    %v3820 = vsub.f32 1.0, %v3564
    %v3821 = vsub.f32 1.0, %v3565
    %v3822 = vsub.f32 1.0, %v3566
    %v3823 = vsub.f32 1.0, %v3567
    %v3824 = vsub.f32 1.0, %v3568
    %v3825 = vsub.f32 1.0, %v3569
    %v3826 = vsub.f32 1.0, %v3570
    %v3827 = vsub.f32 1.0, %v3571
    %v3828 = vsub.f32 1.0, %v3572
    %v3829 = vsub.f32 1.0, %v3573
    %v3830 = vsub.f32 1.0, %v3574
    %v3831 = vsub.f32 1.0, %v3575
    %v3832 = vsub.f32 1.0, %v3576
    %v3833 = vsub.f32 1.0, %v3577
    %v3834 = vsub.f32 1.0, %v3578
    %v3835 = vsub.f32 1.0, %v3579
    %v3836 = vsub.f32 1.0, %v3580
    %v3837 = vsub.f32 1.0, %v3581
    %v3838 = vsub.f32 1.0, %v3582
    %v3839 = vsub.f32 1.0, %v3583
    %v3840 = vsub.f32 1.0, %v3584
    %v3841 = vsub.f32 1.0, %v3585
    %v3842 = vsub.f32 1.0, %v3586
    %v3843 = vsub.f32 1.0, %v3587
    %v3844 = vsub.f32 1.0, %v3588
    %v3845 = vsub.f32 1.0, %v3589
    %v3846 = vsub.f32 1.0, %v3590
    %v3847 = vsub.f32 1.0, %v3591
    %v3848 = vsub.f32 1.0, %v3592
    %v3849 = vsub.f32 1.0, %v3593
    %v3850 = vsub.f32 1.0, %v3594
    %v3851 = vsub.f32 1.0, %v3595
    %v3852 = vsub.f32 1.0, %v3596
    %v3853 = vsub.f32 1.0, %v3597
    %v3854 = vsub.f32 1.0, %v3598
    %v3855 = vsub.f32 1.0, %v3599
    %v3856 = vsub.f32 1.0, %v3600
    %v3857 = vsub.f32 1.0, %v3601
    %v3858 = vsub.f32 1.0, %v3602
    %v3859 = vsub.f32 1.0, %v3603
    %v3860 = vsub.f32 1.0, %v3604
    %v3861 = vsub.f32 1.0, %v3605
    %v3862 = vsub.f32 1.0, %v3606
    %v3863 = vsub.f32 1.0, %v3607
    %v3864 = vsub.f32 1.0, %v3608
    %v3865 = vsub.f32 1.0, %v3609
    %v3866 = vsub.f32 1.0, %v3610
    %v3867 = vsub.f32 1.0, %v3611
    %v3868 = vsub.f32 1.0, %v3612
    %v3869 = vsub.f32 1.0, %v3613
    %v3870 = vsub.f32 1.0, %v3614
    %v3871 = vsub.f32 1.0, %v3615
    %v3872 = vsub.f32 1.0, %v3616
    %v3873 = vsub.f32 1.0, %v3617
    %v3874 = vsub.f32 1.0, %v3618
    %v3875 = vsub.f32 1.0, %v3619
    %v3876 = vsub.f32 1.0, %v3620
    %v3877 = vsub.f32 1.0, %v3621
    %v3878 = vsub.f32 1.0, %v3622
    %v3879 = vsub.f32 1.0, %v3623
    %v3880 = vsub.f32 1.0, %v3624
    %v3881 = vsub.f32 1.0, %v3625
    %v3882 = vsub.f32 1.0, %v3626
    %v3883 = vsub.f32 1.0, %v3627
    %v3884 = vsub.f32 1.0, %v3628
    %v3885 = vsub.f32 1.0, %v3629
    %v3886 = vsub.f32 1.0, %v3630
    %v3887 = vsub.f32 1.0, %v3631
    %v3888 = vsub.f32 1.0, %v3632
    %v3889 = vsub.f32 1.0, %v3633
    %v3890 = vsub.f32 1.0, %v3634
    %v3891 = vsub.f32 1.0, %v3635
    %v3892 = vsub.f32 1.0, %v3636
    %v3893 = vsub.f32 1.0, %v3637
    %v3894 = vsub.f32 1.0, %v3638
    %v3895 = vsub.f32 1.0, %v3639
    %v3896 = vsub.f32 1.0, %v3640
    %v3897 = vsub.f32 1.0, %v3641
    %v3898 = vsub.f32 1.0, %v3642
    %v3899 = vsub.f32 1.0, %v3643
    %v3900 = vsub.f32 1.0, %v3644
    %v3901 = vsub.f32 1.0, %v3645
    %v3902 = vsub.f32 1.0, %v3646
    %v3903 = vsub.f32 1.0, %v3647
    %v3904 = vsub.f32 1.0, %v3648
    %v3905 = vsub.f32 1.0, %v3649
    %v3906 = vsub.f32 1.0, %v3650
    %v3907 = vsub.f32 1.0, %v3651
    %v3908 = vsub.f32 1.0, %v3652
    %v3909 = vsub.f32 1.0, %v3653
    %v3910 = vsub.f32 1.0, %v3654
    %v3911 = vsub.f32 1.0, %v3655
    %v3912 = vsub.f32 1.0, %v3656
    %v3913 = vsub.f32 1.0, %v3657
    %v3914 = vsub.f32 1.0, %v3658
    %v3915 = vsub.f32 1.0, %v3659
    %v3916 = vsub.f32 1.0, %v3660
    %v3917 = vsub.f32 1.0, %v3661
    %v3918 = vsub.f32 1.0, %v3662
    %v3919 = vsub.f32 1.0, %v3663
    %v3920 = vsub.f32 1.0, %v3664
    %v3921 = vsub.f32 1.0, %v3665
    %v3922 = vsub.f32 1.0, %v3666
    %v3923 = vsub.f32 1.0, %v3667
    %v3924 = vsub.f32 1.0, %v3668
    %v3925 = vsub.f32 1.0, %v3669
    %v3926 = vsub.f32 1.0, %v3670
    %v3927 = vsub.f32 1.0, %v3671
    %v3928 = vsub.f32 1.0, %v3672
    %v3929 = vsub.f32 1.0, %v3673
    %v3930 = vsub.f32 1.0, %v3674
    %v3931 = vsub.f32 1.0, %v3675
    %v3932 = vsub.f32 1.0, %v3676
    %v3933 = vsub.f32 1.0, %v3677
    %v3934 = vsub.f32 1.0, %v3678
    %v3935 = vsub.f32 1.0, %v3679
    %v3936 = vsub.f32 1.0, %v3680
    %v3937 = vsub.f32 1.0, %v3681
    %v3938 = vsub.f32 1.0, %v3682
    %v3939 = vsub.f32 1.0, %v3683
    %v3940 = vsub.f32 1.0, %v3684
    %v3941 = vsub.f32 1.0, %v3685
    %v3942 = vsub.f32 1.0, %v3686
    %v3943 = vsub.f32 1.0, %v3687
    %v3944 = vsub.f32 1.0, %v3688
    %v3945 = vsub.f32 1.0, %v3689
    %v3946 = vsub.f32 1.0, %v3690
    %v3947 = vsub.f32 1.0, %v3691
    %v3948 = vsub.f32 1.0, %v3692
    %v3949 = vsub.f32 1.0, %v3693
    %v3950 = vsub.f32 1.0, %v3694
    %v3951 = vsub.f32 1.0, %v3695
    %v3952 = vsub.f32 1.0, %v3696
    %v3953 = vsub.f32 1.0, %v3697
    %v3954 = vsub.f32 1.0, %v3698
    %v3955 = vmax.f32 %v3699, 0.0
    %v3956 = vmax.f32 %v3700, 0.0
    %v3957 = vmax.f32 %v3701, 0.0
    %v3958 = vmax.f32 %v3702, 0.0
    %v3959 = vmax.f32 %v3703, 0.0
    %v3960 = vmax.f32 %v3704, 0.0
    %v3961 = vmax.f32 %v3705, 0.0
    %v3962 = vmax.f32 %v3706, 0.0
    %v3963 = vmax.f32 %v3707, 0.0
    %v3964 = vmax.f32 %v3708, 0.0
    %v3965 = vmax.f32 %v3709, 0.0
    %v3966 = vmax.f32 %v3710, 0.0
    %v3967 = vmax.f32 %v3711, 0.0
    %v3968 = vmax.f32 %v3712, 0.0
    %v3969 = vmax.f32 %v3713, 0.0
    %v3970 = vmax.f32 %v3714, 0.0
    %v3971 = vmax.f32 %v3715, 0.0
    %v3972 = vmax.f32 %v3716, 0.0
    %v3973 = vmax.f32 %v3717, 0.0
    %v3974 = vmax.f32 %v3718, 0.0
    %v3975 = vmax.f32 %v3719, 0.0
    %v3976 = vmax.f32 %v3720, 0.0
    %v3977 = vmax.f32 %v3721, 0.0
    %v3978 = vmax.f32 %v3722, 0.0
    %v3979 = vmax.f32 %v3723, 0.0
    %v3980 = vmax.f32 %v3724, 0.0
    %v3981 = vmax.f32 %v3725, 0.0
    %v3982 = vmax.f32 %v3726, 0.0
    %v3983 = vmax.f32 %v3727, 0.0
    %v3984 = vmax.f32 %v3728, 0.0
    %v3985 = vmax.f32 %v3729, 0.0
    %v3986 = vmax.f32 %v3730, 0.0
    %v3987 = vmax.f32 %v3731, 0.0
    %v3988 = vmax.f32 %v3732, 0.0
    %v3989 = vmax.f32 %v3733, 0.0
    %v3990 = vmax.f32 %v3734, 0.0
    %v3991 = vmax.f32 %v3735, 0.0
    %v3992 = vmax.f32 %v3736, 0.0
    %v3993 = vmax.f32 %v3737, 0.0
    %v3994 = vmax.f32 %v3738, 0.0
    %v3995 = vmax.f32 %v3739, 0.0
    %v3996 = vmax.f32 %v3740, 0.0
    %v3997 = vmax.f32 %v3741, 0.0
    %v3998 = vmax.f32 %v3742, 0.0
    %v3999 = vmax.f32 %v3743, 0.0
    %v4000 = vmax.f32 %v3744, 0.0
    %v4001 = vmax.f32 %v3745, 0.0
    %v4002 = vmax.f32 %v3746, 0.0
    %v4003 = vmax.f32 %v3747, 0.0
    %v4004 = vmax.f32 %v3748, 0.0
    %v4005 = vmax.f32 %v3749, 0.0
    %v4006 = vmax.f32 %v3750, 0.0
    %v4007 = vmax.f32 %v3751, 0.0
    %v4008 = vmax.f32 %v3752, 0.0
    %v4009 = vmax.f32 %v3753, 0.0
    %v4010 = vmax.f32 %v3754, 0.0
    %v4011 = vmax.f32 %v3755, 0.0
    %v4012 = vmax.f32 %v3756, 0.0
    %v4013 = vmax.f32 %v3757, 0.0
    %v4014 = vmax.f32 %v3758, 0.0
    %v4015 = vmax.f32 %v3759, 0.0
    %v4016 = vmax.f32 %v3760, 0.0
    %v4017 = vmax.f32 %v3761, 0.0
    %v4018 = vmax.f32 %v3762, 0.0
    %v4019 = vmax.f32 %v3763, 0.0
    %v4020 = vmax.f32 %v3764, 0.0
    %v4021 = vmax.f32 %v3765, 0.0
    %v4022 = vmax.f32 %v3766, 0.0
    %v4023 = vmax.f32 %v3767, 0.0
    %v4024 = vmax.f32 %v3768, 0.0
    %v4025 = vmax.f32 %v3769, 0.0
    %v4026 = vmax.f32 %v3770, 0.0
    %v4027 = vmax.f32 %v3771, 0.0
    %v4028 = vmax.f32 %v3772, 0.0
    %v4029 = vmax.f32 %v3773, 0.0
    %v4030 = vmax.f32 %v3774, 0.0
    %v4031 = vmax.f32 %v3775, 0.0
    %v4032 = vmax.f32 %v3776, 0.0
    %v4033 = vmax.f32 %v3777, 0.0
    %v4034 = vmax.f32 %v3778, 0.0
    %v4035 = vmax.f32 %v3779, 0.0
    %v4036 = vmax.f32 %v3780, 0.0
    %v4037 = vmax.f32 %v3781, 0.0
    %v4038 = vmax.f32 %v3782, 0.0
    %v4039 = vmax.f32 %v3783, 0.0
    %v4040 = vmax.f32 %v3784, 0.0
    %v4041 = vmax.f32 %v3785, 0.0
    %v4042 = vmax.f32 %v3786, 0.0
    %v4043 = vmax.f32 %v3787, 0.0
    %v4044 = vmax.f32 %v3788, 0.0
    %v4045 = vmax.f32 %v3789, 0.0
    %v4046 = vmax.f32 %v3790, 0.0
    %v4047 = vmax.f32 %v3791, 0.0
    %v4048 = vmax.f32 %v3792, 0.0
    %v4049 = vmax.f32 %v3793, 0.0
    %v4050 = vmax.f32 %v3794, 0.0
    %v4051 = vmax.f32 %v3795, 0.0
    %v4052 = vmax.f32 %v3796, 0.0
    %v4053 = vmax.f32 %v3797, 0.0
    %v4054 = vmax.f32 %v3798, 0.0
    %v4055 = vmax.f32 %v3799, 0.0
    %v4056 = vmax.f32 %v3800, 0.0
    %v4057 = vmax.f32 %v3801, 0.0
    %v4058 = vmax.f32 %v3802, 0.0
    %v4059 = vmax.f32 %v3803, 0.0
    %v4060 = vmax.f32 %v3804, 0.0
    %v4061 = vmax.f32 %v3805, 0.0
    %v4062 = vmax.f32 %v3806, 0.0
    %v4063 = vmax.f32 %v3807, 0.0
    %v4064 = vmax.f32 %v3808, 0.0
    %v4065 = vmax.f32 %v3809, 0.0
    %v4066 = vmax.f32 %v3810, 0.0
    %v4067 = vmax.f32 %v3811, 0.0
    %v4068 = vmax.f32 %v3812, 0.0
    %v4069 = vmax.f32 %v3813, 0.0
    %v4070 = vmax.f32 %v3814, 0.0
    %v4071 = vmax.f32 %v3815, 0.0
    %v4072 = vmax.f32 %v3816, 0.0
    %v4073 = vmax.f32 %v3817, 0.0
    %v4074 = vmax.f32 %v3818, 0.0
    %v4075 = vmax.f32 %v3819, 0.0
    %v4076 = vmax.f32 %v3820, 0.0
    %v4077 = vmax.f32 %v3821, 0.0
    %v4078 = vmax.f32 %v3822, 0.0
    %v4079 = vmax.f32 %v3823, 0.0
    %v4080 = vmax.f32 %v3824, 0.0
    %v4081 = vmax.f32 %v3825, 0.0
    %v4082 = vmax.f32 %v3826, 0.0
    %v4083 = vmax.f32 %v3827, 0.0
    %v4084 = vmax.f32 %v3828, 0.0
    %v4085 = vmax.f32 %v3829, 0.0
    %v4086 = vmax.f32 %v3830, 0.0
    %v4087 = vmax.f32 %v3831, 0.0
    %v4088 = vmax.f32 %v3832, 0.0
    %v4089 = vmax.f32 %v3833, 0.0
    %v4090 = vmax.f32 %v3834, 0.0
    %v4091 = vmax.f32 %v3835, 0.0
    %v4092 = vmax.f32 %v3836, 0.0
    %v4093 = vmax.f32 %v3837, 0.0
    %v4094 = vmax.f32 %v3838, 0.0
    %v4095 = vmax.f32 %v3839, 0.0
    %v4096 = vmax.f32 %v3840, 0.0
    %v4097 = vmax.f32 %v3841, 0.0
    %v4098 = vmax.f32 %v3842, 0.0
    %v4099 = vmax.f32 %v3843, 0.0
    %v4100 = vmax.f32 %v3844, 0.0
    %v4101 = vmax.f32 %v3845, 0.0
    %v4102 = vmax.f32 %v3846, 0.0
    %v4103 = vmax.f32 %v3847, 0.0
    %v4104 = vmax.f32 %v3848, 0.0
    %v4105 = vmax.f32 %v3849, 0.0
    %v4106 = vmax.f32 %v3850, 0.0
    %v4107 = vmax.f32 %v3851, 0.0
    %v4108 = vmax.f32 %v3852, 0.0
    %v4109 = vmax.f32 %v3853, 0.0
    %v4110 = vmax.f32 %v3854, 0.0
    %v4111 = vmax.f32 %v3855, 0.0
    %v4112 = vmax.f32 %v3856, 0.0
    %v4113 = vmax.f32 %v3857, 0.0
    %v4114 = vmax.f32 %v3858, 0.0
    %v4115 = vmax.f32 %v3859, 0.0
    %v4116 = vmax.f32 %v3860, 0.0
    %v4117 = vmax.f32 %v3861, 0.0
    %v4118 = vmax.f32 %v3862, 0.0
    %v4119 = vmax.f32 %v3863, 0.0
    %v4120 = vmax.f32 %v3864, 0.0
    %v4121 = vmax.f32 %v3865, 0.0
    %v4122 = vmax.f32 %v3866, 0.0
    %v4123 = vmax.f32 %v3867, 0.0
    %v4124 = vmax.f32 %v3868, 0.0
    %v4125 = vmax.f32 %v3869, 0.0
    %v4126 = vmax.f32 %v3870, 0.0
    %v4127 = vmax.f32 %v3871, 0.0
    %v4128 = vmax.f32 %v3872, 0.0
    %v4129 = vmax.f32 %v3873, 0.0
    %v4130 = vmax.f32 %v3874, 0.0
    %v4131 = vmax.f32 %v3875, 0.0
    %v4132 = vmax.f32 %v3876, 0.0
    %v4133 = vmax.f32 %v3877, 0.0
    %v4134 = vmax.f32 %v3878, 0.0
    %v4135 = vmax.f32 %v3879, 0.0
    %v4136 = vmax.f32 %v3880, 0.0
    %v4137 = vmax.f32 %v3881, 0.0
    %v4138 = vmax.f32 %v3882, 0.0
    %v4139 = vmax.f32 %v3883, 0.0
    %v4140 = vmax.f32 %v3884, 0.0
    %v4141 = vmax.f32 %v3885, 0.0
    %v4142 = vmax.f32 %v3886, 0.0
    %v4143 = vmax.f32 %v3887, 0.0
    %v4144 = vmax.f32 %v3888, 0.0
    %v4145 = vmax.f32 %v3889, 0.0
    %v4146 = vmax.f32 %v3890, 0.0
    %v4147 = vmax.f32 %v3891, 0.0
    %v4148 = vmax.f32 %v3892, 0.0
    %v4149 = vmax.f32 %v3893, 0.0
    %v4150 = vmax.f32 %v3894, 0.0
    %v4151 = vmax.f32 %v3895, 0.0
    %v4152 = vmax.f32 %v3896, 0.0
    %v4153 = vmax.f32 %v3897, 0.0
    %v4154 = vmax.f32 %v3898, 0.0
    %v4155 = vmax.f32 %v3899, 0.0
    %v4156 = vmax.f32 %v3900, 0.0
    %v4157 = vmax.f32 %v3901, 0.0
    %v4158 = vmax.f32 %v3902, 0.0
    %v4159 = vmax.f32 %v3903, 0.0
    %v4160 = vmax.f32 %v3904, 0.0
    %v4161 = vmax.f32 %v3905, 0.0
    %v4162 = vmax.f32 %v3906, 0.0
    %v4163 = vmax.f32 %v3907, 0.0
    %v4164 = vmax.f32 %v3908, 0.0
    %v4165 = vmax.f32 %v3909, 0.0
    %v4166 = vmax.f32 %v3910, 0.0
    %v4167 = vmax.f32 %v3911, 0.0
    %v4168 = vmax.f32 %v3912, 0.0
    %v4169 = vmax.f32 %v3913, 0.0
    %v4170 = vmax.f32 %v3914, 0.0
    %v4171 = vmax.f32 %v3915, 0.0
    %v4172 = vmax.f32 %v3916, 0.0
    %v4173 = vmax.f32 %v3917, 0.0
    %v4174 = vmax.f32 %v3918, 0.0
    %v4175 = vmax.f32 %v3919, 0.0
    %v4176 = vmax.f32 %v3920, 0.0
    %v4177 = vmax.f32 %v3921, 0.0
    %v4178 = vmax.f32 %v3922, 0.0
    %v4179 = vmax.f32 %v3923, 0.0
    %v4180 = vmax.f32 %v3924, 0.0
    %v4181 = vmax.f32 %v3925, 0.0
    %v4182 = vmax.f32 %v3926, 0.0
    %v4183 = vmax.f32 %v3927, 0.0
    %v4184 = vmax.f32 %v3928, 0.0
    %v4185 = vmax.f32 %v3929, 0.0
    %v4186 = vmax.f32 %v3930, 0.0
    %v4187 = vmax.f32 %v3931, 0.0
    %v4188 = vmax.f32 %v3932, 0.0
    %v4189 = vmax.f32 %v3933, 0.0
    %v4190 = vmax.f32 %v3934, 0.0
    %v4191 = vmax.f32 %v3935, 0.0
    %v4192 = vmax.f32 %v3936, 0.0
    %v4193 = vmax.f32 %v3937, 0.0
    %v4194 = vmax.f32 %v3938, 0.0
    %v4195 = vmax.f32 %v3939, 0.0
    %v4196 = vmax.f32 %v3940, 0.0
    %v4197 = vmax.f32 %v3941, 0.0
    %v4198 = vmax.f32 %v3942, 0.0
    %v4199 = vmax.f32 %v3943, 0.0
    %v4200 = vmax.f32 %v3944, 0.0
    %v4201 = vmax.f32 %v3945, 0.0
    %v4202 = vmax.f32 %v3946, 0.0
    %v4203 = vmax.f32 %v3947, 0.0
    %v4204 = vmax.f32 %v3948, 0.0
    %v4205 = vmax.f32 %v3949, 0.0
    %v4206 = vmax.f32 %v3950, 0.0
    %v4207 = vmax.f32 %v3951, 0.0
    %v4208 = vmax.f32 %v3952, 0.0
    %v4209 = vmax.f32 %v3953, 0.0
    %v4210 = vmax.f32 %v3954, 0.0
    %v4211 = vmul.f32 %v1139, %v3955
    %v4212 = vmul.f32 %v1140, %v3956
    %v4213 = vmul.f32 %v1141, %v3957
    %v4214 = vmul.f32 %v1142, %v3958
    %v4215 = vmul.f32 %v1143, %v3959
    %v4216 = vmul.f32 %v1144, %v3960
    %v4217 = vmul.f32 %v1145, %v3961
    %v4218 = vmul.f32 %v1146, %v3962
    %v4219 = vmul.f32 %v1147, %v3963
    %v4220 = vmul.f32 %v1148, %v3964
    %v4221 = vmul.f32 %v1149, %v3965
    %v4222 = vmul.f32 %v1150, %v3966
    %v4223 = vmul.f32 %v1151, %v3967
    %v4224 = vmul.f32 %v1152, %v3968
    %v4225 = vmul.f32 %v1153, %v3969
    %v4226 = vmul.f32 %v1154, %v3970
    %v4227 = vmul.f32 %v1155, %v3971
    %v4228 = vmul.f32 %v1156, %v3972
    %v4229 = vmul.f32 %v1157, %v3973
    %v4230 = vmul.f32 %v1158, %v3974
    %v4231 = vmul.f32 %v1159, %v3975
    %v4232 = vmul.f32 %v1160, %v3976
    %v4233 = vmul.f32 %v1161, %v3977
    %v4234 = vmul.f32 %v1162, %v3978
    %v4235 = vmul.f32 %v1163, %v3979
    %v4236 = vmul.f32 %v1164, %v3980
    %v4237 = vmul.f32 %v1165, %v3981
    %v4238 = vmul.f32 %v1166, %v3982
    %v4239 = vmul.f32 %v1167, %v3983
    %v4240 = vmul.f32 %v1168, %v3984
    %v4241 = vmul.f32 %v1169, %v3985
    %v4242 = vmul.f32 %v1170, %v3986
    %v4243 = vmul.f32 %v1171, %v3987
    %v4244 = vmul.f32 %v1172, %v3988
    %v4245 = vmul.f32 %v1173, %v3989
    %v4246 = vmul.f32 %v1174, %v3990
    %v4247 = vmul.f32 %v1175, %v3991
    %v4248 = vmul.f32 %v1176, %v3992
    %v4249 = vmul.f32 %v1177, %v3993
    %v4250 = vmul.f32 %v1178, %v3994
    %v4251 = vmul.f32 %v1179, %v3995
    %v4252 = vmul.f32 %v1180, %v3996
    %v4253 = vmul.f32 %v1181, %v3997
    %v4254 = vmul.f32 %v1182, %v3998
    %v4255 = vmul.f32 %v1183, %v3999
    %v4256 = vmul.f32 %v1184, %v4000
    %v4257 = vmul.f32 %v1185, %v4001
    %v4258 = vmul.f32 %v1186, %v4002
    %v4259 = vmul.f32 %v1187, %v4003
    %v4260 = vmul.f32 %v1188, %v4004
    %v4261 = vmul.f32 %v1189, %v4005
    %v4262 = vmul.f32 %v1190, %v4006
    %v4263 = vmul.f32 %v1191, %v4007
    %v4264 = vmul.f32 %v1192, %v4008
    %v4265 = vmul.f32 %v1193, %v4009
    %v4266 = vmul.f32 %v1194, %v4010
    %v4267 = vmul.f32 %v1195, %v4011
    %v4268 = vmul.f32 %v1196, %v4012
    %v4269 = vmul.f32 %v1197, %v4013
    %v4270 = vmul.f32 %v1198, %v4014
    %v4271 = vmul.f32 %v1199, %v4015
    %v4272 = vmul.f32 %v1200, %v4016
    %v4273 = vmul.f32 %v1201, %v4017
    %v4274 = vmul.f32 %v1202, %v4018
    %v4275 = vmul.f32 %v1203, %v4019
    %v4276 = vmul.f32 %v1204, %v4020
    %v4277 = vmul.f32 %v1205, %v4021
    %v4278 = vmul.f32 %v1206, %v4022
    %v4279 = vmul.f32 %v1207, %v4023
    %v4280 = vmul.f32 %v1208, %v4024
    %v4281 = vmul.f32 %v1209, %v4025
    %v4282 = vmul.f32 %v1210, %v4026
    %v4283 = vmul.f32 %v1211, %v4027
    %v4284 = vmul.f32 %v1212, %v4028
    %v4285 = vmul.f32 %v1213, %v4029
    %v4286 = vmul.f32 %v1214, %v4030
    %v4287 = vmul.f32 %v1215, %v4031
    %v4288 = vmul.f32 %v1216, %v4032
    %v4289 = vmul.f32 %v1217, %v4033
    %v4290 = vmul.f32 %v1218, %v4034
    %v4291 = vmul.f32 %v1219, %v4035
    %v4292 = vmul.f32 %v1220, %v4036
    %v4293 = vmul.f32 %v1221, %v4037
    %v4294 = vmul.f32 %v1222, %v4038
    %v4295 = vmul.f32 %v1223, %v4039
    %v4296 = vmul.f32 %v1224, %v4040
    %v4297 = vmul.f32 %v1225, %v4041
    %v4298 = vmul.f32 %v1226, %v4042
    %v4299 = vmul.f32 %v1227, %v4043
    %v4300 = vmul.f32 %v1228, %v4044
    %v4301 = vmul.f32 %v1229, %v4045
    %v4302 = vmul.f32 %v1230, %v4046
    %v4303 = vmul.f32 %v1231, %v4047
    %v4304 = vmul.f32 %v1232, %v4048
    %v4305 = vmul.f32 %v1233, %v4049
    %v4306 = vmul.f32 %v1234, %v4050
    %v4307 = vmul.f32 %v1235, %v4051
    %v4308 = vmul.f32 %v1236, %v4052
    %v4309 = vmul.f32 %v1237, %v4053
    %v4310 = vmul.f32 %v1238, %v4054
    %v4311 = vmul.f32 %v1239, %v4055
    %v4312 = vmul.f32 %v1240, %v4056
    %v4313 = vmul.f32 %v1241, %v4057
    %v4314 = vmul.f32 %v1242, %v4058
    %v4315 = vmul.f32 %v1243, %v4059
    %v4316 = vmul.f32 %v1244, %v4060
    %v4317 = vmul.f32 %v1245, %v4061
    %v4318 = vmul.f32 %v1246, %v4062
    %v4319 = vmul.f32 %v1247, %v4063
    %v4320 = vmul.f32 %v1248, %v4064
    %v4321 = vmul.f32 %v1249, %v4065
    %v4322 = vmul.f32 %v1250, %v4066
    %v4323 = vmul.f32 %v1251, %v4067
    %v4324 = vmul.f32 %v1252, %v4068
    %v4325 = vmul.f32 %v1253, %v4069
    %v4326 = vmul.f32 %v1254, %v4070
    %v4327 = vmul.f32 %v1255, %v4071
    %v4328 = vmul.f32 %v1256, %v4072
    %v4329 = vmul.f32 %v1257, %v4073
    %v4330 = vmul.f32 %v1258, %v4074
    %v4331 = vmul.f32 %v1259, %v4075
    %v4332 = vmul.f32 %v1260, %v4076
    %v4333 = vmul.f32 %v1261, %v4077
    %v4334 = vmul.f32 %v1262, %v4078
    %v4335 = vmul.f32 %v1263, %v4079
    %v4336 = vmul.f32 %v1264, %v4080
    %v4337 = vmul.f32 %v1265, %v4081
    %v4338 = vmul.f32 %v1266, %v4082
    %v4339 = vmul.f32 %v1267, %v4083
    %v4340 = vmul.f32 %v1268, %v4084
    %v4341 = vmul.f32 %v1269, %v4085
    %v4342 = vmul.f32 %v1270, %v4086
    %v4343 = vmul.f32 %v1271, %v4087
    %v4344 = vmul.f32 %v1272, %v4088
    %v4345 = vmul.f32 %v1273, %v4089
    %v4346 = vmul.f32 %v1274, %v4090
    %v4347 = vmul.f32 %v1275, %v4091
    %v4348 = vmul.f32 %v1276, %v4092
    %v4349 = vmul.f32 %v1277, %v4093
    %v4350 = vmul.f32 %v1278, %v4094
    %v4351 = vmul.f32 %v1279, %v4095
    %v4352 = vmul.f32 %v1280, %v4096
    %v4353 = vmul.f32 %v1281, %v4097
    %v4354 = vmul.f32 %v1282, %v4098
    %v4355 = vmul.f32 %v1283, %v4099
    %v4356 = vmul.f32 %v1284, %v4100
    %v4357 = vmul.f32 %v1285, %v4101
    %v4358 = vmul.f32 %v1286, %v4102
    %v4359 = vmul.f32 %v1287, %v4103
    %v4360 = vmul.f32 %v1288, %v4104
    %v4361 = vmul.f32 %v1289, %v4105
    %v4362 = vmul.f32 %v1290, %v4106
    %v4363 = vmul.f32 %v1291, %v4107
    %v4364 = vmul.f32 %v1292, %v4108
    %v4365 = vmul.f32 %v1293, %v4109
    %v4366 = vmul.f32 %v1294, %v4110
    %v4367 = vmul.f32 %v1295, %v4111
    %v4368 = vmul.f32 %v1296, %v4112
    %v4369 = vmul.f32 %v1297, %v4113
    %v4370 = vmul.f32 %v1298, %v4114
    %v4371 = vmul.f32 %v1299, %v4115
    %v4372 = vmul.f32 %v1300, %v4116
    %v4373 = vmul.f32 %v1301, %v4117
    %v4374 = vmul.f32 %v1302, %v4118
    %v4375 = vmul.f32 %v1303, %v4119
    %v4376 = vmul.f32 %v1304, %v4120
    %v4377 = vmul.f32 %v1305, %v4121
    %v4378 = vmul.f32 %v1306, %v4122
    %v4379 = vmul.f32 %v1307, %v4123
    %v4380 = vmul.f32 %v1308, %v4124
    %v4381 = vmul.f32 %v1309, %v4125
    %v4382 = vmul.f32 %v1310, %v4126
    %v4383 = vmul.f32 %v1311, %v4127
    %v4384 = vmul.f32 %v1312, %v4128
    %v4385 = vmul.f32 %v1313, %v4129
    %v4386 = vmul.f32 %v1314, %v4130
    %v4387 = vmul.f32 %v1315, %v4131
    %v4388 = vmul.f32 %v1316, %v4132
    %v4389 = vmul.f32 %v1317, %v4133
    %v4390 = vmul.f32 %v1318, %v4134
    %v4391 = vmul.f32 %v1319, %v4135
    %v4392 = vmul.f32 %v1320, %v4136
    %v4393 = vmul.f32 %v1321, %v4137
    %v4394 = vmul.f32 %v1322, %v4138
    %v4395 = vmul.f32 %v1323, %v4139
    %v4396 = vmul.f32 %v1324, %v4140
    %v4397 = vmul.f32 %v1325, %v4141
    %v4398 = vmul.f32 %v1326, %v4142
    %v4399 = vmul.f32 %v1327, %v4143
    %v4400 = vmul.f32 %v1328, %v4144
    %v4401 = vmul.f32 %v1329, %v4145
    %v4402 = vmul.f32 %v1330, %v4146
    %v4403 = vmul.f32 %v1331, %v4147
    %v4404 = vmul.f32 %v1332, %v4148
    %v4405 = vmul.f32 %v1333, %v4149
    %v4406 = vmul.f32 %v1334, %v4150
    %v4407 = vmul.f32 %v1335, %v4151
    %v4408 = vmul.f32 %v1336, %v4152
    %v4409 = vmul.f32 %v1337, %v4153
    %v4410 = vmul.f32 %v1338, %v4154
    %v4411 = vmul.f32 %v1339, %v4155
    %v4412 = vmul.f32 %v1340, %v4156
    %v4413 = vmul.f32 %v1341, %v4157
    %v4414 = vmul.f32 %v1342, %v4158
    %v4415 = vmul.f32 %v1343, %v4159
    %v4416 = vmul.f32 %v1344, %v4160
    %v4417 = vmul.f32 %v1345, %v4161
    %v4418 = vmul.f32 %v1346, %v4162
    %v4419 = vmul.f32 %v1347, %v4163
    %v4420 = vmul.f32 %v1348, %v4164
    %v4421 = vmul.f32 %v1349, %v4165
    %v4422 = vmul.f32 %v1350, %v4166
    %v4423 = vmul.f32 %v1351, %v4167
    %v4424 = vmul.f32 %v1352, %v4168
    %v4425 = vmul.f32 %v1353, %v4169
    %v4426 = vmul.f32 %v1354, %v4170
    %v4427 = vmul.f32 %v1355, %v4171
    %v4428 = vmul.f32 %v1356, %v4172
    %v4429 = vmul.f32 %v1357, %v4173
    %v4430 = vmul.f32 %v1358, %v4174
    %v4431 = vmul.f32 %v1359, %v4175
    %v4432 = vmul.f32 %v1360, %v4176
    %v4433 = vmul.f32 %v1361, %v4177
    %v4434 = vmul.f32 %v1362, %v4178
    %v4435 = vmul.f32 %v1363, %v4179
    %v4436 = vmul.f32 %v1364, %v4180
    %v4437 = vmul.f32 %v1365, %v4181
    %v4438 = vmul.f32 %v1366, %v4182
    %v4439 = vmul.f32 %v1367, %v4183
    %v4440 = vmul.f32 %v1368, %v4184
    %v4441 = vmul.f32 %v1369, %v4185
    %v4442 = vmul.f32 %v1370, %v4186
    %v4443 = vmul.f32 %v1371, %v4187
    %v4444 = vmul.f32 %v1372, %v4188
    %v4445 = vmul.f32 %v1373, %v4189
    %v4446 = vmul.f32 %v1374, %v4190
    %v4447 = vmul.f32 %v1375, %v4191
    %v4448 = vmul.f32 %v1376, %v4192
    %v4449 = vmul.f32 %v1377, %v4193
    %v4450 = vmul.f32 %v1378, %v4194
    %v4451 = vmul.f32 %v1379, %v4195
    %v4452 = vmul.f32 %v1380, %v4196
    %v4453 = vmul.f32 %v1381, %v4197
    %v4454 = vmul.f32 %v1382, %v4198
    %v4455 = vmul.f32 %v1383, %v4199
    %v4456 = vmul.f32 %v1384, %v4200
    %v4457 = vmul.f32 %v1385, %v4201
    %v4458 = vmul.f32 %v1386, %v4202
    %v4459 = vmul.f32 %v1387, %v4203
    %v4460 = vmul.f32 %v1388, %v4204
    %v4461 = vmul.f32 %v1389, %v4205
    %v4462 = vmul.f32 %v1390, %v4206
    %v4463 = vmul.f32 %v1391, %v4207
    %v4464 = vmul.f32 %v1392, %v4208
    %v4465 = vmul.f32 %v1393, %v4209
    %v4466 = vmul.f32 %v1394, %v4210
    %v4467 = vpack.c.bf16 %v4219, %v4211
    %v4468 = vpack.c.bf16 %v4220, %v4212
    %v4469 = vpack.c.bf16 %v4221, %v4213
    %v4470 = vpack.c.bf16 %v4222, %v4214
    %v4471 = vpack.c.bf16 %v4223, %v4215
    %v4472 = vpack.c.bf16 %v4224, %v4216
    %v4473 = vpack.c.bf16 %v4225, %v4217
    %v4474 = vpack.c.bf16 %v4226, %v4218
    %v4475 = vpack.c.bf16 %v4235, %v4227
    %v4476 = vpack.c.bf16 %v4236, %v4228
    %v4477 = vpack.c.bf16 %v4237, %v4229
    %v4478 = vpack.c.bf16 %v4238, %v4230
    %v4479 = vpack.c.bf16 %v4239, %v4231
    %v4480 = vpack.c.bf16 %v4240, %v4232
    %v4481 = vpack.c.bf16 %v4241, %v4233
    %v4482 = vpack.c.bf16 %v4242, %v4234
    %v4483 = vpack.c.bf16 %v4251, %v4243
    %v4484 = vpack.c.bf16 %v4252, %v4244
    %v4485 = vpack.c.bf16 %v4253, %v4245
    %v4486 = vpack.c.bf16 %v4254, %v4246
    %v4487 = vpack.c.bf16 %v4255, %v4247
    %v4488 = vpack.c.bf16 %v4256, %v4248
    %v4489 = vpack.c.bf16 %v4257, %v4249
    %v4490 = vpack.c.bf16 %v4258, %v4250
    %v4491 = vpack.c.bf16 %v4267, %v4259
    %v4492 = vpack.c.bf16 %v4268, %v4260
    %v4493 = vpack.c.bf16 %v4269, %v4261
    %v4494 = vpack.c.bf16 %v4270, %v4262
    %v4495 = vpack.c.bf16 %v4271, %v4263
    %v4496 = vpack.c.bf16 %v4272, %v4264
    %v4497 = vpack.c.bf16 %v4273, %v4265
    %v4498 = vpack.c.bf16 %v4274, %v4266
    %v4499 = vpack.c.bf16 %v4283, %v4275
    %v4500 = vpack.c.bf16 %v4284, %v4276
    %v4501 = vpack.c.bf16 %v4285, %v4277
    %v4502 = vpack.c.bf16 %v4286, %v4278
    %v4503 = vpack.c.bf16 %v4287, %v4279
    %v4504 = vpack.c.bf16 %v4288, %v4280
    %v4505 = vpack.c.bf16 %v4289, %v4281
    %v4506 = vpack.c.bf16 %v4290, %v4282
    %v4507 = vpack.c.bf16 %v4299, %v4291
    %v4508 = vpack.c.bf16 %v4300, %v4292
    %v4509 = vpack.c.bf16 %v4301, %v4293
    %v4510 = vpack.c.bf16 %v4302, %v4294
    %v4511 = vpack.c.bf16 %v4303, %v4295
    %v4512 = vpack.c.bf16 %v4304, %v4296
    %v4513 = vpack.c.bf16 %v4305, %v4297
    %v4514 = vpack.c.bf16 %v4306, %v4298
    %v4515 = vpack.c.bf16 %v4315, %v4307
    %v4516 = vpack.c.bf16 %v4316, %v4308
    %v4517 = vpack.c.bf16 %v4317, %v4309
    %v4518 = vpack.c.bf16 %v4318, %v4310
    %v4519 = vpack.c.bf16 %v4319, %v4311
    %v4520 = vpack.c.bf16 %v4320, %v4312
    %v4521 = vpack.c.bf16 %v4321, %v4313
    %v4522 = vpack.c.bf16 %v4322, %v4314
    %v4523 = vpack.c.bf16 %v4331, %v4323
    %v4524 = vpack.c.bf16 %v4332, %v4324
    %v4525 = vpack.c.bf16 %v4333, %v4325
    %v4526 = vpack.c.bf16 %v4334, %v4326
    %v4527 = vpack.c.bf16 %v4335, %v4327
    %v4528 = vpack.c.bf16 %v4336, %v4328
    %v4529 = vpack.c.bf16 %v4337, %v4329
    %v4530 = vpack.c.bf16 %v4338, %v4330
    %v4531 = vpack.c.bf16 %v4347, %v4339
    %v4532 = vpack.c.bf16 %v4348, %v4340
    %v4533 = vpack.c.bf16 %v4349, %v4341
    %v4534 = vpack.c.bf16 %v4350, %v4342
    %v4535 = vpack.c.bf16 %v4351, %v4343
    %v4536 = vpack.c.bf16 %v4352, %v4344
    %v4537 = vpack.c.bf16 %v4353, %v4345
    %v4538 = vpack.c.bf16 %v4354, %v4346
    %v4539 = vpack.c.bf16 %v4363, %v4355
    %v4540 = vpack.c.bf16 %v4364, %v4356
    %v4541 = vpack.c.bf16 %v4365, %v4357
    %v4542 = vpack.c.bf16 %v4366, %v4358
    %v4543 = vpack.c.bf16 %v4367, %v4359
    %v4544 = vpack.c.bf16 %v4368, %v4360
    %v4545 = vpack.c.bf16 %v4369, %v4361
    %v4546 = vpack.c.bf16 %v4370, %v4362
    %v4547 = vpack.c.bf16 %v4379, %v4371
    %v4548 = vpack.c.bf16 %v4380, %v4372
    %v4549 = vpack.c.bf16 %v4381, %v4373
    %v4550 = vpack.c.bf16 %v4382, %v4374
    %v4551 = vpack.c.bf16 %v4383, %v4375
    %v4552 = vpack.c.bf16 %v4384, %v4376
    %v4553 = vpack.c.bf16 %v4385, %v4377
    %v4554 = vpack.c.bf16 %v4386, %v4378
    %v4555 = vpack.c.bf16 %v4395, %v4387
    %v4556 = vpack.c.bf16 %v4396, %v4388
    %v4557 = vpack.c.bf16 %v4397, %v4389
    %v4558 = vpack.c.bf16 %v4398, %v4390
    %v4559 = vpack.c.bf16 %v4399, %v4391
    %v4560 = vpack.c.bf16 %v4400, %v4392
    %v4561 = vpack.c.bf16 %v4401, %v4393
    %v4562 = vpack.c.bf16 %v4402, %v4394
    %v4563 = vpack.c.bf16 %v4411, %v4403
    %v4564 = vpack.c.bf16 %v4412, %v4404
    %v4565 = vpack.c.bf16 %v4413, %v4405
    %v4566 = vpack.c.bf16 %v4414, %v4406
    %v4567 = vpack.c.bf16 %v4415, %v4407
    %v4568 = vpack.c.bf16 %v4416, %v4408
    %v4569 = vpack.c.bf16 %v4417, %v4409
    %v4570 = vpack.c.bf16 %v4418, %v4410
    %v4571 = vpack.c.bf16 %v4427, %v4419
    %v4572 = vpack.c.bf16 %v4428, %v4420
    %v4573 = vpack.c.bf16 %v4429, %v4421
    %v4574 = vpack.c.bf16 %v4430, %v4422
    %v4575 = vpack.c.bf16 %v4431, %v4423
    %v4576 = vpack.c.bf16 %v4432, %v4424
    %v4577 = vpack.c.bf16 %v4433, %v4425
    %v4578 = vpack.c.bf16 %v4434, %v4426
    %v4579 = vpack.c.bf16 %v4443, %v4435
    %v4580 = vpack.c.bf16 %v4444, %v4436
    %v4581 = vpack.c.bf16 %v4445, %v4437
    %v4582 = vpack.c.bf16 %v4446, %v4438
    %v4583 = vpack.c.bf16 %v4447, %v4439
    %v4584 = vpack.c.bf16 %v4448, %v4440
    %v4585 = vpack.c.bf16 %v4449, %v4441
    %v4586 = vpack.c.bf16 %v4450, %v4442
    %v4587 = vpack.c.bf16 %v4459, %v4451
    %v4588 = vpack.c.bf16 %v4460, %v4452
    %v4589 = vpack.c.bf16 %v4461, %v4453
    %v4590 = vpack.c.bf16 %v4462, %v4454
    %v4591 = vpack.c.bf16 %v4463, %v4455
    %v4592 = vpack.c.bf16 %v4464, %v4456
    %v4593 = vpack.c.bf16 %v4465, %v4457
    %v4594 = vpack.c.bf16 %v4466, %v4458
    %v4595 = vld [vmem:[#allocation2 + $0x200] sm:$0xf]
    %v4596 = vld [vmem:[#allocation2 + $0x204] sm:$0xf]
    %v4597 = vld [vmem:[#allocation2 + $0x208] sm:$0xf]
    %v4598 = vld [vmem:[#allocation2 + $0x20c] sm:$0xf]
    %v4599 = vld [vmem:[#allocation2 + $0x210] sm:$0xf]
    %v4600 = vld [vmem:[#allocation2 + $0x214] sm:$0xf]
    %v4601 = vld [vmem:[#allocation2 + $0x218] sm:$0xf]
    %v4602 = vld [vmem:[#allocation2 + $0x21c] sm:$0xf]
    %v4603 = vld [vmem:[#allocation2 + $0x220] sm:$0xf]
    %v4604 = vld [vmem:[#allocation2 + $0x224] sm:$0xf]
    %v4605 = vld [vmem:[#allocation2 + $0x228] sm:$0xf]
    %v4606 = vld [vmem:[#allocation2 + $0x22c] sm:$0xf]
    %v4607 = vld [vmem:[#allocation2 + $0x230] sm:$0xf]
    %v4608 = vld [vmem:[#allocation2 + $0x234] sm:$0xf]
    %v4609 = vld [vmem:[#allocation2 + $0x238] sm:$0xf]
    %v4610 = vld [vmem:[#allocation2 + $0x23c] sm:$0xf]
    %v4611 = vld [vmem:[#allocation2 + $0x240] sm:$0xf]
    %v4612 = vld [vmem:[#allocation2 + $0x244] sm:$0xf]
    %v4613 = vld [vmem:[#allocation2 + $0x248] sm:$0xf]
    %v4614 = vld [vmem:[#allocation2 + $0x24c] sm:$0xf]
    %v4615 = vld [vmem:[#allocation2 + $0x250] sm:$0xf]
    %v4616 = vld [vmem:[#allocation2 + $0x254] sm:$0xf]
    %v4617 = vld [vmem:[#allocation2 + $0x258] sm:$0xf]
    %v4618 = vld [vmem:[#allocation2 + $0x25c] sm:$0xf]
    %v4619 = vld [vmem:[#allocation2 + $0x260] sm:$0xf]
    %v4620 = vld [vmem:[#allocation2 + $0x264] sm:$0xf]
    %v4621 = vld [vmem:[#allocation2 + $0x268] sm:$0xf]
    %v4622 = vld [vmem:[#allocation2 + $0x26c] sm:$0xf]
    %v4623 = vld [vmem:[#allocation2 + $0x270] sm:$0xf]
    %v4624 = vld [vmem:[#allocation2 + $0x274] sm:$0xf]
    %v4625 = vld [vmem:[#allocation2 + $0x278] sm:$0xf]
    %v4626 = vld [vmem:[#allocation2 + $0x27c] sm:$0xf]
    %v4627 = vld [vmem:[#allocation2 + $0x280] sm:$0xf]
    %v4628 = vld [vmem:[#allocation2 + $0x284] sm:$0xf]
    %v4629 = vld [vmem:[#allocation2 + $0x288] sm:$0xf]
    %v4630 = vld [vmem:[#allocation2 + $0x28c] sm:$0xf]
    %v4631 = vld [vmem:[#allocation2 + $0x290] sm:$0xf]
    %v4632 = vld [vmem:[#allocation2 + $0x294] sm:$0xf]
    %v4633 = vld [vmem:[#allocation2 + $0x298] sm:$0xf]
    %v4634 = vld [vmem:[#allocation2 + $0x29c] sm:$0xf]
    %v4635 = vld [vmem:[#allocation2 + $0x2a0] sm:$0xf]
    %v4636 = vld [vmem:[#allocation2 + $0x2a4] sm:$0xf]
    %v4637 = vld [vmem:[#allocation2 + $0x2a8] sm:$0xf]
    %v4638 = vld [vmem:[#allocation2 + $0x2ac] sm:$0xf]
    %v4639 = vld [vmem:[#allocation2 + $0x2b0] sm:$0xf]
    %v4640 = vld [vmem:[#allocation2 + $0x2b4] sm:$0xf]
    %v4641 = vld [vmem:[#allocation2 + $0x2b8] sm:$0xf]
    %v4642 = vld [vmem:[#allocation2 + $0x2bc] sm:$0xf]
    %v4643 = vld [vmem:[#allocation2 + $0x2c0] sm:$0xf]
    %v4644 = vld [vmem:[#allocation2 + $0x2c4] sm:$0xf]
    %v4645 = vld [vmem:[#allocation2 + $0x2c8] sm:$0xf]
    %v4646 = vld [vmem:[#allocation2 + $0x2cc] sm:$0xf]
    %v4647 = vld [vmem:[#allocation2 + $0x2d0] sm:$0xf]
    %v4648 = vld [vmem:[#allocation2 + $0x2d4] sm:$0xf]
    %v4649 = vld [vmem:[#allocation2 + $0x2d8] sm:$0xf]
    %v4650 = vld [vmem:[#allocation2 + $0x2dc] sm:$0xf]
    %v4651 = vld [vmem:[#allocation2 + $0x2e0] sm:$0xf]
    %v4652 = vld [vmem:[#allocation2 + $0x2e4] sm:$0xf]
    %v4653 = vld [vmem:[#allocation2 + $0x2e8] sm:$0xf]
    %v4654 = vld [vmem:[#allocation2 + $0x2ec] sm:$0xf]
    %v4655 = vld [vmem:[#allocation2 + $0x2f0] sm:$0xf]
    %v4656 = vld [vmem:[#allocation2 + $0x2f4] sm:$0xf]
    %v4657 = vld [vmem:[#allocation2 + $0x2f8] sm:$0xf]
    %v4658 = vld [vmem:[#allocation2 + $0x2fc] sm:$0xf]
    %v4659 = vld [vmem:[#allocation2 + $0x300] sm:$0xf]
    %v4660 = vld [vmem:[#allocation2 + $0x304] sm:$0xf]
    %v4661 = vld [vmem:[#allocation2 + $0x308] sm:$0xf]
    %v4662 = vld [vmem:[#allocation2 + $0x30c] sm:$0xf]
    %v4663 = vld [vmem:[#allocation2 + $0x310] sm:$0xf]
    %v4664 = vld [vmem:[#allocation2 + $0x314] sm:$0xf]
    %v4665 = vld [vmem:[#allocation2 + $0x318] sm:$0xf]
    %v4666 = vld [vmem:[#allocation2 + $0x31c] sm:$0xf]
    %v4667 = vld [vmem:[#allocation2 + $0x320] sm:$0xf]
    %v4668 = vld [vmem:[#allocation2 + $0x324] sm:$0xf]
    %v4669 = vld [vmem:[#allocation2 + $0x328] sm:$0xf]
    %v4670 = vld [vmem:[#allocation2 + $0x32c] sm:$0xf]
    %v4671 = vld [vmem:[#allocation2 + $0x330] sm:$0xf]
    %v4672 = vld [vmem:[#allocation2 + $0x334] sm:$0xf]
    %v4673 = vld [vmem:[#allocation2 + $0x338] sm:$0xf]
    %v4674 = vld [vmem:[#allocation2 + $0x33c] sm:$0xf]
    %v4675 = vld [vmem:[#allocation2 + $0x340] sm:$0xf]
    %v4676 = vld [vmem:[#allocation2 + $0x344] sm:$0xf]
    %v4677 = vld [vmem:[#allocation2 + $0x348] sm:$0xf]
    %v4678 = vld [vmem:[#allocation2 + $0x34c] sm:$0xf]
    %v4679 = vld [vmem:[#allocation2 + $0x350] sm:$0xf]
    %v4680 = vld [vmem:[#allocation2 + $0x354] sm:$0xf]
    %v4681 = vld [vmem:[#allocation2 + $0x358] sm:$0xf]
    %v4682 = vld [vmem:[#allocation2 + $0x35c] sm:$0xf]
    %v4683 = vld [vmem:[#allocation2 + $0x360] sm:$0xf]
    %v4684 = vld [vmem:[#allocation2 + $0x364] sm:$0xf]
    %v4685 = vld [vmem:[#allocation2 + $0x368] sm:$0xf]
    %v4686 = vld [vmem:[#allocation2 + $0x36c] sm:$0xf]
    %v4687 = vld [vmem:[#allocation2 + $0x370] sm:$0xf]
    %v4688 = vld [vmem:[#allocation2 + $0x374] sm:$0xf]
    %v4689 = vld [vmem:[#allocation2 + $0x378] sm:$0xf]
    %v4690 = vld [vmem:[#allocation2 + $0x37c] sm:$0xf]
    %v4691 = vld [vmem:[#allocation2 + $0x380] sm:$0xf]
    %v4692 = vld [vmem:[#allocation2 + $0x384] sm:$0xf]
    %v4693 = vld [vmem:[#allocation2 + $0x388] sm:$0xf]
    %v4694 = vld [vmem:[#allocation2 + $0x38c] sm:$0xf]
    %v4695 = vld [vmem:[#allocation2 + $0x390] sm:$0xf]
    %v4696 = vld [vmem:[#allocation2 + $0x394] sm:$0xf]
    %v4697 = vld [vmem:[#allocation2 + $0x398] sm:$0xf]
    %v4698 = vld [vmem:[#allocation2 + $0x39c] sm:$0xf]
    %v4699 = vld [vmem:[#allocation2 + $0x3a0] sm:$0xf]
    %v4700 = vld [vmem:[#allocation2 + $0x3a4] sm:$0xf]
    %v4701 = vld [vmem:[#allocation2 + $0x3a8] sm:$0xf]
    %v4702 = vld [vmem:[#allocation2 + $0x3ac] sm:$0xf]
    %v4703 = vld [vmem:[#allocation2 + $0x3b0] sm:$0xf]
    %v4704 = vld [vmem:[#allocation2 + $0x3b4] sm:$0xf]
    %v4705 = vld [vmem:[#allocation2 + $0x3b8] sm:$0xf]
    %v4706 = vld [vmem:[#allocation2 + $0x3bc] sm:$0xf]
    %v4707 = vld [vmem:[#allocation2 + $0x3c0] sm:$0xf]
    %v4708 = vld [vmem:[#allocation2 + $0x3c4] sm:$0xf]
    %v4709 = vld [vmem:[#allocation2 + $0x3c8] sm:$0xf]
    %v4710 = vld [vmem:[#allocation2 + $0x3cc] sm:$0xf]
    %v4711 = vld [vmem:[#allocation2 + $0x3d0] sm:$0xf]
    %v4712 = vld [vmem:[#allocation2 + $0x3d4] sm:$0xf]
    %v4713 = vld [vmem:[#allocation2 + $0x3d8] sm:$0xf]
    %v4714 = vld [vmem:[#allocation2 + $0x3dc] sm:$0xf]
    %v4715 = vld [vmem:[#allocation2 + $0x3e0] sm:$0xf]
    %v4716 = vld [vmem:[#allocation2 + $0x3e4] sm:$0xf]
    %v4717 = vld [vmem:[#allocation2 + $0x3e8] sm:$0xf]
    %v4718 = vld [vmem:[#allocation2 + $0x3ec] sm:$0xf]
    %v4719 = vld [vmem:[#allocation2 + $0x3f0] sm:$0xf]
    %v4720 = vld [vmem:[#allocation2 + $0x3f4] sm:$0xf]
    %v4721 = vld [vmem:[#allocation2 + $0x3f8] sm:$0xf]
    %v4722 = vld [vmem:[#allocation2 + $0x3fc] sm:$0xf]
    %v4851 = vunpack.c.l.b16 %v4595
    %v4852 = vunpack.c.l.b16 %v4596
    %v4853 = vunpack.c.l.b16 %v4597
    %v4854 = vunpack.c.l.b16 %v4598
    %v4855 = vunpack.c.l.b16 %v4599
    %v4856 = vunpack.c.l.b16 %v4600
    %v4857 = vunpack.c.l.b16 %v4601
    %v4858 = vunpack.c.l.b16 %v4602
    %v4859 = vunpack.c.l.b16 %v4603
    %v4860 = vunpack.c.l.b16 %v4604
    %v4861 = vunpack.c.l.b16 %v4605
    %v4862 = vunpack.c.l.b16 %v4606
    %v4863 = vunpack.c.l.b16 %v4607
    %v4864 = vunpack.c.l.b16 %v4608
    %v4865 = vunpack.c.l.b16 %v4609
    %v4866 = vunpack.c.l.b16 %v4610
    %v4867 = vunpack.c.l.b16 %v4611
    %v4868 = vunpack.c.l.b16 %v4612
    %v4869 = vunpack.c.l.b16 %v4613
    %v4870 = vunpack.c.l.b16 %v4614
    %v4871 = vunpack.c.l.b16 %v4615
    %v4872 = vunpack.c.l.b16 %v4616
    %v4873 = vunpack.c.l.b16 %v4617
    %v4874 = vunpack.c.l.b16 %v4618
    %v4875 = vunpack.c.l.b16 %v4619
    %v4876 = vunpack.c.l.b16 %v4620
    %v4877 = vunpack.c.l.b16 %v4621
    %v4878 = vunpack.c.l.b16 %v4622
    %v4879 = vunpack.c.l.b16 %v4623
    %v4880 = vunpack.c.l.b16 %v4624
    %v4881 = vunpack.c.l.b16 %v4625
    %v4882 = vunpack.c.l.b16 %v4626
    %v4883 = vunpack.c.l.b16 %v4627
    %v4884 = vunpack.c.l.b16 %v4628
    %v4885 = vunpack.c.l.b16 %v4629
    %v4886 = vunpack.c.l.b16 %v4630
    %v4887 = vunpack.c.l.b16 %v4631
    %v4888 = vunpack.c.l.b16 %v4632
    %v4889 = vunpack.c.l.b16 %v4633
    %v4890 = vunpack.c.l.b16 %v4634
    %v4891 = vunpack.c.l.b16 %v4635
    %v4892 = vunpack.c.l.b16 %v4636
    %v4893 = vunpack.c.l.b16 %v4637
    %v4894 = vunpack.c.l.b16 %v4638
    %v4895 = vunpack.c.l.b16 %v4639
    %v4896 = vunpack.c.l.b16 %v4640
    %v4897 = vunpack.c.l.b16 %v4641
    %v4898 = vunpack.c.l.b16 %v4642
    %v4899 = vunpack.c.l.b16 %v4643
    %v4900 = vunpack.c.l.b16 %v4644
    %v4901 = vunpack.c.l.b16 %v4645
    %v4902 = vunpack.c.l.b16 %v4646
    %v4903 = vunpack.c.l.b16 %v4647
    %v4904 = vunpack.c.l.b16 %v4648
    %v4905 = vunpack.c.l.b16 %v4649
    %v4906 = vunpack.c.l.b16 %v4650
    %v4907 = vunpack.c.l.b16 %v4651
    %v4908 = vunpack.c.l.b16 %v4652
    %v4909 = vunpack.c.l.b16 %v4653
    %v4910 = vunpack.c.l.b16 %v4654
    %v4911 = vunpack.c.l.b16 %v4655
    %v4912 = vunpack.c.l.b16 %v4656
    %v4913 = vunpack.c.l.b16 %v4657
    %v4914 = vunpack.c.l.b16 %v4658
    %v4915 = vunpack.c.l.b16 %v4659
    %v4916 = vunpack.c.l.b16 %v4660
    %v4917 = vunpack.c.l.b16 %v4661
    %v4918 = vunpack.c.l.b16 %v4662
    %v4919 = vunpack.c.l.b16 %v4663
    %v4920 = vunpack.c.l.b16 %v4664
    %v4921 = vunpack.c.l.b16 %v4665
    %v4922 = vunpack.c.l.b16 %v4666
    %v4923 = vunpack.c.l.b16 %v4667
    %v4924 = vunpack.c.l.b16 %v4668
    %v4925 = vunpack.c.l.b16 %v4669
    %v4926 = vunpack.c.l.b16 %v4670
    %v4927 = vunpack.c.l.b16 %v4671
    %v4928 = vunpack.c.l.b16 %v4672
    %v4929 = vunpack.c.l.b16 %v4673
    %v4930 = vunpack.c.l.b16 %v4674
    %v4931 = vunpack.c.l.b16 %v4675
    %v4932 = vunpack.c.l.b16 %v4676
    %v4933 = vunpack.c.l.b16 %v4677
    %v4934 = vunpack.c.l.b16 %v4678
    %v4935 = vunpack.c.l.b16 %v4679
    %v4936 = vunpack.c.l.b16 %v4680
    %v4937 = vunpack.c.l.b16 %v4681
    %v4938 = vunpack.c.l.b16 %v4682
    %v4939 = vunpack.c.l.b16 %v4683
    %v4940 = vunpack.c.l.b16 %v4684
    %v4941 = vunpack.c.l.b16 %v4685
    %v4942 = vunpack.c.l.b16 %v4686
    %v4943 = vunpack.c.l.b16 %v4687
    %v4944 = vunpack.c.l.b16 %v4688
    %v4945 = vunpack.c.l.b16 %v4689
    %v4946 = vunpack.c.l.b16 %v4690
    %v4947 = vunpack.c.l.b16 %v4691
    %v4948 = vunpack.c.l.b16 %v4692
    %v4949 = vunpack.c.l.b16 %v4693
    %v4950 = vunpack.c.l.b16 %v4694
    %v4951 = vunpack.c.l.b16 %v4695
    %v4952 = vunpack.c.l.b16 %v4696
    %v4953 = vunpack.c.l.b16 %v4697
    %v4954 = vunpack.c.l.b16 %v4698
    %v4955 = vunpack.c.l.b16 %v4699
    %v4956 = vunpack.c.l.b16 %v4700
    %v4957 = vunpack.c.l.b16 %v4701
    %v4958 = vunpack.c.l.b16 %v4702
    %v4959 = vunpack.c.l.b16 %v4703
    %v4960 = vunpack.c.l.b16 %v4704
    %v4961 = vunpack.c.l.b16 %v4705
    %v4962 = vunpack.c.l.b16 %v4706
    %v4963 = vunpack.c.l.b16 %v4707
    %v4964 = vunpack.c.l.b16 %v4708
    %v4965 = vunpack.c.l.b16 %v4709
    %v4966 = vunpack.c.l.b16 %v4710
    %v4967 = vunpack.c.l.b16 %v4711
    %v4968 = vunpack.c.l.b16 %v4712
    %v4969 = vunpack.c.l.b16 %v4713
    %v4970 = vunpack.c.l.b16 %v4714
    %v4971 = vunpack.c.l.b16 %v4715
    %v4972 = vunpack.c.l.b16 %v4716
    %v4973 = vunpack.c.l.b16 %v4717
    %v4974 = vunpack.c.l.b16 %v4718
    %v4975 = vunpack.c.l.b16 %v4719
    %v4976 = vunpack.c.l.b16 %v4720
    %v4977 = vunpack.c.l.b16 %v4721
    %v4978 = vunpack.c.l.b16 %v4722
    %v4979 = vpack.c.b16 %v4852, %v4851
    %v4980 = vpack.c.b16 %v4854, %v4853
    %v4981 = vpack.c.b16 %v4856, %v4855
    %v4982 = vpack.c.b16 %v4858, %v4857
    %v4983 = vpack.c.b16 %v4860, %v4859
    %v4984 = vpack.c.b16 %v4862, %v4861
    %v4985 = vpack.c.b16 %v4864, %v4863
    %v4986 = vpack.c.b16 %v4866, %v4865
    %v4987 = vpack.c.b16 %v4868, %v4867
    %v4988 = vpack.c.b16 %v4870, %v4869
    %v4989 = vpack.c.b16 %v4872, %v4871
    %v4990 = vpack.c.b16 %v4874, %v4873
    %v4991 = vpack.c.b16 %v4876, %v4875
    %v4992 = vpack.c.b16 %v4878, %v4877
    %v4993 = vpack.c.b16 %v4880, %v4879
    %v4994 = vpack.c.b16 %v4882, %v4881
    %v4995 = vpack.c.b16 %v4884, %v4883
    %v4996 = vpack.c.b16 %v4886, %v4885
    %v4997 = vpack.c.b16 %v4888, %v4887
    %v4998 = vpack.c.b16 %v4890, %v4889
    %v4999 = vpack.c.b16 %v4892, %v4891
    %v5000 = vpack.c.b16 %v4894, %v4893
    %v5001 = vpack.c.b16 %v4896, %v4895
    %v5002 = vpack.c.b16 %v4898, %v4897
    %v5003 = vpack.c.b16 %v4900, %v4899
    %v5004 = vpack.c.b16 %v4902, %v4901
    %v5005 = vpack.c.b16 %v4904, %v4903
    %v5006 = vpack.c.b16 %v4906, %v4905
    %v5007 = vpack.c.b16 %v4908, %v4907
    %v5008 = vpack.c.b16 %v4910, %v4909
    %v5009 = vpack.c.b16 %v4912, %v4911
    %v5010 = vpack.c.b16 %v4914, %v4913
    %v5011 = vpack.c.b16 %v4916, %v4915
    %v5012 = vpack.c.b16 %v4918, %v4917
    %v5013 = vpack.c.b16 %v4920, %v4919
    %v5014 = vpack.c.b16 %v4922, %v4921
    %v5015 = vpack.c.b16 %v4924, %v4923
    %v5016 = vpack.c.b16 %v4926, %v4925
    %v5017 = vpack.c.b16 %v4928, %v4927
    %v5018 = vpack.c.b16 %v4930, %v4929
    %v5019 = vpack.c.b16 %v4932, %v4931
    %v5020 = vpack.c.b16 %v4934, %v4933
    %v5021 = vpack.c.b16 %v4936, %v4935
    %v5022 = vpack.c.b16 %v4938, %v4937
    %v5023 = vpack.c.b16 %v4940, %v4939
    %v5024 = vpack.c.b16 %v4942, %v4941
    %v5025 = vpack.c.b16 %v4944, %v4943
    %v5026 = vpack.c.b16 %v4946, %v4945
    %v5027 = vpack.c.b16 %v4948, %v4947
    %v5028 = vpack.c.b16 %v4950, %v4949
    %v5029 = vpack.c.b16 %v4952, %v4951
    %v5030 = vpack.c.b16 %v4954, %v4953
    %v5031 = vpack.c.b16 %v4956, %v4955
    %v5032 = vpack.c.b16 %v4958, %v4957
    %v5033 = vpack.c.b16 %v4960, %v4959
    %v5034 = vpack.c.b16 %v4962, %v4961
    %v5035 = vpack.c.b16 %v4964, %v4963
    %v5036 = vpack.c.b16 %v4966, %v4965
    %v5037 = vpack.c.b16 %v4968, %v4967
    %v5038 = vpack.c.b16 %v4970, %v4969
    %v5039 = vpack.c.b16 %v4972, %v4971
    %v5040 = vpack.c.b16 %v4974, %v4973
    %v5041 = vpack.c.b16 %v4976, %v4975
    %v5042 = vpack.c.b16 %v4978, %v4977
    %5107 = vmatprep.subr.bf16.mxu0 0
    %5108 = vmatpush1.bf16.msra.mxu0 %v4986
    %5109 = vmatprep.subr.bf16.mxu0 0
    %5110 = vmatpush1.bf16.msra.mxu0 %v4985
    %5111 = vmatprep.subr.bf16.mxu0 0
    %5112 = vmatpush1.bf16.msra.mxu0 %v4984
    %5113 = vmatprep.subr.bf16.mxu0 0
    %5114 = vmatpush1.bf16.msra.mxu0 %v4983
    %5115 = vmatprep.subr.bf16.mxu0 0
    %5116 = vmatpush1.bf16.msra.mxu0 %v4982
    %5117 = vmatprep.subr.bf16.mxu0 0
    %5118 = vmatpush1.bf16.msra.mxu0 %v4981
    %5119 = vmatprep.subr.bf16.mxu0 0
    %5120 = vmatpush1.bf16.msra.mxu0 %v4980
    %5121 = vmatprep.subr.bf16.mxu0 0
    %5122 = vmatpush1.bf16.msra.mxu0 %v4979
    %5123 = vmatprep.subr.bf16.mxu0 0
    %5124 = vmatpush2.bf16.msra.mxu0 %v4994
    %5125 = vmatprep.subr.bf16.mxu0 0
    %5126 = vmatpush2.bf16.msra.mxu0 %v4993
    %5127 = vmatprep.subr.bf16.mxu0 0
    %5128 = vmatpush2.bf16.msra.mxu0 %v4992
    %5129 = vmatprep.subr.bf16.mxu0 0
    %5130 = vmatpush2.bf16.msra.mxu0 %v4991
    %5131 = vmatprep.subr.bf16.mxu0 0
    %5132 = vmatpush2.bf16.msra.mxu0 %v4990
    %5133 = vmatprep.subr.bf16.mxu0 0
    %5134 = vmatpush2.bf16.msra.mxu0 %v4989
    %5135 = vmatprep.subr.bf16.mxu0 0
    %5136 = vmatpush2.bf16.msra.mxu0 %v4988
    %5137 = vmatprep.subr.bf16.mxu0 0
    %5138 = vmatpush2.bf16.msra.mxu0 %v4987
    %5139 = vmatprep.mubr.bf16.mxu0 %v4468
    %5140 = vmatmul.mubr.bf16.gmra.mxu0 %v4467
    %v5141 = vpop.f32.mrf.mxu0
    %v5142 = vadd.f32 0.0, %v5141
    %v5143 = vpop.f32.mrf.mxu0
    %v5144 = vpop.f32.mrf.mxu0
    %v5145 = vadd.f32 0.0, %v5144
    %v5146 = vpop.f32.mrf.mxu0
    %5147 = vmatprep.mubr.bf16.mxu0 %v4476
    %5148 = vmatmul.mubr.bf16.gmra.mxu0 %v4475
    %v5149 = vpop.f32.mrf.mxu0
    %v5150 = vadd.f32 0.0, %v5149
    %v5151 = vpop.f32.mrf.mxu0
    %v5152 = vpop.f32.mrf.mxu0
    %v5153 = vadd.f32 0.0, %v5152
    %v5154 = vpop.f32.mrf.mxu0
    %5155 = vmatprep.mubr.bf16.mxu0 %v4484
    %5156 = vmatmul.mubr.bf16.gmra.mxu0 %v4483
    %v5157 = vpop.f32.mrf.mxu0
    %v5158 = vadd.f32 0.0, %v5157
    %v5159 = vpop.f32.mrf.mxu0
    %v5160 = vpop.f32.mrf.mxu0
    %v5161 = vadd.f32 0.0, %v5160
    %v5162 = vpop.f32.mrf.mxu0
    %5163 = vmatprep.mubr.bf16.mxu0 %v4492
    %5164 = vmatmul.mubr.bf16.gmra.mxu0 %v4491
    %v5165 = vpop.f32.mrf.mxu0
    %v5166 = vadd.f32 0.0, %v5165
    %v5167 = vpop.f32.mrf.mxu0
    %v5168 = vpop.f32.mrf.mxu0
    %v5169 = vadd.f32 0.0, %v5168
    %v5170 = vpop.f32.mrf.mxu0
    %5171 = vmatprep.mubr.bf16.mxu0 %v4500
    %5172 = vmatmul.mubr.bf16.gmra.mxu0 %v4499
    %v5173 = vpop.f32.mrf.mxu0
    %v5174 = vadd.f32 0.0, %v5173
    %v5175 = vpop.f32.mrf.mxu0
    %v5176 = vpop.f32.mrf.mxu0
    %v5177 = vadd.f32 0.0, %v5176
    %v5178 = vpop.f32.mrf.mxu0
    %5179 = vmatprep.mubr.bf16.mxu0 %v4508
    %5180 = vmatmul.mubr.bf16.gmra.mxu0 %v4507
    %v5181 = vpop.f32.mrf.mxu0
    %v5182 = vadd.f32 0.0, %v5181
    %v5183 = vpop.f32.mrf.mxu0
    %v5184 = vpop.f32.mrf.mxu0
    %v5185 = vadd.f32 0.0, %v5184
    %v5186 = vpop.f32.mrf.mxu0
    %5187 = vmatprep.mubr.bf16.mxu0 %v4516
    %5188 = vmatmul.mubr.bf16.gmra.mxu0 %v4515
    %v5189 = vpop.f32.mrf.mxu0
    %v5190 = vadd.f32 0.0, %v5189
    %v5191 = vpop.f32.mrf.mxu0
    %v5192 = vpop.f32.mrf.mxu0
    %v5193 = vadd.f32 0.0, %v5192
    %v5194 = vpop.f32.mrf.mxu0
    %5195 = vmatprep.mubr.bf16.mxu0 %v4524
    %5196 = vmatmul.mubr.bf16.gmra.mxu0 %v4523
    %v5197 = vpop.f32.mrf.mxu0
    %v5198 = vadd.f32 0.0, %v5197
    %v5199 = vpop.f32.mrf.mxu0
    %v5200 = vpop.f32.mrf.mxu0
    %v5201 = vadd.f32 0.0, %v5200
    %v5202 = vpop.f32.mrf.mxu0
    %5203 = vmatprep.mubr.bf16.mxu0 %v4532
    %5204 = vmatmul.mubr.bf16.gmra.mxu0 %v4531
    %v5205 = vpop.f32.mrf.mxu0
    %v5206 = vadd.f32 0.0, %v5205
    %v5207 = vpop.f32.mrf.mxu0
    %v5208 = vpop.f32.mrf.mxu0
    %v5209 = vadd.f32 0.0, %v5208
    %v5210 = vpop.f32.mrf.mxu0
    %5211 = vmatprep.mubr.bf16.mxu0 %v4540
    %5212 = vmatmul.mubr.bf16.gmra.mxu0 %v4539
    %v5213 = vpop.f32.mrf.mxu0
    %v5214 = vadd.f32 0.0, %v5213
    %v5215 = vpop.f32.mrf.mxu0
    %v5216 = vpop.f32.mrf.mxu0
    %v5217 = vadd.f32 0.0, %v5216
    %v5218 = vpop.f32.mrf.mxu0
    %5219 = vmatprep.mubr.bf16.mxu0 %v4548
    %5220 = vmatmul.mubr.bf16.gmra.mxu0 %v4547
    %v5221 = vpop.f32.mrf.mxu0
    %v5222 = vadd.f32 0.0, %v5221
    %v5223 = vpop.f32.mrf.mxu0
    %v5224 = vpop.f32.mrf.mxu0
    %v5225 = vadd.f32 0.0, %v5224
    %v5226 = vpop.f32.mrf.mxu0
    %5227 = vmatprep.mubr.bf16.mxu0 %v4556
    %5228 = vmatmul.mubr.bf16.gmra.mxu0 %v4555
    %v5229 = vpop.f32.mrf.mxu0
    %v5230 = vadd.f32 0.0, %v5229
    %v5231 = vpop.f32.mrf.mxu0
    %v5232 = vpop.f32.mrf.mxu0
    %v5233 = vadd.f32 0.0, %v5232
    %v5234 = vpop.f32.mrf.mxu0
    %5235 = vmatprep.mubr.bf16.mxu0 %v4564
    %5236 = vmatmul.mubr.bf16.gmra.mxu0 %v4563
    %v5237 = vpop.f32.mrf.mxu0
    %v5238 = vadd.f32 0.0, %v5237
    %v5239 = vpop.f32.mrf.mxu0
    %v5240 = vpop.f32.mrf.mxu0
    %v5241 = vadd.f32 0.0, %v5240
    %v5242 = vpop.f32.mrf.mxu0
    %5243 = vmatprep.mubr.bf16.mxu0 %v4572
    %5244 = vmatmul.mubr.bf16.gmra.mxu0 %v4571
    %v5245 = vpop.f32.mrf.mxu0
    %v5246 = vadd.f32 0.0, %v5245
    %v5247 = vpop.f32.mrf.mxu0
    %v5248 = vpop.f32.mrf.mxu0
    %v5249 = vadd.f32 0.0, %v5248
    %v5250 = vpop.f32.mrf.mxu0
    %5251 = vmatprep.mubr.bf16.mxu0 %v4580
    %5252 = vmatmul.mubr.bf16.gmra.mxu0 %v4579
    %v5253 = vpop.f32.mrf.mxu0
    %v5254 = vadd.f32 0.0, %v5253
    %v5255 = vpop.f32.mrf.mxu0
    %v5256 = vpop.f32.mrf.mxu0
    %v5257 = vadd.f32 0.0, %v5256
    %v5258 = vpop.f32.mrf.mxu0
    %5259 = vmatprep.mubr.bf16.mxu0 %v4588
    %5260 = vmatmul.mubr.bf16.gmra.mxu0 %v4587
    %v5261 = vpop.f32.mrf.mxu0
    %v5262 = vadd.f32 0.0, %v5261
    %v5263 = vpop.f32.mrf.mxu0
    %v5264 = vpop.f32.mrf.mxu0
    %v5265 = vadd.f32 0.0, %v5264
    %v5266 = vpop.f32.mrf.mxu0
    %5267 = vdwg.mxu0
    %5268 = vmatprep.subr.bf16.mxu0 0
    %5269 = vmatpush1.bf16.msra.mxu0 %v5002
    %5270 = vmatprep.subr.bf16.mxu0 0
    %5271 = vmatpush1.bf16.msra.mxu0 %v5001
    %5272 = vmatprep.subr.bf16.mxu0 0
    %5273 = vmatpush1.bf16.msra.mxu0 %v5000
    %5274 = vmatprep.subr.bf16.mxu0 0
    %5275 = vmatpush1.bf16.msra.mxu0 %v4999
    %5276 = vmatprep.subr.bf16.mxu0 0
    %5277 = vmatpush1.bf16.msra.mxu0 %v4998
    %5278 = vmatprep.subr.bf16.mxu0 0
    %5279 = vmatpush1.bf16.msra.mxu0 %v4997
    %5280 = vmatprep.subr.bf16.mxu0 0
    %5281 = vmatpush1.bf16.msra.mxu0 %v4996
    %5282 = vmatprep.subr.bf16.mxu0 0
    %5283 = vmatpush1.bf16.msra.mxu0 %v4995
    %5284 = vmatprep.subr.bf16.mxu0 0
    %5285 = vmatpush2.bf16.msra.mxu0 %v5010
    %5286 = vmatprep.subr.bf16.mxu0 0
    %5287 = vmatpush2.bf16.msra.mxu0 %v5009
    %5288 = vmatprep.subr.bf16.mxu0 0
    %5289 = vmatpush2.bf16.msra.mxu0 %v5008
    %5290 = vmatprep.subr.bf16.mxu0 0
    %5291 = vmatpush2.bf16.msra.mxu0 %v5007
    %5292 = vmatprep.subr.bf16.mxu0 0
    %5293 = vmatpush2.bf16.msra.mxu0 %v5006
    %5294 = vmatprep.subr.bf16.mxu0 0
    %5295 = vmatpush2.bf16.msra.mxu0 %v5005
    %5296 = vmatprep.subr.bf16.mxu0 0
    %5297 = vmatpush2.bf16.msra.mxu0 %v5004
    %5298 = vmatprep.subr.bf16.mxu0 0
    %5299 = vmatpush2.bf16.msra.mxu0 %v5003
    %5300 = vmatprep.mubr.bf16.mxu0 %v4470
    %5301 = vmatmul.mubr.bf16.gmra.mxu0 %v4469
    %v5302 = vpop.f32.mrf.mxu0
    %v5303 = vadd.f32 %v5142, %v5302
    %v5304 = vpop.f32.mrf.mxu0
    %v5305 = vpop.f32.mrf.mxu0
    %v5306 = vadd.f32 %v5145, %v5305
    %v5307 = vpop.f32.mrf.mxu0
    %5308 = vmatprep.mubr.bf16.mxu0 %v4478
    %5309 = vmatmul.mubr.bf16.gmra.mxu0 %v4477
    %v5310 = vpop.f32.mrf.mxu0
    %v5311 = vadd.f32 %v5150, %v5310
    %v5312 = vpop.f32.mrf.mxu0
    %v5313 = vpop.f32.mrf.mxu0
    %v5314 = vadd.f32 %v5153, %v5313
    %v5315 = vpop.f32.mrf.mxu0
    %5316 = vmatprep.mubr.bf16.mxu0 %v4486
    %5317 = vmatmul.mubr.bf16.gmra.mxu0 %v4485
    %v5318 = vpop.f32.mrf.mxu0
    %v5319 = vadd.f32 %v5158, %v5318
    %v5320 = vpop.f32.mrf.mxu0
    %v5321 = vpop.f32.mrf.mxu0
    %v5322 = vadd.f32 %v5161, %v5321
    %v5323 = vpop.f32.mrf.mxu0
    %5324 = vmatprep.mubr.bf16.mxu0 %v4494
    %5325 = vmatmul.mubr.bf16.gmra.mxu0 %v4493
    %v5326 = vpop.f32.mrf.mxu0
    %v5327 = vadd.f32 %v5166, %v5326
    %v5328 = vpop.f32.mrf.mxu0
    %v5329 = vpop.f32.mrf.mxu0
    %v5330 = vadd.f32 %v5169, %v5329
    %v5331 = vpop.f32.mrf.mxu0
    %5332 = vmatprep.mubr.bf16.mxu0 %v4502
    %5333 = vmatmul.mubr.bf16.gmra.mxu0 %v4501
    %v5334 = vpop.f32.mrf.mxu0
    %v5335 = vadd.f32 %v5174, %v5334
    %v5336 = vpop.f32.mrf.mxu0
    %v5337 = vpop.f32.mrf.mxu0
    %v5338 = vadd.f32 %v5177, %v5337
    %v5339 = vpop.f32.mrf.mxu0
    %5340 = vmatprep.mubr.bf16.mxu0 %v4510
    %5341 = vmatmul.mubr.bf16.gmra.mxu0 %v4509
    %v5342 = vpop.f32.mrf.mxu0
    %v5343 = vadd.f32 %v5182, %v5342
    %v5344 = vpop.f32.mrf.mxu0
    %v5345 = vpop.f32.mrf.mxu0
    %v5346 = vadd.f32 %v5185, %v5345
    %v5347 = vpop.f32.mrf.mxu0
    %5348 = vmatprep.mubr.bf16.mxu0 %v4518
    %5349 = vmatmul.mubr.bf16.gmra.mxu0 %v4517
    %v5350 = vpop.f32.mrf.mxu0
    %v5351 = vadd.f32 %v5190, %v5350
    %v5352 = vpop.f32.mrf.mxu0
    %v5353 = vpop.f32.mrf.mxu0
    %v5354 = vadd.f32 %v5193, %v5353
    %v5355 = vpop.f32.mrf.mxu0
    %5356 = vmatprep.mubr.bf16.mxu0 %v4526
    %5357 = vmatmul.mubr.bf16.gmra.mxu0 %v4525
    %v5358 = vpop.f32.mrf.mxu0
    %v5359 = vadd.f32 %v5198, %v5358
    %v5360 = vpop.f32.mrf.mxu0
    %v5361 = vpop.f32.mrf.mxu0
    %v5362 = vadd.f32 %v5201, %v5361
    %v5363 = vpop.f32.mrf.mxu0
    %5364 = vmatprep.mubr.bf16.mxu0 %v4534
    %5365 = vmatmul.mubr.bf16.gmra.mxu0 %v4533
    %v5366 = vpop.f32.mrf.mxu0
    %v5367 = vadd.f32 %v5206, %v5366
    %v5368 = vpop.f32.mrf.mxu0
    %v5369 = vpop.f32.mrf.mxu0
    %v5370 = vadd.f32 %v5209, %v5369
    %v5371 = vpop.f32.mrf.mxu0
    %5372 = vmatprep.mubr.bf16.mxu0 %v4542
    %5373 = vmatmul.mubr.bf16.gmra.mxu0 %v4541
    %v5374 = vpop.f32.mrf.mxu0
    %v5375 = vadd.f32 %v5214, %v5374
    %v5376 = vpop.f32.mrf.mxu0
    %v5377 = vpop.f32.mrf.mxu0
    %v5378 = vadd.f32 %v5217, %v5377
    %v5379 = vpop.f32.mrf.mxu0
    %5380 = vmatprep.mubr.bf16.mxu0 %v4550
    %5381 = vmatmul.mubr.bf16.gmra.mxu0 %v4549
    %v5382 = vpop.f32.mrf.mxu0
    %v5383 = vadd.f32 %v5222, %v5382
    %v5384 = vpop.f32.mrf.mxu0
    %v5385 = vpop.f32.mrf.mxu0
    %v5386 = vadd.f32 %v5225, %v5385
    %v5387 = vpop.f32.mrf.mxu0
    %5388 = vmatprep.mubr.bf16.mxu0 %v4558
    %5389 = vmatmul.mubr.bf16.gmra.mxu0 %v4557
    %v5390 = vpop.f32.mrf.mxu0
    %v5391 = vadd.f32 %v5230, %v5390
    %v5392 = vpop.f32.mrf.mxu0
    %v5393 = vpop.f32.mrf.mxu0
    %v5394 = vadd.f32 %v5233, %v5393
    %v5395 = vpop.f32.mrf.mxu0
    %5396 = vmatprep.mubr.bf16.mxu0 %v4566
    %5397 = vmatmul.mubr.bf16.gmra.mxu0 %v4565
    %v5398 = vpop.f32.mrf.mxu0
    %v5399 = vadd.f32 %v5238, %v5398
    %v5400 = vpop.f32.mrf.mxu0
    %v5401 = vpop.f32.mrf.mxu0
    %v5402 = vadd.f32 %v5241, %v5401
    %v5403 = vpop.f32.mrf.mxu0
    %5404 = vmatprep.mubr.bf16.mxu0 %v4574
    %5405 = vmatmul.mubr.bf16.gmra.mxu0 %v4573
    %v5406 = vpop.f32.mrf.mxu0
    %v5407 = vadd.f32 %v5246, %v5406
    %v5408 = vpop.f32.mrf.mxu0
    %v5409 = vpop.f32.mrf.mxu0
    %v5410 = vadd.f32 %v5249, %v5409
    %v5411 = vpop.f32.mrf.mxu0
    %5412 = vmatprep.mubr.bf16.mxu0 %v4582
    %5413 = vmatmul.mubr.bf16.gmra.mxu0 %v4581
    %v5414 = vpop.f32.mrf.mxu0
    %v5415 = vadd.f32 %v5254, %v5414
    %v5416 = vpop.f32.mrf.mxu0
    %v5417 = vpop.f32.mrf.mxu0
    %v5418 = vadd.f32 %v5257, %v5417
    %v5419 = vpop.f32.mrf.mxu0
    %5420 = vmatprep.mubr.bf16.mxu0 %v4590
    %5421 = vmatmul.mubr.bf16.gmra.mxu0 %v4589
    %v5422 = vpop.f32.mrf.mxu0
    %v5423 = vadd.f32 %v5262, %v5422
    %v5424 = vpop.f32.mrf.mxu0
    %v5425 = vpop.f32.mrf.mxu0
    %v5426 = vadd.f32 %v5265, %v5425
    %v5427 = vpop.f32.mrf.mxu0
    %5428 = vdwg.mxu0
    %5429 = vmatprep.subr.bf16.mxu0 0
    %5430 = vmatpush1.bf16.msra.mxu0 %v5018
    %5431 = vmatprep.subr.bf16.mxu0 0
    %5432 = vmatpush1.bf16.msra.mxu0 %v5017
    %5433 = vmatprep.subr.bf16.mxu0 0
    %5434 = vmatpush1.bf16.msra.mxu0 %v5016
    %5435 = vmatprep.subr.bf16.mxu0 0
    %5436 = vmatpush1.bf16.msra.mxu0 %v5015
    %5437 = vmatprep.subr.bf16.mxu0 0
    %5438 = vmatpush1.bf16.msra.mxu0 %v5014
    %5439 = vmatprep.subr.bf16.mxu0 0
    %5440 = vmatpush1.bf16.msra.mxu0 %v5013
    %5441 = vmatprep.subr.bf16.mxu0 0
    %5442 = vmatpush1.bf16.msra.mxu0 %v5012
    %5443 = vmatprep.subr.bf16.mxu0 0
    %5444 = vmatpush1.bf16.msra.mxu0 %v5011
    %5445 = vmatprep.subr.bf16.mxu0 0
    %5446 = vmatpush2.bf16.msra.mxu0 %v5026
    %5447 = vmatprep.subr.bf16.mxu0 0
    %5448 = vmatpush2.bf16.msra.mxu0 %v5025
    %5449 = vmatprep.subr.bf16.mxu0 0
    %5450 = vmatpush2.bf16.msra.mxu0 %v5024
    %5451 = vmatprep.subr.bf16.mxu0 0
    %5452 = vmatpush2.bf16.msra.mxu0 %v5023
    %5453 = vmatprep.subr.bf16.mxu0 0
    %5454 = vmatpush2.bf16.msra.mxu0 %v5022
    %5455 = vmatprep.subr.bf16.mxu0 0
    %5456 = vmatpush2.bf16.msra.mxu0 %v5021
    %5457 = vmatprep.subr.bf16.mxu0 0
    %5458 = vmatpush2.bf16.msra.mxu0 %v5020
    %5459 = vmatprep.subr.bf16.mxu0 0
    %5460 = vmatpush2.bf16.msra.mxu0 %v5019
    %5461 = vmatprep.mubr.bf16.mxu0 %v4472
    %5462 = vmatmul.mubr.bf16.gmra.mxu0 %v4471
    %v5463 = vpop.f32.mrf.mxu0
    %v5464 = vadd.f32 %v5303, %v5463
    %v5465 = vpop.f32.mrf.mxu0
    %v5466 = vpop.f32.mrf.mxu0
    %v5467 = vadd.f32 %v5306, %v5466
    %v5468 = vpop.f32.mrf.mxu0
    %5469 = vmatprep.mubr.bf16.mxu0 %v4480
    %5470 = vmatmul.mubr.bf16.gmra.mxu0 %v4479
    %v5471 = vpop.f32.mrf.mxu0
    %v5472 = vadd.f32 %v5311, %v5471
    %v5473 = vpop.f32.mrf.mxu0
    %v5474 = vpop.f32.mrf.mxu0
    %v5475 = vadd.f32 %v5314, %v5474
    %v5476 = vpop.f32.mrf.mxu0
    %5477 = vmatprep.mubr.bf16.mxu0 %v4488
    %5478 = vmatmul.mubr.bf16.gmra.mxu0 %v4487
    %v5479 = vpop.f32.mrf.mxu0
    %v5480 = vadd.f32 %v5319, %v5479
    %v5481 = vpop.f32.mrf.mxu0
    %v5482 = vpop.f32.mrf.mxu0
    %v5483 = vadd.f32 %v5322, %v5482
    %v5484 = vpop.f32.mrf.mxu0
    %5485 = vmatprep.mubr.bf16.mxu0 %v4496
    %5486 = vmatmul.mubr.bf16.gmra.mxu0 %v4495
    %v5487 = vpop.f32.mrf.mxu0
    %v5488 = vadd.f32 %v5327, %v5487
    %v5489 = vpop.f32.mrf.mxu0
    %v5490 = vpop.f32.mrf.mxu0
    %v5491 = vadd.f32 %v5330, %v5490
    %v5492 = vpop.f32.mrf.mxu0
    %5493 = vmatprep.mubr.bf16.mxu0 %v4504
    %5494 = vmatmul.mubr.bf16.gmra.mxu0 %v4503
    %v5495 = vpop.f32.mrf.mxu0
    %v5496 = vadd.f32 %v5335, %v5495
    %v5497 = vpop.f32.mrf.mxu0
    %v5498 = vpop.f32.mrf.mxu0
    %v5499 = vadd.f32 %v5338, %v5498
    %v5500 = vpop.f32.mrf.mxu0
    %5501 = vmatprep.mubr.bf16.mxu0 %v4512
    %5502 = vmatmul.mubr.bf16.gmra.mxu0 %v4511
    %v5503 = vpop.f32.mrf.mxu0
    %v5504 = vadd.f32 %v5343, %v5503
    %v5505 = vpop.f32.mrf.mxu0
    %v5506 = vpop.f32.mrf.mxu0
    %v5507 = vadd.f32 %v5346, %v5506
    %v5508 = vpop.f32.mrf.mxu0
    %5509 = vmatprep.mubr.bf16.mxu0 %v4520
    %5510 = vmatmul.mubr.bf16.gmra.mxu0 %v4519
    %v5511 = vpop.f32.mrf.mxu0
    %v5512 = vadd.f32 %v5351, %v5511
    %v5513 = vpop.f32.mrf.mxu0
    %v5514 = vpop.f32.mrf.mxu0
    %v5515 = vadd.f32 %v5354, %v5514
    %v5516 = vpop.f32.mrf.mxu0
    %5517 = vmatprep.mubr.bf16.mxu0 %v4528
    %5518 = vmatmul.mubr.bf16.gmra.mxu0 %v4527
    %v5519 = vpop.f32.mrf.mxu0
    %v5520 = vadd.f32 %v5359, %v5519
    %v5521 = vpop.f32.mrf.mxu0
    %v5522 = vpop.f32.mrf.mxu0
    %v5523 = vadd.f32 %v5362, %v5522
    %v5524 = vpop.f32.mrf.mxu0
    %5525 = vmatprep.mubr.bf16.mxu0 %v4536
    %5526 = vmatmul.mubr.bf16.gmra.mxu0 %v4535
    %v5527 = vpop.f32.mrf.mxu0
    %v5528 = vadd.f32 %v5367, %v5527
    %v5529 = vpop.f32.mrf.mxu0
    %v5530 = vpop.f32.mrf.mxu0
    %v5531 = vadd.f32 %v5370, %v5530
    %v5532 = vpop.f32.mrf.mxu0
    %5533 = vmatprep.mubr.bf16.mxu0 %v4544
    %5534 = vmatmul.mubr.bf16.gmra.mxu0 %v4543
    %v5535 = vpop.f32.mrf.mxu0
    %v5536 = vadd.f32 %v5375, %v5535
    %v5537 = vpop.f32.mrf.mxu0
    %v5538 = vpop.f32.mrf.mxu0
    %v5539 = vadd.f32 %v5378, %v5538
    %v5540 = vpop.f32.mrf.mxu0
    %5541 = vmatprep.mubr.bf16.mxu0 %v4552
    %5542 = vmatmul.mubr.bf16.gmra.mxu0 %v4551
    %v5543 = vpop.f32.mrf.mxu0
    %v5544 = vadd.f32 %v5383, %v5543
    %v5545 = vpop.f32.mrf.mxu0
    %v5546 = vpop.f32.mrf.mxu0
    %v5547 = vadd.f32 %v5386, %v5546
    %v5548 = vpop.f32.mrf.mxu0
    %5549 = vmatprep.mubr.bf16.mxu0 %v4560
    %5550 = vmatmul.mubr.bf16.gmra.mxu0 %v4559
    %v5551 = vpop.f32.mrf.mxu0
    %v5552 = vadd.f32 %v5391, %v5551
    %v5553 = vpop.f32.mrf.mxu0
    %v5554 = vpop.f32.mrf.mxu0
    %v5555 = vadd.f32 %v5394, %v5554
    %v5556 = vpop.f32.mrf.mxu0
    %5557 = vmatprep.mubr.bf16.mxu0 %v4568
    %5558 = vmatmul.mubr.bf16.gmra.mxu0 %v4567
    %v5559 = vpop.f32.mrf.mxu0
    %v5560 = vadd.f32 %v5399, %v5559
    %v5561 = vpop.f32.mrf.mxu0
    %v5562 = vpop.f32.mrf.mxu0
    %v5563 = vadd.f32 %v5402, %v5562
    %v5564 = vpop.f32.mrf.mxu0
    %5565 = vmatprep.mubr.bf16.mxu0 %v4576
    %5566 = vmatmul.mubr.bf16.gmra.mxu0 %v4575
    %v5567 = vpop.f32.mrf.mxu0
    %v5568 = vadd.f32 %v5407, %v5567
    %v5569 = vpop.f32.mrf.mxu0
    %v5570 = vpop.f32.mrf.mxu0
    %v5571 = vadd.f32 %v5410, %v5570
    %v5572 = vpop.f32.mrf.mxu0
    %5573 = vmatprep.mubr.bf16.mxu0 %v4584
    %5574 = vmatmul.mubr.bf16.gmra.mxu0 %v4583
    %v5575 = vpop.f32.mrf.mxu0
    %v5576 = vadd.f32 %v5415, %v5575
    %v5577 = vpop.f32.mrf.mxu0
    %v5578 = vpop.f32.mrf.mxu0
    %v5579 = vadd.f32 %v5418, %v5578
    %v5580 = vpop.f32.mrf.mxu0
    %5581 = vmatprep.mubr.bf16.mxu0 %v4592
    %5582 = vmatmul.mubr.bf16.gmra.mxu0 %v4591
    %v5583 = vpop.f32.mrf.mxu0
    %v5584 = vadd.f32 %v5423, %v5583
    %v5585 = vpop.f32.mrf.mxu0
    %v5586 = vpop.f32.mrf.mxu0
    %v5587 = vadd.f32 %v5426, %v5586
    %v5588 = vpop.f32.mrf.mxu0
    %5589 = vdwg.mxu0
    %5590 = vmatprep.subr.bf16.mxu0 0
    %5591 = vmatpush1.bf16.msra.mxu0 %v5034
    %5592 = vmatprep.subr.bf16.mxu0 0
    %5593 = vmatpush1.bf16.msra.mxu0 %v5033
    %5594 = vmatprep.subr.bf16.mxu0 0
    %5595 = vmatpush1.bf16.msra.mxu0 %v5032
    %5596 = vmatprep.subr.bf16.mxu0 0
    %5597 = vmatpush1.bf16.msra.mxu0 %v5031
    %5598 = vmatprep.subr.bf16.mxu0 0
    %5599 = vmatpush1.bf16.msra.mxu0 %v5030
    %5600 = vmatprep.subr.bf16.mxu0 0
    %5601 = vmatpush1.bf16.msra.mxu0 %v5029
    %5602 = vmatprep.subr.bf16.mxu0 0
    %5603 = vmatpush1.bf16.msra.mxu0 %v5028
    %5604 = vmatprep.subr.bf16.mxu0 0
    %5605 = vmatpush1.bf16.msra.mxu0 %v5027
    %5606 = vmatprep.subr.bf16.mxu0 0
    %5607 = vmatpush2.bf16.msra.mxu0 %v5042
    %5608 = vmatprep.subr.bf16.mxu0 0
    %5609 = vmatpush2.bf16.msra.mxu0 %v5041
    %5610 = vmatprep.subr.bf16.mxu0 0
    %5611 = vmatpush2.bf16.msra.mxu0 %v5040
    %5612 = vmatprep.subr.bf16.mxu0 0
    %5613 = vmatpush2.bf16.msra.mxu0 %v5039
    %5614 = vmatprep.subr.bf16.mxu0 0
    %5615 = vmatpush2.bf16.msra.mxu0 %v5038
    %5616 = vmatprep.subr.bf16.mxu0 0
    %5617 = vmatpush2.bf16.msra.mxu0 %v5037
    %5618 = vmatprep.subr.bf16.mxu0 0
    %5619 = vmatpush2.bf16.msra.mxu0 %v5036
    %5620 = vmatprep.subr.bf16.mxu0 0
    %5621 = vmatpush2.bf16.msra.mxu0 %v5035
    %5622 = vmatprep.mubr.bf16.mxu0 %v4474
    %5623 = vmatmul.mubr.bf16.gmra.mxu0 %v4473
    %v5624 = vpop.f32.mrf.mxu0
    %v5625 = vadd.f32 %v5464, %v5624
    %v5626 = vpop.f32.mrf.mxu0
    %v5627 = vpop.f32.mrf.mxu0
    %v5628 = vadd.f32 %v5467, %v5627
    %v5629 = vpop.f32.mrf.mxu0
    %5630 = vmatprep.mubr.bf16.mxu0 %v4482
    %5631 = vmatmul.mubr.bf16.gmra.mxu0 %v4481
    %v5632 = vpop.f32.mrf.mxu0
    %v5633 = vadd.f32 %v5472, %v5632
    %v5634 = vpop.f32.mrf.mxu0
    %v5635 = vpop.f32.mrf.mxu0
    %v5636 = vadd.f32 %v5475, %v5635
    %v5637 = vpop.f32.mrf.mxu0
    %5638 = vmatprep.mubr.bf16.mxu0 %v4490
    %5639 = vmatmul.mubr.bf16.gmra.mxu0 %v4489
    %v5640 = vpop.f32.mrf.mxu0
    %v5641 = vadd.f32 %v5480, %v5640
    %v5642 = vpop.f32.mrf.mxu0
    %v5643 = vpop.f32.mrf.mxu0
    %v5644 = vadd.f32 %v5483, %v5643
    %v5645 = vpop.f32.mrf.mxu0
    %5646 = vmatprep.mubr.bf16.mxu0 %v4498
    %5647 = vmatmul.mubr.bf16.gmra.mxu0 %v4497
    %v5648 = vpop.f32.mrf.mxu0
    %v5649 = vadd.f32 %v5488, %v5648
    %v5650 = vpop.f32.mrf.mxu0
    %v5651 = vpop.f32.mrf.mxu0
    %v5652 = vadd.f32 %v5491, %v5651
    %v5653 = vpop.f32.mrf.mxu0
    %5654 = vmatprep.mubr.bf16.mxu0 %v4506
    %5655 = vmatmul.mubr.bf16.gmra.mxu0 %v4505
    %v5656 = vpop.f32.mrf.mxu0
    %v5657 = vadd.f32 %v5496, %v5656
    %v5658 = vpop.f32.mrf.mxu0
    %v5659 = vpop.f32.mrf.mxu0
    %v5660 = vadd.f32 %v5499, %v5659
    %v5661 = vpop.f32.mrf.mxu0
    %5662 = vmatprep.mubr.bf16.mxu0 %v4514
    %5663 = vmatmul.mubr.bf16.gmra.mxu0 %v4513
    %v5664 = vpop.f32.mrf.mxu0
    %v5665 = vadd.f32 %v5504, %v5664
    %v5666 = vpop.f32.mrf.mxu0
    %v5667 = vpop.f32.mrf.mxu0
    %v5668 = vadd.f32 %v5507, %v5667
    %v5669 = vpop.f32.mrf.mxu0
    %5670 = vmatprep.mubr.bf16.mxu0 %v4522
    %5671 = vmatmul.mubr.bf16.gmra.mxu0 %v4521
    %v5672 = vpop.f32.mrf.mxu0
    %v5673 = vadd.f32 %v5512, %v5672
    %v5674 = vpop.f32.mrf.mxu0
    %v5675 = vpop.f32.mrf.mxu0
    %v5676 = vadd.f32 %v5515, %v5675
    %v5677 = vpop.f32.mrf.mxu0
    %5678 = vmatprep.mubr.bf16.mxu0 %v4530
    %5679 = vmatmul.mubr.bf16.gmra.mxu0 %v4529
    %v5680 = vpop.f32.mrf.mxu0
    %v5681 = vadd.f32 %v5520, %v5680
    %v5682 = vpop.f32.mrf.mxu0
    %v5683 = vpop.f32.mrf.mxu0
    %v5684 = vadd.f32 %v5523, %v5683
    %v5685 = vpop.f32.mrf.mxu0
    %5686 = vmatprep.mubr.bf16.mxu0 %v4538
    %5687 = vmatmul.mubr.bf16.gmra.mxu0 %v4537
    %v5688 = vpop.f32.mrf.mxu0
    %v5689 = vadd.f32 %v5528, %v5688
    %v5690 = vpop.f32.mrf.mxu0
    %v5691 = vpop.f32.mrf.mxu0
    %v5692 = vadd.f32 %v5531, %v5691
    %v5693 = vpop.f32.mrf.mxu0
    %5694 = vmatprep.mubr.bf16.mxu0 %v4546
    %5695 = vmatmul.mubr.bf16.gmra.mxu0 %v4545
    %v5696 = vpop.f32.mrf.mxu0
    %v5697 = vadd.f32 %v5536, %v5696
    %v5698 = vpop.f32.mrf.mxu0
    %v5699 = vpop.f32.mrf.mxu0
    %v5700 = vadd.f32 %v5539, %v5699
    %v5701 = vpop.f32.mrf.mxu0
    %5702 = vmatprep.mubr.bf16.mxu0 %v4554
    %5703 = vmatmul.mubr.bf16.gmra.mxu0 %v4553
    %v5704 = vpop.f32.mrf.mxu0
    %v5705 = vadd.f32 %v5544, %v5704
    %v5706 = vpop.f32.mrf.mxu0
    %v5707 = vpop.f32.mrf.mxu0
    %v5708 = vadd.f32 %v5547, %v5707
    %v5709 = vpop.f32.mrf.mxu0
    %5710 = vmatprep.mubr.bf16.mxu0 %v4562
    %5711 = vmatmul.mubr.bf16.gmra.mxu0 %v4561
    %v5712 = vpop.f32.mrf.mxu0
    %v5713 = vadd.f32 %v5552, %v5712
    %v5714 = vpop.f32.mrf.mxu0
    %v5715 = vpop.f32.mrf.mxu0
    %v5716 = vadd.f32 %v5555, %v5715
    %v5717 = vpop.f32.mrf.mxu0
    %5718 = vmatprep.mubr.bf16.mxu0 %v4570
    %5719 = vmatmul.mubr.bf16.gmra.mxu0 %v4569
    %v5720 = vpop.f32.mrf.mxu0
    %v5721 = vadd.f32 %v5560, %v5720
    %v5722 = vpop.f32.mrf.mxu0
    %v5723 = vpop.f32.mrf.mxu0
    %v5724 = vadd.f32 %v5563, %v5723
    %v5725 = vpop.f32.mrf.mxu0
    %5726 = vmatprep.mubr.bf16.mxu0 %v4578
    %5727 = vmatmul.mubr.bf16.gmra.mxu0 %v4577
    %v5728 = vpop.f32.mrf.mxu0
    %v5729 = vadd.f32 %v5568, %v5728
    %v5730 = vpop.f32.mrf.mxu0
    %v5731 = vpop.f32.mrf.mxu0
    %v5732 = vadd.f32 %v5571, %v5731
    %v5733 = vpop.f32.mrf.mxu0
    %5734 = vmatprep.mubr.bf16.mxu0 %v4586
    %5735 = vmatmul.mubr.bf16.gmra.mxu0 %v4585
    %v5736 = vpop.f32.mrf.mxu0
    %v5737 = vadd.f32 %v5576, %v5736
    %v5738 = vpop.f32.mrf.mxu0
    %v5739 = vpop.f32.mrf.mxu0
    %v5740 = vadd.f32 %v5579, %v5739
    %v5741 = vpop.f32.mrf.mxu0
    %5742 = vmatprep.mubr.bf16.mxu0 %v4594
    %5743 = vmatmul.mubr.bf16.gmra.mxu0 %v4593
    %v5744 = vpop.f32.mrf.mxu0
    %v5745 = vadd.f32 %v5584, %v5744
    %v5746 = vpop.f32.mrf.mxu0
    %v5747 = vpop.f32.mrf.mxu0
    %v5748 = vadd.f32 %v5587, %v5747
    %v5749 = vpop.f32.mrf.mxu0
    %5750 = vdwg.mxu0
    %v5879 = vunpack.c.l.b16 %v2931
    %v5880 = vunpack.c.l.b16 %v2932
    %v5881 = vunpack.c.l.b16 %v2933
    %v5882 = vunpack.c.l.b16 %v2934
    %v5883 = vunpack.c.l.b16 %v2935
    %v5884 = vunpack.c.l.b16 %v2936
    %v5885 = vunpack.c.l.b16 %v2937
    %v5886 = vunpack.c.l.b16 %v2938
    %v5887 = vunpack.c.l.b16 %v2939
    %v5888 = vunpack.c.l.b16 %v2940
    %v5889 = vunpack.c.l.b16 %v2941
    %v5890 = vunpack.c.l.b16 %v2942
    %v5891 = vunpack.c.l.b16 %v2943
    %v5892 = vunpack.c.l.b16 %v2944
    %v5893 = vunpack.c.l.b16 %v2945
    %v5894 = vunpack.c.l.b16 %v2946
    %v5895 = vunpack.c.l.b16 %v2947
    %v5896 = vunpack.c.l.b16 %v2948
    %v5897 = vunpack.c.l.b16 %v2949
    %v5898 = vunpack.c.l.b16 %v2950
    %v5899 = vunpack.c.l.b16 %v2951
    %v5900 = vunpack.c.l.b16 %v2952
    %v5901 = vunpack.c.l.b16 %v2953
    %v5902 = vunpack.c.l.b16 %v2954
    %v5903 = vunpack.c.l.b16 %v2955
    %v5904 = vunpack.c.l.b16 %v2956
    %v5905 = vunpack.c.l.b16 %v2957
    %v5906 = vunpack.c.l.b16 %v2958
    %v5907 = vunpack.c.l.b16 %v2959
    %v5908 = vunpack.c.l.b16 %v2960
    %v5909 = vunpack.c.l.b16 %v2961
    %v5910 = vunpack.c.l.b16 %v2962
    %v5911 = vunpack.c.l.b16 %v2963
    %v5912 = vunpack.c.l.b16 %v2964
    %v5913 = vunpack.c.l.b16 %v2965
    %v5914 = vunpack.c.l.b16 %v2966
    %v5915 = vunpack.c.l.b16 %v2967
    %v5916 = vunpack.c.l.b16 %v2968
    %v5917 = vunpack.c.l.b16 %v2969
    %v5918 = vunpack.c.l.b16 %v2970
    %v5919 = vunpack.c.l.b16 %v2971
    %v5920 = vunpack.c.l.b16 %v2972
    %v5921 = vunpack.c.l.b16 %v2973
    %v5922 = vunpack.c.l.b16 %v2974
    %v5923 = vunpack.c.l.b16 %v2975
    %v5924 = vunpack.c.l.b16 %v2976
    %v5925 = vunpack.c.l.b16 %v2977
    %v5926 = vunpack.c.l.b16 %v2978
    %v5927 = vunpack.c.l.b16 %v2979
    %v5928 = vunpack.c.l.b16 %v2980
    %v5929 = vunpack.c.l.b16 %v2981
    %v5930 = vunpack.c.l.b16 %v2982
    %v5931 = vunpack.c.l.b16 %v2983
    %v5932 = vunpack.c.l.b16 %v2984
    %v5933 = vunpack.c.l.b16 %v2985
    %v5934 = vunpack.c.l.b16 %v2986
    %v5935 = vunpack.c.l.b16 %v2987
    %v5936 = vunpack.c.l.b16 %v2988
    %v5937 = vunpack.c.l.b16 %v2989
    %v5938 = vunpack.c.l.b16 %v2990
    %v5939 = vunpack.c.l.b16 %v2991
    %v5940 = vunpack.c.l.b16 %v2992
    %v5941 = vunpack.c.l.b16 %v2993
    %v5942 = vunpack.c.l.b16 %v2994
    %v5943 = vunpack.c.l.b16 %v2995
    %v5944 = vunpack.c.l.b16 %v2996
    %v5945 = vunpack.c.l.b16 %v2997
    %v5946 = vunpack.c.l.b16 %v2998
    %v5947 = vunpack.c.l.b16 %v2999
    %v5948 = vunpack.c.l.b16 %v3000
    %v5949 = vunpack.c.l.b16 %v3001
    %v5950 = vunpack.c.l.b16 %v3002
    %v5951 = vunpack.c.l.b16 %v3003
    %v5952 = vunpack.c.l.b16 %v3004
    %v5953 = vunpack.c.l.b16 %v3005
    %v5954 = vunpack.c.l.b16 %v3006
    %v5955 = vunpack.c.l.b16 %v3007
    %v5956 = vunpack.c.l.b16 %v3008
    %v5957 = vunpack.c.l.b16 %v3009
    %v5958 = vunpack.c.l.b16 %v3010
    %v5959 = vunpack.c.l.b16 %v3011
    %v5960 = vunpack.c.l.b16 %v3012
    %v5961 = vunpack.c.l.b16 %v3013
    %v5962 = vunpack.c.l.b16 %v3014
    %v5963 = vunpack.c.l.b16 %v3015
    %v5964 = vunpack.c.l.b16 %v3016
    %v5965 = vunpack.c.l.b16 %v3017
    %v5966 = vunpack.c.l.b16 %v3018
    %v5967 = vunpack.c.l.b16 %v3019
    %v5968 = vunpack.c.l.b16 %v3020
    %v5969 = vunpack.c.l.b16 %v3021
    %v5970 = vunpack.c.l.b16 %v3022
    %v5971 = vunpack.c.l.b16 %v3023
    %v5972 = vunpack.c.l.b16 %v3024
    %v5973 = vunpack.c.l.b16 %v3025
    %v5974 = vunpack.c.l.b16 %v3026
    %v5975 = vunpack.c.l.b16 %v3027
    %v5976 = vunpack.c.l.b16 %v3028
    %v5977 = vunpack.c.l.b16 %v3029
    %v5978 = vunpack.c.l.b16 %v3030
    %v5979 = vunpack.c.l.b16 %v3031
    %v5980 = vunpack.c.l.b16 %v3032
    %v5981 = vunpack.c.l.b16 %v3033
    %v5982 = vunpack.c.l.b16 %v3034
    %v5983 = vunpack.c.l.b16 %v3035
    %v5984 = vunpack.c.l.b16 %v3036
    %v5985 = vunpack.c.l.b16 %v3037
    %v5986 = vunpack.c.l.b16 %v3038
    %v5987 = vunpack.c.l.b16 %v3039
    %v5988 = vunpack.c.l.b16 %v3040
    %v5989 = vunpack.c.l.b16 %v3041
    %v5990 = vunpack.c.l.b16 %v3042
    %v5991 = vunpack.c.l.b16 %v3043
    %v5992 = vunpack.c.l.b16 %v3044
    %v5993 = vunpack.c.l.b16 %v3045
    %v5994 = vunpack.c.l.b16 %v3046
    %v5995 = vunpack.c.l.b16 %v3047
    %v5996 = vunpack.c.l.b16 %v3048
    %v5997 = vunpack.c.l.b16 %v3049
    %v5998 = vunpack.c.l.b16 %v3050
    %v5999 = vunpack.c.l.b16 %v3051
    %v6000 = vunpack.c.l.b16 %v3052
    %v6001 = vunpack.c.l.b16 %v3053
    %v6002 = vunpack.c.l.b16 %v3054
    %v6003 = vunpack.c.l.b16 %v3055
    %v6004 = vunpack.c.l.b16 %v3056
    %v6005 = vunpack.c.l.b16 %v3057
    %v6006 = vunpack.c.l.b16 %v3058
    %v6007 = vpack.c.b16 %v5880, %v5879
    %v6008 = vpack.c.b16 %v5882, %v5881
    %v6009 = vpack.c.b16 %v5884, %v5883
    %v6010 = vpack.c.b16 %v5886, %v5885
    %v6011 = vpack.c.b16 %v5888, %v5887
    %v6012 = vpack.c.b16 %v5890, %v5889
    %v6013 = vpack.c.b16 %v5892, %v5891
    %v6014 = vpack.c.b16 %v5894, %v5893
    %v6015 = vpack.c.b16 %v5896, %v5895
    %v6016 = vpack.c.b16 %v5898, %v5897
    %v6017 = vpack.c.b16 %v5900, %v5899
    %v6018 = vpack.c.b16 %v5902, %v5901
    %v6019 = vpack.c.b16 %v5904, %v5903
    %v6020 = vpack.c.b16 %v5906, %v5905
    %v6021 = vpack.c.b16 %v5908, %v5907
    %v6022 = vpack.c.b16 %v5910, %v5909
    %v6023 = vpack.c.b16 %v5912, %v5911
    %v6024 = vpack.c.b16 %v5914, %v5913
    %v6025 = vpack.c.b16 %v5916, %v5915
    %v6026 = vpack.c.b16 %v5918, %v5917
    %v6027 = vpack.c.b16 %v5920, %v5919
    %v6028 = vpack.c.b16 %v5922, %v5921
    %v6029 = vpack.c.b16 %v5924, %v5923
    %v6030 = vpack.c.b16 %v5926, %v5925
    %v6031 = vpack.c.b16 %v5928, %v5927
    %v6032 = vpack.c.b16 %v5930, %v5929
    %v6033 = vpack.c.b16 %v5932, %v5931
    %v6034 = vpack.c.b16 %v5934, %v5933
    %v6035 = vpack.c.b16 %v5936, %v5935
    %v6036 = vpack.c.b16 %v5938, %v5937
    %v6037 = vpack.c.b16 %v5940, %v5939
    %v6038 = vpack.c.b16 %v5942, %v5941
    %v6039 = vpack.c.b16 %v5944, %v5943
    %v6040 = vpack.c.b16 %v5946, %v5945
    %v6041 = vpack.c.b16 %v5948, %v5947
    %v6042 = vpack.c.b16 %v5950, %v5949
    %v6043 = vpack.c.b16 %v5952, %v5951
    %v6044 = vpack.c.b16 %v5954, %v5953
    %v6045 = vpack.c.b16 %v5956, %v5955
    %v6046 = vpack.c.b16 %v5958, %v5957
    %v6047 = vpack.c.b16 %v5960, %v5959
    %v6048 = vpack.c.b16 %v5962, %v5961
    %v6049 = vpack.c.b16 %v5964, %v5963
    %v6050 = vpack.c.b16 %v5966, %v5965
    %v6051 = vpack.c.b16 %v5968, %v5967
    %v6052 = vpack.c.b16 %v5970, %v5969
    %v6053 = vpack.c.b16 %v5972, %v5971
    %v6054 = vpack.c.b16 %v5974, %v5973
    %v6055 = vpack.c.b16 %v5976, %v5975
    %v6056 = vpack.c.b16 %v5978, %v5977
    %v6057 = vpack.c.b16 %v5980, %v5979
    %v6058 = vpack.c.b16 %v5982, %v5981
    %v6059 = vpack.c.b16 %v5984, %v5983
    %v6060 = vpack.c.b16 %v5986, %v5985
    %v6061 = vpack.c.b16 %v5988, %v5987
    %v6062 = vpack.c.b16 %v5990, %v5989
    %v6063 = vpack.c.b16 %v5992, %v5991
    %v6064 = vpack.c.b16 %v5994, %v5993
    %v6065 = vpack.c.b16 %v5996, %v5995
    %v6066 = vpack.c.b16 %v5998, %v5997
    %v6067 = vpack.c.b16 %v6000, %v5999
    %v6068 = vpack.c.b16 %v6002, %v6001
    %v6069 = vpack.c.b16 %v6004, %v6003
    %v6070 = vpack.c.b16 %v6006, %v6005
    %6135 = vmatprep.subr.bf16.mxu0 0
    %6136 = vmatpush1.bf16.msra.mxu0 %v6014
    %6137 = vmatprep.subr.bf16.mxu0 0
    %6138 = vmatpush1.bf16.msra.mxu0 %v6013
    %6139 = vmatprep.subr.bf16.mxu0 0
    %6140 = vmatpush1.bf16.msra.mxu0 %v6012
    %6141 = vmatprep.subr.bf16.mxu0 0
    %6142 = vmatpush1.bf16.msra.mxu0 %v6011
    %6143 = vmatprep.subr.bf16.mxu0 0
    %6144 = vmatpush1.bf16.msra.mxu0 %v6010
    %6145 = vmatprep.subr.bf16.mxu0 0
    %6146 = vmatpush1.bf16.msra.mxu0 %v6009
    %6147 = vmatprep.subr.bf16.mxu0 0
    %6148 = vmatpush1.bf16.msra.mxu0 %v6008
    %6149 = vmatprep.subr.bf16.mxu0 0
    %6150 = vmatpush1.bf16.msra.mxu0 %v6007
    %6151 = vmatprep.subr.bf16.mxu0 0
    %6152 = vmatpush2.bf16.msra.mxu0 %v6022
    %6153 = vmatprep.subr.bf16.mxu0 0
    %6154 = vmatpush2.bf16.msra.mxu0 %v6021
    %6155 = vmatprep.subr.bf16.mxu0 0
    %6156 = vmatpush2.bf16.msra.mxu0 %v6020
    %6157 = vmatprep.subr.bf16.mxu0 0
    %6158 = vmatpush2.bf16.msra.mxu0 %v6019
    %6159 = vmatprep.subr.bf16.mxu0 0
    %6160 = vmatpush2.bf16.msra.mxu0 %v6018
    %6161 = vmatprep.subr.bf16.mxu0 0
    %6162 = vmatpush2.bf16.msra.mxu0 %v6017
    %6163 = vmatprep.subr.bf16.mxu0 0
    %6164 = vmatpush2.bf16.msra.mxu0 %v6016
    %6165 = vmatprep.subr.bf16.mxu0 0
    %6166 = vmatpush2.bf16.msra.mxu0 %v6015
    %6167 = vmatprep.mubr.bf16.mxu0 %v2804
    %6168 = vmatmul.mubr.bf16.gmra.mxu0 %v2803
    %v6169 = vpop.f32.mrf.mxu0
    %v6170 = vadd.f32 %v5625, %v6169
    %v6171 = vpop.f32.mrf.mxu0
    %v6172 = vpop.f32.mrf.mxu0
    %v6173 = vadd.f32 %v5628, %v6172
    %v6174 = vpop.f32.mrf.mxu0
    %6175 = vmatprep.mubr.bf16.mxu0 %v2812
    %6176 = vmatmul.mubr.bf16.gmra.mxu0 %v2811
    %v6177 = vpop.f32.mrf.mxu0
    %v6178 = vadd.f32 %v5633, %v6177
    %v6179 = vpop.f32.mrf.mxu0
    %v6180 = vpop.f32.mrf.mxu0
    %v6181 = vadd.f32 %v5636, %v6180
    %v6182 = vpop.f32.mrf.mxu0
    %6183 = vmatprep.mubr.bf16.mxu0 %v2820
    %6184 = vmatmul.mubr.bf16.gmra.mxu0 %v2819
    %v6185 = vpop.f32.mrf.mxu0
    %v6186 = vadd.f32 %v5641, %v6185
    %v6187 = vpop.f32.mrf.mxu0
    %v6188 = vpop.f32.mrf.mxu0
    %v6189 = vadd.f32 %v5644, %v6188
    %v6190 = vpop.f32.mrf.mxu0
    %6191 = vmatprep.mubr.bf16.mxu0 %v2828
    %6192 = vmatmul.mubr.bf16.gmra.mxu0 %v2827
    %v6193 = vpop.f32.mrf.mxu0
    %v6194 = vadd.f32 %v5649, %v6193
    %v6195 = vpop.f32.mrf.mxu0
    %v6196 = vpop.f32.mrf.mxu0
    %v6197 = vadd.f32 %v5652, %v6196
    %v6198 = vpop.f32.mrf.mxu0
    %6199 = vmatprep.mubr.bf16.mxu0 %v2836
    %6200 = vmatmul.mubr.bf16.gmra.mxu0 %v2835
    %v6201 = vpop.f32.mrf.mxu0
    %v6202 = vadd.f32 %v5657, %v6201
    %v6203 = vpop.f32.mrf.mxu0
    %v6204 = vpop.f32.mrf.mxu0
    %v6205 = vadd.f32 %v5660, %v6204
    %v6206 = vpop.f32.mrf.mxu0
    %6207 = vmatprep.mubr.bf16.mxu0 %v2844
    %6208 = vmatmul.mubr.bf16.gmra.mxu0 %v2843
    %v6209 = vpop.f32.mrf.mxu0
    %v6210 = vadd.f32 %v5665, %v6209
    %v6211 = vpop.f32.mrf.mxu0
    %v6212 = vpop.f32.mrf.mxu0
    %v6213 = vadd.f32 %v5668, %v6212
    %v6214 = vpop.f32.mrf.mxu0
    %6215 = vmatprep.mubr.bf16.mxu0 %v2852
    %6216 = vmatmul.mubr.bf16.gmra.mxu0 %v2851
    %v6217 = vpop.f32.mrf.mxu0
    %v6218 = vadd.f32 %v5673, %v6217
    %v6219 = vpop.f32.mrf.mxu0
    %v6220 = vpop.f32.mrf.mxu0
    %v6221 = vadd.f32 %v5676, %v6220
    %v6222 = vpop.f32.mrf.mxu0
    %6223 = vmatprep.mubr.bf16.mxu0 %v2860
    %6224 = vmatmul.mubr.bf16.gmra.mxu0 %v2859
    %v6225 = vpop.f32.mrf.mxu0
    %v6226 = vadd.f32 %v5681, %v6225
    %v6227 = vpop.f32.mrf.mxu0
    %v6228 = vpop.f32.mrf.mxu0
    %v6229 = vadd.f32 %v5684, %v6228
    %v6230 = vpop.f32.mrf.mxu0
    %6231 = vmatprep.mubr.bf16.mxu0 %v2868
    %6232 = vmatmul.mubr.bf16.gmra.mxu0 %v2867
    %v6233 = vpop.f32.mrf.mxu0
    %v6234 = vadd.f32 %v5689, %v6233
    %v6235 = vpop.f32.mrf.mxu0
    %v6236 = vpop.f32.mrf.mxu0
    %v6237 = vadd.f32 %v5692, %v6236
    %v6238 = vpop.f32.mrf.mxu0
    %6239 = vmatprep.mubr.bf16.mxu0 %v2876
    %6240 = vmatmul.mubr.bf16.gmra.mxu0 %v2875
    %v6241 = vpop.f32.mrf.mxu0
    %v6242 = vadd.f32 %v5697, %v6241
    %v6243 = vpop.f32.mrf.mxu0
    %v6244 = vpop.f32.mrf.mxu0
    %v6245 = vadd.f32 %v5700, %v6244
    %v6246 = vpop.f32.mrf.mxu0
    %6247 = vmatprep.mubr.bf16.mxu0 %v2884
    %6248 = vmatmul.mubr.bf16.gmra.mxu0 %v2883
    %v6249 = vpop.f32.mrf.mxu0
    %v6250 = vadd.f32 %v5705, %v6249
    %v6251 = vpop.f32.mrf.mxu0
    %v6252 = vpop.f32.mrf.mxu0
    %v6253 = vadd.f32 %v5708, %v6252
    %v6254 = vpop.f32.mrf.mxu0
    %6255 = vmatprep.mubr.bf16.mxu0 %v2892
    %6256 = vmatmul.mubr.bf16.gmra.mxu0 %v2891
    %v6257 = vpop.f32.mrf.mxu0
    %v6258 = vadd.f32 %v5713, %v6257
    %v6259 = vpop.f32.mrf.mxu0
    %v6260 = vpop.f32.mrf.mxu0
    %v6261 = vadd.f32 %v5716, %v6260
    %v6262 = vpop.f32.mrf.mxu0
    %6263 = vmatprep.mubr.bf16.mxu0 %v2900
    %6264 = vmatmul.mubr.bf16.gmra.mxu0 %v2899
    %v6265 = vpop.f32.mrf.mxu0
    %v6266 = vadd.f32 %v5721, %v6265
    %v6267 = vpop.f32.mrf.mxu0
    %v6268 = vpop.f32.mrf.mxu0
    %v6269 = vadd.f32 %v5724, %v6268
    %v6270 = vpop.f32.mrf.mxu0
    %6271 = vmatprep.mubr.bf16.mxu0 %v2908
    %6272 = vmatmul.mubr.bf16.gmra.mxu0 %v2907
    %v6273 = vpop.f32.mrf.mxu0
    %v6274 = vadd.f32 %v5729, %v6273
    %v6275 = vpop.f32.mrf.mxu0
    %v6276 = vpop.f32.mrf.mxu0
    %v6277 = vadd.f32 %v5732, %v6276
    %v6278 = vpop.f32.mrf.mxu0
    %6279 = vmatprep.mubr.bf16.mxu0 %v2916
    %6280 = vmatmul.mubr.bf16.gmra.mxu0 %v2915
    %v6281 = vpop.f32.mrf.mxu0
    %v6282 = vadd.f32 %v5737, %v6281
    %v6283 = vpop.f32.mrf.mxu0
    %v6284 = vpop.f32.mrf.mxu0
    %v6285 = vadd.f32 %v5740, %v6284
    %v6286 = vpop.f32.mrf.mxu0
    %6287 = vmatprep.mubr.bf16.mxu0 %v2924
    %6288 = vmatmul.mubr.bf16.gmra.mxu0 %v2923
    %v6289 = vpop.f32.mrf.mxu0
    %v6290 = vadd.f32 %v5745, %v6289
    %v6291 = vpop.f32.mrf.mxu0
    %v6292 = vpop.f32.mrf.mxu0
    %v6293 = vadd.f32 %v5748, %v6292
    %v6294 = vpop.f32.mrf.mxu0
    %6295 = vdwg.mxu0
    %6296 = vmatprep.subr.bf16.mxu0 0
    %6297 = vmatpush1.bf16.msra.mxu0 %v6030
    %6298 = vmatprep.subr.bf16.mxu0 0
    %6299 = vmatpush1.bf16.msra.mxu0 %v6029
    %6300 = vmatprep.subr.bf16.mxu0 0
    %6301 = vmatpush1.bf16.msra.mxu0 %v6028
    %6302 = vmatprep.subr.bf16.mxu0 0
    %6303 = vmatpush1.bf16.msra.mxu0 %v6027
    %6304 = vmatprep.subr.bf16.mxu0 0
    %6305 = vmatpush1.bf16.msra.mxu0 %v6026
    %6306 = vmatprep.subr.bf16.mxu0 0
    %6307 = vmatpush1.bf16.msra.mxu0 %v6025
    %6308 = vmatprep.subr.bf16.mxu0 0
    %6309 = vmatpush1.bf16.msra.mxu0 %v6024
    %6310 = vmatprep.subr.bf16.mxu0 0
    %6311 = vmatpush1.bf16.msra.mxu0 %v6023
    %6312 = vmatprep.subr.bf16.mxu0 0
    %6313 = vmatpush2.bf16.msra.mxu0 %v6038
    %6314 = vmatprep.subr.bf16.mxu0 0
    %6315 = vmatpush2.bf16.msra.mxu0 %v6037
    %6316 = vmatprep.subr.bf16.mxu0 0
    %6317 = vmatpush2.bf16.msra.mxu0 %v6036
    %6318 = vmatprep.subr.bf16.mxu0 0
    %6319 = vmatpush2.bf16.msra.mxu0 %v6035
    %6320 = vmatprep.subr.bf16.mxu0 0
    %6321 = vmatpush2.bf16.msra.mxu0 %v6034
    %6322 = vmatprep.subr.bf16.mxu0 0
    %6323 = vmatpush2.bf16.msra.mxu0 %v6033
    %6324 = vmatprep.subr.bf16.mxu0 0
    %6325 = vmatpush2.bf16.msra.mxu0 %v6032
    %6326 = vmatprep.subr.bf16.mxu0 0
    %6327 = vmatpush2.bf16.msra.mxu0 %v6031
    %6328 = vmatprep.mubr.bf16.mxu0 %v2806
    %6329 = vmatmul.mubr.bf16.gmra.mxu0 %v2805
    %v6330 = vpop.f32.mrf.mxu0
    %v6331 = vadd.f32 %v6170, %v6330
    %v6332 = vpop.f32.mrf.mxu0
    %v6333 = vpop.f32.mrf.mxu0
    %v6334 = vadd.f32 %v6173, %v6333
    %v6335 = vpop.f32.mrf.mxu0
    %6336 = vmatprep.mubr.bf16.mxu0 %v2814
    %6337 = vmatmul.mubr.bf16.gmra.mxu0 %v2813
    %v6338 = vpop.f32.mrf.mxu0
    %v6339 = vadd.f32 %v6178, %v6338
    %v6340 = vpop.f32.mrf.mxu0
    %v6341 = vpop.f32.mrf.mxu0
    %v6342 = vadd.f32 %v6181, %v6341
    %v6343 = vpop.f32.mrf.mxu0
    %6344 = vmatprep.mubr.bf16.mxu0 %v2822
    %6345 = vmatmul.mubr.bf16.gmra.mxu0 %v2821
    %v6346 = vpop.f32.mrf.mxu0
    %v6347 = vadd.f32 %v6186, %v6346
    %v6348 = vpop.f32.mrf.mxu0
    %v6349 = vpop.f32.mrf.mxu0
    %v6350 = vadd.f32 %v6189, %v6349
    %v6351 = vpop.f32.mrf.mxu0
    %6352 = vmatprep.mubr.bf16.mxu0 %v2830
    %6353 = vmatmul.mubr.bf16.gmra.mxu0 %v2829
    %v6354 = vpop.f32.mrf.mxu0
    %v6355 = vadd.f32 %v6194, %v6354
    %v6356 = vpop.f32.mrf.mxu0
    %v6357 = vpop.f32.mrf.mxu0
    %v6358 = vadd.f32 %v6197, %v6357
    %v6359 = vpop.f32.mrf.mxu0
    %6360 = vmatprep.mubr.bf16.mxu0 %v2838
    %6361 = vmatmul.mubr.bf16.gmra.mxu0 %v2837
    %v6362 = vpop.f32.mrf.mxu0
    %v6363 = vadd.f32 %v6202, %v6362
    %v6364 = vpop.f32.mrf.mxu0
    %v6365 = vpop.f32.mrf.mxu0
    %v6366 = vadd.f32 %v6205, %v6365
    %v6367 = vpop.f32.mrf.mxu0
    %6368 = vmatprep.mubr.bf16.mxu0 %v2846
    %6369 = vmatmul.mubr.bf16.gmra.mxu0 %v2845
    %v6370 = vpop.f32.mrf.mxu0
    %v6371 = vadd.f32 %v6210, %v6370
    %v6372 = vpop.f32.mrf.mxu0
    %v6373 = vpop.f32.mrf.mxu0
    %v6374 = vadd.f32 %v6213, %v6373
    %v6375 = vpop.f32.mrf.mxu0
    %6376 = vmatprep.mubr.bf16.mxu0 %v2854
    %6377 = vmatmul.mubr.bf16.gmra.mxu0 %v2853
    %v6378 = vpop.f32.mrf.mxu0
    %v6379 = vadd.f32 %v6218, %v6378
    %v6380 = vpop.f32.mrf.mxu0
    %v6381 = vpop.f32.mrf.mxu0
    %v6382 = vadd.f32 %v6221, %v6381
    %v6383 = vpop.f32.mrf.mxu0
    %6384 = vmatprep.mubr.bf16.mxu0 %v2862
    %6385 = vmatmul.mubr.bf16.gmra.mxu0 %v2861
    %v6386 = vpop.f32.mrf.mxu0
    %v6387 = vadd.f32 %v6226, %v6386
    %v6388 = vpop.f32.mrf.mxu0
    %v6389 = vpop.f32.mrf.mxu0
    %v6390 = vadd.f32 %v6229, %v6389
    %v6391 = vpop.f32.mrf.mxu0
    %6392 = vmatprep.mubr.bf16.mxu0 %v2870
    %6393 = vmatmul.mubr.bf16.gmra.mxu0 %v2869
    %v6394 = vpop.f32.mrf.mxu0
    %v6395 = vadd.f32 %v6234, %v6394
    %v6396 = vpop.f32.mrf.mxu0
    %v6397 = vpop.f32.mrf.mxu0
    %v6398 = vadd.f32 %v6237, %v6397
    %v6399 = vpop.f32.mrf.mxu0
    %6400 = vmatprep.mubr.bf16.mxu0 %v2878
    %6401 = vmatmul.mubr.bf16.gmra.mxu0 %v2877
    %v6402 = vpop.f32.mrf.mxu0
    %v6403 = vadd.f32 %v6242, %v6402
    %v6404 = vpop.f32.mrf.mxu0
    %v6405 = vpop.f32.mrf.mxu0
    %v6406 = vadd.f32 %v6245, %v6405
    %v6407 = vpop.f32.mrf.mxu0
    %6408 = vmatprep.mubr.bf16.mxu0 %v2886
    %6409 = vmatmul.mubr.bf16.gmra.mxu0 %v2885
    %v6410 = vpop.f32.mrf.mxu0
    %v6411 = vadd.f32 %v6250, %v6410
    %v6412 = vpop.f32.mrf.mxu0
    %v6413 = vpop.f32.mrf.mxu0
    %v6414 = vadd.f32 %v6253, %v6413
    %v6415 = vpop.f32.mrf.mxu0
    %6416 = vmatprep.mubr.bf16.mxu0 %v2894
    %6417 = vmatmul.mubr.bf16.gmra.mxu0 %v2893
    %v6418 = vpop.f32.mrf.mxu0
    %v6419 = vadd.f32 %v6258, %v6418
    %v6420 = vpop.f32.mrf.mxu0
    %v6421 = vpop.f32.mrf.mxu0
    %v6422 = vadd.f32 %v6261, %v6421
    %v6423 = vpop.f32.mrf.mxu0
    %6424 = vmatprep.mubr.bf16.mxu0 %v2902
    %6425 = vmatmul.mubr.bf16.gmra.mxu0 %v2901
    %v6426 = vpop.f32.mrf.mxu0
    %v6427 = vadd.f32 %v6266, %v6426
    %v6428 = vpop.f32.mrf.mxu0
    %v6429 = vpop.f32.mrf.mxu0
    %v6430 = vadd.f32 %v6269, %v6429
    %v6431 = vpop.f32.mrf.mxu0
    %6432 = vmatprep.mubr.bf16.mxu0 %v2910
    %6433 = vmatmul.mubr.bf16.gmra.mxu0 %v2909
    %v6434 = vpop.f32.mrf.mxu0
    %v6435 = vadd.f32 %v6274, %v6434
    %v6436 = vpop.f32.mrf.mxu0
    %v6437 = vpop.f32.mrf.mxu0
    %v6438 = vadd.f32 %v6277, %v6437
    %v6439 = vpop.f32.mrf.mxu0
    %6440 = vmatprep.mubr.bf16.mxu0 %v2918
    %6441 = vmatmul.mubr.bf16.gmra.mxu0 %v2917
    %v6442 = vpop.f32.mrf.mxu0
    %v6443 = vadd.f32 %v6282, %v6442
    %v6444 = vpop.f32.mrf.mxu0
    %v6445 = vpop.f32.mrf.mxu0
    %v6446 = vadd.f32 %v6285, %v6445
    %v6447 = vpop.f32.mrf.mxu0
    %6448 = vmatprep.mubr.bf16.mxu0 %v2926
    %6449 = vmatmul.mubr.bf16.gmra.mxu0 %v2925
    %v6450 = vpop.f32.mrf.mxu0
    %v6451 = vadd.f32 %v6290, %v6450
    %v6452 = vpop.f32.mrf.mxu0
    %v6453 = vpop.f32.mrf.mxu0
    %v6454 = vadd.f32 %v6293, %v6453
    %v6455 = vpop.f32.mrf.mxu0
    %6456 = vdwg.mxu0
    %6457 = vmatprep.subr.bf16.mxu0 0
    %6458 = vmatpush1.bf16.msra.mxu0 %v6046
    %6459 = vmatprep.subr.bf16.mxu0 0
    %6460 = vmatpush1.bf16.msra.mxu0 %v6045
    %6461 = vmatprep.subr.bf16.mxu0 0
    %6462 = vmatpush1.bf16.msra.mxu0 %v6044
    %6463 = vmatprep.subr.bf16.mxu0 0
    %6464 = vmatpush1.bf16.msra.mxu0 %v6043
    %6465 = vmatprep.subr.bf16.mxu0 0
    %6466 = vmatpush1.bf16.msra.mxu0 %v6042
    %6467 = vmatprep.subr.bf16.mxu0 0
    %6468 = vmatpush1.bf16.msra.mxu0 %v6041
    %6469 = vmatprep.subr.bf16.mxu0 0
    %6470 = vmatpush1.bf16.msra.mxu0 %v6040
    %6471 = vmatprep.subr.bf16.mxu0 0
    %6472 = vmatpush1.bf16.msra.mxu0 %v6039
    %6473 = vmatprep.subr.bf16.mxu0 0
    %6474 = vmatpush2.bf16.msra.mxu0 %v6054
    %6475 = vmatprep.subr.bf16.mxu0 0
    %6476 = vmatpush2.bf16.msra.mxu0 %v6053
    %6477 = vmatprep.subr.bf16.mxu0 0
    %6478 = vmatpush2.bf16.msra.mxu0 %v6052
    %6479 = vmatprep.subr.bf16.mxu0 0
    %6480 = vmatpush2.bf16.msra.mxu0 %v6051
    %6481 = vmatprep.subr.bf16.mxu0 0
    %6482 = vmatpush2.bf16.msra.mxu0 %v6050
    %6483 = vmatprep.subr.bf16.mxu0 0
    %6484 = vmatpush2.bf16.msra.mxu0 %v6049
    %6485 = vmatprep.subr.bf16.mxu0 0
    %6486 = vmatpush2.bf16.msra.mxu0 %v6048
    %6487 = vmatprep.subr.bf16.mxu0 0
    %6488 = vmatpush2.bf16.msra.mxu0 %v6047
    %6489 = vmatprep.mubr.bf16.mxu0 %v2808
    %6490 = vmatmul.mubr.bf16.gmra.mxu0 %v2807
    %v6491 = vpop.f32.mrf.mxu0
    %v6492 = vadd.f32 %v6331, %v6491
    %v6493 = vpop.f32.mrf.mxu0
    %v6494 = vpop.f32.mrf.mxu0
    %v6495 = vadd.f32 %v6334, %v6494
    %v6496 = vpop.f32.mrf.mxu0
    %6497 = vmatprep.mubr.bf16.mxu0 %v2816
    %6498 = vmatmul.mubr.bf16.gmra.mxu0 %v2815
    %v6499 = vpop.f32.mrf.mxu0
    %v6500 = vadd.f32 %v6339, %v6499
    %v6501 = vpop.f32.mrf.mxu0
    %v6502 = vpop.f32.mrf.mxu0
    %v6503 = vadd.f32 %v6342, %v6502
    %v6504 = vpop.f32.mrf.mxu0
    %6505 = vmatprep.mubr.bf16.mxu0 %v2824
    %6506 = vmatmul.mubr.bf16.gmra.mxu0 %v2823
    %v6507 = vpop.f32.mrf.mxu0
    %v6508 = vadd.f32 %v6347, %v6507
    %v6509 = vpop.f32.mrf.mxu0
    %v6510 = vpop.f32.mrf.mxu0
    %v6511 = vadd.f32 %v6350, %v6510
    %v6512 = vpop.f32.mrf.mxu0
    %6513 = vmatprep.mubr.bf16.mxu0 %v2832
    %6514 = vmatmul.mubr.bf16.gmra.mxu0 %v2831
    %v6515 = vpop.f32.mrf.mxu0
    %v6516 = vadd.f32 %v6355, %v6515
    %v6517 = vpop.f32.mrf.mxu0
    %v6518 = vpop.f32.mrf.mxu0
    %v6519 = vadd.f32 %v6358, %v6518
    %v6520 = vpop.f32.mrf.mxu0
    %6521 = vmatprep.mubr.bf16.mxu0 %v2840
    %6522 = vmatmul.mubr.bf16.gmra.mxu0 %v2839
    %v6523 = vpop.f32.mrf.mxu0
    %v6524 = vadd.f32 %v6363, %v6523
    %v6525 = vpop.f32.mrf.mxu0
    %v6526 = vpop.f32.mrf.mxu0
    %v6527 = vadd.f32 %v6366, %v6526
    %v6528 = vpop.f32.mrf.mxu0
    %6529 = vmatprep.mubr.bf16.mxu0 %v2848
    %6530 = vmatmul.mubr.bf16.gmra.mxu0 %v2847
    %v6531 = vpop.f32.mrf.mxu0
    %v6532 = vadd.f32 %v6371, %v6531
    %v6533 = vpop.f32.mrf.mxu0
    %v6534 = vpop.f32.mrf.mxu0
    %v6535 = vadd.f32 %v6374, %v6534
    %v6536 = vpop.f32.mrf.mxu0
    %6537 = vmatprep.mubr.bf16.mxu0 %v2856
    %6538 = vmatmul.mubr.bf16.gmra.mxu0 %v2855
    %v6539 = vpop.f32.mrf.mxu0
    %v6540 = vadd.f32 %v6379, %v6539
    %v6541 = vpop.f32.mrf.mxu0
    %v6542 = vpop.f32.mrf.mxu0
    %v6543 = vadd.f32 %v6382, %v6542
    %v6544 = vpop.f32.mrf.mxu0
    %6545 = vmatprep.mubr.bf16.mxu0 %v2864
    %6546 = vmatmul.mubr.bf16.gmra.mxu0 %v2863
    %v6547 = vpop.f32.mrf.mxu0
    %v6548 = vadd.f32 %v6387, %v6547
    %v6549 = vpop.f32.mrf.mxu0
    %v6550 = vpop.f32.mrf.mxu0
    %v6551 = vadd.f32 %v6390, %v6550
    %v6552 = vpop.f32.mrf.mxu0
    %6553 = vmatprep.mubr.bf16.mxu0 %v2872
    %6554 = vmatmul.mubr.bf16.gmra.mxu0 %v2871
    %v6555 = vpop.f32.mrf.mxu0
    %v6556 = vadd.f32 %v6395, %v6555
    %v6557 = vpop.f32.mrf.mxu0
    %v6558 = vpop.f32.mrf.mxu0
    %v6559 = vadd.f32 %v6398, %v6558
    %v6560 = vpop.f32.mrf.mxu0
    %6561 = vmatprep.mubr.bf16.mxu0 %v2880
    %6562 = vmatmul.mubr.bf16.gmra.mxu0 %v2879
    %v6563 = vpop.f32.mrf.mxu0
    %v6564 = vadd.f32 %v6403, %v6563
    %v6565 = vpop.f32.mrf.mxu0
    %v6566 = vpop.f32.mrf.mxu0
    %v6567 = vadd.f32 %v6406, %v6566
    %v6568 = vpop.f32.mrf.mxu0
    %6569 = vmatprep.mubr.bf16.mxu0 %v2888
    %6570 = vmatmul.mubr.bf16.gmra.mxu0 %v2887
    %v6571 = vpop.f32.mrf.mxu0
    %v6572 = vadd.f32 %v6411, %v6571
    %v6573 = vpop.f32.mrf.mxu0
    %v6574 = vpop.f32.mrf.mxu0
    %v6575 = vadd.f32 %v6414, %v6574
    %v6576 = vpop.f32.mrf.mxu0
    %6577 = vmatprep.mubr.bf16.mxu0 %v2896
    %6578 = vmatmul.mubr.bf16.gmra.mxu0 %v2895
    %v6579 = vpop.f32.mrf.mxu0
    %v6580 = vadd.f32 %v6419, %v6579
    %v6581 = vpop.f32.mrf.mxu0
    %v6582 = vpop.f32.mrf.mxu0
    %v6583 = vadd.f32 %v6422, %v6582
    %v6584 = vpop.f32.mrf.mxu0
    %6585 = vmatprep.mubr.bf16.mxu0 %v2904
    %6586 = vmatmul.mubr.bf16.gmra.mxu0 %v2903
    %v6587 = vpop.f32.mrf.mxu0
    %v6588 = vadd.f32 %v6427, %v6587
    %v6589 = vpop.f32.mrf.mxu0
    %v6590 = vpop.f32.mrf.mxu0
    %v6591 = vadd.f32 %v6430, %v6590
    %v6592 = vpop.f32.mrf.mxu0
    %6593 = vmatprep.mubr.bf16.mxu0 %v2912
    %6594 = vmatmul.mubr.bf16.gmra.mxu0 %v2911
    %v6595 = vpop.f32.mrf.mxu0
    %v6596 = vadd.f32 %v6435, %v6595
    %v6597 = vpop.f32.mrf.mxu0
    %v6598 = vpop.f32.mrf.mxu0
    %v6599 = vadd.f32 %v6438, %v6598
    %v6600 = vpop.f32.mrf.mxu0
    %6601 = vmatprep.mubr.bf16.mxu0 %v2920
    %6602 = vmatmul.mubr.bf16.gmra.mxu0 %v2919
    %v6603 = vpop.f32.mrf.mxu0
    %v6604 = vadd.f32 %v6443, %v6603
    %v6605 = vpop.f32.mrf.mxu0
    %v6606 = vpop.f32.mrf.mxu0
    %v6607 = vadd.f32 %v6446, %v6606
    %v6608 = vpop.f32.mrf.mxu0
    %6609 = vmatprep.mubr.bf16.mxu0 %v2928
    %6610 = vmatmul.mubr.bf16.gmra.mxu0 %v2927
    %v6611 = vpop.f32.mrf.mxu0
    %v6612 = vadd.f32 %v6451, %v6611
    %v6613 = vpop.f32.mrf.mxu0
    %v6614 = vpop.f32.mrf.mxu0
    %v6615 = vadd.f32 %v6454, %v6614
    %v6616 = vpop.f32.mrf.mxu0
    %6617 = vdwg.mxu0
    %6618 = vmatprep.subr.bf16.mxu0 0
    %6619 = vmatpush1.bf16.msra.mxu0 %v6062
    %6620 = vmatprep.subr.bf16.mxu0 0
    %6621 = vmatpush1.bf16.msra.mxu0 %v6061
    %6622 = vmatprep.subr.bf16.mxu0 0
    %6623 = vmatpush1.bf16.msra.mxu0 %v6060
    %6624 = vmatprep.subr.bf16.mxu0 0
    %6625 = vmatpush1.bf16.msra.mxu0 %v6059
    %6626 = vmatprep.subr.bf16.mxu0 0
    %6627 = vmatpush1.bf16.msra.mxu0 %v6058
    %6628 = vmatprep.subr.bf16.mxu0 0
    %6629 = vmatpush1.bf16.msra.mxu0 %v6057
    %6630 = vmatprep.subr.bf16.mxu0 0
    %6631 = vmatpush1.bf16.msra.mxu0 %v6056
    %6632 = vmatprep.subr.bf16.mxu0 0
    %6633 = vmatpush1.bf16.msra.mxu0 %v6055
    %6634 = vmatprep.subr.bf16.mxu0 0
    %6635 = vmatpush2.bf16.msra.mxu0 %v6070
    %6636 = vmatprep.subr.bf16.mxu0 0
    %6637 = vmatpush2.bf16.msra.mxu0 %v6069
    %6638 = vmatprep.subr.bf16.mxu0 0
    %6639 = vmatpush2.bf16.msra.mxu0 %v6068
    %6640 = vmatprep.subr.bf16.mxu0 0
    %6641 = vmatpush2.bf16.msra.mxu0 %v6067
    %6642 = vmatprep.subr.bf16.mxu0 0
    %6643 = vmatpush2.bf16.msra.mxu0 %v6066
    %6644 = vmatprep.subr.bf16.mxu0 0
    %6645 = vmatpush2.bf16.msra.mxu0 %v6065
    %6646 = vmatprep.subr.bf16.mxu0 0
    %6647 = vmatpush2.bf16.msra.mxu0 %v6064
    %6648 = vmatprep.subr.bf16.mxu0 0
    %6649 = vmatpush2.bf16.msra.mxu0 %v6063
    %6650 = vmatprep.mubr.bf16.mxu0 %v2810
    %6651 = vmatmul.mubr.bf16.gmra.mxu0 %v2809
    %v6652 = vpop.f32.mrf.mxu0
    %v6653 = vadd.f32 %v6492, %v6652
    %v6654 = vpop.f32.mrf.mxu0
    %v6655 = vpop.f32.mrf.mxu0
    %v6656 = vadd.f32 %v6495, %v6655
    %v6657 = vpop.f32.mrf.mxu0
    %6658 = vmatprep.mubr.bf16.mxu0 %v2818
    %6659 = vmatmul.mubr.bf16.gmra.mxu0 %v2817
    %v6660 = vpop.f32.mrf.mxu0
    %v6661 = vadd.f32 %v6500, %v6660
    %v6662 = vpop.f32.mrf.mxu0
    %v6663 = vpop.f32.mrf.mxu0
    %v6664 = vadd.f32 %v6503, %v6663
    %v6665 = vpop.f32.mrf.mxu0
    %6666 = vmatprep.mubr.bf16.mxu0 %v2826
    %6667 = vmatmul.mubr.bf16.gmra.mxu0 %v2825
    %v6668 = vpop.f32.mrf.mxu0
    %v6669 = vadd.f32 %v6508, %v6668
    %v6670 = vpop.f32.mrf.mxu0
    %v6671 = vpop.f32.mrf.mxu0
    %v6672 = vadd.f32 %v6511, %v6671
    %v6673 = vpop.f32.mrf.mxu0
    %6674 = vmatprep.mubr.bf16.mxu0 %v2834
    %6675 = vmatmul.mubr.bf16.gmra.mxu0 %v2833
    %v6676 = vpop.f32.mrf.mxu0
    %v6677 = vadd.f32 %v6516, %v6676
    %v6678 = vpop.f32.mrf.mxu0
    %v6679 = vpop.f32.mrf.mxu0
    %v6680 = vadd.f32 %v6519, %v6679
    %v6681 = vpop.f32.mrf.mxu0
    %6682 = vmatprep.mubr.bf16.mxu0 %v2842
    %6683 = vmatmul.mubr.bf16.gmra.mxu0 %v2841
    %v6684 = vpop.f32.mrf.mxu0
    %v6685 = vadd.f32 %v6524, %v6684
    %v6686 = vpop.f32.mrf.mxu0
    %v6687 = vpop.f32.mrf.mxu0
    %v6688 = vadd.f32 %v6527, %v6687
    %v6689 = vpop.f32.mrf.mxu0
    %6690 = vmatprep.mubr.bf16.mxu0 %v2850
    %6691 = vmatmul.mubr.bf16.gmra.mxu0 %v2849
    %v6692 = vpop.f32.mrf.mxu0
    %v6693 = vadd.f32 %v6532, %v6692
    %v6694 = vpop.f32.mrf.mxu0
    %v6695 = vpop.f32.mrf.mxu0
    %v6696 = vadd.f32 %v6535, %v6695
    %v6697 = vpop.f32.mrf.mxu0
    %6698 = vmatprep.mubr.bf16.mxu0 %v2858
    %6699 = vmatmul.mubr.bf16.gmra.mxu0 %v2857
    %v6700 = vpop.f32.mrf.mxu0
    %v6701 = vadd.f32 %v6540, %v6700
    %v6702 = vpop.f32.mrf.mxu0
    %v6703 = vpop.f32.mrf.mxu0
    %v6704 = vadd.f32 %v6543, %v6703
    %v6705 = vpop.f32.mrf.mxu0
    %6706 = vmatprep.mubr.bf16.mxu0 %v2866
    %6707 = vmatmul.mubr.bf16.gmra.mxu0 %v2865
    %v6708 = vpop.f32.mrf.mxu0
    %v6709 = vadd.f32 %v6548, %v6708
    %v6710 = vpop.f32.mrf.mxu0
    %v6711 = vpop.f32.mrf.mxu0
    %v6712 = vadd.f32 %v6551, %v6711
    %v6713 = vpop.f32.mrf.mxu0
    %6714 = vmatprep.mubr.bf16.mxu0 %v2874
    %6715 = vmatmul.mubr.bf16.gmra.mxu0 %v2873
    %v6716 = vpop.f32.mrf.mxu0
    %v6717 = vadd.f32 %v6556, %v6716
    %v6718 = vpop.f32.mrf.mxu0
    %v6719 = vpop.f32.mrf.mxu0
    %v6720 = vadd.f32 %v6559, %v6719
    %v6721 = vpop.f32.mrf.mxu0
    %6722 = vmatprep.mubr.bf16.mxu0 %v2882
    %6723 = vmatmul.mubr.bf16.gmra.mxu0 %v2881
    %v6724 = vpop.f32.mrf.mxu0
    %v6725 = vadd.f32 %v6564, %v6724
    %v6726 = vpop.f32.mrf.mxu0
    %v6727 = vpop.f32.mrf.mxu0
    %v6728 = vadd.f32 %v6567, %v6727
    %v6729 = vpop.f32.mrf.mxu0
    %6730 = vmatprep.mubr.bf16.mxu0 %v2890
    %6731 = vmatmul.mubr.bf16.gmra.mxu0 %v2889
    %v6732 = vpop.f32.mrf.mxu0
    %v6733 = vadd.f32 %v6572, %v6732
    %v6734 = vpop.f32.mrf.mxu0
    %v6735 = vpop.f32.mrf.mxu0
    %v6736 = vadd.f32 %v6575, %v6735
    %v6737 = vpop.f32.mrf.mxu0
    %6738 = vmatprep.mubr.bf16.mxu0 %v2898
    %6739 = vmatmul.mubr.bf16.gmra.mxu0 %v2897
    %v6740 = vpop.f32.mrf.mxu0
    %v6741 = vadd.f32 %v6580, %v6740
    %v6742 = vpop.f32.mrf.mxu0
    %v6743 = vpop.f32.mrf.mxu0
    %v6744 = vadd.f32 %v6583, %v6743
    %v6745 = vpop.f32.mrf.mxu0
    %6746 = vmatprep.mubr.bf16.mxu0 %v2906
    %6747 = vmatmul.mubr.bf16.gmra.mxu0 %v2905
    %v6748 = vpop.f32.mrf.mxu0
    %v6749 = vadd.f32 %v6588, %v6748
    %v6750 = vpop.f32.mrf.mxu0
    %v6751 = vpop.f32.mrf.mxu0
    %v6752 = vadd.f32 %v6591, %v6751
    %v6753 = vpop.f32.mrf.mxu0
    %6754 = vmatprep.mubr.bf16.mxu0 %v2914
    %6755 = vmatmul.mubr.bf16.gmra.mxu0 %v2913
    %v6756 = vpop.f32.mrf.mxu0
    %v6757 = vadd.f32 %v6596, %v6756
    %v6758 = vpop.f32.mrf.mxu0
    %v6759 = vpop.f32.mrf.mxu0
    %v6760 = vadd.f32 %v6599, %v6759
    %v6761 = vpop.f32.mrf.mxu0
    %6762 = vmatprep.mubr.bf16.mxu0 %v2922
    %6763 = vmatmul.mubr.bf16.gmra.mxu0 %v2921
    %v6764 = vpop.f32.mrf.mxu0
    %v6765 = vadd.f32 %v6604, %v6764
    %v6766 = vpop.f32.mrf.mxu0
    %v6767 = vpop.f32.mrf.mxu0
    %v6768 = vadd.f32 %v6607, %v6767
    %v6769 = vpop.f32.mrf.mxu0
    %6770 = vmatprep.mubr.bf16.mxu0 %v2930
    %6771 = vmatmul.mubr.bf16.gmra.mxu0 %v2929
    %v6772 = vpop.f32.mrf.mxu0
    %v6773 = vadd.f32 %v6612, %v6772
    %v6774 = vpop.f32.mrf.mxu0
    %v6775 = vpop.f32.mrf.mxu0
    %v6776 = vadd.f32 %v6615, %v6775
    %v6777 = vpop.f32.mrf.mxu0
    %6778 = vdwg.mxu0
    %v6779 = vsub.f32 %v131, %v1397
    %v6780 = vsub.f32 %v135, %v1397
    %v6781 = vsub.f32 %v139, %v1397
    %v6782 = vsub.f32 %v143, %v1397
    %v6783 = vsub.f32 %v147, %v1397
    %v6784 = vsub.f32 %v151, %v1397
    %v6785 = vsub.f32 %v155, %v1397
    %v6786 = vsub.f32 %v159, %v1397
    %v6787 = vsub.f32 %v131, %v1401
    %v6788 = vsub.f32 %v135, %v1401
    %v6789 = vsub.f32 %v139, %v1401
    %v6790 = vsub.f32 %v143, %v1401
    %v6791 = vsub.f32 %v147, %v1401
    %v6792 = vsub.f32 %v151, %v1401
    %v6793 = vsub.f32 %v155, %v1401
    %v6794 = vsub.f32 %v159, %v1401
    %v6795 = vsub.f32 %v131, %v1405
    %v6796 = vsub.f32 %v135, %v1405
    %v6797 = vsub.f32 %v139, %v1405
    %v6798 = vsub.f32 %v143, %v1405
    %v6799 = vsub.f32 %v147, %v1405
    %v6800 = vsub.f32 %v151, %v1405
    %v6801 = vsub.f32 %v155, %v1405
    %v6802 = vsub.f32 %v159, %v1405
    %v6803 = vsub.f32 %v131, %v1409
    %v6804 = vsub.f32 %v135, %v1409
    %v6805 = vsub.f32 %v139, %v1409
    %v6806 = vsub.f32 %v143, %v1409
    %v6807 = vsub.f32 %v147, %v1409
    %v6808 = vsub.f32 %v151, %v1409
    %v6809 = vsub.f32 %v155, %v1409
    %v6810 = vsub.f32 %v159, %v1409
    %v6811 = vsub.f32 %v131, %v1413
    %v6812 = vsub.f32 %v135, %v1413
    %v6813 = vsub.f32 %v139, %v1413
    %v6814 = vsub.f32 %v143, %v1413
    %v6815 = vsub.f32 %v147, %v1413
    %v6816 = vsub.f32 %v151, %v1413
    %v6817 = vsub.f32 %v155, %v1413
    %v6818 = vsub.f32 %v159, %v1413
    %v6819 = vsub.f32 %v131, %v1417
    %v6820 = vsub.f32 %v135, %v1417
    %v6821 = vsub.f32 %v139, %v1417
    %v6822 = vsub.f32 %v143, %v1417
    %v6823 = vsub.f32 %v147, %v1417
    %v6824 = vsub.f32 %v151, %v1417
    %v6825 = vsub.f32 %v155, %v1417
    %v6826 = vsub.f32 %v159, %v1417
    %v6827 = vsub.f32 %v131, %v1421
    %v6828 = vsub.f32 %v135, %v1421
    %v6829 = vsub.f32 %v139, %v1421
    %v6830 = vsub.f32 %v143, %v1421
    %v6831 = vsub.f32 %v147, %v1421
    %v6832 = vsub.f32 %v151, %v1421
    %v6833 = vsub.f32 %v155, %v1421
    %v6834 = vsub.f32 %v159, %v1421
    %v6835 = vsub.f32 %v131, %v1425
    %v6836 = vsub.f32 %v135, %v1425
    %v6837 = vsub.f32 %v139, %v1425
    %v6838 = vsub.f32 %v143, %v1425
    %v6839 = vsub.f32 %v147, %v1425
    %v6840 = vsub.f32 %v151, %v1425
    %v6841 = vsub.f32 %v155, %v1425
    %v6842 = vsub.f32 %v159, %v1425
    %v6843 = vsub.f32 %v131, %v1429
    %v6844 = vsub.f32 %v135, %v1429
    %v6845 = vsub.f32 %v139, %v1429
    %v6846 = vsub.f32 %v143, %v1429
    %v6847 = vsub.f32 %v147, %v1429
    %v6848 = vsub.f32 %v151, %v1429
    %v6849 = vsub.f32 %v155, %v1429
    %v6850 = vsub.f32 %v159, %v1429
    %v6851 = vsub.f32 %v131, %v1433
    %v6852 = vsub.f32 %v135, %v1433
    %v6853 = vsub.f32 %v139, %v1433
    %v6854 = vsub.f32 %v143, %v1433
    %v6855 = vsub.f32 %v147, %v1433
    %v6856 = vsub.f32 %v151, %v1433
    %v6857 = vsub.f32 %v155, %v1433
    %v6858 = vsub.f32 %v159, %v1433
    %v6859 = vsub.f32 %v131, %v1437
    %v6860 = vsub.f32 %v135, %v1437
    %v6861 = vsub.f32 %v139, %v1437
    %v6862 = vsub.f32 %v143, %v1437
    %v6863 = vsub.f32 %v147, %v1437
    %v6864 = vsub.f32 %v151, %v1437
    %v6865 = vsub.f32 %v155, %v1437
    %v6866 = vsub.f32 %v159, %v1437
    %v6867 = vsub.f32 %v131, %v1441
    %v6868 = vsub.f32 %v135, %v1441
    %v6869 = vsub.f32 %v139, %v1441
    %v6870 = vsub.f32 %v143, %v1441
    %v6871 = vsub.f32 %v147, %v1441
    %v6872 = vsub.f32 %v151, %v1441
    %v6873 = vsub.f32 %v155, %v1441
    %v6874 = vsub.f32 %v159, %v1441
    %v6875 = vsub.f32 %v131, %v1445
    %v6876 = vsub.f32 %v135, %v1445
    %v6877 = vsub.f32 %v139, %v1445
    %v6878 = vsub.f32 %v143, %v1445
    %v6879 = vsub.f32 %v147, %v1445
    %v6880 = vsub.f32 %v151, %v1445
    %v6881 = vsub.f32 %v155, %v1445
    %v6882 = vsub.f32 %v159, %v1445
    %v6883 = vsub.f32 %v131, %v1449
    %v6884 = vsub.f32 %v135, %v1449
    %v6885 = vsub.f32 %v139, %v1449
    %v6886 = vsub.f32 %v143, %v1449
    %v6887 = vsub.f32 %v147, %v1449
    %v6888 = vsub.f32 %v151, %v1449
    %v6889 = vsub.f32 %v155, %v1449
    %v6890 = vsub.f32 %v159, %v1449
    %v6891 = vsub.f32 %v131, %v1453
    %v6892 = vsub.f32 %v135, %v1453
    %v6893 = vsub.f32 %v139, %v1453
    %v6894 = vsub.f32 %v143, %v1453
    %v6895 = vsub.f32 %v147, %v1453
    %v6896 = vsub.f32 %v151, %v1453
    %v6897 = vsub.f32 %v155, %v1453
    %v6898 = vsub.f32 %v159, %v1453
    %v6899 = vsub.f32 %v131, %v1457
    %v6900 = vsub.f32 %v135, %v1457
    %v6901 = vsub.f32 %v139, %v1457
    %v6902 = vsub.f32 %v143, %v1457
    %v6903 = vsub.f32 %v147, %v1457
    %v6904 = vsub.f32 %v151, %v1457
    %v6905 = vsub.f32 %v155, %v1457
    %v6906 = vsub.f32 %v159, %v1457
    %v6907 = vsub.f32 %v131, %v1461
    %v6908 = vsub.f32 %v135, %v1461
    %v6909 = vsub.f32 %v139, %v1461
    %v6910 = vsub.f32 %v143, %v1461
    %v6911 = vsub.f32 %v147, %v1461
    %v6912 = vsub.f32 %v151, %v1461
    %v6913 = vsub.f32 %v155, %v1461
    %v6914 = vsub.f32 %v159, %v1461
    %v6915 = vsub.f32 %v131, %v1465
    %v6916 = vsub.f32 %v135, %v1465
    %v6917 = vsub.f32 %v139, %v1465
    %v6918 = vsub.f32 %v143, %v1465
    %v6919 = vsub.f32 %v147, %v1465
    %v6920 = vsub.f32 %v151, %v1465
    %v6921 = vsub.f32 %v155, %v1465
    %v6922 = vsub.f32 %v159, %v1465
    %v6923 = vsub.f32 %v131, %v1469
    %v6924 = vsub.f32 %v135, %v1469
    %v6925 = vsub.f32 %v139, %v1469
    %v6926 = vsub.f32 %v143, %v1469
    %v6927 = vsub.f32 %v147, %v1469
    %v6928 = vsub.f32 %v151, %v1469
    %v6929 = vsub.f32 %v155, %v1469
    %v6930 = vsub.f32 %v159, %v1469
    %v6931 = vsub.f32 %v131, %v1473
    %v6932 = vsub.f32 %v135, %v1473
    %v6933 = vsub.f32 %v139, %v1473
    %v6934 = vsub.f32 %v143, %v1473
    %v6935 = vsub.f32 %v147, %v1473
    %v6936 = vsub.f32 %v151, %v1473
    %v6937 = vsub.f32 %v155, %v1473
    %v6938 = vsub.f32 %v159, %v1473
    %v6939 = vsub.f32 %v131, %v1477
    %v6940 = vsub.f32 %v135, %v1477
    %v6941 = vsub.f32 %v139, %v1477
    %v6942 = vsub.f32 %v143, %v1477
    %v6943 = vsub.f32 %v147, %v1477
    %v6944 = vsub.f32 %v151, %v1477
    %v6945 = vsub.f32 %v155, %v1477
    %v6946 = vsub.f32 %v159, %v1477
    %v6947 = vsub.f32 %v131, %v1481
    %v6948 = vsub.f32 %v135, %v1481
    %v6949 = vsub.f32 %v139, %v1481
    %v6950 = vsub.f32 %v143, %v1481
    %v6951 = vsub.f32 %v147, %v1481
    %v6952 = vsub.f32 %v151, %v1481
    %v6953 = vsub.f32 %v155, %v1481
    %v6954 = vsub.f32 %v159, %v1481
    %v6955 = vsub.f32 %v131, %v1485
    %v6956 = vsub.f32 %v135, %v1485
    %v6957 = vsub.f32 %v139, %v1485
    %v6958 = vsub.f32 %v143, %v1485
    %v6959 = vsub.f32 %v147, %v1485
    %v6960 = vsub.f32 %v151, %v1485
    %v6961 = vsub.f32 %v155, %v1485
    %v6962 = vsub.f32 %v159, %v1485
    %v6963 = vsub.f32 %v131, %v1489
    %v6964 = vsub.f32 %v135, %v1489
    %v6965 = vsub.f32 %v139, %v1489
    %v6966 = vsub.f32 %v143, %v1489
    %v6967 = vsub.f32 %v147, %v1489
    %v6968 = vsub.f32 %v151, %v1489
    %v6969 = vsub.f32 %v155, %v1489
    %v6970 = vsub.f32 %v159, %v1489
    %v6971 = vsub.f32 %v131, %v1493
    %v6972 = vsub.f32 %v135, %v1493
    %v6973 = vsub.f32 %v139, %v1493
    %v6974 = vsub.f32 %v143, %v1493
    %v6975 = vsub.f32 %v147, %v1493
    %v6976 = vsub.f32 %v151, %v1493
    %v6977 = vsub.f32 %v155, %v1493
    %v6978 = vsub.f32 %v159, %v1493
    %v6979 = vsub.f32 %v131, %v1497
    %v6980 = vsub.f32 %v135, %v1497
    %v6981 = vsub.f32 %v139, %v1497
    %v6982 = vsub.f32 %v143, %v1497
    %v6983 = vsub.f32 %v147, %v1497
    %v6984 = vsub.f32 %v151, %v1497
    %v6985 = vsub.f32 %v155, %v1497
    %v6986 = vsub.f32 %v159, %v1497
    %v6987 = vsub.f32 %v131, %v1501
    %v6988 = vsub.f32 %v135, %v1501
    %v6989 = vsub.f32 %v139, %v1501
    %v6990 = vsub.f32 %v143, %v1501
    %v6991 = vsub.f32 %v147, %v1501
    %v6992 = vsub.f32 %v151, %v1501
    %v6993 = vsub.f32 %v155, %v1501
    %v6994 = vsub.f32 %v159, %v1501
    %v6995 = vsub.f32 %v131, %v1505
    %v6996 = vsub.f32 %v135, %v1505
    %v6997 = vsub.f32 %v139, %v1505
    %v6998 = vsub.f32 %v143, %v1505
    %v6999 = vsub.f32 %v147, %v1505
    %v7000 = vsub.f32 %v151, %v1505
    %v7001 = vsub.f32 %v155, %v1505
    %v7002 = vsub.f32 %v159, %v1505
    %v7003 = vsub.f32 %v131, %v1509
    %v7004 = vsub.f32 %v135, %v1509
    %v7005 = vsub.f32 %v139, %v1509
    %v7006 = vsub.f32 %v143, %v1509
    %v7007 = vsub.f32 %v147, %v1509
    %v7008 = vsub.f32 %v151, %v1509
    %v7009 = vsub.f32 %v155, %v1509
    %v7010 = vsub.f32 %v159, %v1509
    %v7011 = vsub.f32 %v131, %v1513
    %v7012 = vsub.f32 %v135, %v1513
    %v7013 = vsub.f32 %v139, %v1513
    %v7014 = vsub.f32 %v143, %v1513
    %v7015 = vsub.f32 %v147, %v1513
    %v7016 = vsub.f32 %v151, %v1513
    %v7017 = vsub.f32 %v155, %v1513
    %v7018 = vsub.f32 %v159, %v1513
    %v7019 = vsub.f32 %v131, %v1517
    %v7020 = vsub.f32 %v135, %v1517
    %v7021 = vsub.f32 %v139, %v1517
    %v7022 = vsub.f32 %v143, %v1517
    %v7023 = vsub.f32 %v147, %v1517
    %v7024 = vsub.f32 %v151, %v1517
    %v7025 = vsub.f32 %v155, %v1517
    %v7026 = vsub.f32 %v159, %v1517
    %v7027 = vsub.f32 %v131, %v1521
    %v7028 = vsub.f32 %v135, %v1521
    %v7029 = vsub.f32 %v139, %v1521
    %v7030 = vsub.f32 %v143, %v1521
    %v7031 = vsub.f32 %v147, %v1521
    %v7032 = vsub.f32 %v151, %v1521
    %v7033 = vsub.f32 %v155, %v1521
    %v7034 = vsub.f32 %v159, %v1521
    %v7035 = vand.u32 2147483647, %v6779
    %v7036 = vand.u32 2147483647, %v6780
    %v7037 = vand.u32 2147483647, %v6781
    %v7038 = vand.u32 2147483647, %v6782
    %v7039 = vand.u32 2147483647, %v6783
    %v7040 = vand.u32 2147483647, %v6784
    %v7041 = vand.u32 2147483647, %v6785
    %v7042 = vand.u32 2147483647, %v6786
    %v7043 = vand.u32 2147483647, %v6787
    %v7044 = vand.u32 2147483647, %v6788
    %v7045 = vand.u32 2147483647, %v6789
    %v7046 = vand.u32 2147483647, %v6790
    %v7047 = vand.u32 2147483647, %v6791
    %v7048 = vand.u32 2147483647, %v6792
    %v7049 = vand.u32 2147483647, %v6793
    %v7050 = vand.u32 2147483647, %v6794
    %v7051 = vand.u32 2147483647, %v6795
    %v7052 = vand.u32 2147483647, %v6796
    %v7053 = vand.u32 2147483647, %v6797
    %v7054 = vand.u32 2147483647, %v6798
    %v7055 = vand.u32 2147483647, %v6799
    %v7056 = vand.u32 2147483647, %v6800
    %v7057 = vand.u32 2147483647, %v6801
    %v7058 = vand.u32 2147483647, %v6802
    %v7059 = vand.u32 2147483647, %v6803
    %v7060 = vand.u32 2147483647, %v6804
    %v7061 = vand.u32 2147483647, %v6805
    %v7062 = vand.u32 2147483647, %v6806
    %v7063 = vand.u32 2147483647, %v6807
    %v7064 = vand.u32 2147483647, %v6808
    %v7065 = vand.u32 2147483647, %v6809
    %v7066 = vand.u32 2147483647, %v6810
    %v7067 = vand.u32 2147483647, %v6811
    %v7068 = vand.u32 2147483647, %v6812
    %v7069 = vand.u32 2147483647, %v6813
    %v7070 = vand.u32 2147483647, %v6814
    %v7071 = vand.u32 2147483647, %v6815
    %v7072 = vand.u32 2147483647, %v6816
    %v7073 = vand.u32 2147483647, %v6817
    %v7074 = vand.u32 2147483647, %v6818
    %v7075 = vand.u32 2147483647, %v6819
    %v7076 = vand.u32 2147483647, %v6820
    %v7077 = vand.u32 2147483647, %v6821
    %v7078 = vand.u32 2147483647, %v6822
    %v7079 = vand.u32 2147483647, %v6823
    %v7080 = vand.u32 2147483647, %v6824
    %v7081 = vand.u32 2147483647, %v6825
    %v7082 = vand.u32 2147483647, %v6826
    %v7083 = vand.u32 2147483647, %v6827
    %v7084 = vand.u32 2147483647, %v6828
    %v7085 = vand.u32 2147483647, %v6829
    %v7086 = vand.u32 2147483647, %v6830
    %v7087 = vand.u32 2147483647, %v6831
    %v7088 = vand.u32 2147483647, %v6832
    %v7089 = vand.u32 2147483647, %v6833
    %v7090 = vand.u32 2147483647, %v6834
    %v7091 = vand.u32 2147483647, %v6835
    %v7092 = vand.u32 2147483647, %v6836
    %v7093 = vand.u32 2147483647, %v6837
    %v7094 = vand.u32 2147483647, %v6838
    %v7095 = vand.u32 2147483647, %v6839
    %v7096 = vand.u32 2147483647, %v6840
    %v7097 = vand.u32 2147483647, %v6841
    %v7098 = vand.u32 2147483647, %v6842
    %v7099 = vand.u32 2147483647, %v6843
    %v7100 = vand.u32 2147483647, %v6844
    %v7101 = vand.u32 2147483647, %v6845
    %v7102 = vand.u32 2147483647, %v6846
    %v7103 = vand.u32 2147483647, %v6847
    %v7104 = vand.u32 2147483647, %v6848
    %v7105 = vand.u32 2147483647, %v6849
    %v7106 = vand.u32 2147483647, %v6850
    %v7107 = vand.u32 2147483647, %v6851
    %v7108 = vand.u32 2147483647, %v6852
    %v7109 = vand.u32 2147483647, %v6853
    %v7110 = vand.u32 2147483647, %v6854
    %v7111 = vand.u32 2147483647, %v6855
    %v7112 = vand.u32 2147483647, %v6856
    %v7113 = vand.u32 2147483647, %v6857
    %v7114 = vand.u32 2147483647, %v6858
    %v7115 = vand.u32 2147483647, %v6859
    %v7116 = vand.u32 2147483647, %v6860
    %v7117 = vand.u32 2147483647, %v6861
    %v7118 = vand.u32 2147483647, %v6862
    %v7119 = vand.u32 2147483647, %v6863
    %v7120 = vand.u32 2147483647, %v6864
    %v7121 = vand.u32 2147483647, %v6865
    %v7122 = vand.u32 2147483647, %v6866
    %v7123 = vand.u32 2147483647, %v6867
    %v7124 = vand.u32 2147483647, %v6868
    %v7125 = vand.u32 2147483647, %v6869
    %v7126 = vand.u32 2147483647, %v6870
    %v7127 = vand.u32 2147483647, %v6871
    %v7128 = vand.u32 2147483647, %v6872
    %v7129 = vand.u32 2147483647, %v6873
    %v7130 = vand.u32 2147483647, %v6874
    %v7131 = vand.u32 2147483647, %v6875
    %v7132 = vand.u32 2147483647, %v6876
    %v7133 = vand.u32 2147483647, %v6877
    %v7134 = vand.u32 2147483647, %v6878
    %v7135 = vand.u32 2147483647, %v6879
    %v7136 = vand.u32 2147483647, %v6880
    %v7137 = vand.u32 2147483647, %v6881
    %v7138 = vand.u32 2147483647, %v6882
    %v7139 = vand.u32 2147483647, %v6883
    %v7140 = vand.u32 2147483647, %v6884
    %v7141 = vand.u32 2147483647, %v6885
    %v7142 = vand.u32 2147483647, %v6886
    %v7143 = vand.u32 2147483647, %v6887
    %v7144 = vand.u32 2147483647, %v6888
    %v7145 = vand.u32 2147483647, %v6889
    %v7146 = vand.u32 2147483647, %v6890
    %v7147 = vand.u32 2147483647, %v6891
    %v7148 = vand.u32 2147483647, %v6892
    %v7149 = vand.u32 2147483647, %v6893
    %v7150 = vand.u32 2147483647, %v6894
    %v7151 = vand.u32 2147483647, %v6895
    %v7152 = vand.u32 2147483647, %v6896
    %v7153 = vand.u32 2147483647, %v6897
    %v7154 = vand.u32 2147483647, %v6898
    %v7155 = vand.u32 2147483647, %v6899
    %v7156 = vand.u32 2147483647, %v6900
    %v7157 = vand.u32 2147483647, %v6901
    %v7158 = vand.u32 2147483647, %v6902
    %v7159 = vand.u32 2147483647, %v6903
    %v7160 = vand.u32 2147483647, %v6904
    %v7161 = vand.u32 2147483647, %v6905
    %v7162 = vand.u32 2147483647, %v6906
    %v7163 = vand.u32 2147483647, %v6907
    %v7164 = vand.u32 2147483647, %v6908
    %v7165 = vand.u32 2147483647, %v6909
    %v7166 = vand.u32 2147483647, %v6910
    %v7167 = vand.u32 2147483647, %v6911
    %v7168 = vand.u32 2147483647, %v6912
    %v7169 = vand.u32 2147483647, %v6913
    %v7170 = vand.u32 2147483647, %v6914
    %v7171 = vand.u32 2147483647, %v6915
    %v7172 = vand.u32 2147483647, %v6916
    %v7173 = vand.u32 2147483647, %v6917
    %v7174 = vand.u32 2147483647, %v6918
    %v7175 = vand.u32 2147483647, %v6919
    %v7176 = vand.u32 2147483647, %v6920
    %v7177 = vand.u32 2147483647, %v6921
    %v7178 = vand.u32 2147483647, %v6922
    %v7179 = vand.u32 2147483647, %v6923
    %v7180 = vand.u32 2147483647, %v6924
    %v7181 = vand.u32 2147483647, %v6925
    %v7182 = vand.u32 2147483647, %v6926
    %v7183 = vand.u32 2147483647, %v6927
    %v7184 = vand.u32 2147483647, %v6928
    %v7185 = vand.u32 2147483647, %v6929
    %v7186 = vand.u32 2147483647, %v6930
    %v7187 = vand.u32 2147483647, %v6931
    %v7188 = vand.u32 2147483647, %v6932
    %v7189 = vand.u32 2147483647, %v6933
    %v7190 = vand.u32 2147483647, %v6934
    %v7191 = vand.u32 2147483647, %v6935
    %v7192 = vand.u32 2147483647, %v6936
    %v7193 = vand.u32 2147483647, %v6937
    %v7194 = vand.u32 2147483647, %v6938
    %v7195 = vand.u32 2147483647, %v6939
    %v7196 = vand.u32 2147483647, %v6940
    %v7197 = vand.u32 2147483647, %v6941
    %v7198 = vand.u32 2147483647, %v6942
    %v7199 = vand.u32 2147483647, %v6943
    %v7200 = vand.u32 2147483647, %v6944
    %v7201 = vand.u32 2147483647, %v6945
    %v7202 = vand.u32 2147483647, %v6946
    %v7203 = vand.u32 2147483647, %v6947
    %v7204 = vand.u32 2147483647, %v6948
    %v7205 = vand.u32 2147483647, %v6949
    %v7206 = vand.u32 2147483647, %v6950
    %v7207 = vand.u32 2147483647, %v6951
    %v7208 = vand.u32 2147483647, %v6952
    %v7209 = vand.u32 2147483647, %v6953
    %v7210 = vand.u32 2147483647, %v6954
    %v7211 = vand.u32 2147483647, %v6955
    %v7212 = vand.u32 2147483647, %v6956
    %v7213 = vand.u32 2147483647, %v6957
    %v7214 = vand.u32 2147483647, %v6958
    %v7215 = vand.u32 2147483647, %v6959
    %v7216 = vand.u32 2147483647, %v6960
    %v7217 = vand.u32 2147483647, %v6961
    %v7218 = vand.u32 2147483647, %v6962
    %v7219 = vand.u32 2147483647, %v6963
    %v7220 = vand.u32 2147483647, %v6964
    %v7221 = vand.u32 2147483647, %v6965
    %v7222 = vand.u32 2147483647, %v6966
    %v7223 = vand.u32 2147483647, %v6967
    %v7224 = vand.u32 2147483647, %v6968
    %v7225 = vand.u32 2147483647, %v6969
    %v7226 = vand.u32 2147483647, %v6970
    %v7227 = vand.u32 2147483647, %v6971
    %v7228 = vand.u32 2147483647, %v6972
    %v7229 = vand.u32 2147483647, %v6973
    %v7230 = vand.u32 2147483647, %v6974
    %v7231 = vand.u32 2147483647, %v6975
    %v7232 = vand.u32 2147483647, %v6976
    %v7233 = vand.u32 2147483647, %v6977
    %v7234 = vand.u32 2147483647, %v6978
    %v7235 = vand.u32 2147483647, %v6979
    %v7236 = vand.u32 2147483647, %v6980
    %v7237 = vand.u32 2147483647, %v6981
    %v7238 = vand.u32 2147483647, %v6982
    %v7239 = vand.u32 2147483647, %v6983
    %v7240 = vand.u32 2147483647, %v6984
    %v7241 = vand.u32 2147483647, %v6985
    %v7242 = vand.u32 2147483647, %v6986
    %v7243 = vand.u32 2147483647, %v6987
    %v7244 = vand.u32 2147483647, %v6988
    %v7245 = vand.u32 2147483647, %v6989
    %v7246 = vand.u32 2147483647, %v6990
    %v7247 = vand.u32 2147483647, %v6991
    %v7248 = vand.u32 2147483647, %v6992
    %v7249 = vand.u32 2147483647, %v6993
    %v7250 = vand.u32 2147483647, %v6994
    %v7251 = vand.u32 2147483647, %v6995
    %v7252 = vand.u32 2147483647, %v6996
    %v7253 = vand.u32 2147483647, %v6997
    %v7254 = vand.u32 2147483647, %v6998
    %v7255 = vand.u32 2147483647, %v6999
    %v7256 = vand.u32 2147483647, %v7000
    %v7257 = vand.u32 2147483647, %v7001
    %v7258 = vand.u32 2147483647, %v7002
    %v7259 = vand.u32 2147483647, %v7003
    %v7260 = vand.u32 2147483647, %v7004
    %v7261 = vand.u32 2147483647, %v7005
    %v7262 = vand.u32 2147483647, %v7006
    %v7263 = vand.u32 2147483647, %v7007
    %v7264 = vand.u32 2147483647, %v7008
    %v7265 = vand.u32 2147483647, %v7009
    %v7266 = vand.u32 2147483647, %v7010
    %v7267 = vand.u32 2147483647, %v7011
    %v7268 = vand.u32 2147483647, %v7012
    %v7269 = vand.u32 2147483647, %v7013
    %v7270 = vand.u32 2147483647, %v7014
    %v7271 = vand.u32 2147483647, %v7015
    %v7272 = vand.u32 2147483647, %v7016
    %v7273 = vand.u32 2147483647, %v7017
    %v7274 = vand.u32 2147483647, %v7018
    %v7275 = vand.u32 2147483647, %v7019
    %v7276 = vand.u32 2147483647, %v7020
    %v7277 = vand.u32 2147483647, %v7021
    %v7278 = vand.u32 2147483647, %v7022
    %v7279 = vand.u32 2147483647, %v7023
    %v7280 = vand.u32 2147483647, %v7024
    %v7281 = vand.u32 2147483647, %v7025
    %v7282 = vand.u32 2147483647, %v7026
    %v7283 = vand.u32 2147483647, %v7027
    %v7284 = vand.u32 2147483647, %v7028
    %v7285 = vand.u32 2147483647, %v7029
    %v7286 = vand.u32 2147483647, %v7030
    %v7287 = vand.u32 2147483647, %v7031
    %v7288 = vand.u32 2147483647, %v7032
    %v7289 = vand.u32 2147483647, %v7033
    %v7290 = vand.u32 2147483647, %v7034
    %v7291 = vsub.f32 1.0, %v7035
    %v7292 = vsub.f32 1.0, %v7036
    %v7293 = vsub.f32 1.0, %v7037
    %v7294 = vsub.f32 1.0, %v7038
    %v7295 = vsub.f32 1.0, %v7039
    %v7296 = vsub.f32 1.0, %v7040
    %v7297 = vsub.f32 1.0, %v7041
    %v7298 = vsub.f32 1.0, %v7042
    %v7299 = vsub.f32 1.0, %v7043
    %v7300 = vsub.f32 1.0, %v7044
    %v7301 = vsub.f32 1.0, %v7045
    %v7302 = vsub.f32 1.0, %v7046
    %v7303 = vsub.f32 1.0, %v7047
    %v7304 = vsub.f32 1.0, %v7048
    %v7305 = vsub.f32 1.0, %v7049
    %v7306 = vsub.f32 1.0, %v7050
    %v7307 = vsub.f32 1.0, %v7051
    %v7308 = vsub.f32 1.0, %v7052
    %v7309 = vsub.f32 1.0, %v7053
    %v7310 = vsub.f32 1.0, %v7054
    %v7311 = vsub.f32 1.0, %v7055
    %v7312 = vsub.f32 1.0, %v7056
    %v7313 = vsub.f32 1.0, %v7057
    %v7314 = vsub.f32 1.0, %v7058
    %v7315 = vsub.f32 1.0, %v7059
    %v7316 = vsub.f32 1.0, %v7060
    %v7317 = vsub.f32 1.0, %v7061
    %v7318 = vsub.f32 1.0, %v7062
    %v7319 = vsub.f32 1.0, %v7063
    %v7320 = vsub.f32 1.0, %v7064
    %v7321 = vsub.f32 1.0, %v7065
    %v7322 = vsub.f32 1.0, %v7066
    %v7323 = vsub.f32 1.0, %v7067
    %v7324 = vsub.f32 1.0, %v7068
    %v7325 = vsub.f32 1.0, %v7069
    %v7326 = vsub.f32 1.0, %v7070
    %v7327 = vsub.f32 1.0, %v7071
    %v7328 = vsub.f32 1.0, %v7072
    %v7329 = vsub.f32 1.0, %v7073
    %v7330 = vsub.f32 1.0, %v7074
    %v7331 = vsub.f32 1.0, %v7075
    %v7332 = vsub.f32 1.0, %v7076
    %v7333 = vsub.f32 1.0, %v7077
    %v7334 = vsub.f32 1.0, %v7078
    %v7335 = vsub.f32 1.0, %v7079
    %v7336 = vsub.f32 1.0, %v7080
    %v7337 = vsub.f32 1.0, %v7081
    %v7338 = vsub.f32 1.0, %v7082
    %v7339 = vsub.f32 1.0, %v7083
    %v7340 = vsub.f32 1.0, %v7084
    %v7341 = vsub.f32 1.0, %v7085
    %v7342 = vsub.f32 1.0, %v7086
    %v7343 = vsub.f32 1.0, %v7087
    %v7344 = vsub.f32 1.0, %v7088
    %v7345 = vsub.f32 1.0, %v7089
    %v7346 = vsub.f32 1.0, %v7090
    %v7347 = vsub.f32 1.0, %v7091
    %v7348 = vsub.f32 1.0, %v7092
    %v7349 = vsub.f32 1.0, %v7093
    %v7350 = vsub.f32 1.0, %v7094
    %v7351 = vsub.f32 1.0, %v7095
    %v7352 = vsub.f32 1.0, %v7096
    %v7353 = vsub.f32 1.0, %v7097
    %v7354 = vsub.f32 1.0, %v7098
    %v7355 = vsub.f32 1.0, %v7099
    %v7356 = vsub.f32 1.0, %v7100
    %v7357 = vsub.f32 1.0, %v7101
    %v7358 = vsub.f32 1.0, %v7102
    %v7359 = vsub.f32 1.0, %v7103
    %v7360 = vsub.f32 1.0, %v7104
    %v7361 = vsub.f32 1.0, %v7105
    %v7362 = vsub.f32 1.0, %v7106
    %v7363 = vsub.f32 1.0, %v7107
    %v7364 = vsub.f32 1.0, %v7108
    %v7365 = vsub.f32 1.0, %v7109
    %v7366 = vsub.f32 1.0, %v7110
    %v7367 = vsub.f32 1.0, %v7111
    %v7368 = vsub.f32 1.0, %v7112
    %v7369 = vsub.f32 1.0, %v7113
    %v7370 = vsub.f32 1.0, %v7114
    %v7371 = vsub.f32 1.0, %v7115
    %v7372 = vsub.f32 1.0, %v7116
    %v7373 = vsub.f32 1.0, %v7117
    %v7374 = vsub.f32 1.0, %v7118
    %v7375 = vsub.f32 1.0, %v7119
    %v7376 = vsub.f32 1.0, %v7120
    %v7377 = vsub.f32 1.0, %v7121
    %v7378 = vsub.f32 1.0, %v7122
    %v7379 = vsub.f32 1.0, %v7123
    %v7380 = vsub.f32 1.0, %v7124
    %v7381 = vsub.f32 1.0, %v7125
    %v7382 = vsub.f32 1.0, %v7126
    %v7383 = vsub.f32 1.0, %v7127
    %v7384 = vsub.f32 1.0, %v7128
    %v7385 = vsub.f32 1.0, %v7129
    %v7386 = vsub.f32 1.0, %v7130
    %v7387 = vsub.f32 1.0, %v7131
    %v7388 = vsub.f32 1.0, %v7132
    %v7389 = vsub.f32 1.0, %v7133
    %v7390 = vsub.f32 1.0, %v7134
    %v7391 = vsub.f32 1.0, %v7135
    %v7392 = vsub.f32 1.0, %v7136
    %v7393 = vsub.f32 1.0, %v7137
    %v7394 = vsub.f32 1.0, %v7138
    %v7395 = vsub.f32 1.0, %v7139
    %v7396 = vsub.f32 1.0, %v7140
    %v7397 = vsub.f32 1.0, %v7141
    %v7398 = vsub.f32 1.0, %v7142
    %v7399 = vsub.f32 1.0, %v7143
    %v7400 = vsub.f32 1.0, %v7144
    %v7401 = vsub.f32 1.0, %v7145
    %v7402 = vsub.f32 1.0, %v7146
    %v7403 = vsub.f32 1.0, %v7147
    %v7404 = vsub.f32 1.0, %v7148
    %v7405 = vsub.f32 1.0, %v7149
    %v7406 = vsub.f32 1.0, %v7150
    %v7407 = vsub.f32 1.0, %v7151
    %v7408 = vsub.f32 1.0, %v7152
    %v7409 = vsub.f32 1.0, %v7153
    %v7410 = vsub.f32 1.0, %v7154
    %v7411 = vsub.f32 1.0, %v7155
    %v7412 = vsub.f32 1.0, %v7156
    %v7413 = vsub.f32 1.0, %v7157
    %v7414 = vsub.f32 1.0, %v7158
    %v7415 = vsub.f32 1.0, %v7159
    %v7416 = vsub.f32 1.0, %v7160
    %v7417 = vsub.f32 1.0, %v7161
    %v7418 = vsub.f32 1.0, %v7162
    %v7419 = vsub.f32 1.0, %v7163
    %v7420 = vsub.f32 1.0, %v7164
    %v7421 = vsub.f32 1.0, %v7165
    %v7422 = vsub.f32 1.0, %v7166
    %v7423 = vsub.f32 1.0, %v7167
    %v7424 = vsub.f32 1.0, %v7168
    %v7425 = vsub.f32 1.0, %v7169
    %v7426 = vsub.f32 1.0, %v7170
    %v7427 = vsub.f32 1.0, %v7171
    %v7428 = vsub.f32 1.0, %v7172
    %v7429 = vsub.f32 1.0, %v7173
    %v7430 = vsub.f32 1.0, %v7174
    %v7431 = vsub.f32 1.0, %v7175
    %v7432 = vsub.f32 1.0, %v7176
    %v7433 = vsub.f32 1.0, %v7177
    %v7434 = vsub.f32 1.0, %v7178
    %v7435 = vsub.f32 1.0, %v7179
    %v7436 = vsub.f32 1.0, %v7180
    %v7437 = vsub.f32 1.0, %v7181
    %v7438 = vsub.f32 1.0, %v7182
    %v7439 = vsub.f32 1.0, %v7183
    %v7440 = vsub.f32 1.0, %v7184
    %v7441 = vsub.f32 1.0, %v7185
    %v7442 = vsub.f32 1.0, %v7186
    %v7443 = vsub.f32 1.0, %v7187
    %v7444 = vsub.f32 1.0, %v7188
    %v7445 = vsub.f32 1.0, %v7189
    %v7446 = vsub.f32 1.0, %v7190
    %v7447 = vsub.f32 1.0, %v7191
    %v7448 = vsub.f32 1.0, %v7192
    %v7449 = vsub.f32 1.0, %v7193
    %v7450 = vsub.f32 1.0, %v7194
    %v7451 = vsub.f32 1.0, %v7195
    %v7452 = vsub.f32 1.0, %v7196
    %v7453 = vsub.f32 1.0, %v7197
    %v7454 = vsub.f32 1.0, %v7198
    %v7455 = vsub.f32 1.0, %v7199
    %v7456 = vsub.f32 1.0, %v7200
    %v7457 = vsub.f32 1.0, %v7201
    %v7458 = vsub.f32 1.0, %v7202
    %v7459 = vsub.f32 1.0, %v7203
    %v7460 = vsub.f32 1.0, %v7204
    %v7461 = vsub.f32 1.0, %v7205
    %v7462 = vsub.f32 1.0, %v7206
    %v7463 = vsub.f32 1.0, %v7207
    %v7464 = vsub.f32 1.0, %v7208
    %v7465 = vsub.f32 1.0, %v7209
    %v7466 = vsub.f32 1.0, %v7210
    %v7467 = vsub.f32 1.0, %v7211
    %v7468 = vsub.f32 1.0, %v7212
    %v7469 = vsub.f32 1.0, %v7213
    %v7470 = vsub.f32 1.0, %v7214
    %v7471 = vsub.f32 1.0, %v7215
    %v7472 = vsub.f32 1.0, %v7216
    %v7473 = vsub.f32 1.0, %v7217
    %v7474 = vsub.f32 1.0, %v7218
    %v7475 = vsub.f32 1.0, %v7219
    %v7476 = vsub.f32 1.0, %v7220
    %v7477 = vsub.f32 1.0, %v7221
    %v7478 = vsub.f32 1.0, %v7222
    %v7479 = vsub.f32 1.0, %v7223
    %v7480 = vsub.f32 1.0, %v7224
    %v7481 = vsub.f32 1.0, %v7225
    %v7482 = vsub.f32 1.0, %v7226
    %v7483 = vsub.f32 1.0, %v7227
    %v7484 = vsub.f32 1.0, %v7228
    %v7485 = vsub.f32 1.0, %v7229
    %v7486 = vsub.f32 1.0, %v7230
    %v7487 = vsub.f32 1.0, %v7231
    %v7488 = vsub.f32 1.0, %v7232
    %v7489 = vsub.f32 1.0, %v7233
    %v7490 = vsub.f32 1.0, %v7234
    %v7491 = vsub.f32 1.0, %v7235
    %v7492 = vsub.f32 1.0, %v7236
    %v7493 = vsub.f32 1.0, %v7237
    %v7494 = vsub.f32 1.0, %v7238
    %v7495 = vsub.f32 1.0, %v7239
    %v7496 = vsub.f32 1.0, %v7240
    %v7497 = vsub.f32 1.0, %v7241
    %v7498 = vsub.f32 1.0, %v7242
    %v7499 = vsub.f32 1.0, %v7243
    %v7500 = vsub.f32 1.0, %v7244
    %v7501 = vsub.f32 1.0, %v7245
    %v7502 = vsub.f32 1.0, %v7246
    %v7503 = vsub.f32 1.0, %v7247
    %v7504 = vsub.f32 1.0, %v7248
    %v7505 = vsub.f32 1.0, %v7249
    %v7506 = vsub.f32 1.0, %v7250
    %v7507 = vsub.f32 1.0, %v7251
    %v7508 = vsub.f32 1.0, %v7252
    %v7509 = vsub.f32 1.0, %v7253
    %v7510 = vsub.f32 1.0, %v7254
    %v7511 = vsub.f32 1.0, %v7255
    %v7512 = vsub.f32 1.0, %v7256
    %v7513 = vsub.f32 1.0, %v7257
    %v7514 = vsub.f32 1.0, %v7258
    %v7515 = vsub.f32 1.0, %v7259
    %v7516 = vsub.f32 1.0, %v7260
    %v7517 = vsub.f32 1.0, %v7261
    %v7518 = vsub.f32 1.0, %v7262
    %v7519 = vsub.f32 1.0, %v7263
    %v7520 = vsub.f32 1.0, %v7264
    %v7521 = vsub.f32 1.0, %v7265
    %v7522 = vsub.f32 1.0, %v7266
    %v7523 = vsub.f32 1.0, %v7267
    %v7524 = vsub.f32 1.0, %v7268
    %v7525 = vsub.f32 1.0, %v7269
    %v7526 = vsub.f32 1.0, %v7270
    %v7527 = vsub.f32 1.0, %v7271
    %v7528 = vsub.f32 1.0, %v7272
    %v7529 = vsub.f32 1.0, %v7273
    %v7530 = vsub.f32 1.0, %v7274
    %v7531 = vsub.f32 1.0, %v7275
    %v7532 = vsub.f32 1.0, %v7276
    %v7533 = vsub.f32 1.0, %v7277
    %v7534 = vsub.f32 1.0, %v7278
    %v7535 = vsub.f32 1.0, %v7279
    %v7536 = vsub.f32 1.0, %v7280
    %v7537 = vsub.f32 1.0, %v7281
    %v7538 = vsub.f32 1.0, %v7282
    %v7539 = vsub.f32 1.0, %v7283
    %v7540 = vsub.f32 1.0, %v7284
    %v7541 = vsub.f32 1.0, %v7285
    %v7542 = vsub.f32 1.0, %v7286
    %v7543 = vsub.f32 1.0, %v7287
    %v7544 = vsub.f32 1.0, %v7288
    %v7545 = vsub.f32 1.0, %v7289
    %v7546 = vsub.f32 1.0, %v7290
    %v7547 = vmax.f32 %v7291, 0.0
    %v7548 = vmax.f32 %v7292, 0.0
    %v7549 = vmax.f32 %v7293, 0.0
    %v7550 = vmax.f32 %v7294, 0.0
    %v7551 = vmax.f32 %v7295, 0.0
    %v7552 = vmax.f32 %v7296, 0.0
    %v7553 = vmax.f32 %v7297, 0.0
    %v7554 = vmax.f32 %v7298, 0.0
    %v7555 = vmax.f32 %v7299, 0.0
    %v7556 = vmax.f32 %v7300, 0.0
    %v7557 = vmax.f32 %v7301, 0.0
    %v7558 = vmax.f32 %v7302, 0.0
    %v7559 = vmax.f32 %v7303, 0.0
    %v7560 = vmax.f32 %v7304, 0.0
    %v7561 = vmax.f32 %v7305, 0.0
    %v7562 = vmax.f32 %v7306, 0.0
    %v7563 = vmax.f32 %v7307, 0.0
    %v7564 = vmax.f32 %v7308, 0.0
    %v7565 = vmax.f32 %v7309, 0.0
    %v7566 = vmax.f32 %v7310, 0.0
    %v7567 = vmax.f32 %v7311, 0.0
    %v7568 = vmax.f32 %v7312, 0.0
    %v7569 = vmax.f32 %v7313, 0.0
    %v7570 = vmax.f32 %v7314, 0.0
    %v7571 = vmax.f32 %v7315, 0.0
    %v7572 = vmax.f32 %v7316, 0.0
    %v7573 = vmax.f32 %v7317, 0.0
    %v7574 = vmax.f32 %v7318, 0.0
    %v7575 = vmax.f32 %v7319, 0.0
    %v7576 = vmax.f32 %v7320, 0.0
    %v7577 = vmax.f32 %v7321, 0.0
    %v7578 = vmax.f32 %v7322, 0.0
    %v7579 = vmax.f32 %v7323, 0.0
    %v7580 = vmax.f32 %v7324, 0.0
    %v7581 = vmax.f32 %v7325, 0.0
    %v7582 = vmax.f32 %v7326, 0.0
    %v7583 = vmax.f32 %v7327, 0.0
    %v7584 = vmax.f32 %v7328, 0.0
    %v7585 = vmax.f32 %v7329, 0.0
    %v7586 = vmax.f32 %v7330, 0.0
    %v7587 = vmax.f32 %v7331, 0.0
    %v7588 = vmax.f32 %v7332, 0.0
    %v7589 = vmax.f32 %v7333, 0.0
    %v7590 = vmax.f32 %v7334, 0.0
    %v7591 = vmax.f32 %v7335, 0.0
    %v7592 = vmax.f32 %v7336, 0.0
    %v7593 = vmax.f32 %v7337, 0.0
    %v7594 = vmax.f32 %v7338, 0.0
    %v7595 = vmax.f32 %v7339, 0.0
    %v7596 = vmax.f32 %v7340, 0.0
    %v7597 = vmax.f32 %v7341, 0.0
    %v7598 = vmax.f32 %v7342, 0.0
    %v7599 = vmax.f32 %v7343, 0.0
    %v7600 = vmax.f32 %v7344, 0.0
    %v7601 = vmax.f32 %v7345, 0.0
    %v7602 = vmax.f32 %v7346, 0.0
    %v7603 = vmax.f32 %v7347, 0.0
    %v7604 = vmax.f32 %v7348, 0.0
    %v7605 = vmax.f32 %v7349, 0.0
    %v7606 = vmax.f32 %v7350, 0.0
    %v7607 = vmax.f32 %v7351, 0.0
    %v7608 = vmax.f32 %v7352, 0.0
    %v7609 = vmax.f32 %v7353, 0.0
    %v7610 = vmax.f32 %v7354, 0.0
    %v7611 = vmax.f32 %v7355, 0.0
    %v7612 = vmax.f32 %v7356, 0.0
    %v7613 = vmax.f32 %v7357, 0.0
    %v7614 = vmax.f32 %v7358, 0.0
    %v7615 = vmax.f32 %v7359, 0.0
    %v7616 = vmax.f32 %v7360, 0.0
    %v7617 = vmax.f32 %v7361, 0.0
    %v7618 = vmax.f32 %v7362, 0.0
    %v7619 = vmax.f32 %v7363, 0.0
    %v7620 = vmax.f32 %v7364, 0.0
    %v7621 = vmax.f32 %v7365, 0.0
    %v7622 = vmax.f32 %v7366, 0.0
    %v7623 = vmax.f32 %v7367, 0.0
    %v7624 = vmax.f32 %v7368, 0.0
    %v7625 = vmax.f32 %v7369, 0.0
    %v7626 = vmax.f32 %v7370, 0.0
    %v7627 = vmax.f32 %v7371, 0.0
    %v7628 = vmax.f32 %v7372, 0.0
    %v7629 = vmax.f32 %v7373, 0.0
    %v7630 = vmax.f32 %v7374, 0.0
    %v7631 = vmax.f32 %v7375, 0.0
    %v7632 = vmax.f32 %v7376, 0.0
    %v7633 = vmax.f32 %v7377, 0.0
    %v7634 = vmax.f32 %v7378, 0.0
    %v7635 = vmax.f32 %v7379, 0.0
    %v7636 = vmax.f32 %v7380, 0.0
    %v7637 = vmax.f32 %v7381, 0.0
    %v7638 = vmax.f32 %v7382, 0.0
    %v7639 = vmax.f32 %v7383, 0.0
    %v7640 = vmax.f32 %v7384, 0.0
    %v7641 = vmax.f32 %v7385, 0.0
    %v7642 = vmax.f32 %v7386, 0.0
    %v7643 = vmax.f32 %v7387, 0.0
    %v7644 = vmax.f32 %v7388, 0.0
    %v7645 = vmax.f32 %v7389, 0.0
    %v7646 = vmax.f32 %v7390, 0.0
    %v7647 = vmax.f32 %v7391, 0.0
    %v7648 = vmax.f32 %v7392, 0.0
    %v7649 = vmax.f32 %v7393, 0.0
    %v7650 = vmax.f32 %v7394, 0.0
    %v7651 = vmax.f32 %v7395, 0.0
    %v7652 = vmax.f32 %v7396, 0.0
    %v7653 = vmax.f32 %v7397, 0.0
    %v7654 = vmax.f32 %v7398, 0.0
    %v7655 = vmax.f32 %v7399, 0.0
    %v7656 = vmax.f32 %v7400, 0.0
    %v7657 = vmax.f32 %v7401, 0.0
    %v7658 = vmax.f32 %v7402, 0.0
    %v7659 = vmax.f32 %v7403, 0.0
    %v7660 = vmax.f32 %v7404, 0.0
    %v7661 = vmax.f32 %v7405, 0.0
    %v7662 = vmax.f32 %v7406, 0.0
    %v7663 = vmax.f32 %v7407, 0.0
    %v7664 = vmax.f32 %v7408, 0.0
    %v7665 = vmax.f32 %v7409, 0.0
    %v7666 = vmax.f32 %v7410, 0.0
    %v7667 = vmax.f32 %v7411, 0.0
    %v7668 = vmax.f32 %v7412, 0.0
    %v7669 = vmax.f32 %v7413, 0.0
    %v7670 = vmax.f32 %v7414, 0.0
    %v7671 = vmax.f32 %v7415, 0.0
    %v7672 = vmax.f32 %v7416, 0.0
    %v7673 = vmax.f32 %v7417, 0.0
    %v7674 = vmax.f32 %v7418, 0.0
    %v7675 = vmax.f32 %v7419, 0.0
    %v7676 = vmax.f32 %v7420, 0.0
    %v7677 = vmax.f32 %v7421, 0.0
    %v7678 = vmax.f32 %v7422, 0.0
    %v7679 = vmax.f32 %v7423, 0.0
    %v7680 = vmax.f32 %v7424, 0.0
    %v7681 = vmax.f32 %v7425, 0.0
    %v7682 = vmax.f32 %v7426, 0.0
    %v7683 = vmax.f32 %v7427, 0.0
    %v7684 = vmax.f32 %v7428, 0.0
    %v7685 = vmax.f32 %v7429, 0.0
    %v7686 = vmax.f32 %v7430, 0.0
    %v7687 = vmax.f32 %v7431, 0.0
    %v7688 = vmax.f32 %v7432, 0.0
    %v7689 = vmax.f32 %v7433, 0.0
    %v7690 = vmax.f32 %v7434, 0.0
    %v7691 = vmax.f32 %v7435, 0.0
    %v7692 = vmax.f32 %v7436, 0.0
    %v7693 = vmax.f32 %v7437, 0.0
    %v7694 = vmax.f32 %v7438, 0.0
    %v7695 = vmax.f32 %v7439, 0.0
    %v7696 = vmax.f32 %v7440, 0.0
    %v7697 = vmax.f32 %v7441, 0.0
    %v7698 = vmax.f32 %v7442, 0.0
    %v7699 = vmax.f32 %v7443, 0.0
    %v7700 = vmax.f32 %v7444, 0.0
    %v7701 = vmax.f32 %v7445, 0.0
    %v7702 = vmax.f32 %v7446, 0.0
    %v7703 = vmax.f32 %v7447, 0.0
    %v7704 = vmax.f32 %v7448, 0.0
    %v7705 = vmax.f32 %v7449, 0.0
    %v7706 = vmax.f32 %v7450, 0.0
    %v7707 = vmax.f32 %v7451, 0.0
    %v7708 = vmax.f32 %v7452, 0.0
    %v7709 = vmax.f32 %v7453, 0.0
    %v7710 = vmax.f32 %v7454, 0.0
    %v7711 = vmax.f32 %v7455, 0.0
    %v7712 = vmax.f32 %v7456, 0.0
    %v7713 = vmax.f32 %v7457, 0.0
    %v7714 = vmax.f32 %v7458, 0.0
    %v7715 = vmax.f32 %v7459, 0.0
    %v7716 = vmax.f32 %v7460, 0.0
    %v7717 = vmax.f32 %v7461, 0.0
    %v7718 = vmax.f32 %v7462, 0.0
    %v7719 = vmax.f32 %v7463, 0.0
    %v7720 = vmax.f32 %v7464, 0.0
    %v7721 = vmax.f32 %v7465, 0.0
    %v7722 = vmax.f32 %v7466, 0.0
    %v7723 = vmax.f32 %v7467, 0.0
    %v7724 = vmax.f32 %v7468, 0.0
    %v7725 = vmax.f32 %v7469, 0.0
    %v7726 = vmax.f32 %v7470, 0.0
    %v7727 = vmax.f32 %v7471, 0.0
    %v7728 = vmax.f32 %v7472, 0.0
    %v7729 = vmax.f32 %v7473, 0.0
    %v7730 = vmax.f32 %v7474, 0.0
    %v7731 = vmax.f32 %v7475, 0.0
    %v7732 = vmax.f32 %v7476, 0.0
    %v7733 = vmax.f32 %v7477, 0.0
    %v7734 = vmax.f32 %v7478, 0.0
    %v7735 = vmax.f32 %v7479, 0.0
    %v7736 = vmax.f32 %v7480, 0.0
    %v7737 = vmax.f32 %v7481, 0.0
    %v7738 = vmax.f32 %v7482, 0.0
    %v7739 = vmax.f32 %v7483, 0.0
    %v7740 = vmax.f32 %v7484, 0.0
    %v7741 = vmax.f32 %v7485, 0.0
    %v7742 = vmax.f32 %v7486, 0.0
    %v7743 = vmax.f32 %v7487, 0.0
    %v7744 = vmax.f32 %v7488, 0.0
    %v7745 = vmax.f32 %v7489, 0.0
    %v7746 = vmax.f32 %v7490, 0.0
    %v7747 = vmax.f32 %v7491, 0.0
    %v7748 = vmax.f32 %v7492, 0.0
    %v7749 = vmax.f32 %v7493, 0.0
    %v7750 = vmax.f32 %v7494, 0.0
    %v7751 = vmax.f32 %v7495, 0.0
    %v7752 = vmax.f32 %v7496, 0.0
    %v7753 = vmax.f32 %v7497, 0.0
    %v7754 = vmax.f32 %v7498, 0.0
    %v7755 = vmax.f32 %v7499, 0.0
    %v7756 = vmax.f32 %v7500, 0.0
    %v7757 = vmax.f32 %v7501, 0.0
    %v7758 = vmax.f32 %v7502, 0.0
    %v7759 = vmax.f32 %v7503, 0.0
    %v7760 = vmax.f32 %v7504, 0.0
    %v7761 = vmax.f32 %v7505, 0.0
    %v7762 = vmax.f32 %v7506, 0.0
    %v7763 = vmax.f32 %v7507, 0.0
    %v7764 = vmax.f32 %v7508, 0.0
    %v7765 = vmax.f32 %v7509, 0.0
    %v7766 = vmax.f32 %v7510, 0.0
    %v7767 = vmax.f32 %v7511, 0.0
    %v7768 = vmax.f32 %v7512, 0.0
    %v7769 = vmax.f32 %v7513, 0.0
    %v7770 = vmax.f32 %v7514, 0.0
    %v7771 = vmax.f32 %v7515, 0.0
    %v7772 = vmax.f32 %v7516, 0.0
    %v7773 = vmax.f32 %v7517, 0.0
    %v7774 = vmax.f32 %v7518, 0.0
    %v7775 = vmax.f32 %v7519, 0.0
    %v7776 = vmax.f32 %v7520, 0.0
    %v7777 = vmax.f32 %v7521, 0.0
    %v7778 = vmax.f32 %v7522, 0.0
    %v7779 = vmax.f32 %v7523, 0.0
    %v7780 = vmax.f32 %v7524, 0.0
    %v7781 = vmax.f32 %v7525, 0.0
    %v7782 = vmax.f32 %v7526, 0.0
    %v7783 = vmax.f32 %v7527, 0.0
    %v7784 = vmax.f32 %v7528, 0.0
    %v7785 = vmax.f32 %v7529, 0.0
    %v7786 = vmax.f32 %v7530, 0.0
    %v7787 = vmax.f32 %v7531, 0.0
    %v7788 = vmax.f32 %v7532, 0.0
    %v7789 = vmax.f32 %v7533, 0.0
    %v7790 = vmax.f32 %v7534, 0.0
    %v7791 = vmax.f32 %v7535, 0.0
    %v7792 = vmax.f32 %v7536, 0.0
    %v7793 = vmax.f32 %v7537, 0.0
    %v7794 = vmax.f32 %v7538, 0.0
    %v7795 = vmax.f32 %v7539, 0.0
    %v7796 = vmax.f32 %v7540, 0.0
    %v7797 = vmax.f32 %v7541, 0.0
    %v7798 = vmax.f32 %v7542, 0.0
    %v7799 = vmax.f32 %v7543, 0.0
    %v7800 = vmax.f32 %v7544, 0.0
    %v7801 = vmax.f32 %v7545, 0.0
    %v7802 = vmax.f32 %v7546, 0.0
    %v7803 = vmul.f32 %v7547, %v3955
    %v7804 = vmul.f32 %v7548, %v3956
    %v7805 = vmul.f32 %v7549, %v3957
    %v7806 = vmul.f32 %v7550, %v3958
    %v7807 = vmul.f32 %v7551, %v3959
    %v7808 = vmul.f32 %v7552, %v3960
    %v7809 = vmul.f32 %v7553, %v3961
    %v7810 = vmul.f32 %v7554, %v3962
    %v7811 = vmul.f32 %v7555, %v3963
    %v7812 = vmul.f32 %v7556, %v3964
    %v7813 = vmul.f32 %v7557, %v3965
    %v7814 = vmul.f32 %v7558, %v3966
    %v7815 = vmul.f32 %v7559, %v3967
    %v7816 = vmul.f32 %v7560, %v3968
    %v7817 = vmul.f32 %v7561, %v3969
    %v7818 = vmul.f32 %v7562, %v3970
    %v7819 = vmul.f32 %v7563, %v3971
    %v7820 = vmul.f32 %v7564, %v3972
    %v7821 = vmul.f32 %v7565, %v3973
    %v7822 = vmul.f32 %v7566, %v3974
    %v7823 = vmul.f32 %v7567, %v3975
    %v7824 = vmul.f32 %v7568, %v3976
    %v7825 = vmul.f32 %v7569, %v3977
    %v7826 = vmul.f32 %v7570, %v3978
    %v7827 = vmul.f32 %v7571, %v3979
    %v7828 = vmul.f32 %v7572, %v3980
    %v7829 = vmul.f32 %v7573, %v3981
    %v7830 = vmul.f32 %v7574, %v3982
    %v7831 = vmul.f32 %v7575, %v3983
    %v7832 = vmul.f32 %v7576, %v3984
    %v7833 = vmul.f32 %v7577, %v3985
    %v7834 = vmul.f32 %v7578, %v3986
    %v7835 = vmul.f32 %v7579, %v3987
    %v7836 = vmul.f32 %v7580, %v3988
    %v7837 = vmul.f32 %v7581, %v3989
    %v7838 = vmul.f32 %v7582, %v3990
    %v7839 = vmul.f32 %v7583, %v3991
    %v7840 = vmul.f32 %v7584, %v3992
    %v7841 = vmul.f32 %v7585, %v3993
    %v7842 = vmul.f32 %v7586, %v3994
    %v7843 = vmul.f32 %v7587, %v3995
    %v7844 = vmul.f32 %v7588, %v3996
    %v7845 = vmul.f32 %v7589, %v3997
    %v7846 = vmul.f32 %v7590, %v3998
    %v7847 = vmul.f32 %v7591, %v3999
    %v7848 = vmul.f32 %v7592, %v4000
    %v7849 = vmul.f32 %v7593, %v4001
    %v7850 = vmul.f32 %v7594, %v4002
    %v7851 = vmul.f32 %v7595, %v4003
    %v7852 = vmul.f32 %v7596, %v4004
    %v7853 = vmul.f32 %v7597, %v4005
    %v7854 = vmul.f32 %v7598, %v4006
    %v7855 = vmul.f32 %v7599, %v4007
    %v7856 = vmul.f32 %v7600, %v4008
    %v7857 = vmul.f32 %v7601, %v4009
    %v7858 = vmul.f32 %v7602, %v4010
    %v7859 = vmul.f32 %v7603, %v4011
    %v7860 = vmul.f32 %v7604, %v4012
    %v7861 = vmul.f32 %v7605, %v4013
    %v7862 = vmul.f32 %v7606, %v4014
    %v7863 = vmul.f32 %v7607, %v4015
    %v7864 = vmul.f32 %v7608, %v4016
    %v7865 = vmul.f32 %v7609, %v4017
    %v7866 = vmul.f32 %v7610, %v4018
    %v7867 = vmul.f32 %v7611, %v4019
    %v7868 = vmul.f32 %v7612, %v4020
    %v7869 = vmul.f32 %v7613, %v4021
    %v7870 = vmul.f32 %v7614, %v4022
    %v7871 = vmul.f32 %v7615, %v4023
    %v7872 = vmul.f32 %v7616, %v4024
    %v7873 = vmul.f32 %v7617, %v4025
    %v7874 = vmul.f32 %v7618, %v4026
    %v7875 = vmul.f32 %v7619, %v4027
    %v7876 = vmul.f32 %v7620, %v4028
    %v7877 = vmul.f32 %v7621, %v4029
    %v7878 = vmul.f32 %v7622, %v4030
    %v7879 = vmul.f32 %v7623, %v4031
    %v7880 = vmul.f32 %v7624, %v4032
    %v7881 = vmul.f32 %v7625, %v4033
    %v7882 = vmul.f32 %v7626, %v4034
    %v7883 = vmul.f32 %v7627, %v4035
    %v7884 = vmul.f32 %v7628, %v4036
    %v7885 = vmul.f32 %v7629, %v4037
    %v7886 = vmul.f32 %v7630, %v4038
    %v7887 = vmul.f32 %v7631, %v4039
    %v7888 = vmul.f32 %v7632, %v4040
    %v7889 = vmul.f32 %v7633, %v4041
    %v7890 = vmul.f32 %v7634, %v4042
    %v7891 = vmul.f32 %v7635, %v4043
    %v7892 = vmul.f32 %v7636, %v4044
    %v7893 = vmul.f32 %v7637, %v4045
    %v7894 = vmul.f32 %v7638, %v4046
    %v7895 = vmul.f32 %v7639, %v4047
    %v7896 = vmul.f32 %v7640, %v4048
    %v7897 = vmul.f32 %v7641, %v4049
    %v7898 = vmul.f32 %v7642, %v4050
    %v7899 = vmul.f32 %v7643, %v4051
    %v7900 = vmul.f32 %v7644, %v4052
    %v7901 = vmul.f32 %v7645, %v4053
    %v7902 = vmul.f32 %v7646, %v4054
    %v7903 = vmul.f32 %v7647, %v4055
    %v7904 = vmul.f32 %v7648, %v4056
    %v7905 = vmul.f32 %v7649, %v4057
    %v7906 = vmul.f32 %v7650, %v4058
    %v7907 = vmul.f32 %v7651, %v4059
    %v7908 = vmul.f32 %v7652, %v4060
    %v7909 = vmul.f32 %v7653, %v4061
    %v7910 = vmul.f32 %v7654, %v4062
    %v7911 = vmul.f32 %v7655, %v4063
    %v7912 = vmul.f32 %v7656, %v4064
    %v7913 = vmul.f32 %v7657, %v4065
    %v7914 = vmul.f32 %v7658, %v4066
    %v7915 = vmul.f32 %v7659, %v4067
    %v7916 = vmul.f32 %v7660, %v4068
    %v7917 = vmul.f32 %v7661, %v4069
    %v7918 = vmul.f32 %v7662, %v4070
    %v7919 = vmul.f32 %v7663, %v4071
    %v7920 = vmul.f32 %v7664, %v4072
    %v7921 = vmul.f32 %v7665, %v4073
    %v7922 = vmul.f32 %v7666, %v4074
    %v7923 = vmul.f32 %v7667, %v4075
    %v7924 = vmul.f32 %v7668, %v4076
    %v7925 = vmul.f32 %v7669, %v4077
    %v7926 = vmul.f32 %v7670, %v4078
    %v7927 = vmul.f32 %v7671, %v4079
    %v7928 = vmul.f32 %v7672, %v4080
    %v7929 = vmul.f32 %v7673, %v4081
    %v7930 = vmul.f32 %v7674, %v4082
    %v7931 = vmul.f32 %v7675, %v4083
    %v7932 = vmul.f32 %v7676, %v4084
    %v7933 = vmul.f32 %v7677, %v4085
    %v7934 = vmul.f32 %v7678, %v4086
    %v7935 = vmul.f32 %v7679, %v4087
    %v7936 = vmul.f32 %v7680, %v4088
    %v7937 = vmul.f32 %v7681, %v4089
    %v7938 = vmul.f32 %v7682, %v4090
    %v7939 = vmul.f32 %v7683, %v4091
    %v7940 = vmul.f32 %v7684, %v4092
    %v7941 = vmul.f32 %v7685, %v4093
    %v7942 = vmul.f32 %v7686, %v4094
    %v7943 = vmul.f32 %v7687, %v4095
    %v7944 = vmul.f32 %v7688, %v4096
    %v7945 = vmul.f32 %v7689, %v4097
    %v7946 = vmul.f32 %v7690, %v4098
    %v7947 = vmul.f32 %v7691, %v4099
    %v7948 = vmul.f32 %v7692, %v4100
    %v7949 = vmul.f32 %v7693, %v4101
    %v7950 = vmul.f32 %v7694, %v4102
    %v7951 = vmul.f32 %v7695, %v4103
    %v7952 = vmul.f32 %v7696, %v4104
    %v7953 = vmul.f32 %v7697, %v4105
    %v7954 = vmul.f32 %v7698, %v4106
    %v7955 = vmul.f32 %v7699, %v4107
    %v7956 = vmul.f32 %v7700, %v4108
    %v7957 = vmul.f32 %v7701, %v4109
    %v7958 = vmul.f32 %v7702, %v4110
    %v7959 = vmul.f32 %v7703, %v4111
    %v7960 = vmul.f32 %v7704, %v4112
    %v7961 = vmul.f32 %v7705, %v4113
    %v7962 = vmul.f32 %v7706, %v4114
    %v7963 = vmul.f32 %v7707, %v4115
    %v7964 = vmul.f32 %v7708, %v4116
    %v7965 = vmul.f32 %v7709, %v4117
    %v7966 = vmul.f32 %v7710, %v4118
    %v7967 = vmul.f32 %v7711, %v4119
    %v7968 = vmul.f32 %v7712, %v4120
    %v7969 = vmul.f32 %v7713, %v4121
    %v7970 = vmul.f32 %v7714, %v4122
    %v7971 = vmul.f32 %v7715, %v4123
    %v7972 = vmul.f32 %v7716, %v4124
    %v7973 = vmul.f32 %v7717, %v4125
    %v7974 = vmul.f32 %v7718, %v4126
    %v7975 = vmul.f32 %v7719, %v4127
    %v7976 = vmul.f32 %v7720, %v4128
    %v7977 = vmul.f32 %v7721, %v4129
    %v7978 = vmul.f32 %v7722, %v4130
    %v7979 = vmul.f32 %v7723, %v4131
    %v7980 = vmul.f32 %v7724, %v4132
    %v7981 = vmul.f32 %v7725, %v4133
    %v7982 = vmul.f32 %v7726, %v4134
    %v7983 = vmul.f32 %v7727, %v4135
    %v7984 = vmul.f32 %v7728, %v4136
    %v7985 = vmul.f32 %v7729, %v4137
    %v7986 = vmul.f32 %v7730, %v4138
    %v7987 = vmul.f32 %v7731, %v4139
    %v7988 = vmul.f32 %v7732, %v4140
    %v7989 = vmul.f32 %v7733, %v4141
    %v7990 = vmul.f32 %v7734, %v4142
    %v7991 = vmul.f32 %v7735, %v4143
    %v7992 = vmul.f32 %v7736, %v4144
    %v7993 = vmul.f32 %v7737, %v4145
    %v7994 = vmul.f32 %v7738, %v4146
    %v7995 = vmul.f32 %v7739, %v4147
    %v7996 = vmul.f32 %v7740, %v4148
    %v7997 = vmul.f32 %v7741, %v4149
    %v7998 = vmul.f32 %v7742, %v4150
    %v7999 = vmul.f32 %v7743, %v4151
    %v8000 = vmul.f32 %v7744, %v4152
    %v8001 = vmul.f32 %v7745, %v4153
    %v8002 = vmul.f32 %v7746, %v4154
    %v8003 = vmul.f32 %v7747, %v4155
    %v8004 = vmul.f32 %v7748, %v4156
    %v8005 = vmul.f32 %v7749, %v4157
    %v8006 = vmul.f32 %v7750, %v4158
    %v8007 = vmul.f32 %v7751, %v4159
    %v8008 = vmul.f32 %v7752, %v4160
    %v8009 = vmul.f32 %v7753, %v4161
    %v8010 = vmul.f32 %v7754, %v4162
    %v8011 = vmul.f32 %v7755, %v4163
    %v8012 = vmul.f32 %v7756, %v4164
    %v8013 = vmul.f32 %v7757, %v4165
    %v8014 = vmul.f32 %v7758, %v4166
    %v8015 = vmul.f32 %v7759, %v4167
    %v8016 = vmul.f32 %v7760, %v4168
    %v8017 = vmul.f32 %v7761, %v4169
    %v8018 = vmul.f32 %v7762, %v4170
    %v8019 = vmul.f32 %v7763, %v4171
    %v8020 = vmul.f32 %v7764, %v4172
    %v8021 = vmul.f32 %v7765, %v4173
    %v8022 = vmul.f32 %v7766, %v4174
    %v8023 = vmul.f32 %v7767, %v4175
    %v8024 = vmul.f32 %v7768, %v4176
    %v8025 = vmul.f32 %v7769, %v4177
    %v8026 = vmul.f32 %v7770, %v4178
    %v8027 = vmul.f32 %v7771, %v4179
    %v8028 = vmul.f32 %v7772, %v4180
    %v8029 = vmul.f32 %v7773, %v4181
    %v8030 = vmul.f32 %v7774, %v4182
    %v8031 = vmul.f32 %v7775, %v4183
    %v8032 = vmul.f32 %v7776, %v4184
    %v8033 = vmul.f32 %v7777, %v4185
    %v8034 = vmul.f32 %v7778, %v4186
    %v8035 = vmul.f32 %v7779, %v4187
    %v8036 = vmul.f32 %v7780, %v4188
    %v8037 = vmul.f32 %v7781, %v4189
    %v8038 = vmul.f32 %v7782, %v4190
    %v8039 = vmul.f32 %v7783, %v4191
    %v8040 = vmul.f32 %v7784, %v4192
    %v8041 = vmul.f32 %v7785, %v4193
    %v8042 = vmul.f32 %v7786, %v4194
    %v8043 = vmul.f32 %v7787, %v4195
    %v8044 = vmul.f32 %v7788, %v4196
    %v8045 = vmul.f32 %v7789, %v4197
    %v8046 = vmul.f32 %v7790, %v4198
    %v8047 = vmul.f32 %v7791, %v4199
    %v8048 = vmul.f32 %v7792, %v4200
    %v8049 = vmul.f32 %v7793, %v4201
    %v8050 = vmul.f32 %v7794, %v4202
    %v8051 = vmul.f32 %v7795, %v4203
    %v8052 = vmul.f32 %v7796, %v4204
    %v8053 = vmul.f32 %v7797, %v4205
    %v8054 = vmul.f32 %v7798, %v4206
    %v8055 = vmul.f32 %v7799, %v4207
    %v8056 = vmul.f32 %v7800, %v4208
    %v8057 = vmul.f32 %v7801, %v4209
    %v8058 = vmul.f32 %v7802, %v4210
    %v8059 = vpack.c.bf16 %v7811, %v7803
    %v8060 = vpack.c.bf16 %v7812, %v7804
    %v8061 = vpack.c.bf16 %v7813, %v7805
    %v8062 = vpack.c.bf16 %v7814, %v7806
    %v8063 = vpack.c.bf16 %v7815, %v7807
    %v8064 = vpack.c.bf16 %v7816, %v7808
    %v8065 = vpack.c.bf16 %v7817, %v7809
    %v8066 = vpack.c.bf16 %v7818, %v7810
    %v8067 = vpack.c.bf16 %v7827, %v7819
    %v8068 = vpack.c.bf16 %v7828, %v7820
    %v8069 = vpack.c.bf16 %v7829, %v7821
    %v8070 = vpack.c.bf16 %v7830, %v7822
    %v8071 = vpack.c.bf16 %v7831, %v7823
    %v8072 = vpack.c.bf16 %v7832, %v7824
    %v8073 = vpack.c.bf16 %v7833, %v7825
    %v8074 = vpack.c.bf16 %v7834, %v7826
    %v8075 = vpack.c.bf16 %v7843, %v7835
    %v8076 = vpack.c.bf16 %v7844, %v7836
    %v8077 = vpack.c.bf16 %v7845, %v7837
    %v8078 = vpack.c.bf16 %v7846, %v7838
    %v8079 = vpack.c.bf16 %v7847, %v7839
    %v8080 = vpack.c.bf16 %v7848, %v7840
    %v8081 = vpack.c.bf16 %v7849, %v7841
    %v8082 = vpack.c.bf16 %v7850, %v7842
    %v8083 = vpack.c.bf16 %v7859, %v7851
    %v8084 = vpack.c.bf16 %v7860, %v7852
    %v8085 = vpack.c.bf16 %v7861, %v7853
    %v8086 = vpack.c.bf16 %v7862, %v7854
    %v8087 = vpack.c.bf16 %v7863, %v7855
    %v8088 = vpack.c.bf16 %v7864, %v7856
    %v8089 = vpack.c.bf16 %v7865, %v7857
    %v8090 = vpack.c.bf16 %v7866, %v7858
    %v8091 = vpack.c.bf16 %v7875, %v7867
    %v8092 = vpack.c.bf16 %v7876, %v7868
    %v8093 = vpack.c.bf16 %v7877, %v7869
    %v8094 = vpack.c.bf16 %v7878, %v7870
    %v8095 = vpack.c.bf16 %v7879, %v7871
    %v8096 = vpack.c.bf16 %v7880, %v7872
    %v8097 = vpack.c.bf16 %v7881, %v7873
    %v8098 = vpack.c.bf16 %v7882, %v7874
    %v8099 = vpack.c.bf16 %v7891, %v7883
    %v8100 = vpack.c.bf16 %v7892, %v7884
    %v8101 = vpack.c.bf16 %v7893, %v7885
    %v8102 = vpack.c.bf16 %v7894, %v7886
    %v8103 = vpack.c.bf16 %v7895, %v7887
    %v8104 = vpack.c.bf16 %v7896, %v7888
    %v8105 = vpack.c.bf16 %v7897, %v7889
    %v8106 = vpack.c.bf16 %v7898, %v7890
    %v8107 = vpack.c.bf16 %v7907, %v7899
    %v8108 = vpack.c.bf16 %v7908, %v7900
    %v8109 = vpack.c.bf16 %v7909, %v7901
    %v8110 = vpack.c.bf16 %v7910, %v7902
    %v8111 = vpack.c.bf16 %v7911, %v7903
    %v8112 = vpack.c.bf16 %v7912, %v7904
    %v8113 = vpack.c.bf16 %v7913, %v7905
    %v8114 = vpack.c.bf16 %v7914, %v7906
    %v8115 = vpack.c.bf16 %v7923, %v7915
    %v8116 = vpack.c.bf16 %v7924, %v7916
    %v8117 = vpack.c.bf16 %v7925, %v7917
    %v8118 = vpack.c.bf16 %v7926, %v7918
    %v8119 = vpack.c.bf16 %v7927, %v7919
    %v8120 = vpack.c.bf16 %v7928, %v7920
    %v8121 = vpack.c.bf16 %v7929, %v7921
    %v8122 = vpack.c.bf16 %v7930, %v7922
    %v8123 = vpack.c.bf16 %v7939, %v7931
    %v8124 = vpack.c.bf16 %v7940, %v7932
    %v8125 = vpack.c.bf16 %v7941, %v7933
    %v8126 = vpack.c.bf16 %v7942, %v7934
    %v8127 = vpack.c.bf16 %v7943, %v7935
    %v8128 = vpack.c.bf16 %v7944, %v7936
    %v8129 = vpack.c.bf16 %v7945, %v7937
    %v8130 = vpack.c.bf16 %v7946, %v7938
    %v8131 = vpack.c.bf16 %v7955, %v7947
    %v8132 = vpack.c.bf16 %v7956, %v7948
    %v8133 = vpack.c.bf16 %v7957, %v7949
    %v8134 = vpack.c.bf16 %v7958, %v7950
    %v8135 = vpack.c.bf16 %v7959, %v7951
    %v8136 = vpack.c.bf16 %v7960, %v7952
    %v8137 = vpack.c.bf16 %v7961, %v7953
    %v8138 = vpack.c.bf16 %v7962, %v7954
    %v8139 = vpack.c.bf16 %v7971, %v7963
    %v8140 = vpack.c.bf16 %v7972, %v7964
    %v8141 = vpack.c.bf16 %v7973, %v7965
    %v8142 = vpack.c.bf16 %v7974, %v7966
    %v8143 = vpack.c.bf16 %v7975, %v7967
    %v8144 = vpack.c.bf16 %v7976, %v7968
    %v8145 = vpack.c.bf16 %v7977, %v7969
    %v8146 = vpack.c.bf16 %v7978, %v7970
    %v8147 = vpack.c.bf16 %v7987, %v7979
    %v8148 = vpack.c.bf16 %v7988, %v7980
    %v8149 = vpack.c.bf16 %v7989, %v7981
    %v8150 = vpack.c.bf16 %v7990, %v7982
    %v8151 = vpack.c.bf16 %v7991, %v7983
    %v8152 = vpack.c.bf16 %v7992, %v7984
    %v8153 = vpack.c.bf16 %v7993, %v7985
    %v8154 = vpack.c.bf16 %v7994, %v7986
    %v8155 = vpack.c.bf16 %v8003, %v7995
    %v8156 = vpack.c.bf16 %v8004, %v7996
    %v8157 = vpack.c.bf16 %v8005, %v7997
    %v8158 = vpack.c.bf16 %v8006, %v7998
    %v8159 = vpack.c.bf16 %v8007, %v7999
    %v8160 = vpack.c.bf16 %v8008, %v8000
    %v8161 = vpack.c.bf16 %v8009, %v8001
    %v8162 = vpack.c.bf16 %v8010, %v8002
    %v8163 = vpack.c.bf16 %v8019, %v8011
    %v8164 = vpack.c.bf16 %v8020, %v8012
    %v8165 = vpack.c.bf16 %v8021, %v8013
    %v8166 = vpack.c.bf16 %v8022, %v8014
    %v8167 = vpack.c.bf16 %v8023, %v8015
    %v8168 = vpack.c.bf16 %v8024, %v8016
    %v8169 = vpack.c.bf16 %v8025, %v8017
    %v8170 = vpack.c.bf16 %v8026, %v8018
    %v8171 = vpack.c.bf16 %v8035, %v8027
    %v8172 = vpack.c.bf16 %v8036, %v8028
    %v8173 = vpack.c.bf16 %v8037, %v8029
    %v8174 = vpack.c.bf16 %v8038, %v8030
    %v8175 = vpack.c.bf16 %v8039, %v8031
    %v8176 = vpack.c.bf16 %v8040, %v8032
    %v8177 = vpack.c.bf16 %v8041, %v8033
    %v8178 = vpack.c.bf16 %v8042, %v8034
    %v8179 = vpack.c.bf16 %v8051, %v8043
    %v8180 = vpack.c.bf16 %v8052, %v8044
    %v8181 = vpack.c.bf16 %v8053, %v8045
    %v8182 = vpack.c.bf16 %v8054, %v8046
    %v8183 = vpack.c.bf16 %v8055, %v8047
    %v8184 = vpack.c.bf16 %v8056, %v8048
    %v8185 = vpack.c.bf16 %v8057, %v8049
    %v8186 = vpack.c.bf16 %v8058, %v8050
    %v8187 = vld [vmem:[#allocation2 + $0x400] sm:$0xf]
    %v8188 = vld [vmem:[#allocation2 + $0x404] sm:$0xf]
    %v8189 = vld [vmem:[#allocation2 + $0x408] sm:$0xf]
    %v8190 = vld [vmem:[#allocation2 + $0x40c] sm:$0xf]
    %v8191 = vld [vmem:[#allocation2 + $0x410] sm:$0xf]
    %v8192 = vld [vmem:[#allocation2 + $0x414] sm:$0xf]
    %v8193 = vld [vmem:[#allocation2 + $0x418] sm:$0xf]
    %v8194 = vld [vmem:[#allocation2 + $0x41c] sm:$0xf]
    %v8195 = vld [vmem:[#allocation2 + $0x420] sm:$0xf]
    %v8196 = vld [vmem:[#allocation2 + $0x424] sm:$0xf]
    %v8197 = vld [vmem:[#allocation2 + $0x428] sm:$0xf]
    %v8198 = vld [vmem:[#allocation2 + $0x42c] sm:$0xf]
    %v8199 = vld [vmem:[#allocation2 + $0x430] sm:$0xf]
    %v8200 = vld [vmem:[#allocation2 + $0x434] sm:$0xf]
    %v8201 = vld [vmem:[#allocation2 + $0x438] sm:$0xf]
    %v8202 = vld [vmem:[#allocation2 + $0x43c] sm:$0xf]
    %v8203 = vld [vmem:[#allocation2 + $0x440] sm:$0xf]
    %v8204 = vld [vmem:[#allocation2 + $0x444] sm:$0xf]
    %v8205 = vld [vmem:[#allocation2 + $0x448] sm:$0xf]
    %v8206 = vld [vmem:[#allocation2 + $0x44c] sm:$0xf]
    %v8207 = vld [vmem:[#allocation2 + $0x450] sm:$0xf]
    %v8208 = vld [vmem:[#allocation2 + $0x454] sm:$0xf]
    %v8209 = vld [vmem:[#allocation2 + $0x458] sm:$0xf]
    %v8210 = vld [vmem:[#allocation2 + $0x45c] sm:$0xf]
    %v8211 = vld [vmem:[#allocation2 + $0x460] sm:$0xf]
    %v8212 = vld [vmem:[#allocation2 + $0x464] sm:$0xf]
    %v8213 = vld [vmem:[#allocation2 + $0x468] sm:$0xf]
    %v8214 = vld [vmem:[#allocation2 + $0x46c] sm:$0xf]
    %v8215 = vld [vmem:[#allocation2 + $0x470] sm:$0xf]
    %v8216 = vld [vmem:[#allocation2 + $0x474] sm:$0xf]
    %v8217 = vld [vmem:[#allocation2 + $0x478] sm:$0xf]
    %v8218 = vld [vmem:[#allocation2 + $0x47c] sm:$0xf]
    %v8219 = vld [vmem:[#allocation2 + $0x480] sm:$0xf]
    %v8220 = vld [vmem:[#allocation2 + $0x484] sm:$0xf]
    %v8221 = vld [vmem:[#allocation2 + $0x488] sm:$0xf]
    %v8222 = vld [vmem:[#allocation2 + $0x48c] sm:$0xf]
    %v8223 = vld [vmem:[#allocation2 + $0x490] sm:$0xf]
    %v8224 = vld [vmem:[#allocation2 + $0x494] sm:$0xf]
    %v8225 = vld [vmem:[#allocation2 + $0x498] sm:$0xf]
    %v8226 = vld [vmem:[#allocation2 + $0x49c] sm:$0xf]
    %v8227 = vld [vmem:[#allocation2 + $0x4a0] sm:$0xf]
    %v8228 = vld [vmem:[#allocation2 + $0x4a4] sm:$0xf]
    %v8229 = vld [vmem:[#allocation2 + $0x4a8] sm:$0xf]
    %v8230 = vld [vmem:[#allocation2 + $0x4ac] sm:$0xf]
    %v8231 = vld [vmem:[#allocation2 + $0x4b0] sm:$0xf]
    %v8232 = vld [vmem:[#allocation2 + $0x4b4] sm:$0xf]
    %v8233 = vld [vmem:[#allocation2 + $0x4b8] sm:$0xf]
    %v8234 = vld [vmem:[#allocation2 + $0x4bc] sm:$0xf]
    %v8235 = vld [vmem:[#allocation2 + $0x4c0] sm:$0xf]
    %v8236 = vld [vmem:[#allocation2 + $0x4c4] sm:$0xf]
    %v8237 = vld [vmem:[#allocation2 + $0x4c8] sm:$0xf]
    %v8238 = vld [vmem:[#allocation2 + $0x4cc] sm:$0xf]
    %v8239 = vld [vmem:[#allocation2 + $0x4d0] sm:$0xf]
    %v8240 = vld [vmem:[#allocation2 + $0x4d4] sm:$0xf]
    %v8241 = vld [vmem:[#allocation2 + $0x4d8] sm:$0xf]
    %v8242 = vld [vmem:[#allocation2 + $0x4dc] sm:$0xf]
    %v8243 = vld [vmem:[#allocation2 + $0x4e0] sm:$0xf]
    %v8244 = vld [vmem:[#allocation2 + $0x4e4] sm:$0xf]
    %v8245 = vld [vmem:[#allocation2 + $0x4e8] sm:$0xf]
    %v8246 = vld [vmem:[#allocation2 + $0x4ec] sm:$0xf]
    %v8247 = vld [vmem:[#allocation2 + $0x4f0] sm:$0xf]
    %v8248 = vld [vmem:[#allocation2 + $0x4f4] sm:$0xf]
    %v8249 = vld [vmem:[#allocation2 + $0x4f8] sm:$0xf]
    %v8250 = vld [vmem:[#allocation2 + $0x4fc] sm:$0xf]
    %v8251 = vld [vmem:[#allocation2 + $0x500] sm:$0xf]
    %v8252 = vld [vmem:[#allocation2 + $0x504] sm:$0xf]
    %v8253 = vld [vmem:[#allocation2 + $0x508] sm:$0xf]
    %v8254 = vld [vmem:[#allocation2 + $0x50c] sm:$0xf]
    %v8255 = vld [vmem:[#allocation2 + $0x510] sm:$0xf]
    %v8256 = vld [vmem:[#allocation2 + $0x514] sm:$0xf]
    %v8257 = vld [vmem:[#allocation2 + $0x518] sm:$0xf]
    %v8258 = vld [vmem:[#allocation2 + $0x51c] sm:$0xf]
    %v8259 = vld [vmem:[#allocation2 + $0x520] sm:$0xf]
    %v8260 = vld [vmem:[#allocation2 + $0x524] sm:$0xf]
    %v8261 = vld [vmem:[#allocation2 + $0x528] sm:$0xf]
    %v8262 = vld [vmem:[#allocation2 + $0x52c] sm:$0xf]
    %v8263 = vld [vmem:[#allocation2 + $0x530] sm:$0xf]
    %v8264 = vld [vmem:[#allocation2 + $0x534] sm:$0xf]
    %v8265 = vld [vmem:[#allocation2 + $0x538] sm:$0xf]
    %v8266 = vld [vmem:[#allocation2 + $0x53c] sm:$0xf]
    %v8267 = vld [vmem:[#allocation2 + $0x540] sm:$0xf]
    %v8268 = vld [vmem:[#allocation2 + $0x544] sm:$0xf]
    %v8269 = vld [vmem:[#allocation2 + $0x548] sm:$0xf]
    %v8270 = vld [vmem:[#allocation2 + $0x54c] sm:$0xf]
    %v8271 = vld [vmem:[#allocation2 + $0x550] sm:$0xf]
    %v8272 = vld [vmem:[#allocation2 + $0x554] sm:$0xf]
    %v8273 = vld [vmem:[#allocation2 + $0x558] sm:$0xf]
    %v8274 = vld [vmem:[#allocation2 + $0x55c] sm:$0xf]
    %v8275 = vld [vmem:[#allocation2 + $0x560] sm:$0xf]
    %v8276 = vld [vmem:[#allocation2 + $0x564] sm:$0xf]
    %v8277 = vld [vmem:[#allocation2 + $0x568] sm:$0xf]
    %v8278 = vld [vmem:[#allocation2 + $0x56c] sm:$0xf]
    %v8279 = vld [vmem:[#allocation2 + $0x570] sm:$0xf]
    %v8280 = vld [vmem:[#allocation2 + $0x574] sm:$0xf]
    %v8281 = vld [vmem:[#allocation2 + $0x578] sm:$0xf]
    %v8282 = vld [vmem:[#allocation2 + $0x57c] sm:$0xf]
    %v8283 = vld [vmem:[#allocation2 + $0x580] sm:$0xf]
    %v8284 = vld [vmem:[#allocation2 + $0x584] sm:$0xf]
    %v8285 = vld [vmem:[#allocation2 + $0x588] sm:$0xf]
    %v8286 = vld [vmem:[#allocation2 + $0x58c] sm:$0xf]
    %v8287 = vld [vmem:[#allocation2 + $0x590] sm:$0xf]
    %v8288 = vld [vmem:[#allocation2 + $0x594] sm:$0xf]
    %v8289 = vld [vmem:[#allocation2 + $0x598] sm:$0xf]
    %v8290 = vld [vmem:[#allocation2 + $0x59c] sm:$0xf]
    %v8291 = vld [vmem:[#allocation2 + $0x5a0] sm:$0xf]
    %v8292 = vld [vmem:[#allocation2 + $0x5a4] sm:$0xf]
    %v8293 = vld [vmem:[#allocation2 + $0x5a8] sm:$0xf]
    %v8294 = vld [vmem:[#allocation2 + $0x5ac] sm:$0xf]
    %v8295 = vld [vmem:[#allocation2 + $0x5b0] sm:$0xf]
    %v8296 = vld [vmem:[#allocation2 + $0x5b4] sm:$0xf]
    %v8297 = vld [vmem:[#allocation2 + $0x5b8] sm:$0xf]
    %v8298 = vld [vmem:[#allocation2 + $0x5bc] sm:$0xf]
    %v8299 = vld [vmem:[#allocation2 + $0x5c0] sm:$0xf]
    %v8300 = vld [vmem:[#allocation2 + $0x5c4] sm:$0xf]
    %v8301 = vld [vmem:[#allocation2 + $0x5c8] sm:$0xf]
    %v8302 = vld [vmem:[#allocation2 + $0x5cc] sm:$0xf]
    %v8303 = vld [vmem:[#allocation2 + $0x5d0] sm:$0xf]
    %v8304 = vld [vmem:[#allocation2 + $0x5d4] sm:$0xf]
    %v8305 = vld [vmem:[#allocation2 + $0x5d8] sm:$0xf]
    %v8306 = vld [vmem:[#allocation2 + $0x5dc] sm:$0xf]
    %v8307 = vld [vmem:[#allocation2 + $0x5e0] sm:$0xf]
    %v8308 = vld [vmem:[#allocation2 + $0x5e4] sm:$0xf]
    %v8309 = vld [vmem:[#allocation2 + $0x5e8] sm:$0xf]
    %v8310 = vld [vmem:[#allocation2 + $0x5ec] sm:$0xf]
    %v8311 = vld [vmem:[#allocation2 + $0x5f0] sm:$0xf]
    %v8312 = vld [vmem:[#allocation2 + $0x5f4] sm:$0xf]
    %v8313 = vld [vmem:[#allocation2 + $0x5f8] sm:$0xf]
    %v8314 = vld [vmem:[#allocation2 + $0x5fc] sm:$0xf]
    %v8443 = vunpack.c.l.b16 %v8187
    %v8444 = vunpack.c.l.b16 %v8188
    %v8445 = vunpack.c.l.b16 %v8189
    %v8446 = vunpack.c.l.b16 %v8190
    %v8447 = vunpack.c.l.b16 %v8191
    %v8448 = vunpack.c.l.b16 %v8192
    %v8449 = vunpack.c.l.b16 %v8193
    %v8450 = vunpack.c.l.b16 %v8194
    %v8451 = vunpack.c.l.b16 %v8195
    %v8452 = vunpack.c.l.b16 %v8196
    %v8453 = vunpack.c.l.b16 %v8197
    %v8454 = vunpack.c.l.b16 %v8198
    %v8455 = vunpack.c.l.b16 %v8199
    %v8456 = vunpack.c.l.b16 %v8200
    %v8457 = vunpack.c.l.b16 %v8201
    %v8458 = vunpack.c.l.b16 %v8202
    %v8459 = vunpack.c.l.b16 %v8203
    %v8460 = vunpack.c.l.b16 %v8204
    %v8461 = vunpack.c.l.b16 %v8205
    %v8462 = vunpack.c.l.b16 %v8206
    %v8463 = vunpack.c.l.b16 %v8207
    %v8464 = vunpack.c.l.b16 %v8208
    %v8465 = vunpack.c.l.b16 %v8209
    %v8466 = vunpack.c.l.b16 %v8210
    %v8467 = vunpack.c.l.b16 %v8211
    %v8468 = vunpack.c.l.b16 %v8212
    %v8469 = vunpack.c.l.b16 %v8213
    %v8470 = vunpack.c.l.b16 %v8214
    %v8471 = vunpack.c.l.b16 %v8215
    %v8472 = vunpack.c.l.b16 %v8216
    %v8473 = vunpack.c.l.b16 %v8217
    %v8474 = vunpack.c.l.b16 %v8218
    %v8475 = vunpack.c.l.b16 %v8219
    %v8476 = vunpack.c.l.b16 %v8220
    %v8477 = vunpack.c.l.b16 %v8221
    %v8478 = vunpack.c.l.b16 %v8222
    %v8479 = vunpack.c.l.b16 %v8223
    %v8480 = vunpack.c.l.b16 %v8224
    %v8481 = vunpack.c.l.b16 %v8225
    %v8482 = vunpack.c.l.b16 %v8226
    %v8483 = vunpack.c.l.b16 %v8227
    %v8484 = vunpack.c.l.b16 %v8228
    %v8485 = vunpack.c.l.b16 %v8229
    %v8486 = vunpack.c.l.b16 %v8230
    %v8487 = vunpack.c.l.b16 %v8231
    %v8488 = vunpack.c.l.b16 %v8232
    %v8489 = vunpack.c.l.b16 %v8233
    %v8490 = vunpack.c.l.b16 %v8234
    %v8491 = vunpack.c.l.b16 %v8235
    %v8492 = vunpack.c.l.b16 %v8236
    %v8493 = vunpack.c.l.b16 %v8237
    %v8494 = vunpack.c.l.b16 %v8238
    %v8495 = vunpack.c.l.b16 %v8239
    %v8496 = vunpack.c.l.b16 %v8240
    %v8497 = vunpack.c.l.b16 %v8241
    %v8498 = vunpack.c.l.b16 %v8242
    %v8499 = vunpack.c.l.b16 %v8243
    %v8500 = vunpack.c.l.b16 %v8244
    %v8501 = vunpack.c.l.b16 %v8245
    %v8502 = vunpack.c.l.b16 %v8246
    %v8503 = vunpack.c.l.b16 %v8247
    %v8504 = vunpack.c.l.b16 %v8248
    %v8505 = vunpack.c.l.b16 %v8249
    %v8506 = vunpack.c.l.b16 %v8250
    %v8507 = vunpack.c.l.b16 %v8251
    %v8508 = vunpack.c.l.b16 %v8252
    %v8509 = vunpack.c.l.b16 %v8253
    %v8510 = vunpack.c.l.b16 %v8254
    %v8511 = vunpack.c.l.b16 %v8255
    %v8512 = vunpack.c.l.b16 %v8256
    %v8513 = vunpack.c.l.b16 %v8257
    %v8514 = vunpack.c.l.b16 %v8258
    %v8515 = vunpack.c.l.b16 %v8259
    %v8516 = vunpack.c.l.b16 %v8260
    %v8517 = vunpack.c.l.b16 %v8261
    %v8518 = vunpack.c.l.b16 %v8262
    %v8519 = vunpack.c.l.b16 %v8263
    %v8520 = vunpack.c.l.b16 %v8264
    %v8521 = vunpack.c.l.b16 %v8265
    %v8522 = vunpack.c.l.b16 %v8266
    %v8523 = vunpack.c.l.b16 %v8267
    %v8524 = vunpack.c.l.b16 %v8268
    %v8525 = vunpack.c.l.b16 %v8269
    %v8526 = vunpack.c.l.b16 %v8270
    %v8527 = vunpack.c.l.b16 %v8271
    %v8528 = vunpack.c.l.b16 %v8272
    %v8529 = vunpack.c.l.b16 %v8273
    %v8530 = vunpack.c.l.b16 %v8274
    %v8531 = vunpack.c.l.b16 %v8275
    %v8532 = vunpack.c.l.b16 %v8276
    %v8533 = vunpack.c.l.b16 %v8277
    %v8534 = vunpack.c.l.b16 %v8278
    %v8535 = vunpack.c.l.b16 %v8279
    %v8536 = vunpack.c.l.b16 %v8280
    %v8537 = vunpack.c.l.b16 %v8281
    %v8538 = vunpack.c.l.b16 %v8282
    %v8539 = vunpack.c.l.b16 %v8283
    %v8540 = vunpack.c.l.b16 %v8284
    %v8541 = vunpack.c.l.b16 %v8285
    %v8542 = vunpack.c.l.b16 %v8286
    %v8543 = vunpack.c.l.b16 %v8287
    %v8544 = vunpack.c.l.b16 %v8288
    %v8545 = vunpack.c.l.b16 %v8289
    %v8546 = vunpack.c.l.b16 %v8290
    %v8547 = vunpack.c.l.b16 %v8291
    %v8548 = vunpack.c.l.b16 %v8292
    %v8549 = vunpack.c.l.b16 %v8293
    %v8550 = vunpack.c.l.b16 %v8294
    %v8551 = vunpack.c.l.b16 %v8295
    %v8552 = vunpack.c.l.b16 %v8296
    %v8553 = vunpack.c.l.b16 %v8297
    %v8554 = vunpack.c.l.b16 %v8298
    %v8555 = vunpack.c.l.b16 %v8299
    %v8556 = vunpack.c.l.b16 %v8300
    %v8557 = vunpack.c.l.b16 %v8301
    %v8558 = vunpack.c.l.b16 %v8302
    %v8559 = vunpack.c.l.b16 %v8303
    %v8560 = vunpack.c.l.b16 %v8304
    %v8561 = vunpack.c.l.b16 %v8305
    %v8562 = vunpack.c.l.b16 %v8306
    %v8563 = vunpack.c.l.b16 %v8307
    %v8564 = vunpack.c.l.b16 %v8308
    %v8565 = vunpack.c.l.b16 %v8309
    %v8566 = vunpack.c.l.b16 %v8310
    %v8567 = vunpack.c.l.b16 %v8311
    %v8568 = vunpack.c.l.b16 %v8312
    %v8569 = vunpack.c.l.b16 %v8313
    %v8570 = vunpack.c.l.b16 %v8314
    %v8571 = vpack.c.b16 %v8444, %v8443
    %v8572 = vpack.c.b16 %v8446, %v8445
    %v8573 = vpack.c.b16 %v8448, %v8447
    %v8574 = vpack.c.b16 %v8450, %v8449
    %v8575 = vpack.c.b16 %v8452, %v8451
    %v8576 = vpack.c.b16 %v8454, %v8453
    %v8577 = vpack.c.b16 %v8456, %v8455
    %v8578 = vpack.c.b16 %v8458, %v8457
    %v8579 = vpack.c.b16 %v8460, %v8459
    %v8580 = vpack.c.b16 %v8462, %v8461
    %v8581 = vpack.c.b16 %v8464, %v8463
    %v8582 = vpack.c.b16 %v8466, %v8465
    %v8583 = vpack.c.b16 %v8468, %v8467
    %v8584 = vpack.c.b16 %v8470, %v8469
    %v8585 = vpack.c.b16 %v8472, %v8471
    %v8586 = vpack.c.b16 %v8474, %v8473
    %v8587 = vpack.c.b16 %v8476, %v8475
    %v8588 = vpack.c.b16 %v8478, %v8477
    %v8589 = vpack.c.b16 %v8480, %v8479
    %v8590 = vpack.c.b16 %v8482, %v8481
    %v8591 = vpack.c.b16 %v8484, %v8483
    %v8592 = vpack.c.b16 %v8486, %v8485
    %v8593 = vpack.c.b16 %v8488, %v8487
    %v8594 = vpack.c.b16 %v8490, %v8489
    %v8595 = vpack.c.b16 %v8492, %v8491
    %v8596 = vpack.c.b16 %v8494, %v8493
    %v8597 = vpack.c.b16 %v8496, %v8495
    %v8598 = vpack.c.b16 %v8498, %v8497
    %v8599 = vpack.c.b16 %v8500, %v8499
    %v8600 = vpack.c.b16 %v8502, %v8501
    %v8601 = vpack.c.b16 %v8504, %v8503
    %v8602 = vpack.c.b16 %v8506, %v8505
    %v8603 = vpack.c.b16 %v8508, %v8507
    %v8604 = vpack.c.b16 %v8510, %v8509
    %v8605 = vpack.c.b16 %v8512, %v8511
    %v8606 = vpack.c.b16 %v8514, %v8513
    %v8607 = vpack.c.b16 %v8516, %v8515
    %v8608 = vpack.c.b16 %v8518, %v8517
    %v8609 = vpack.c.b16 %v8520, %v8519
    %v8610 = vpack.c.b16 %v8522, %v8521
    %v8611 = vpack.c.b16 %v8524, %v8523
    %v8612 = vpack.c.b16 %v8526, %v8525
    %v8613 = vpack.c.b16 %v8528, %v8527
    %v8614 = vpack.c.b16 %v8530, %v8529
    %v8615 = vpack.c.b16 %v8532, %v8531
    %v8616 = vpack.c.b16 %v8534, %v8533
    %v8617 = vpack.c.b16 %v8536, %v8535
    %v8618 = vpack.c.b16 %v8538, %v8537
    %v8619 = vpack.c.b16 %v8540, %v8539
    %v8620 = vpack.c.b16 %v8542, %v8541
    %v8621 = vpack.c.b16 %v8544, %v8543
    %v8622 = vpack.c.b16 %v8546, %v8545
    %v8623 = vpack.c.b16 %v8548, %v8547
    %v8624 = vpack.c.b16 %v8550, %v8549
    %v8625 = vpack.c.b16 %v8552, %v8551
    %v8626 = vpack.c.b16 %v8554, %v8553
    %v8627 = vpack.c.b16 %v8556, %v8555
    %v8628 = vpack.c.b16 %v8558, %v8557
    %v8629 = vpack.c.b16 %v8560, %v8559
    %v8630 = vpack.c.b16 %v8562, %v8561
    %v8631 = vpack.c.b16 %v8564, %v8563
    %v8632 = vpack.c.b16 %v8566, %v8565
    %v8633 = vpack.c.b16 %v8568, %v8567
    %v8634 = vpack.c.b16 %v8570, %v8569
    %8699 = vmatprep.subr.bf16.mxu0 0
    %8700 = vmatpush1.bf16.msra.mxu0 %v8578
    %8701 = vmatprep.subr.bf16.mxu0 0
    %8702 = vmatpush1.bf16.msra.mxu0 %v8577
    %8703 = vmatprep.subr.bf16.mxu0 0
    %8704 = vmatpush1.bf16.msra.mxu0 %v8576
    %8705 = vmatprep.subr.bf16.mxu0 0
    %8706 = vmatpush1.bf16.msra.mxu0 %v8575
    %8707 = vmatprep.subr.bf16.mxu0 0
    %8708 = vmatpush1.bf16.msra.mxu0 %v8574
    %8709 = vmatprep.subr.bf16.mxu0 0
    %8710 = vmatpush1.bf16.msra.mxu0 %v8573
    %8711 = vmatprep.subr.bf16.mxu0 0
    %8712 = vmatpush1.bf16.msra.mxu0 %v8572
    %8713 = vmatprep.subr.bf16.mxu0 0
    %8714 = vmatpush1.bf16.msra.mxu0 %v8571
    %8715 = vmatprep.subr.bf16.mxu0 0
    %8716 = vmatpush2.bf16.msra.mxu0 %v8586
    %8717 = vmatprep.subr.bf16.mxu0 0
    %8718 = vmatpush2.bf16.msra.mxu0 %v8585
    %8719 = vmatprep.subr.bf16.mxu0 0
    %8720 = vmatpush2.bf16.msra.mxu0 %v8584
    %8721 = vmatprep.subr.bf16.mxu0 0
    %8722 = vmatpush2.bf16.msra.mxu0 %v8583
    %8723 = vmatprep.subr.bf16.mxu0 0
    %8724 = vmatpush2.bf16.msra.mxu0 %v8582
    %8725 = vmatprep.subr.bf16.mxu0 0
    %8726 = vmatpush2.bf16.msra.mxu0 %v8581
    %8727 = vmatprep.subr.bf16.mxu0 0
    %8728 = vmatpush2.bf16.msra.mxu0 %v8580
    %8729 = vmatprep.subr.bf16.mxu0 0
    %8730 = vmatpush2.bf16.msra.mxu0 %v8579
    %8731 = vmatprep.mubr.bf16.mxu0 %v8060
    %8732 = vmatmul.mubr.bf16.gmra.mxu0 %v8059
    %v8733 = vpop.f32.mrf.mxu0
    %v8734 = vadd.f32 0.0, %v8733
    %v8735 = vpop.f32.mrf.mxu0
    %v8736 = vpop.f32.mrf.mxu0
    %v8737 = vadd.f32 0.0, %v8736
    %v8738 = vpop.f32.mrf.mxu0
    %8739 = vmatprep.mubr.bf16.mxu0 %v8068
    %8740 = vmatmul.mubr.bf16.gmra.mxu0 %v8067
    %v8741 = vpop.f32.mrf.mxu0
    %v8742 = vadd.f32 0.0, %v8741
    %v8743 = vpop.f32.mrf.mxu0
    %v8744 = vpop.f32.mrf.mxu0
    %v8745 = vadd.f32 0.0, %v8744
    %v8746 = vpop.f32.mrf.mxu0
    %8747 = vmatprep.mubr.bf16.mxu0 %v8076
    %8748 = vmatmul.mubr.bf16.gmra.mxu0 %v8075
    %v8749 = vpop.f32.mrf.mxu0
    %v8750 = vadd.f32 0.0, %v8749
    %v8751 = vpop.f32.mrf.mxu0
    %v8752 = vpop.f32.mrf.mxu0
    %v8753 = vadd.f32 0.0, %v8752
    %v8754 = vpop.f32.mrf.mxu0
    %8755 = vmatprep.mubr.bf16.mxu0 %v8084
    %8756 = vmatmul.mubr.bf16.gmra.mxu0 %v8083
    %v8757 = vpop.f32.mrf.mxu0
    %v8758 = vadd.f32 0.0, %v8757
    %v8759 = vpop.f32.mrf.mxu0
    %v8760 = vpop.f32.mrf.mxu0
    %v8761 = vadd.f32 0.0, %v8760
    %v8762 = vpop.f32.mrf.mxu0
    %8763 = vmatprep.mubr.bf16.mxu0 %v8092
    %8764 = vmatmul.mubr.bf16.gmra.mxu0 %v8091
    %v8765 = vpop.f32.mrf.mxu0
    %v8766 = vadd.f32 0.0, %v8765
    %v8767 = vpop.f32.mrf.mxu0
    %v8768 = vpop.f32.mrf.mxu0
    %v8769 = vadd.f32 0.0, %v8768
    %v8770 = vpop.f32.mrf.mxu0
    %8771 = vmatprep.mubr.bf16.mxu0 %v8100
    %8772 = vmatmul.mubr.bf16.gmra.mxu0 %v8099
    %v8773 = vpop.f32.mrf.mxu0
    %v8774 = vadd.f32 0.0, %v8773
    %v8775 = vpop.f32.mrf.mxu0
    %v8776 = vpop.f32.mrf.mxu0
    %v8777 = vadd.f32 0.0, %v8776
    %v8778 = vpop.f32.mrf.mxu0
    %8779 = vmatprep.mubr.bf16.mxu0 %v8108
    %8780 = vmatmul.mubr.bf16.gmra.mxu0 %v8107
    %v8781 = vpop.f32.mrf.mxu0
    %v8782 = vadd.f32 0.0, %v8781
    %v8783 = vpop.f32.mrf.mxu0
    %v8784 = vpop.f32.mrf.mxu0
    %v8785 = vadd.f32 0.0, %v8784
    %v8786 = vpop.f32.mrf.mxu0
    %8787 = vmatprep.mubr.bf16.mxu0 %v8116
    %8788 = vmatmul.mubr.bf16.gmra.mxu0 %v8115
    %v8789 = vpop.f32.mrf.mxu0
    %v8790 = vadd.f32 0.0, %v8789
    %v8791 = vpop.f32.mrf.mxu0
    %v8792 = vpop.f32.mrf.mxu0
    %v8793 = vadd.f32 0.0, %v8792
    %v8794 = vpop.f32.mrf.mxu0
    %8795 = vmatprep.mubr.bf16.mxu0 %v8124
    %8796 = vmatmul.mubr.bf16.gmra.mxu0 %v8123
    %v8797 = vpop.f32.mrf.mxu0
    %v8798 = vadd.f32 0.0, %v8797
    %v8799 = vpop.f32.mrf.mxu0
    %v8800 = vpop.f32.mrf.mxu0
    %v8801 = vadd.f32 0.0, %v8800
    %v8802 = vpop.f32.mrf.mxu0
    %8803 = vmatprep.mubr.bf16.mxu0 %v8132
    %8804 = vmatmul.mubr.bf16.gmra.mxu0 %v8131
    %v8805 = vpop.f32.mrf.mxu0
    %v8806 = vadd.f32 0.0, %v8805
    %v8807 = vpop.f32.mrf.mxu0
    %v8808 = vpop.f32.mrf.mxu0
    %v8809 = vadd.f32 0.0, %v8808
    %v8810 = vpop.f32.mrf.mxu0
    %8811 = vmatprep.mubr.bf16.mxu0 %v8140
    %8812 = vmatmul.mubr.bf16.gmra.mxu0 %v8139
    %v8813 = vpop.f32.mrf.mxu0
    %v8814 = vadd.f32 0.0, %v8813
    %v8815 = vpop.f32.mrf.mxu0
    %v8816 = vpop.f32.mrf.mxu0
    %v8817 = vadd.f32 0.0, %v8816
    %v8818 = vpop.f32.mrf.mxu0
    %8819 = vmatprep.mubr.bf16.mxu0 %v8148
    %8820 = vmatmul.mubr.bf16.gmra.mxu0 %v8147
    %v8821 = vpop.f32.mrf.mxu0
    %v8822 = vadd.f32 0.0, %v8821
    %v8823 = vpop.f32.mrf.mxu0
    %v8824 = vpop.f32.mrf.mxu0
    %v8825 = vadd.f32 0.0, %v8824
    %v8826 = vpop.f32.mrf.mxu0
    %8827 = vmatprep.mubr.bf16.mxu0 %v8156
    %8828 = vmatmul.mubr.bf16.gmra.mxu0 %v8155
    %v8829 = vpop.f32.mrf.mxu0
    %v8830 = vadd.f32 0.0, %v8829
    %v8831 = vpop.f32.mrf.mxu0
    %v8832 = vpop.f32.mrf.mxu0
    %v8833 = vadd.f32 0.0, %v8832
    %v8834 = vpop.f32.mrf.mxu0
    %8835 = vmatprep.mubr.bf16.mxu0 %v8164
    %8836 = vmatmul.mubr.bf16.gmra.mxu0 %v8163
    %v8837 = vpop.f32.mrf.mxu0
    %v8838 = vadd.f32 0.0, %v8837
    %v8839 = vpop.f32.mrf.mxu0
    %v8840 = vpop.f32.mrf.mxu0
    %v8841 = vadd.f32 0.0, %v8840
    %v8842 = vpop.f32.mrf.mxu0
    %8843 = vmatprep.mubr.bf16.mxu0 %v8172
    %8844 = vmatmul.mubr.bf16.gmra.mxu0 %v8171
    %v8845 = vpop.f32.mrf.mxu0
    %v8846 = vadd.f32 0.0, %v8845
    %v8847 = vpop.f32.mrf.mxu0
    %v8848 = vpop.f32.mrf.mxu0
    %v8849 = vadd.f32 0.0, %v8848
    %v8850 = vpop.f32.mrf.mxu0
    %8851 = vmatprep.mubr.bf16.mxu0 %v8180
    %8852 = vmatmul.mubr.bf16.gmra.mxu0 %v8179
    %v8853 = vpop.f32.mrf.mxu0
    %v8854 = vadd.f32 0.0, %v8853
    %v8855 = vpop.f32.mrf.mxu0
    %v8856 = vpop.f32.mrf.mxu0
    %v8857 = vadd.f32 0.0, %v8856
    %v8858 = vpop.f32.mrf.mxu0
    %8859 = vdwg.mxu0
    %8860 = vmatprep.subr.bf16.mxu0 0
    %8861 = vmatpush1.bf16.msra.mxu0 %v8594
    %8862 = vmatprep.subr.bf16.mxu0 0
    %8863 = vmatpush1.bf16.msra.mxu0 %v8593
    %8864 = vmatprep.subr.bf16.mxu0 0
    %8865 = vmatpush1.bf16.msra.mxu0 %v8592
    %8866 = vmatprep.subr.bf16.mxu0 0
    %8867 = vmatpush1.bf16.msra.mxu0 %v8591
    %8868 = vmatprep.subr.bf16.mxu0 0
    %8869 = vmatpush1.bf16.msra.mxu0 %v8590
    %8870 = vmatprep.subr.bf16.mxu0 0
    %8871 = vmatpush1.bf16.msra.mxu0 %v8589
    %8872 = vmatprep.subr.bf16.mxu0 0
    %8873 = vmatpush1.bf16.msra.mxu0 %v8588
    %8874 = vmatprep.subr.bf16.mxu0 0
    %8875 = vmatpush1.bf16.msra.mxu0 %v8587
    %8876 = vmatprep.subr.bf16.mxu0 0
    %8877 = vmatpush2.bf16.msra.mxu0 %v8602
    %8878 = vmatprep.subr.bf16.mxu0 0
    %8879 = vmatpush2.bf16.msra.mxu0 %v8601
    %8880 = vmatprep.subr.bf16.mxu0 0
    %8881 = vmatpush2.bf16.msra.mxu0 %v8600
    %8882 = vmatprep.subr.bf16.mxu0 0
    %8883 = vmatpush2.bf16.msra.mxu0 %v8599
    %8884 = vmatprep.subr.bf16.mxu0 0
    %8885 = vmatpush2.bf16.msra.mxu0 %v8598
    %8886 = vmatprep.subr.bf16.mxu0 0
    %8887 = vmatpush2.bf16.msra.mxu0 %v8597
    %8888 = vmatprep.subr.bf16.mxu0 0
    %8889 = vmatpush2.bf16.msra.mxu0 %v8596
    %8890 = vmatprep.subr.bf16.mxu0 0
    %8891 = vmatpush2.bf16.msra.mxu0 %v8595
    %8892 = vmatprep.mubr.bf16.mxu0 %v8062
    %8893 = vmatmul.mubr.bf16.gmra.mxu0 %v8061
    %v8894 = vpop.f32.mrf.mxu0
    %v8895 = vadd.f32 %v8734, %v8894
    %v8896 = vpop.f32.mrf.mxu0
    %v8897 = vpop.f32.mrf.mxu0
    %v8898 = vadd.f32 %v8737, %v8897
    %v8899 = vpop.f32.mrf.mxu0
    %8900 = vmatprep.mubr.bf16.mxu0 %v8070
    %8901 = vmatmul.mubr.bf16.gmra.mxu0 %v8069
    %v8902 = vpop.f32.mrf.mxu0
    %v8903 = vadd.f32 %v8742, %v8902
    %v8904 = vpop.f32.mrf.mxu0
    %v8905 = vpop.f32.mrf.mxu0
    %v8906 = vadd.f32 %v8745, %v8905
    %v8907 = vpop.f32.mrf.mxu0
    %8908 = vmatprep.mubr.bf16.mxu0 %v8078
    %8909 = vmatmul.mubr.bf16.gmra.mxu0 %v8077
    %v8910 = vpop.f32.mrf.mxu0
    %v8911 = vadd.f32 %v8750, %v8910
    %v8912 = vpop.f32.mrf.mxu0
    %v8913 = vpop.f32.mrf.mxu0
    %v8914 = vadd.f32 %v8753, %v8913
    %v8915 = vpop.f32.mrf.mxu0
    %8916 = vmatprep.mubr.bf16.mxu0 %v8086
    %8917 = vmatmul.mubr.bf16.gmra.mxu0 %v8085
    %v8918 = vpop.f32.mrf.mxu0
    %v8919 = vadd.f32 %v8758, %v8918
    %v8920 = vpop.f32.mrf.mxu0
    %v8921 = vpop.f32.mrf.mxu0
    %v8922 = vadd.f32 %v8761, %v8921
    %v8923 = vpop.f32.mrf.mxu0
    %8924 = vmatprep.mubr.bf16.mxu0 %v8094
    %8925 = vmatmul.mubr.bf16.gmra.mxu0 %v8093
    %v8926 = vpop.f32.mrf.mxu0
    %v8927 = vadd.f32 %v8766, %v8926
    %v8928 = vpop.f32.mrf.mxu0
    %v8929 = vpop.f32.mrf.mxu0
    %v8930 = vadd.f32 %v8769, %v8929
    %v8931 = vpop.f32.mrf.mxu0
    %8932 = vmatprep.mubr.bf16.mxu0 %v8102
    %8933 = vmatmul.mubr.bf16.gmra.mxu0 %v8101
    %v8934 = vpop.f32.mrf.mxu0
    %v8935 = vadd.f32 %v8774, %v8934
    %v8936 = vpop.f32.mrf.mxu0
    %v8937 = vpop.f32.mrf.mxu0
    %v8938 = vadd.f32 %v8777, %v8937
    %v8939 = vpop.f32.mrf.mxu0
    %8940 = vmatprep.mubr.bf16.mxu0 %v8110
    %8941 = vmatmul.mubr.bf16.gmra.mxu0 %v8109
    %v8942 = vpop.f32.mrf.mxu0
    %v8943 = vadd.f32 %v8782, %v8942
    %v8944 = vpop.f32.mrf.mxu0
    %v8945 = vpop.f32.mrf.mxu0
    %v8946 = vadd.f32 %v8785, %v8945
    %v8947 = vpop.f32.mrf.mxu0
    %8948 = vmatprep.mubr.bf16.mxu0 %v8118
    %8949 = vmatmul.mubr.bf16.gmra.mxu0 %v8117
    %v8950 = vpop.f32.mrf.mxu0
    %v8951 = vadd.f32 %v8790, %v8950
    %v8952 = vpop.f32.mrf.mxu0
    %v8953 = vpop.f32.mrf.mxu0
    %v8954 = vadd.f32 %v8793, %v8953
    %v8955 = vpop.f32.mrf.mxu0
    %8956 = vmatprep.mubr.bf16.mxu0 %v8126
    %8957 = vmatmul.mubr.bf16.gmra.mxu0 %v8125
    %v8958 = vpop.f32.mrf.mxu0
    %v8959 = vadd.f32 %v8798, %v8958
    %v8960 = vpop.f32.mrf.mxu0
    %v8961 = vpop.f32.mrf.mxu0
    %v8962 = vadd.f32 %v8801, %v8961
    %v8963 = vpop.f32.mrf.mxu0
    %8964 = vmatprep.mubr.bf16.mxu0 %v8134
    %8965 = vmatmul.mubr.bf16.gmra.mxu0 %v8133
    %v8966 = vpop.f32.mrf.mxu0
    %v8967 = vadd.f32 %v8806, %v8966
    %v8968 = vpop.f32.mrf.mxu0
    %v8969 = vpop.f32.mrf.mxu0
    %v8970 = vadd.f32 %v8809, %v8969
    %v8971 = vpop.f32.mrf.mxu0
    %8972 = vmatprep.mubr.bf16.mxu0 %v8142
    %8973 = vmatmul.mubr.bf16.gmra.mxu0 %v8141
    %v8974 = vpop.f32.mrf.mxu0
    %v8975 = vadd.f32 %v8814, %v8974
    %v8976 = vpop.f32.mrf.mxu0
    %v8977 = vpop.f32.mrf.mxu0
    %v8978 = vadd.f32 %v8817, %v8977
    %v8979 = vpop.f32.mrf.mxu0
    %8980 = vmatprep.mubr.bf16.mxu0 %v8150
    %8981 = vmatmul.mubr.bf16.gmra.mxu0 %v8149
    %v8982 = vpop.f32.mrf.mxu0
    %v8983 = vadd.f32 %v8822, %v8982
    %v8984 = vpop.f32.mrf.mxu0
    %v8985 = vpop.f32.mrf.mxu0
    %v8986 = vadd.f32 %v8825, %v8985
    %v8987 = vpop.f32.mrf.mxu0
    %8988 = vmatprep.mubr.bf16.mxu0 %v8158
    %8989 = vmatmul.mubr.bf16.gmra.mxu0 %v8157
    %v8990 = vpop.f32.mrf.mxu0
    %v8991 = vadd.f32 %v8830, %v8990
    %v8992 = vpop.f32.mrf.mxu0
    %v8993 = vpop.f32.mrf.mxu0
    %v8994 = vadd.f32 %v8833, %v8993
    %v8995 = vpop.f32.mrf.mxu0
    %8996 = vmatprep.mubr.bf16.mxu0 %v8166
    %8997 = vmatmul.mubr.bf16.gmra.mxu0 %v8165
    %v8998 = vpop.f32.mrf.mxu0
    %v8999 = vadd.f32 %v8838, %v8998
    %v9000 = vpop.f32.mrf.mxu0
    %v9001 = vpop.f32.mrf.mxu0
    %v9002 = vadd.f32 %v8841, %v9001
    %v9003 = vpop.f32.mrf.mxu0
    %9004 = vmatprep.mubr.bf16.mxu0 %v8174
    %9005 = vmatmul.mubr.bf16.gmra.mxu0 %v8173
    %v9006 = vpop.f32.mrf.mxu0
    %v9007 = vadd.f32 %v8846, %v9006
    %v9008 = vpop.f32.mrf.mxu0
    %v9009 = vpop.f32.mrf.mxu0
    %v9010 = vadd.f32 %v8849, %v9009
    %v9011 = vpop.f32.mrf.mxu0
    %9012 = vmatprep.mubr.bf16.mxu0 %v8182
    %9013 = vmatmul.mubr.bf16.gmra.mxu0 %v8181
    %v9014 = vpop.f32.mrf.mxu0
    %v9015 = vadd.f32 %v8854, %v9014
    %v9016 = vpop.f32.mrf.mxu0
    %v9017 = vpop.f32.mrf.mxu0
    %v9018 = vadd.f32 %v8857, %v9017
    %v9019 = vpop.f32.mrf.mxu0
    %9020 = vdwg.mxu0
    %9021 = vmatprep.subr.bf16.mxu0 0
    %9022 = vmatpush1.bf16.msra.mxu0 %v8610
    %9023 = vmatprep.subr.bf16.mxu0 0
    %9024 = vmatpush1.bf16.msra.mxu0 %v8609
    %9025 = vmatprep.subr.bf16.mxu0 0
    %9026 = vmatpush1.bf16.msra.mxu0 %v8608
    %9027 = vmatprep.subr.bf16.mxu0 0
    %9028 = vmatpush1.bf16.msra.mxu0 %v8607
    %9029 = vmatprep.subr.bf16.mxu0 0
    %9030 = vmatpush1.bf16.msra.mxu0 %v8606
    %9031 = vmatprep.subr.bf16.mxu0 0
    %9032 = vmatpush1.bf16.msra.mxu0 %v8605
    %9033 = vmatprep.subr.bf16.mxu0 0
    %9034 = vmatpush1.bf16.msra.mxu0 %v8604
    %9035 = vmatprep.subr.bf16.mxu0 0
    %9036 = vmatpush1.bf16.msra.mxu0 %v8603
    %9037 = vmatprep.subr.bf16.mxu0 0
    %9038 = vmatpush2.bf16.msra.mxu0 %v8618
    %9039 = vmatprep.subr.bf16.mxu0 0
    %9040 = vmatpush2.bf16.msra.mxu0 %v8617
    %9041 = vmatprep.subr.bf16.mxu0 0
    %9042 = vmatpush2.bf16.msra.mxu0 %v8616
    %9043 = vmatprep.subr.bf16.mxu0 0
    %9044 = vmatpush2.bf16.msra.mxu0 %v8615
    %9045 = vmatprep.subr.bf16.mxu0 0
    %9046 = vmatpush2.bf16.msra.mxu0 %v8614
    %9047 = vmatprep.subr.bf16.mxu0 0
    %9048 = vmatpush2.bf16.msra.mxu0 %v8613
    %9049 = vmatprep.subr.bf16.mxu0 0
    %9050 = vmatpush2.bf16.msra.mxu0 %v8612
    %9051 = vmatprep.subr.bf16.mxu0 0
    %9052 = vmatpush2.bf16.msra.mxu0 %v8611
    %9053 = vmatprep.mubr.bf16.mxu0 %v8064
    %9054 = vmatmul.mubr.bf16.gmra.mxu0 %v8063
    %v9055 = vpop.f32.mrf.mxu0
    %v9056 = vadd.f32 %v8895, %v9055
    %v9057 = vpop.f32.mrf.mxu0
    %v9058 = vpop.f32.mrf.mxu0
    %v9059 = vadd.f32 %v8898, %v9058
    %v9060 = vpop.f32.mrf.mxu0
    %9061 = vmatprep.mubr.bf16.mxu0 %v8072
    %9062 = vmatmul.mubr.bf16.gmra.mxu0 %v8071
    %v9063 = vpop.f32.mrf.mxu0
    %v9064 = vadd.f32 %v8903, %v9063
    %v9065 = vpop.f32.mrf.mxu0
    %v9066 = vpop.f32.mrf.mxu0
    %v9067 = vadd.f32 %v8906, %v9066
    %v9068 = vpop.f32.mrf.mxu0
    %9069 = vmatprep.mubr.bf16.mxu0 %v8080
    %9070 = vmatmul.mubr.bf16.gmra.mxu0 %v8079
    %v9071 = vpop.f32.mrf.mxu0
    %v9072 = vadd.f32 %v8911, %v9071
    %v9073 = vpop.f32.mrf.mxu0
    %v9074 = vpop.f32.mrf.mxu0
    %v9075 = vadd.f32 %v8914, %v9074
    %v9076 = vpop.f32.mrf.mxu0
    %9077 = vmatprep.mubr.bf16.mxu0 %v8088
    %9078 = vmatmul.mubr.bf16.gmra.mxu0 %v8087
    %v9079 = vpop.f32.mrf.mxu0
    %v9080 = vadd.f32 %v8919, %v9079
    %v9081 = vpop.f32.mrf.mxu0
    %v9082 = vpop.f32.mrf.mxu0
    %v9083 = vadd.f32 %v8922, %v9082
    %v9084 = vpop.f32.mrf.mxu0
    %9085 = vmatprep.mubr.bf16.mxu0 %v8096
    %9086 = vmatmul.mubr.bf16.gmra.mxu0 %v8095
    %v9087 = vpop.f32.mrf.mxu0
    %v9088 = vadd.f32 %v8927, %v9087
    %v9089 = vpop.f32.mrf.mxu0
    %v9090 = vpop.f32.mrf.mxu0
    %v9091 = vadd.f32 %v8930, %v9090
    %v9092 = vpop.f32.mrf.mxu0
    %9093 = vmatprep.mubr.bf16.mxu0 %v8104
    %9094 = vmatmul.mubr.bf16.gmra.mxu0 %v8103
    %v9095 = vpop.f32.mrf.mxu0
    %v9096 = vadd.f32 %v8935, %v9095
    %v9097 = vpop.f32.mrf.mxu0
    %v9098 = vpop.f32.mrf.mxu0
    %v9099 = vadd.f32 %v8938, %v9098
    %v9100 = vpop.f32.mrf.mxu0
    %9101 = vmatprep.mubr.bf16.mxu0 %v8112
    %9102 = vmatmul.mubr.bf16.gmra.mxu0 %v8111
    %v9103 = vpop.f32.mrf.mxu0
    %v9104 = vadd.f32 %v8943, %v9103
    %v9105 = vpop.f32.mrf.mxu0
    %v9106 = vpop.f32.mrf.mxu0
    %v9107 = vadd.f32 %v8946, %v9106
    %v9108 = vpop.f32.mrf.mxu0
    %9109 = vmatprep.mubr.bf16.mxu0 %v8120
    %9110 = vmatmul.mubr.bf16.gmra.mxu0 %v8119
    %v9111 = vpop.f32.mrf.mxu0
    %v9112 = vadd.f32 %v8951, %v9111
    %v9113 = vpop.f32.mrf.mxu0
    %v9114 = vpop.f32.mrf.mxu0
    %v9115 = vadd.f32 %v8954, %v9114
    %v9116 = vpop.f32.mrf.mxu0
    %9117 = vmatprep.mubr.bf16.mxu0 %v8128
    %9118 = vmatmul.mubr.bf16.gmra.mxu0 %v8127
    %v9119 = vpop.f32.mrf.mxu0
    %v9120 = vadd.f32 %v8959, %v9119
    %v9121 = vpop.f32.mrf.mxu0
    %v9122 = vpop.f32.mrf.mxu0
    %v9123 = vadd.f32 %v8962, %v9122
    %v9124 = vpop.f32.mrf.mxu0
    %9125 = vmatprep.mubr.bf16.mxu0 %v8136
    %9126 = vmatmul.mubr.bf16.gmra.mxu0 %v8135
    %v9127 = vpop.f32.mrf.mxu0
    %v9128 = vadd.f32 %v8967, %v9127
    %v9129 = vpop.f32.mrf.mxu0
    %v9130 = vpop.f32.mrf.mxu0
    %v9131 = vadd.f32 %v8970, %v9130
    %v9132 = vpop.f32.mrf.mxu0
    %9133 = vmatprep.mubr.bf16.mxu0 %v8144
    %9134 = vmatmul.mubr.bf16.gmra.mxu0 %v8143
    %v9135 = vpop.f32.mrf.mxu0
    %v9136 = vadd.f32 %v8975, %v9135
    %v9137 = vpop.f32.mrf.mxu0
    %v9138 = vpop.f32.mrf.mxu0
    %v9139 = vadd.f32 %v8978, %v9138
    %v9140 = vpop.f32.mrf.mxu0
    %9141 = vmatprep.mubr.bf16.mxu0 %v8152
    %9142 = vmatmul.mubr.bf16.gmra.mxu0 %v8151
    %v9143 = vpop.f32.mrf.mxu0
    %v9144 = vadd.f32 %v8983, %v9143
    %v9145 = vpop.f32.mrf.mxu0
    %v9146 = vpop.f32.mrf.mxu0
    %v9147 = vadd.f32 %v8986, %v9146
    %v9148 = vpop.f32.mrf.mxu0
    %9149 = vmatprep.mubr.bf16.mxu0 %v8160
    %9150 = vmatmul.mubr.bf16.gmra.mxu0 %v8159
    %v9151 = vpop.f32.mrf.mxu0
    %v9152 = vadd.f32 %v8991, %v9151
    %v9153 = vpop.f32.mrf.mxu0
    %v9154 = vpop.f32.mrf.mxu0
    %v9155 = vadd.f32 %v8994, %v9154
    %v9156 = vpop.f32.mrf.mxu0
    %9157 = vmatprep.mubr.bf16.mxu0 %v8168
    %9158 = vmatmul.mubr.bf16.gmra.mxu0 %v8167
    %v9159 = vpop.f32.mrf.mxu0
    %v9160 = vadd.f32 %v8999, %v9159
    %v9161 = vpop.f32.mrf.mxu0
    %v9162 = vpop.f32.mrf.mxu0
    %v9163 = vadd.f32 %v9002, %v9162
    %v9164 = vpop.f32.mrf.mxu0
    %9165 = vmatprep.mubr.bf16.mxu0 %v8176
    %9166 = vmatmul.mubr.bf16.gmra.mxu0 %v8175
    %v9167 = vpop.f32.mrf.mxu0
    %v9168 = vadd.f32 %v9007, %v9167
    %v9169 = vpop.f32.mrf.mxu0
    %v9170 = vpop.f32.mrf.mxu0
    %v9171 = vadd.f32 %v9010, %v9170
    %v9172 = vpop.f32.mrf.mxu0
    %9173 = vmatprep.mubr.bf16.mxu0 %v8184
    %9174 = vmatmul.mubr.bf16.gmra.mxu0 %v8183
    %v9175 = vpop.f32.mrf.mxu0
    %v9176 = vadd.f32 %v9015, %v9175
    %v9177 = vpop.f32.mrf.mxu0
    %v9178 = vpop.f32.mrf.mxu0
    %v9179 = vadd.f32 %v9018, %v9178
    %v9180 = vpop.f32.mrf.mxu0
    %9181 = vdwg.mxu0
    %9182 = vmatprep.subr.bf16.mxu0 0
    %9183 = vmatpush1.bf16.msra.mxu0 %v8626
    %9184 = vmatprep.subr.bf16.mxu0 0
    %9185 = vmatpush1.bf16.msra.mxu0 %v8625
    %9186 = vmatprep.subr.bf16.mxu0 0
    %9187 = vmatpush1.bf16.msra.mxu0 %v8624
    %9188 = vmatprep.subr.bf16.mxu0 0
    %9189 = vmatpush1.bf16.msra.mxu0 %v8623
    %9190 = vmatprep.subr.bf16.mxu0 0
    %9191 = vmatpush1.bf16.msra.mxu0 %v8622
    %9192 = vmatprep.subr.bf16.mxu0 0
    %9193 = vmatpush1.bf16.msra.mxu0 %v8621
    %9194 = vmatprep.subr.bf16.mxu0 0
    %9195 = vmatpush1.bf16.msra.mxu0 %v8620
    %9196 = vmatprep.subr.bf16.mxu0 0
    %9197 = vmatpush1.bf16.msra.mxu0 %v8619
    %9198 = vmatprep.subr.bf16.mxu0 0
    %9199 = vmatpush2.bf16.msra.mxu0 %v8634
    %9200 = vmatprep.subr.bf16.mxu0 0
    %9201 = vmatpush2.bf16.msra.mxu0 %v8633
    %9202 = vmatprep.subr.bf16.mxu0 0
    %9203 = vmatpush2.bf16.msra.mxu0 %v8632
    %9204 = vmatprep.subr.bf16.mxu0 0
    %9205 = vmatpush2.bf16.msra.mxu0 %v8631
    %9206 = vmatprep.subr.bf16.mxu0 0
    %9207 = vmatpush2.bf16.msra.mxu0 %v8630
    %9208 = vmatprep.subr.bf16.mxu0 0
    %9209 = vmatpush2.bf16.msra.mxu0 %v8629
    %9210 = vmatprep.subr.bf16.mxu0 0
    %9211 = vmatpush2.bf16.msra.mxu0 %v8628
    %9212 = vmatprep.subr.bf16.mxu0 0
    %9213 = vmatpush2.bf16.msra.mxu0 %v8627
    %9214 = vmatprep.mubr.bf16.mxu0 %v8066
    %9215 = vmatmul.mubr.bf16.gmra.mxu0 %v8065
    %v9216 = vpop.f32.mrf.mxu0
    %v9217 = vadd.f32 %v9056, %v9216
    %v9218 = vpop.f32.mrf.mxu0
    %v9219 = vpop.f32.mrf.mxu0
    %v9220 = vadd.f32 %v9059, %v9219
    %v9221 = vpop.f32.mrf.mxu0
    %9222 = vmatprep.mubr.bf16.mxu0 %v8074
    %9223 = vmatmul.mubr.bf16.gmra.mxu0 %v8073
    %v9224 = vpop.f32.mrf.mxu0
    %v9225 = vadd.f32 %v9064, %v9224
    %v9226 = vpop.f32.mrf.mxu0
    %v9227 = vpop.f32.mrf.mxu0
    %v9228 = vadd.f32 %v9067, %v9227
    %v9229 = vpop.f32.mrf.mxu0
    %9230 = vmatprep.mubr.bf16.mxu0 %v8082
    %9231 = vmatmul.mubr.bf16.gmra.mxu0 %v8081
    %v9232 = vpop.f32.mrf.mxu0
    %v9233 = vadd.f32 %v9072, %v9232
    %v9234 = vpop.f32.mrf.mxu0
    %v9235 = vpop.f32.mrf.mxu0
    %v9236 = vadd.f32 %v9075, %v9235
    %v9237 = vpop.f32.mrf.mxu0
    %9238 = vmatprep.mubr.bf16.mxu0 %v8090
    %9239 = vmatmul.mubr.bf16.gmra.mxu0 %v8089
    %v9240 = vpop.f32.mrf.mxu0
    %v9241 = vadd.f32 %v9080, %v9240
    %v9242 = vpop.f32.mrf.mxu0
    %v9243 = vpop.f32.mrf.mxu0
    %v9244 = vadd.f32 %v9083, %v9243
    %v9245 = vpop.f32.mrf.mxu0
    %9246 = vmatprep.mubr.bf16.mxu0 %v8098
    %9247 = vmatmul.mubr.bf16.gmra.mxu0 %v8097
    %v9248 = vpop.f32.mrf.mxu0
    %v9249 = vadd.f32 %v9088, %v9248
    %v9250 = vpop.f32.mrf.mxu0
    %v9251 = vpop.f32.mrf.mxu0
    %v9252 = vadd.f32 %v9091, %v9251
    %v9253 = vpop.f32.mrf.mxu0
    %9254 = vmatprep.mubr.bf16.mxu0 %v8106
    %9255 = vmatmul.mubr.bf16.gmra.mxu0 %v8105
    %v9256 = vpop.f32.mrf.mxu0
    %v9257 = vadd.f32 %v9096, %v9256
    %v9258 = vpop.f32.mrf.mxu0
    %v9259 = vpop.f32.mrf.mxu0
    %v9260 = vadd.f32 %v9099, %v9259
    %v9261 = vpop.f32.mrf.mxu0
    %9262 = vmatprep.mubr.bf16.mxu0 %v8114
    %9263 = vmatmul.mubr.bf16.gmra.mxu0 %v8113
    %v9264 = vpop.f32.mrf.mxu0
    %v9265 = vadd.f32 %v9104, %v9264
    %v9266 = vpop.f32.mrf.mxu0
    %v9267 = vpop.f32.mrf.mxu0
    %v9268 = vadd.f32 %v9107, %v9267
    %v9269 = vpop.f32.mrf.mxu0
    %9270 = vmatprep.mubr.bf16.mxu0 %v8122
    %9271 = vmatmul.mubr.bf16.gmra.mxu0 %v8121
    %v9272 = vpop.f32.mrf.mxu0
    %v9273 = vadd.f32 %v9112, %v9272
    %v9274 = vpop.f32.mrf.mxu0
    %v9275 = vpop.f32.mrf.mxu0
    %v9276 = vadd.f32 %v9115, %v9275
    %v9277 = vpop.f32.mrf.mxu0
    %9278 = vmatprep.mubr.bf16.mxu0 %v8130
    %9279 = vmatmul.mubr.bf16.gmra.mxu0 %v8129
    %v9280 = vpop.f32.mrf.mxu0
    %v9281 = vadd.f32 %v9120, %v9280
    %v9282 = vpop.f32.mrf.mxu0
    %v9283 = vpop.f32.mrf.mxu0
    %v9284 = vadd.f32 %v9123, %v9283
    %v9285 = vpop.f32.mrf.mxu0
    %9286 = vmatprep.mubr.bf16.mxu0 %v8138
    %9287 = vmatmul.mubr.bf16.gmra.mxu0 %v8137
    %v9288 = vpop.f32.mrf.mxu0
    %v9289 = vadd.f32 %v9128, %v9288
    %v9290 = vpop.f32.mrf.mxu0
    %v9291 = vpop.f32.mrf.mxu0
    %v9292 = vadd.f32 %v9131, %v9291
    %v9293 = vpop.f32.mrf.mxu0
    %9294 = vmatprep.mubr.bf16.mxu0 %v8146
    %9295 = vmatmul.mubr.bf16.gmra.mxu0 %v8145
    %v9296 = vpop.f32.mrf.mxu0
    %v9297 = vadd.f32 %v9136, %v9296
    %v9298 = vpop.f32.mrf.mxu0
    %v9299 = vpop.f32.mrf.mxu0
    %v9300 = vadd.f32 %v9139, %v9299
    %v9301 = vpop.f32.mrf.mxu0
    %9302 = vmatprep.mubr.bf16.mxu0 %v8154
    %9303 = vmatmul.mubr.bf16.gmra.mxu0 %v8153
    %v9304 = vpop.f32.mrf.mxu0
    %v9305 = vadd.f32 %v9144, %v9304
    %v9306 = vpop.f32.mrf.mxu0
    %v9307 = vpop.f32.mrf.mxu0
    %v9308 = vadd.f32 %v9147, %v9307
    %v9309 = vpop.f32.mrf.mxu0
    %9310 = vmatprep.mubr.bf16.mxu0 %v8162
    %9311 = vmatmul.mubr.bf16.gmra.mxu0 %v8161
    %v9312 = vpop.f32.mrf.mxu0
    %v9313 = vadd.f32 %v9152, %v9312
    %v9314 = vpop.f32.mrf.mxu0
    %v9315 = vpop.f32.mrf.mxu0
    %v9316 = vadd.f32 %v9155, %v9315
    %v9317 = vpop.f32.mrf.mxu0
    %9318 = vmatprep.mubr.bf16.mxu0 %v8170
    %9319 = vmatmul.mubr.bf16.gmra.mxu0 %v8169
    %v9320 = vpop.f32.mrf.mxu0
    %v9321 = vadd.f32 %v9160, %v9320
    %v9322 = vpop.f32.mrf.mxu0
    %v9323 = vpop.f32.mrf.mxu0
    %v9324 = vadd.f32 %v9163, %v9323
    %v9325 = vpop.f32.mrf.mxu0
    %9326 = vmatprep.mubr.bf16.mxu0 %v8178
    %9327 = vmatmul.mubr.bf16.gmra.mxu0 %v8177
    %v9328 = vpop.f32.mrf.mxu0
    %v9329 = vadd.f32 %v9168, %v9328
    %v9330 = vpop.f32.mrf.mxu0
    %v9331 = vpop.f32.mrf.mxu0
    %v9332 = vadd.f32 %v9171, %v9331
    %v9333 = vpop.f32.mrf.mxu0
    %9334 = vmatprep.mubr.bf16.mxu0 %v8186
    %9335 = vmatmul.mubr.bf16.gmra.mxu0 %v8185
    %v9336 = vpop.f32.mrf.mxu0
    %v9337 = vadd.f32 %v9176, %v9336
    %v9338 = vpop.f32.mrf.mxu0
    %v9339 = vpop.f32.mrf.mxu0
    %v9340 = vadd.f32 %v9179, %v9339
    %v9341 = vpop.f32.mrf.mxu0
    %9342 = vdwg.mxu0
    %v9343 = vadd.f32 %v6653, %v9217
    %v9344 = vadd.f32 %v6656, %v9220
    %v9345 = vadd.f32 %v6661, %v9225
    %v9346 = vadd.f32 %v6664, %v9228
    %v9347 = vadd.f32 %v6669, %v9233
    %v9348 = vadd.f32 %v6672, %v9236
    %v9349 = vadd.f32 %v6677, %v9241
    %v9350 = vadd.f32 %v6680, %v9244
    %v9351 = vadd.f32 %v6685, %v9249
    %v9352 = vadd.f32 %v6688, %v9252
    %v9353 = vadd.f32 %v6693, %v9257
    %v9354 = vadd.f32 %v6696, %v9260
    %v9355 = vadd.f32 %v6701, %v9265
    %v9356 = vadd.f32 %v6704, %v9268
    %v9357 = vadd.f32 %v6709, %v9273
    %v9358 = vadd.f32 %v6712, %v9276
    %v9359 = vadd.f32 %v6717, %v9281
    %v9360 = vadd.f32 %v6720, %v9284
    %v9361 = vadd.f32 %v6725, %v9289
    %v9362 = vadd.f32 %v6728, %v9292
    %v9363 = vadd.f32 %v6733, %v9297
    %v9364 = vadd.f32 %v6736, %v9300
    %v9365 = vadd.f32 %v6741, %v9305
    %v9366 = vadd.f32 %v6744, %v9308
    %v9367 = vadd.f32 %v6749, %v9313
    %v9368 = vadd.f32 %v6752, %v9316
    %v9369 = vadd.f32 %v6757, %v9321
    %v9370 = vadd.f32 %v6760, %v9324
    %v9371 = vadd.f32 %v6765, %v9329
    %v9372 = vadd.f32 %v6768, %v9332
    %v9373 = vadd.f32 %v6773, %v9337
    %v9374 = vadd.f32 %v6776, %v9340
    %9375 = vst [vmem:[#allocation5] sm:$0xff] %v9343
    %9376 = vst [vmem:[#allocation5 + $0x8] sm:$0xff] %v9344
    %9377 = vst [vmem:[#allocation5 + $0x10] sm:$0xff] %v9345
    %9378 = vst [vmem:[#allocation5 + $0x18] sm:$0xff] %v9346
    %9379 = vst [vmem:[#allocation5 + $0x20] sm:$0xff] %v9347
    %9380 = vst [vmem:[#allocation5 + $0x28] sm:$0xff] %v9348
    %9381 = vst [vmem:[#allocation5 + $0x30] sm:$0xff] %v9349
    %9382 = vst [vmem:[#allocation5 + $0x38] sm:$0xff] %v9350
    %9383 = vst [vmem:[#allocation5 + $0x40] sm:$0xff] %v9351
    %9384 = vst [vmem:[#allocation5 + $0x48] sm:$0xff] %v9352
    %9385 = vst [vmem:[#allocation5 + $0x50] sm:$0xff] %v9353
    %9386 = vst [vmem:[#allocation5 + $0x58] sm:$0xff] %v9354
    %9387 = vst [vmem:[#allocation5 + $0x60] sm:$0xff] %v9355
    %9388 = vst [vmem:[#allocation5 + $0x68] sm:$0xff] %v9356
    %9389 = vst [vmem:[#allocation5 + $0x70] sm:$0xff] %v9357
    %9390 = vst [vmem:[#allocation5 + $0x78] sm:$0xff] %v9358
    %9391 = vst [vmem:[#allocation5 + $0x80] sm:$0xff] %v9359
    %9392 = vst [vmem:[#allocation5 + $0x88] sm:$0xff] %v9360
    %9393 = vst [vmem:[#allocation5 + $0x90] sm:$0xff] %v9361
    %9394 = vst [vmem:[#allocation5 + $0x98] sm:$0xff] %v9362
    %9395 = vst [vmem:[#allocation5 + $0xa0] sm:$0xff] %v9363
    %9396 = vst [vmem:[#allocation5 + $0xa8] sm:$0xff] %v9364
    %9397 = vst [vmem:[#allocation5 + $0xb0] sm:$0xff] %v9365
    %9398 = vst [vmem:[#allocation5 + $0xb8] sm:$0xff] %v9366
    %9399 = vst [vmem:[#allocation5 + $0xc0] sm:$0xff] %v9367
    %9400 = vst [vmem:[#allocation5 + $0xc8] sm:$0xff] %v9368
    %9401 = vst [vmem:[#allocation5 + $0xd0] sm:$0xff] %v9369
    %9402 = vst [vmem:[#allocation5 + $0xd8] sm:$0xff] %v9370
    %9403 = vst [vmem:[#allocation5 + $0xe0] sm:$0xff] %v9371
    %9404 = vst [vmem:[#allocation5 + $0xe8] sm:$0xff] %v9372
    %9405 = vst [vmem:[#allocation5 + $0xf0] sm:$0xff] %v9373
    %9406 = vst [vmem:[#allocation5 + $0xf8] sm:$0xff] %v9374
    // Predicated region
    $region18: #{tpu_custom_call.1} parent=1 // pred_check
      _
    $region19: #{tpu_custom_call.1} parent=1 // pred_check_branch
      %9408 = sbr.rel (0) target = $region21
    $region20: #{tpu_custom_call.1} parent=1 // pred_region
      %s9410 = ssub.s32 4096, 4096
      %9411 = vsyncadd [#allocation4], %s9410
      %s9412 = sshll.u32 [#allocation5], 4
      %s9413 = int_to_ptr.vmem [resolvable:$true] %s9412
      %9418 = dma.vmem_to_hbm [thread:$0]  %s9413, 4096, %s3, [#allocation4], 128, 128, 8
    $region21: #{tpu_custom_call.1} parent=1 // pred_fallthru
      _
    // Predicated region
    $region22: #{tpu_custom_call.1} parent=1 // pred_check
      _
    $region23: #{tpu_custom_call.1} parent=1 // pred_check_branch
      %9420 = sbr.rel (0) target = $region25
    $region24: #{tpu_custom_call.1} parent=1 // pred_region
      %9421 = dma.done [#allocation4], 4096
    $region25: #{tpu_custom_call.1} parent=1 // pred_fallthru
      _
    %9422 = vsyncpa [#allocation3], 1
    %9423 = vsyncpa [#allocation4], 1

</llo_original>
